<compile_context>
chip_gen: v5e
topology: v5e:2x2
jax: 0.10.0
libtpu: 0.0.40
codegen_flags: <defaults>
</compile_context>

<pallas_src>
import jax
import jax.numpy as jnp
from jax.experimental import pallas as pl
from jax.experimental.pallas import tpu as pltpu

KH = KW = 5
H = W = 28
H_PAD = W_PAD = 32
C_OUT = 32
PH = PW = 14
NUM_CLASSES = 10
FEAT = PH * PW * C_OUT            # 6272
F_LANES = W * C_OUT               # 896 = 7 * 128 (lane-dense feature axis)
BATCH_BLOCK = 16                  # max images per grid step (multiple of 8)


# ----------------------- fused Pallas kernel ------------------------------ #
def fused_cnn_kernel(x_ref, m_ref, cb_ref, wf_ref, fb_ref, o_ref):
    # x_ref : (32, B, 32)    zero-padded images, layout (h_pad, image, w_pad)
    # m_ref : (5, 32, 896)   banded conv weights: M[kh][wp, w*32+c]
    # cb_ref: (1, 896)       conv bias tiled over w (bc[c] at lane w*32+c)
    # wf_ref: (14, 10, 896)  fc weight per pooled row; zero at odd w-blocks
    # fb_ref: (1, 10)        fc bias
    # o_ref : (B, 10)        logits
    bsz = x_ref.shape[1]
    x = x_ref[...]                                            # (32, B, 32)

    # conv1 as 5 MXU matmuls, one per kernel row kh; LHS rows = (h, image) pairs.
    acc = None
    for kh in range(KH):
        lhs = x[kh:kh + H].reshape(H * bsz, W_PAD)            # (28*B, 32), tile-aligned fold
        part = jnp.dot(lhs, m_ref[kh], preferred_element_type=jnp.float32)
        acc = part if acc is None else acc + part             # (28*B, 896)

    acc = jnp.maximum(acc + cb_ref[...], 0.0)                 # bias + ReLU

    # 2x2 max-pool, stride 2.
    a4 = acc.reshape(PH, 2, bsz, F_LANES)                     # rows were h*B + b (major split)
    hmax = jnp.maximum(a4[:, 0], a4[:, 1])                    # (14, B, 896): pool over h
    shifted = jnp.concatenate(                                # shifted[f] = hmax[f + 32]
        [hmax[:, :, C_OUT:], hmax[:, :, :C_OUT]], axis=2)
    pooled = jnp.maximum(hmax, shifted)                       # valid at even 32-lane blocks

    # fc1: batched over the 14 pooled rows, contract the lane-dense 896 axis.
    r = jax.lax.dot_general(
        pooled, wf_ref[...],
        dimension_numbers=(((2,), (2,)), ((0,), (0,))),
        preferred_element_type=jnp.float32)                   # (14, B, 10)
    o_ref[...] = jnp.sum(r, axis=0) + fb_ref[...]             # (B, 10)


# ----------------------- wrapper ------------------------------------------ #
@jax.jit
def simple_convolutional_net(x, wc, bc, wf, bf):
    """Forward pass.

    x : (N, 1, 28, 28) f32 NCHW
    wc: (32, 1, 5, 5)  conv1.weight (OIHW)
    bc: (32,)          conv1.bias
    wf: (10, 6272)     fc1.weight (PyTorch layout, columns = c*196 + i*14 + j)
    bf: (10,)          fc1.bias
    returns logits (N, 10)
    """
    n = x.shape[0]
    # Block size: multiple of 8 (sublane alignment), capped at BATCH_BLOCK; small batches
    # shrink the block so we don't pad/compute 16 images for a 2-image call.
    bsz = BATCH_BLOCK if n >= BATCH_BLOCK else ((n + 7) // 8) * 8
    n_pad = ((n + bsz - 1) // bsz) * bsz

    # --- inputs: zero-pad spatially and over batch, lay out as (h_pad, image, w_pad)
    xpad = jnp.pad(x[:, 0].astype(jnp.float32),
                   ((0, n_pad - n), (2, 2), (2, 2)))          # (n_pad, 32, 32)
    x_t = jnp.transpose(xpad, (1, 0, 2))                      # (32, n_pad, 32)

    # --- banded conv weight: M[kh, wp, w*32 + c] = wc[c, 0, kh, wp - w] (0 <= wp-w < 5)
    wct = jnp.transpose(wc[:, 0].astype(jnp.float32), (1, 2, 0))   # (kh, kw, c)
    m4 = jnp.zeros((KH, W_PAD, W, C_OUT), jnp.float32)
    w_idx = jnp.arange(W)
    for kw in range(KW):
        m4 = m4.at[:, w_idx + kw, w_idx, :].set(wct[:, kw, :][:, None, :])
    m_band = m4.reshape(KH, W_PAD, F_LANES)                   # (5, 32, 896)

    cb = jnp.tile(bc.astype(jnp.float32), W).reshape(1, F_LANES)   # (1, 896)

    # --- FC weight -> (14, 10, 896): row i, lane f = 2j*32 + c holds wf[o, c*196+i*14+j];
    #     odd w-blocks are zero (they correspond to garbage lanes after the shift-max).
    wf4 = wf.astype(jnp.float32).reshape(NUM_CLASSES, C_OUT, PH, PW)   # (o, c, i, j)
    wf5 = jnp.transpose(wf4, (2, 0, 3, 1))                             # (i, o, j, c)
    wfk = (jnp.zeros((PH, NUM_CLASSES, W, C_OUT), jnp.float32)
           .at[:, :, 0::2, :].set(wf5)
           .reshape(PH, NUM_CLASSES, F_LANES))                         # (14, 10, 896)
    fb = bf.astype(jnp.float32).reshape(1, NUM_CLASSES)

    logits = pl.pallas_call(
        fused_cnn_kernel,
        out_shape=jax.ShapeDtypeStruct((n_pad, NUM_CLASSES), jnp.float32),
        grid_spec=pltpu.PrefetchScalarGridSpec(
            num_scalar_prefetch=0,
            grid=(n_pad // bsz,),
            in_specs=[
                pl.BlockSpec((H_PAD, bsz, W_PAD), lambda i: (0, i, 0)),
                pl.BlockSpec((KH, W_PAD, F_LANES), lambda i: (0, 0, 0)),
                pl.BlockSpec((1, F_LANES), lambda i: (0, 0)),
                pl.BlockSpec((PH, NUM_CLASSES, F_LANES), lambda i: (0, 0, 0)),
                pl.BlockSpec((1, NUM_CLASSES), lambda i: (0, 0)),
            ],
            out_specs=pl.BlockSpec((bsz, NUM_CLASSES), lambda i: (i, 0)),
        ),
        compiler_params=pltpu.CompilerParams(
            dimension_semantics=("parallel",),
            vmem_limit_bytes=32 * 1024 * 1024),
    )(x_t, m_band, cb, wfk, fb)

    return logits[:n]


# ----------------------- plain-JAX reference ------------------------------ #
def reference_forward(x, wc, bc, wf, bf):
    conv = jax.lax.conv_general_dilated(
        x, wc, window_strides=(1, 1), padding=((2, 2), (2, 2)),
        dimension_numbers=("NCHW", "OIHW", "NCHW"))
    conv = jnp.maximum(conv + bc.reshape(1, C_OUT, 1, 1), 0.0)
    pooled = jax.lax.reduce_window(
        conv, -jnp.inf, jax.lax.max,
        window_dimensions=(1, 1, 2, 2), window_strides=(1, 1, 2, 2),
        padding="VALID")
    flat = pooled.reshape(x.shape[0], -1)                     # (c, h, w) flatten
    return flat @ wf.T + bf


if __name__ == "__main__":
    key = jax.random.PRNGKey(0)
    k1, k2, k3, k4, k5 = jax.random.split(key, 5)

    N = 2
    x = jax.random.normal(k1, (N, 1, 28, 28), dtype=jnp.float32)

    conv_bound = 1.0 / (1 * KH * KW) ** 0.5
    fc_bound = 1.0 / FEAT ** 0.5
    wc = jax.random.uniform(k2, (C_OUT, 1, KH, KW), jnp.float32,
                            -conv_bound, conv_bound)
    bc = jax.random.uniform(k3, (C_OUT,), jnp.float32, -conv_bound, conv_bound)
    wf = jax.random.uniform(k4, (NUM_CLASSES, FEAT), jnp.float32,
                            -fc_bound, fc_bound)
    bf = jax.random.uniform(k5, (NUM_CLASSES,), jnp.float32, -fc_bound, fc_bound)

    logits = simple_convolutional_net(x, wc, bc, wf, bf)
    jax.block_until_ready(logits)

    ref = reference_forward(x, wc, bc, wf, bf)
    assert logits.shape == (N, NUM_CLASSES)
    max_err = float(jnp.max(jnp.abs(logits - ref)))
    assert jnp.allclose(logits, ref, rtol=1e-3, atol=2e-3), (
        "max abs diff: %f" % max_err)

    print("KERNEL_OK")
</pallas_src>

<mosaic_0001>
module attributes {stable_mosaic.version = 11 : i64} {
  func.func @fused_cnn_kernel(%arg0: i32, %arg1: memref<32x8x32xf32, #tpu.memory_space<vmem>>, %arg2: memref<5x32x896xf32, #tpu.memory_space<vmem>>, %arg3: memref<1x896xf32, #tpu.memory_space<vmem>>, %arg4: memref<14x10x896xf32, #tpu.memory_space<vmem>>, %arg5: memref<1x10xf32, #tpu.memory_space<vmem>>, %arg6: memref<8x10xf32, #tpu.memory_space<vmem>>) attributes {dimension_semantics = [#tpu.dimension_semantics<parallel>], iteration_bounds = array<i64: 1>, scalar_prefetch = 0 : i64, scratch_operands = 0 : i64, tpu.core_type = #tpu.core_type<tc>, window_params = [{transform_indices = @transform_0, window_bounds = array<i64: 32, 8, 32>}, {pipeline_mode = #tpu.pipeline_mode<synchronous>, transform_indices = @transform_1, window_bounds = array<i64: 5, 32, 896>}, {pipeline_mode = #tpu.pipeline_mode<synchronous>, transform_indices = @transform_2, window_bounds = array<i64: 1, 896>}, {pipeline_mode = #tpu.pipeline_mode<synchronous>, transform_indices = @transform_3, window_bounds = array<i64: 14, 10, 896>}, {pipeline_mode = #tpu.pipeline_mode<synchronous>, transform_indices = @transform_4, window_bounds = array<i64: 1, 10>}, {transform_indices = @transform_5, window_bounds = array<i64: 8, 10>}]} {
    %c0 = arith.constant 0 : index
    %c0_0 = arith.constant 0 : index
    %c0_1 = arith.constant 0 : index
    %0 = vector.load %arg1[%c0, %c0_0, %c0_1] : memref<32x8x32xf32, #tpu.memory_space<vmem>>, vector<32x8x32xf32>
    %1 = vector.extract_strided_slice %0 {offsets = [0, 0, 0], sizes = [28, 8, 32], strides = [1, 1, 1]} : vector<32x8x32xf32> to vector<28x8x32xf32>
    %2 = vector.shape_cast %1 : vector<28x8x32xf32> to vector<224x32xf32>
    %c0_2 = arith.constant 0 : index
    %c0_3 = arith.constant 0 : index
    %c0_4 = arith.constant 0 : index
    %3 = vector.load %arg2[%c0_2, %c0_3, %c0_4] : memref<5x32x896xf32, #tpu.memory_space<vmem>>, vector<1x32x896xf32>
    %4 = vector.shape_cast %3 : vector<1x32x896xf32> to vector<32x896xf32>
    %cst = arith.constant dense<0.000000e+00> : vector<224x896xf32>
    %5 = tpu.matmul %2, %4, %cst {dimension_numbers = #tpu.dot_dimension_numbers<[1], [0], [0], [1], [0, 0, 1, 1], [], []>} : vector<224x32xf32>, vector<32x896xf32>, vector<224x896xf32> -> vector<224x896xf32>
    %6 = vector.extract_strided_slice %0 {offsets = [1, 0, 0], sizes = [28, 8, 32], strides = [1, 1, 1]} : vector<32x8x32xf32> to vector<28x8x32xf32>
    %7 = vector.shape_cast %6 : vector<28x8x32xf32> to vector<224x32xf32>
    %c1 = arith.constant 1 : index
    %c0_5 = arith.constant 0 : index
    %c0_6 = arith.constant 0 : index
    %8 = vector.load %arg2[%c1, %c0_5, %c0_6] : memref<5x32x896xf32, #tpu.memory_space<vmem>>, vector<1x32x896xf32>
    %9 = vector.shape_cast %8 : vector<1x32x896xf32> to vector<32x896xf32>
    %cst_7 = arith.constant dense<0.000000e+00> : vector<224x896xf32>
    %10 = tpu.matmul %7, %9, %cst_7 {dimension_numbers = #tpu.dot_dimension_numbers<[1], [0], [0], [1], [0, 0, 1, 1], [], []>} : vector<224x32xf32>, vector<32x896xf32>, vector<224x896xf32> -> vector<224x896xf32>
    %11 = arith.addf %5, %10 : vector<224x896xf32>
    %12 = vector.extract_strided_slice %0 {offsets = [2, 0, 0], sizes = [28, 8, 32], strides = [1, 1, 1]} : vector<32x8x32xf32> to vector<28x8x32xf32>
    %13 = vector.shape_cast %12 : vector<28x8x32xf32> to vector<224x32xf32>
    %c2 = arith.constant 2 : index
    %c0_8 = arith.constant 0 : index
    %c0_9 = arith.constant 0 : index
    %14 = vector.load %arg2[%c2, %c0_8, %c0_9] : memref<5x32x896xf32, #tpu.memory_space<vmem>>, vector<1x32x896xf32>
    %15 = vector.shape_cast %14 : vector<1x32x896xf32> to vector<32x896xf32>
    %cst_10 = arith.constant dense<0.000000e+00> : vector<224x896xf32>
    %16 = tpu.matmul %13, %15, %cst_10 {dimension_numbers = #tpu.dot_dimension_numbers<[1], [0], [0], [1], [0, 0, 1, 1], [], []>} : vector<224x32xf32>, vector<32x896xf32>, vector<224x896xf32> -> vector<224x896xf32>
    %17 = arith.addf %11, %16 : vector<224x896xf32>
    %18 = vector.extract_strided_slice %0 {offsets = [3, 0, 0], sizes = [28, 8, 32], strides = [1, 1, 1]} : vector<32x8x32xf32> to vector<28x8x32xf32>
    %19 = vector.shape_cast %18 : vector<28x8x32xf32> to vector<224x32xf32>
    %c3 = arith.constant 3 : index
    %c0_11 = arith.constant 0 : index
    %c0_12 = arith.constant 0 : index
    %20 = vector.load %arg2[%c3, %c0_11, %c0_12] : memref<5x32x896xf32, #tpu.memory_space<vmem>>, vector<1x32x896xf32>
    %21 = vector.shape_cast %20 : vector<1x32x896xf32> to vector<32x896xf32>
    %cst_13 = arith.constant dense<0.000000e+00> : vector<224x896xf32>
    %22 = tpu.matmul %19, %21, %cst_13 {dimension_numbers = #tpu.dot_dimension_numbers<[1], [0], [0], [1], [0, 0, 1, 1], [], []>} : vector<224x32xf32>, vector<32x896xf32>, vector<224x896xf32> -> vector<224x896xf32>
    %23 = arith.addf %17, %22 : vector<224x896xf32>
    %24 = vector.extract_strided_slice %0 {offsets = [4, 0, 0], sizes = [28, 8, 32], strides = [1, 1, 1]} : vector<32x8x32xf32> to vector<28x8x32xf32>
    %25 = vector.shape_cast %24 : vector<28x8x32xf32> to vector<224x32xf32>
    %c4 = arith.constant 4 : index
    %c0_14 = arith.constant 0 : index
    %c0_15 = arith.constant 0 : index
    %26 = vector.load %arg2[%c4, %c0_14, %c0_15] : memref<5x32x896xf32, #tpu.memory_space<vmem>>, vector<1x32x896xf32>
    %27 = vector.shape_cast %26 : vector<1x32x896xf32> to vector<32x896xf32>
    %cst_16 = arith.constant dense<0.000000e+00> : vector<224x896xf32>
    %28 = tpu.matmul %25, %27, %cst_16 {dimension_numbers = #tpu.dot_dimension_numbers<[1], [0], [0], [1], [0, 0, 1, 1], [], []>} : vector<224x32xf32>, vector<32x896xf32>, vector<224x896xf32> -> vector<224x896xf32>
    %29 = arith.addf %23, %28 : vector<224x896xf32>
    %c0_17 = arith.constant 0 : index
    %c0_18 = arith.constant 0 : index
    %30 = vector.load %arg3[%c0_17, %c0_18] : memref<1x896xf32, #tpu.memory_space<vmem>>, vector<1x896xf32>
    %31 = vector.broadcast %30 : vector<1x896xf32> to vector<224x896xf32>
    %32 = arith.addf %29, %31 : vector<224x896xf32>
    %cst_19 = arith.constant 0.000000e+00 : f32
    %33 = vector.broadcast %cst_19 : f32 to vector<224x896xf32>
    %34 = arith.maximumf %32, %33 : vector<224x896xf32>
    %35 = vector.shape_cast %34 : vector<224x896xf32> to vector<14x2x8x896xf32>
    %36 = vector.extract_strided_slice %35 {offsets = [0, 0, 0, 0], sizes = [14, 1, 8, 896], strides = [1, 1, 1, 1]} : vector<14x2x8x896xf32> to vector<14x1x8x896xf32>
    %37 = vector.shape_cast %36 : vector<14x1x8x896xf32> to vector<14x8x896xf32>
    %38 = vector.extract_strided_slice %35 {offsets = [0, 1, 0, 0], sizes = [14, 1, 8, 896], strides = [1, 1, 1, 1]} : vector<14x2x8x896xf32> to vector<14x1x8x896xf32>
    %39 = vector.shape_cast %38 : vector<14x1x8x896xf32> to vector<14x8x896xf32>
    %40 = arith.maximumf %37, %39 : vector<14x8x896xf32>
    %41 = vector.extract_strided_slice %40 {offsets = [0, 0, 32], sizes = [14, 8, 864], strides = [1, 1, 1]} : vector<14x8x896xf32> to vector<14x8x864xf32>
    %42 = vector.extract_strided_slice %40 {offsets = [0, 0, 0], sizes = [14, 8, 32], strides = [1, 1, 1]} : vector<14x8x896xf32> to vector<14x8x32xf32>
    %43 = tpu.concatenate %41, %42 in 2 : vector<14x8x864xf32>, vector<14x8x32xf32> -> vector<14x8x896xf32>
    %44 = arith.maximumf %40, %43 : vector<14x8x896xf32>
    %c0_20 = arith.constant 0 : index
    %c0_21 = arith.constant 0 : index
    %c0_22 = arith.constant 0 : index
    %45 = vector.load %arg4[%c0_20, %c0_21, %c0_22] : memref<14x10x896xf32, #tpu.memory_space<vmem>>, vector<14x10x896xf32>
    %cst_23 = arith.constant dense<0.000000e+00> : vector<14x8x10xf32>
    %46 = tpu.matmul %44, %45, %cst_23 {dimension_numbers = #tpu.dot_dimension_numbers<[2], [2], [1], [1], [0, 0, 0, 1, 1, 1], [0], [0]>} : vector<14x8x896xf32>, vector<14x10x896xf32>, vector<14x8x10xf32> -> vector<14x8x10xf32>
    %cst_24 = arith.constant dense<0.000000e+00> : vector<8x10xf32>
    %47 = vector.multi_reduction <add>, %46, %cst_24 [0] : vector<14x8x10xf32> to vector<8x10xf32>
    %c0_25 = arith.constant 0 : index
    %c0_26 = arith.constant 0 : index
    %48 = vector.load %arg5[%c0_25, %c0_26] : memref<1x10xf32, #tpu.memory_space<vmem>>, vector<1x10xf32>
    %49 = vector.broadcast %48 : vector<1x10xf32> to vector<8x10xf32>
    %50 = arith.addf %47, %49 : vector<8x10xf32>
    %c0_27 = arith.constant 0 : index
    %c0_28 = arith.constant 0 : index
    %51 = vector.load %arg6[%c0_27, %c0_28] : memref<8x10xf32, #tpu.memory_space<vmem>>, vector<8x10xf32>
    tpu.vector_store %arg6[%c0_27, %c0_28], %50 {strides = array<i32>} : memref<8x10xf32, #tpu.memory_space<vmem>>, vector<8x10xf32>,
    return
  }
  func.func @transform_0(%arg0: i32) -> (i32, i32, i32) {
    %c0_i32 = arith.constant 0 : i32
    %c0_i32_0 = arith.constant 0 : i32
    %c0_i32_1 = arith.constant 0 : i32
    return %c0_i32, %arg0, %c0_i32_0 : i32, i32, i32
  }
  func.func @transform_1(%arg0: i32) -> (i32, i32, i32) {
    %c0_i32 = arith.constant 0 : i32
    %c0_i32_0 = arith.constant 0 : i32
    %c0_i32_1 = arith.constant 0 : i32
    %c0_i32_2 = arith.constant 0 : i32
    return %c0_i32, %c0_i32_0, %c0_i32_1 : i32, i32, i32
  }
  func.func @transform_2(%arg0: i32) -> (i32, i32) {
    %c0_i32 = arith.constant 0 : i32
    %c0_i32_0 = arith.constant 0 : i32
    %c0_i32_1 = arith.constant 0 : i32
    return %c0_i32, %c0_i32_0 : i32, i32
  }
  func.func @transform_3(%arg0: i32) -> (i32, i32, i32) {
    %c0_i32 = arith.constant 0 : i32
    %c0_i32_0 = arith.constant 0 : i32
    %c0_i32_1 = arith.constant 0 : i32
    %c0_i32_2 = arith.constant 0 : i32
    return %c0_i32, %c0_i32_0, %c0_i32_1 : i32, i32, i32
  }
  func.func @transform_4(%arg0: i32) -> (i32, i32) {
    %c0_i32 = arith.constant 0 : i32
    %c0_i32_0 = arith.constant 0 : i32
    %c0_i32_1 = arith.constant 0 : i32
    return %c0_i32, %c0_i32_0 : i32, i32
  }
  func.func @transform_5(%arg0: i32) -> (i32, i32) {
    %c0_i32 = arith.constant 0 : i32
    %c0_i32_0 = arith.constant 0 : i32
    return %arg0, %c0_i32 : i32, i32
  }
}

</mosaic_0001>

<llo_original>
// kernel: tile.8
$region0: #{tile.8}
  #allocation0 [shape = 's32[1]{0}', space=sflag, size = 0x4, scoped, tag = 'scoped memory for tile.8']
  %s0 = inlined_call_operand.vmem [shape: f32[32], index: 0, kind: input, shape index: {}]
  %s1 = inlined_call_operand.vmem [shape: f32[28,32], index: 1, kind: output, shape index: {}]
  // Predicated region
  $region2: #{tile.8} parent=0 // pred_check
    _
  $region3: #{tile.8} parent=0 // pred_check_branch
    %3 = sbr.rel (0) target = $region5
  $region4: #{tile.8} parent=0 // pred_region
    _
  $region5: #{tile.8} parent=0 // pred_fallthru
    _
  %v4 = vld [vmem:[%s0] ss:$0 sm:$0xff]
  %5 = vst [vmem:[%s1] sm:$0xff] %v4
  %s6 = scalar_lea.vmem %s1, 8
  %7 = vst [vmem:[%s6] sm:$0xff] %v4
  %s8 = scalar_lea.vmem %s1, 16
  %9 = vst [vmem:[%s8] sm:$0xff] %v4
  %s10 = scalar_lea.vmem %s1, 24
  %11 = vst [vmem:[%s10] sm:$0xff] %v4

// kernel: tile.9
$region0: #{tile.9}
  %s0 = inlined_call_operand.vmem [shape: f32[28,32], index: 0, kind: input, shape index: {}]
  %s1 = inlined_call_operand.vmem [shape: f32[1,896], index: 1, kind: output, shape index: {}]
  $region1: #{tile.9} parent=0
    #allocation0 [shape = 'u8[28672]{0}', space=vmem, size = 0x7000, scoped, tag = 'scoped mem for output reshape']
    %v2 = vld [vmem:[%s0] ss:$4 sm:$0x7f]
    %vm3 = vcmask 261120
    %4 = vst.msk [vmem:[#allocation0] ss:$8 sm:$0xf] %vm3, %v2
    %5 = vst.msk [vmem:[#allocation0] ss:$8 sm:$0x70] %vm3, %v2
    %s6 = scalar_lea.vmem %s0, 3
    %v7 = vld [vmem:[%s6] ss:$4 sm:$0x7f]
    %8 = vrot.lane.b32.xlu0 %v7, 96
    %v9 = vpop.permute.xlu0 %8
    %vm10 = vcmask 1048320
    %11 = vst.msk [vmem:[#allocation0] ss:$8 sm:$0xf] %vm10, %v9
    %12 = vst.msk [vmem:[#allocation0] ss:$8 sm:$0x70] %vm10, %v9
    %s13 = scalar_lea.vmem %s0, 2
    %v14 = vld [vmem:[%s13] ss:$4 sm:$0x7f]
    %15 = vrot.lane.b32.xlu0 %v14, 64
    %v16 = vpop.permute.xlu0 %15
    %vm17 = vcmask 785920
    %18 = vst.msk [vmem:[#allocation0] ss:$8 sm:$0xf] %vm17, %v16
    %19 = vst.msk [vmem:[#allocation0] ss:$8 sm:$0x70] %vm17, %v16
    %s20 = scalar_lea.vmem %s0, 1
    %v21 = vld [vmem:[%s20] ss:$4 sm:$0x7f]
    %22 = vrot.lane.b32.xlu0 %v21, 32
    %v23 = vpop.permute.xlu0 %22
    %vm24 = vcmask 523520
    %25 = vst.msk [vmem:[#allocation0] ss:$8 sm:$0xf] %vm24, %v23
    %26 = vst.msk [vmem:[#allocation0] ss:$8 sm:$0x70] %vm24, %v23
    %s28 = ssub.s32 2, 1
    %v29 = vld [vmem:[#allocation0] sm:%s28]
    %s31 = ssub.s32 2, 1
    %32 = vst [vmem:[%s1] sm:%s31] %v29
    %s33 = scalar_lea.vmem [#allocation0], 8
    %v34 = vld [vmem:[%s33] sm:%s28]
    %s36 = ssub.s32 2, 1
    %s37 = scalar_lea.vmem %s1, 1
    %38 = vst [vmem:[%s37] sm:%s36] %v34
    %s39 = scalar_lea.vmem [#allocation0], 16
    %v40 = vld [vmem:[%s39] sm:%s28]
    %s42 = ssub.s32 2, 1
    %s43 = scalar_lea.vmem %s1, 2
    %44 = vst [vmem:[%s43] sm:%s42] %v40
    %s45 = scalar_lea.vmem [#allocation0], 24
    %v46 = vld [vmem:[%s45] sm:%s28]
    %s48 = ssub.s32 2, 1
    %s49 = scalar_lea.vmem %s1, 3
    %50 = vst [vmem:[%s49] sm:%s48] %v46
    %s51 = scalar_lea.vmem [#allocation0], 32
    %v52 = vld [vmem:[%s51] sm:%s28]
    %s54 = ssub.s32 2, 1
    %s55 = scalar_lea.vmem %s1, 4
    %56 = vst [vmem:[%s55] sm:%s54] %v52
    %s57 = scalar_lea.vmem [#allocation0], 40
    %v58 = vld [vmem:[%s57] sm:%s28]
    %s60 = ssub.s32 2, 1
    %s61 = scalar_lea.vmem %s1, 5
    %62 = vst [vmem:[%s61] sm:%s60] %v58
    %s63 = scalar_lea.vmem [#allocation0], 48
    %v64 = vld [vmem:[%s63] sm:%s28]
    %s66 = ssub.s32 2, 1
    %s67 = scalar_lea.vmem %s1, 6
    %68 = vst [vmem:[%s67] sm:%s66] %v64

// kernel: simple_convolutional_net.1
$region0: #{simple_convolutional_net.1}
  #allocation0 [shape = 'u32[]', space=smem, size = 0x4, offset = 0x4, fixed_abs, tag = 'smem constant byte address 0x4 - core index']
  #allocation1 [shape = 'u32[72,128]{1,0:T(1,128)}', space=vmem, size = 0x9000, scoped, tag = 'internal scratch']
  %s0 = inlined_call_operand.vmem [shape: f32[32,8,32], index: 0, kind: input, shape index: {}]
  %s1 = inlined_call_operand.vmem [shape: f32[5,32,896], index: 1, kind: input, shape index: {}]
  %s2 = inlined_call_operand.vmem [shape: f32[1,896], index: 2, kind: input, shape index: {}]
  %s3 = inlined_call_operand.vmem [shape: f32[14,10,896], index: 3, kind: input, shape index: {}]
  %s4 = inlined_call_operand.vmem [shape: f32[1,10], index: 4, kind: input, shape index: {}]
  %s5 = inlined_call_operand.vmem [shape: f32[8,10], index: 5, kind: output, shape index: {}]
  %s6 = sld [smem:[#allocation0]]
  $region30: #{simple_convolutional_net.1} parent=0
    _
  %s8 = ssub.s32 1, %s6
  %s9 = scalar_select 0, %s8, %s6
  // Predicated region
  $region2: #{simple_convolutional_net.1} parent=0 // pred_check
    _
  $region3: #{simple_convolutional_net.1} parent=0 // pred_check_branch
    %11 = sbr.rel (0) target = $region5
  $region4: #{simple_convolutional_net.1} parent=0 // pred_region
    _
  $region5: #{simple_convolutional_net.1} parent=0 // pred_fallthru
    _
  // Predicated region
  $region6: #{simple_convolutional_net.1} parent=0 // pred_check
    _
  $region7: #{simple_convolutional_net.1} parent=0 // pred_check_branch
    %13 = sbr.rel (0) target = $region9
  $region8: #{simple_convolutional_net.1} parent=0 // pred_region
    _
  $region9: #{simple_convolutional_net.1} parent=0 // pred_fallthru
    _
  // Predicated region
  $region10: #{simple_convolutional_net.1} parent=0 // pred_check
    _
  $region11: #{simple_convolutional_net.1} parent=0 // pred_check_branch
    %15 = sbr.rel (0) target = $region13
  $region12: #{simple_convolutional_net.1} parent=0 // pred_region
    _
  $region13: #{simple_convolutional_net.1} parent=0 // pred_fallthru
    _
  // Predicated region
  $region14: #{simple_convolutional_net.1} parent=0 // pred_check
    _
  $region15: #{simple_convolutional_net.1} parent=0 // pred_check_branch
    %17 = sbr.rel (0) target = $region17
  $region16: #{simple_convolutional_net.1} parent=0 // pred_region
    _
  $region17: #{simple_convolutional_net.1} parent=0 // pred_fallthru
    _
  // Predicated region
  $region18: #{simple_convolutional_net.1} parent=0 // pred_check
    _
  $region19: #{simple_convolutional_net.1} parent=0 // pred_check_branch
    %19 = sbr.rel (0) target = $region21
  $region20: #{simple_convolutional_net.1} parent=0 // pred_region
    _
  $region21: #{simple_convolutional_net.1} parent=0 // pred_fallthru
    _
  %v20 = vld [vmem:[%s0] sm:$0xff]
  %v21 = vld [vmem:[%s0 + $0x8] sm:$0xff]
  %v22 = vld [vmem:[%s0 + $0x10] sm:$0xff]
  %v23 = vld [vmem:[%s0 + $0x18] sm:$0xff]
  %v24 = vld [vmem:[%s0 + $0x20] sm:$0xff]
  %v25 = vld [vmem:[%s0 + $0x28] sm:$0xff]
  %v26 = vld [vmem:[%s0 + $0x30] sm:$0xff]
  %v27 = vld [vmem:[%s0 + $0x38] sm:$0xff]
  %v28 = vld [vmem:[%s0 + $0x40] sm:$0xff]
  %v29 = vld [vmem:[%s0 + $0x48] sm:$0xff]
  %v30 = vld [vmem:[%s0 + $0x50] sm:$0xff]
  %v31 = vld [vmem:[%s0 + $0x58] sm:$0xff]
  %v32 = vld [vmem:[%s0 + $0x60] sm:$0xff]
  %v33 = vld [vmem:[%s0 + $0x68] sm:$0xff]
  %v34 = vld [vmem:[%s0 + $0x70] sm:$0xff]
  %v35 = vld [vmem:[%s0 + $0x78] sm:$0xff]
  %v36 = vld [vmem:[%s0 + $0x80] sm:$0xff]
  %v37 = vld [vmem:[%s0 + $0x88] sm:$0xff]
  %v38 = vld [vmem:[%s0 + $0x90] sm:$0xff]
  %v39 = vld [vmem:[%s0 + $0x98] sm:$0xff]
  %v40 = vld [vmem:[%s0 + $0xa0] sm:$0xff]
  %v41 = vld [vmem:[%s0 + $0xa8] sm:$0xff]
  %v42 = vld [vmem:[%s0 + $0xb0] sm:$0xff]
  %v43 = vld [vmem:[%s0 + $0xb8] sm:$0xff]
  %v44 = vld [vmem:[%s0 + $0xc0] sm:$0xff]
  %v45 = vld [vmem:[%s0 + $0xc8] sm:$0xff]
  %v46 = vld [vmem:[%s0 + $0xd0] sm:$0xff]
  %v47 = vld [vmem:[%s0 + $0xd8] sm:$0xff]
  %v48 = vld [vmem:[%s0 + $0xe0] sm:$0xff]
  %v49 = vld [vmem:[%s0 + $0xe8] sm:$0xff]
  %v50 = vld [vmem:[%s0 + $0xf0] sm:$0xff]
  %v51 = vld [vmem:[%s0 + $0xf8] sm:$0xff]
  %v52 = vld [vmem:[%s1] sm:$0xff]
  %v53 = vld [vmem:[%s1 + $0x8] sm:$0xff]
  %v54 = vld [vmem:[%s1 + $0x10] sm:$0xff]
  %v55 = vld [vmem:[%s1 + $0x18] sm:$0xff]
  %v56 = vld [vmem:[%s1 + $0x20] sm:$0xff]
  %v57 = vld [vmem:[%s1 + $0x28] sm:$0xff]
  %v58 = vld [vmem:[%s1 + $0x30] sm:$0xff]
  %v59 = vld [vmem:[%s1 + $0x38] sm:$0xff]
  %v60 = vld [vmem:[%s1 + $0x40] sm:$0xff]
  %v61 = vld [vmem:[%s1 + $0x48] sm:$0xff]
  %v62 = vld [vmem:[%s1 + $0x50] sm:$0xff]
  %v63 = vld [vmem:[%s1 + $0x58] sm:$0xff]
  %v64 = vld [vmem:[%s1 + $0x60] sm:$0xff]
  %v65 = vld [vmem:[%s1 + $0x68] sm:$0xff]
  %v66 = vld [vmem:[%s1 + $0x70] sm:$0xff]
  %v67 = vld [vmem:[%s1 + $0x78] sm:$0xff]
  %v68 = vld [vmem:[%s1 + $0x80] sm:$0xff]
  %v69 = vld [vmem:[%s1 + $0x88] sm:$0xff]
  %v70 = vld [vmem:[%s1 + $0x90] sm:$0xff]
  %v71 = vld [vmem:[%s1 + $0x98] sm:$0xff]
  %v72 = vld [vmem:[%s1 + $0xa0] sm:$0xff]
  %v73 = vld [vmem:[%s1 + $0xa8] sm:$0xff]
  %v74 = vld [vmem:[%s1 + $0xb0] sm:$0xff]
  %v75 = vld [vmem:[%s1 + $0xb8] sm:$0xff]
  %v76 = vld [vmem:[%s1 + $0xc0] sm:$0xff]
  %v77 = vld [vmem:[%s1 + $0xc8] sm:$0xff]
  %v78 = vld [vmem:[%s1 + $0xd0] sm:$0xff]
  %v79 = vld [vmem:[%s1 + $0xd8] sm:$0xff]
  %s80 = scalar_lea.vmem %s1, 224
  %v81 = vld [vmem:[%s80] sm:$0xff]
  %v82 = vld [vmem:[%s80 + $0x8] sm:$0xff]
  %v83 = vld [vmem:[%s80 + $0x10] sm:$0xff]
  %v84 = vld [vmem:[%s80 + $0x18] sm:$0xff]
  %v85 = vld [vmem:[%s80 + $0x20] sm:$0xff]
  %v86 = vld [vmem:[%s80 + $0x28] sm:$0xff]
  %v87 = vld [vmem:[%s80 + $0x30] sm:$0xff]
  %v88 = vld [vmem:[%s80 + $0x38] sm:$0xff]
  %v89 = vld [vmem:[%s80 + $0x40] sm:$0xff]
  %v90 = vld [vmem:[%s80 + $0x48] sm:$0xff]
  %v91 = vld [vmem:[%s80 + $0x50] sm:$0xff]
  %v92 = vld [vmem:[%s80 + $0x58] sm:$0xff]
  %v93 = vld [vmem:[%s80 + $0x60] sm:$0xff]
  %v94 = vld [vmem:[%s80 + $0x68] sm:$0xff]
  %v95 = vld [vmem:[%s80 + $0x70] sm:$0xff]
  %v96 = vld [vmem:[%s80 + $0x78] sm:$0xff]
  %v97 = vld [vmem:[%s80 + $0x80] sm:$0xff]
  %v98 = vld [vmem:[%s80 + $0x88] sm:$0xff]
  %v99 = vld [vmem:[%s80 + $0x90] sm:$0xff]
  %v100 = vld [vmem:[%s80 + $0x98] sm:$0xff]
  %v101 = vld [vmem:[%s80 + $0xa0] sm:$0xff]
  %v102 = vld [vmem:[%s80 + $0xa8] sm:$0xff]
  %v103 = vld [vmem:[%s80 + $0xb0] sm:$0xff]
  %v104 = vld [vmem:[%s80 + $0xb8] sm:$0xff]
  %v105 = vld [vmem:[%s80 + $0xc0] sm:$0xff]
  %v106 = vld [vmem:[%s80 + $0xc8] sm:$0xff]
  %v107 = vld [vmem:[%s80 + $0xd0] sm:$0xff]
  %v108 = vld [vmem:[%s80 + $0xd8] sm:$0xff]
  %vm109 = vcmask 261120
  %v111 = vsel %vm109, %v21, 0
  %v114 = vsel %vm109, %v22, 0
  %v117 = vsel %vm109, %v23, 0
  %v120 = vsel %vm109, %v24, 0
  %v123 = vsel %vm109, %v25, 0
  %v126 = vsel %vm109, %v26, 0
  %v129 = vsel %vm109, %v27, 0
  %v132 = vsel %vm109, %v28, 0
  %v135 = vsel %vm109, %v29, 0
  %v138 = vsel %vm109, %v30, 0
  %v141 = vsel %vm109, %v31, 0
  %v144 = vsel %vm109, %v32, 0
  %v147 = vsel %vm109, %v33, 0
  %v150 = vsel %vm109, %v34, 0
  %v153 = vsel %vm109, %v35, 0
  %v156 = vsel %vm109, %v36, 0
  %v159 = vsel %vm109, %v37, 0
  %v162 = vsel %vm109, %v38, 0
  %v165 = vsel %vm109, %v39, 0
  %v168 = vsel %vm109, %v40, 0
  %v171 = vsel %vm109, %v41, 0
  %v174 = vsel %vm109, %v42, 0
  %v177 = vsel %vm109, %v43, 0
  %v180 = vsel %vm109, %v44, 0
  %v183 = vsel %vm109, %v45, 0
  %v186 = vsel %vm109, %v46, 0
  %v189 = vsel %vm109, %v47, 0
  %v192 = vsel %vm109, %v48, 0
  %194 = vmatpush.msra.mxu0 0.0
  %195 = vmatpush.msra.mxu0 0.0
  %196 = vmatpush.msra.mxu0 0.0
  %197 = vmatpush.msra.mxu0 0.0
  %198 = vmatpush.msra.mxu0 0.0
  %199 = vmatpush.msra.mxu0 0.0
  %200 = vmatpush.msra.mxu0 0.0
  %201 = vmatpush.msra.mxu0 0.0
  %202 = vmatpush.msra.mxu0 0.0
  %203 = vmatpush.msra.mxu0 0.0
  %204 = vmatpush.msra.mxu0 0.0
  %205 = vmatpush.msra.mxu0 0.0
  %206 = vmatpush.msra.mxu0 %v102
  %207 = vmatpush.msra.mxu0 %v95
  %208 = vmatpush.msra.mxu0 %v88
  %209 = vmatpush.msra.mxu0 %v81
  %210 = vmatmul.f32.gmra.mxu0 %v111
  %v211 = vpop.f32.mrf.mxu0
  %v212 = vadd.f32 0.0, %v211
  %213 = vmatmul.f32.gmra.mxu0 %v114
  %v214 = vpop.f32.mrf.mxu0
  %v215 = vadd.f32 0.0, %v214
  %216 = vmatmul.f32.gmra.mxu0 %v117
  %v217 = vpop.f32.mrf.mxu0
  %v218 = vadd.f32 0.0, %v217
  %219 = vmatmul.f32.gmra.mxu0 %v120
  %v220 = vpop.f32.mrf.mxu0
  %v221 = vadd.f32 0.0, %v220
  %222 = vmatmul.f32.gmra.mxu0 %v123
  %v223 = vpop.f32.mrf.mxu0
  %v224 = vadd.f32 0.0, %v223
  %225 = vmatmul.f32.gmra.mxu0 %v126
  %v226 = vpop.f32.mrf.mxu0
  %v227 = vadd.f32 0.0, %v226
  %228 = vmatmul.f32.gmra.mxu0 %v129
  %v229 = vpop.f32.mrf.mxu0
  %v230 = vadd.f32 0.0, %v229
  %231 = vmatmul.f32.gmra.mxu0 %v132
  %v232 = vpop.f32.mrf.mxu0
  %v233 = vadd.f32 0.0, %v232
  %234 = vmatmul.f32.gmra.mxu0 %v135
  %v235 = vpop.f32.mrf.mxu0
  %v236 = vadd.f32 0.0, %v235
  %237 = vmatmul.f32.gmra.mxu0 %v138
  %v238 = vpop.f32.mrf.mxu0
  %v239 = vadd.f32 0.0, %v238
  %240 = vmatmul.f32.gmra.mxu0 %v141
  %v241 = vpop.f32.mrf.mxu0
  %v242 = vadd.f32 0.0, %v241
  %243 = vmatmul.f32.gmra.mxu0 %v144
  %v244 = vpop.f32.mrf.mxu0
  %v245 = vadd.f32 0.0, %v244
  %246 = vmatmul.f32.gmra.mxu0 %v147
  %v247 = vpop.f32.mrf.mxu0
  %v248 = vadd.f32 0.0, %v247
  %249 = vmatmul.f32.gmra.mxu0 %v150
  %v250 = vpop.f32.mrf.mxu0
  %v251 = vadd.f32 0.0, %v250
  %252 = vmatmul.f32.gmra.mxu0 %v153
  %v253 = vpop.f32.mrf.mxu0
  %v254 = vadd.f32 0.0, %v253
  %255 = vmatmul.f32.gmra.mxu0 %v156
  %v256 = vpop.f32.mrf.mxu0
  %v257 = vadd.f32 0.0, %v256
  %258 = vmatmul.f32.gmra.mxu0 %v159
  %v259 = vpop.f32.mrf.mxu0
  %v260 = vadd.f32 0.0, %v259
  %261 = vmatmul.f32.gmra.mxu0 %v162
  %v262 = vpop.f32.mrf.mxu0
  %v263 = vadd.f32 0.0, %v262
  %264 = vmatmul.f32.gmra.mxu0 %v165
  %v265 = vpop.f32.mrf.mxu0
  %v266 = vadd.f32 0.0, %v265
  %267 = vmatmul.f32.gmra.mxu0 %v168
  %v268 = vpop.f32.mrf.mxu0
  %v269 = vadd.f32 0.0, %v268
  %270 = vmatmul.f32.gmra.mxu0 %v171
  %v271 = vpop.f32.mrf.mxu0
  %v272 = vadd.f32 0.0, %v271
  %273 = vmatmul.f32.gmra.mxu0 %v174
  %v274 = vpop.f32.mrf.mxu0
  %v275 = vadd.f32 0.0, %v274
  %276 = vmatmul.f32.gmra.mxu0 %v177
  %v277 = vpop.f32.mrf.mxu0
  %v278 = vadd.f32 0.0, %v277
  %279 = vmatmul.f32.gmra.mxu0 %v180
  %v280 = vpop.f32.mrf.mxu0
  %v281 = vadd.f32 0.0, %v280
  %282 = vmatmul.f32.gmra.mxu0 %v183
  %v283 = vpop.f32.mrf.mxu0
  %v284 = vadd.f32 0.0, %v283
  %285 = vmatmul.f32.gmra.mxu0 %v186
  %v286 = vpop.f32.mrf.mxu0
  %v287 = vadd.f32 0.0, %v286
  %288 = vmatmul.f32.gmra.mxu0 %v189
  %v289 = vpop.f32.mrf.mxu0
  %v290 = vadd.f32 0.0, %v289
  %291 = vmatmul.f32.gmra.mxu0 %v192
  %v292 = vpop.f32.mrf.mxu0
  %v293 = vadd.f32 0.0, %v292
  %294 = vdwg.mxu0
  %295 = vmatpush.msra.mxu0 0.0
  %296 = vmatpush.msra.mxu0 0.0
  %297 = vmatpush.msra.mxu0 0.0
  %298 = vmatpush.msra.mxu0 0.0
  %299 = vmatpush.msra.mxu0 0.0
  %300 = vmatpush.msra.mxu0 0.0
  %301 = vmatpush.msra.mxu0 0.0
  %302 = vmatpush.msra.mxu0 0.0
  %303 = vmatpush.msra.mxu0 0.0
  %304 = vmatpush.msra.mxu0 0.0
  %305 = vmatpush.msra.mxu0 0.0
  %306 = vmatpush.msra.mxu0 0.0
  %307 = vmatpush.msra.mxu0 %v103
  %308 = vmatpush.msra.mxu0 %v96
  %309 = vmatpush.msra.mxu0 %v89
  %310 = vmatpush.msra.mxu0 %v82
  %311 = vmatmul.f32.gmra.mxu0 %v111
  %v312 = vpop.f32.mrf.mxu0
  %v313 = vadd.f32 0.0, %v312
  %314 = vmatmul.f32.gmra.mxu0 %v114
  %v315 = vpop.f32.mrf.mxu0
  %v316 = vadd.f32 0.0, %v315
  %317 = vmatmul.f32.gmra.mxu0 %v117
  %v318 = vpop.f32.mrf.mxu0
  %v319 = vadd.f32 0.0, %v318
  %320 = vmatmul.f32.gmra.mxu0 %v120
  %v321 = vpop.f32.mrf.mxu0
  %v322 = vadd.f32 0.0, %v321
  %323 = vmatmul.f32.gmra.mxu0 %v123
  %v324 = vpop.f32.mrf.mxu0
  %v325 = vadd.f32 0.0, %v324
  %326 = vmatmul.f32.gmra.mxu0 %v126
  %v327 = vpop.f32.mrf.mxu0
  %v328 = vadd.f32 0.0, %v327
  %329 = vmatmul.f32.gmra.mxu0 %v129
  %v330 = vpop.f32.mrf.mxu0
  %v331 = vadd.f32 0.0, %v330
  %332 = vmatmul.f32.gmra.mxu0 %v132
  %v333 = vpop.f32.mrf.mxu0
  %v334 = vadd.f32 0.0, %v333
  %335 = vmatmul.f32.gmra.mxu0 %v135
  %v336 = vpop.f32.mrf.mxu0
  %v337 = vadd.f32 0.0, %v336
  %338 = vmatmul.f32.gmra.mxu0 %v138
  %v339 = vpop.f32.mrf.mxu0
  %v340 = vadd.f32 0.0, %v339
  %341 = vmatmul.f32.gmra.mxu0 %v141
  %v342 = vpop.f32.mrf.mxu0
  %v343 = vadd.f32 0.0, %v342
  %344 = vmatmul.f32.gmra.mxu0 %v144
  %v345 = vpop.f32.mrf.mxu0
  %v346 = vadd.f32 0.0, %v345
  %347 = vmatmul.f32.gmra.mxu0 %v147
  %v348 = vpop.f32.mrf.mxu0
  %v349 = vadd.f32 0.0, %v348
  %350 = vmatmul.f32.gmra.mxu0 %v150
  %v351 = vpop.f32.mrf.mxu0
  %v352 = vadd.f32 0.0, %v351
  %353 = vmatmul.f32.gmra.mxu0 %v153
  %v354 = vpop.f32.mrf.mxu0
  %v355 = vadd.f32 0.0, %v354
  %356 = vmatmul.f32.gmra.mxu0 %v156
  %v357 = vpop.f32.mrf.mxu0
  %v358 = vadd.f32 0.0, %v357
  %359 = vmatmul.f32.gmra.mxu0 %v159
  %v360 = vpop.f32.mrf.mxu0
  %v361 = vadd.f32 0.0, %v360
  %362 = vmatmul.f32.gmra.mxu0 %v162
  %v363 = vpop.f32.mrf.mxu0
  %v364 = vadd.f32 0.0, %v363
  %365 = vmatmul.f32.gmra.mxu0 %v165
  %v366 = vpop.f32.mrf.mxu0
  %v367 = vadd.f32 0.0, %v366
  %368 = vmatmul.f32.gmra.mxu0 %v168
  %v369 = vpop.f32.mrf.mxu0
  %v370 = vadd.f32 0.0, %v369
  %371 = vmatmul.f32.gmra.mxu0 %v171
  %v372 = vpop.f32.mrf.mxu0
  %v373 = vadd.f32 0.0, %v372
  %374 = vmatmul.f32.gmra.mxu0 %v174
  %v375 = vpop.f32.mrf.mxu0
  %v376 = vadd.f32 0.0, %v375
  %377 = vmatmul.f32.gmra.mxu0 %v177
  %v378 = vpop.f32.mrf.mxu0
  %v379 = vadd.f32 0.0, %v378
  %380 = vmatmul.f32.gmra.mxu0 %v180
  %v381 = vpop.f32.mrf.mxu0
  %v382 = vadd.f32 0.0, %v381
  %383 = vmatmul.f32.gmra.mxu0 %v183
  %v384 = vpop.f32.mrf.mxu0
  %v385 = vadd.f32 0.0, %v384
  %386 = vmatmul.f32.gmra.mxu0 %v186
  %v387 = vpop.f32.mrf.mxu0
  %v388 = vadd.f32 0.0, %v387
  %389 = vmatmul.f32.gmra.mxu0 %v189
  %v390 = vpop.f32.mrf.mxu0
  %v391 = vadd.f32 0.0, %v390
  %392 = vmatmul.f32.gmra.mxu0 %v192
  %v393 = vpop.f32.mrf.mxu0
  %v394 = vadd.f32 0.0, %v393
  %395 = vdwg.mxu0
  %396 = vmatpush.msra.mxu0 0.0
  %397 = vmatpush.msra.mxu0 0.0
  %398 = vmatpush.msra.mxu0 0.0
  %399 = vmatpush.msra.mxu0 0.0
  %400 = vmatpush.msra.mxu0 0.0
  %401 = vmatpush.msra.mxu0 0.0
  %402 = vmatpush.msra.mxu0 0.0
  %403 = vmatpush.msra.mxu0 0.0
  %404 = vmatpush.msra.mxu0 0.0
  %405 = vmatpush.msra.mxu0 0.0
  %406 = vmatpush.msra.mxu0 0.0
  %407 = vmatpush.msra.mxu0 0.0
  %408 = vmatpush.msra.mxu0 %v104
  %409 = vmatpush.msra.mxu0 %v97
  %410 = vmatpush.msra.mxu0 %v90
  %411 = vmatpush.msra.mxu0 %v83
  %412 = vmatmul.f32.gmra.mxu0 %v111
  %v413 = vpop.f32.mrf.mxu0
  %v414 = vadd.f32 0.0, %v413
  %415 = vmatmul.f32.gmra.mxu0 %v114
  %v416 = vpop.f32.mrf.mxu0
  %v417 = vadd.f32 0.0, %v416
  %418 = vmatmul.f32.gmra.mxu0 %v117
  %v419 = vpop.f32.mrf.mxu0
  %v420 = vadd.f32 0.0, %v419
  %421 = vmatmul.f32.gmra.mxu0 %v120
  %v422 = vpop.f32.mrf.mxu0
  %v423 = vadd.f32 0.0, %v422
  %424 = vmatmul.f32.gmra.mxu0 %v123
  %v425 = vpop.f32.mrf.mxu0
  %v426 = vadd.f32 0.0, %v425
  %427 = vmatmul.f32.gmra.mxu0 %v126
  %v428 = vpop.f32.mrf.mxu0
  %v429 = vadd.f32 0.0, %v428
  %430 = vmatmul.f32.gmra.mxu0 %v129
  %v431 = vpop.f32.mrf.mxu0
  %v432 = vadd.f32 0.0, %v431
  %433 = vmatmul.f32.gmra.mxu0 %v132
  %v434 = vpop.f32.mrf.mxu0
  %v435 = vadd.f32 0.0, %v434
  %436 = vmatmul.f32.gmra.mxu0 %v135
  %v437 = vpop.f32.mrf.mxu0
  %v438 = vadd.f32 0.0, %v437
  %439 = vmatmul.f32.gmra.mxu0 %v138
  %v440 = vpop.f32.mrf.mxu0
  %v441 = vadd.f32 0.0, %v440
  %442 = vmatmul.f32.gmra.mxu0 %v141
  %v443 = vpop.f32.mrf.mxu0
  %v444 = vadd.f32 0.0, %v443
  %445 = vmatmul.f32.gmra.mxu0 %v144
  %v446 = vpop.f32.mrf.mxu0
  %v447 = vadd.f32 0.0, %v446
  %448 = vmatmul.f32.gmra.mxu0 %v147
  %v449 = vpop.f32.mrf.mxu0
  %v450 = vadd.f32 0.0, %v449
  %451 = vmatmul.f32.gmra.mxu0 %v150
  %v452 = vpop.f32.mrf.mxu0
  %v453 = vadd.f32 0.0, %v452
  %454 = vmatmul.f32.gmra.mxu0 %v153
  %v455 = vpop.f32.mrf.mxu0
  %v456 = vadd.f32 0.0, %v455
  %457 = vmatmul.f32.gmra.mxu0 %v156
  %v458 = vpop.f32.mrf.mxu0
  %v459 = vadd.f32 0.0, %v458
  %460 = vmatmul.f32.gmra.mxu0 %v159
  %v461 = vpop.f32.mrf.mxu0
  %v462 = vadd.f32 0.0, %v461
  %463 = vmatmul.f32.gmra.mxu0 %v162
  %v464 = vpop.f32.mrf.mxu0
  %v465 = vadd.f32 0.0, %v464
  %466 = vmatmul.f32.gmra.mxu0 %v165
  %v467 = vpop.f32.mrf.mxu0
  %v468 = vadd.f32 0.0, %v467
  %469 = vmatmul.f32.gmra.mxu0 %v168
  %v470 = vpop.f32.mrf.mxu0
  %v471 = vadd.f32 0.0, %v470
  %472 = vmatmul.f32.gmra.mxu0 %v171
  %v473 = vpop.f32.mrf.mxu0
  %v474 = vadd.f32 0.0, %v473
  %475 = vmatmul.f32.gmra.mxu0 %v174
  %v476 = vpop.f32.mrf.mxu0
  %v477 = vadd.f32 0.0, %v476
  %478 = vmatmul.f32.gmra.mxu0 %v177
  %v479 = vpop.f32.mrf.mxu0
  %v480 = vadd.f32 0.0, %v479
  %481 = vmatmul.f32.gmra.mxu0 %v180
  %v482 = vpop.f32.mrf.mxu0
  %v483 = vadd.f32 0.0, %v482
  %484 = vmatmul.f32.gmra.mxu0 %v183
  %v485 = vpop.f32.mrf.mxu0
  %v486 = vadd.f32 0.0, %v485
  %487 = vmatmul.f32.gmra.mxu0 %v186
  %v488 = vpop.f32.mrf.mxu0
  %v489 = vadd.f32 0.0, %v488
  %490 = vmatmul.f32.gmra.mxu0 %v189
  %v491 = vpop.f32.mrf.mxu0
  %v492 = vadd.f32 0.0, %v491
  %493 = vmatmul.f32.gmra.mxu0 %v192
  %v494 = vpop.f32.mrf.mxu0
  %v495 = vadd.f32 0.0, %v494
  %496 = vdwg.mxu0
  %497 = vmatpush.msra.mxu0 0.0
  %498 = vmatpush.msra.mxu0 0.0
  %499 = vmatpush.msra.mxu0 0.0
  %500 = vmatpush.msra.mxu0 0.0
  %501 = vmatpush.msra.mxu0 0.0
  %502 = vmatpush.msra.mxu0 0.0
  %503 = vmatpush.msra.mxu0 0.0
  %504 = vmatpush.msra.mxu0 0.0
  %505 = vmatpush.msra.mxu0 0.0
  %506 = vmatpush.msra.mxu0 0.0
  %507 = vmatpush.msra.mxu0 0.0
  %508 = vmatpush.msra.mxu0 0.0
  %509 = vmatpush.msra.mxu0 %v105
  %510 = vmatpush.msra.mxu0 %v98
  %511 = vmatpush.msra.mxu0 %v91
  %512 = vmatpush.msra.mxu0 %v84
  %513 = vmatmul.f32.gmra.mxu0 %v111
  %v514 = vpop.f32.mrf.mxu0
  %v515 = vadd.f32 0.0, %v514
  %516 = vmatmul.f32.gmra.mxu0 %v114
  %v517 = vpop.f32.mrf.mxu0
  %v518 = vadd.f32 0.0, %v517
  %519 = vmatmul.f32.gmra.mxu0 %v117
  %v520 = vpop.f32.mrf.mxu0
  %v521 = vadd.f32 0.0, %v520
  %522 = vmatmul.f32.gmra.mxu0 %v120
  %v523 = vpop.f32.mrf.mxu0
  %v524 = vadd.f32 0.0, %v523
  %525 = vmatmul.f32.gmra.mxu0 %v123
  %v526 = vpop.f32.mrf.mxu0
  %v527 = vadd.f32 0.0, %v526
  %528 = vmatmul.f32.gmra.mxu0 %v126
  %v529 = vpop.f32.mrf.mxu0
  %v530 = vadd.f32 0.0, %v529
  %531 = vmatmul.f32.gmra.mxu0 %v129
  %v532 = vpop.f32.mrf.mxu0
  %v533 = vadd.f32 0.0, %v532
  %534 = vmatmul.f32.gmra.mxu0 %v132
  %v535 = vpop.f32.mrf.mxu0
  %v536 = vadd.f32 0.0, %v535
  %537 = vmatmul.f32.gmra.mxu0 %v135
  %v538 = vpop.f32.mrf.mxu0
  %v539 = vadd.f32 0.0, %v538
  %540 = vmatmul.f32.gmra.mxu0 %v138
  %v541 = vpop.f32.mrf.mxu0
  %v542 = vadd.f32 0.0, %v541
  %543 = vmatmul.f32.gmra.mxu0 %v141
  %v544 = vpop.f32.mrf.mxu0
  %v545 = vadd.f32 0.0, %v544
  %546 = vmatmul.f32.gmra.mxu0 %v144
  %v547 = vpop.f32.mrf.mxu0
  %v548 = vadd.f32 0.0, %v547
  %549 = vmatmul.f32.gmra.mxu0 %v147
  %v550 = vpop.f32.mrf.mxu0
  %v551 = vadd.f32 0.0, %v550
  %552 = vmatmul.f32.gmra.mxu0 %v150
  %v553 = vpop.f32.mrf.mxu0
  %v554 = vadd.f32 0.0, %v553
  %555 = vmatmul.f32.gmra.mxu0 %v153
  %v556 = vpop.f32.mrf.mxu0
  %v557 = vadd.f32 0.0, %v556
  %558 = vmatmul.f32.gmra.mxu0 %v156
  %v559 = vpop.f32.mrf.mxu0
  %v560 = vadd.f32 0.0, %v559
  %561 = vmatmul.f32.gmra.mxu0 %v159
  %v562 = vpop.f32.mrf.mxu0
  %v563 = vadd.f32 0.0, %v562
  %564 = vmatmul.f32.gmra.mxu0 %v162
  %v565 = vpop.f32.mrf.mxu0
  %v566 = vadd.f32 0.0, %v565
  %567 = vmatmul.f32.gmra.mxu0 %v165
  %v568 = vpop.f32.mrf.mxu0
  %v569 = vadd.f32 0.0, %v568
  %570 = vmatmul.f32.gmra.mxu0 %v168
  %v571 = vpop.f32.mrf.mxu0
  %v572 = vadd.f32 0.0, %v571
  %573 = vmatmul.f32.gmra.mxu0 %v171
  %v574 = vpop.f32.mrf.mxu0
  %v575 = vadd.f32 0.0, %v574
  %576 = vmatmul.f32.gmra.mxu0 %v174
  %v577 = vpop.f32.mrf.mxu0
  %v578 = vadd.f32 0.0, %v577
  %579 = vmatmul.f32.gmra.mxu0 %v177
  %v580 = vpop.f32.mrf.mxu0
  %v581 = vadd.f32 0.0, %v580
  %582 = vmatmul.f32.gmra.mxu0 %v180
  %v583 = vpop.f32.mrf.mxu0
  %v584 = vadd.f32 0.0, %v583
  %585 = vmatmul.f32.gmra.mxu0 %v183
  %v586 = vpop.f32.mrf.mxu0
  %v587 = vadd.f32 0.0, %v586
  %588 = vmatmul.f32.gmra.mxu0 %v186
  %v589 = vpop.f32.mrf.mxu0
  %v590 = vadd.f32 0.0, %v589
  %591 = vmatmul.f32.gmra.mxu0 %v189
  %v592 = vpop.f32.mrf.mxu0
  %v593 = vadd.f32 0.0, %v592
  %594 = vmatmul.f32.gmra.mxu0 %v192
  %v595 = vpop.f32.mrf.mxu0
  %v596 = vadd.f32 0.0, %v595
  %597 = vdwg.mxu0
  %598 = vmatpush.msra.mxu0 0.0
  %599 = vmatpush.msra.mxu0 0.0
  %600 = vmatpush.msra.mxu0 0.0
  %601 = vmatpush.msra.mxu0 0.0
  %602 = vmatpush.msra.mxu0 0.0
  %603 = vmatpush.msra.mxu0 0.0
  %604 = vmatpush.msra.mxu0 0.0
  %605 = vmatpush.msra.mxu0 0.0
  %606 = vmatpush.msra.mxu0 0.0
  %607 = vmatpush.msra.mxu0 0.0
  %608 = vmatpush.msra.mxu0 0.0
  %609 = vmatpush.msra.mxu0 0.0
  %610 = vmatpush.msra.mxu0 %v106
  %611 = vmatpush.msra.mxu0 %v99
  %612 = vmatpush.msra.mxu0 %v92
  %613 = vmatpush.msra.mxu0 %v85
  %614 = vmatmul.f32.gmra.mxu0 %v111
  %v615 = vpop.f32.mrf.mxu0
  %v616 = vadd.f32 0.0, %v615
  %617 = vmatmul.f32.gmra.mxu0 %v114
  %v618 = vpop.f32.mrf.mxu0
  %v619 = vadd.f32 0.0, %v618
  %620 = vmatmul.f32.gmra.mxu0 %v117
  %v621 = vpop.f32.mrf.mxu0
  %v622 = vadd.f32 0.0, %v621
  %623 = vmatmul.f32.gmra.mxu0 %v120
  %v624 = vpop.f32.mrf.mxu0
  %v625 = vadd.f32 0.0, %v624
  %626 = vmatmul.f32.gmra.mxu0 %v123
  %v627 = vpop.f32.mrf.mxu0
  %v628 = vadd.f32 0.0, %v627
  %629 = vmatmul.f32.gmra.mxu0 %v126
  %v630 = vpop.f32.mrf.mxu0
  %v631 = vadd.f32 0.0, %v630
  %632 = vmatmul.f32.gmra.mxu0 %v129
  %v633 = vpop.f32.mrf.mxu0
  %v634 = vadd.f32 0.0, %v633
  %635 = vmatmul.f32.gmra.mxu0 %v132
  %v636 = vpop.f32.mrf.mxu0
  %v637 = vadd.f32 0.0, %v636
  %638 = vmatmul.f32.gmra.mxu0 %v135
  %v639 = vpop.f32.mrf.mxu0
  %v640 = vadd.f32 0.0, %v639
  %641 = vmatmul.f32.gmra.mxu0 %v138
  %v642 = vpop.f32.mrf.mxu0
  %v643 = vadd.f32 0.0, %v642
  %644 = vmatmul.f32.gmra.mxu0 %v141
  %v645 = vpop.f32.mrf.mxu0
  %v646 = vadd.f32 0.0, %v645
  %647 = vmatmul.f32.gmra.mxu0 %v144
  %v648 = vpop.f32.mrf.mxu0
  %v649 = vadd.f32 0.0, %v648
  %650 = vmatmul.f32.gmra.mxu0 %v147
  %v651 = vpop.f32.mrf.mxu0
  %v652 = vadd.f32 0.0, %v651
  %653 = vmatmul.f32.gmra.mxu0 %v150
  %v654 = vpop.f32.mrf.mxu0
  %v655 = vadd.f32 0.0, %v654
  %656 = vmatmul.f32.gmra.mxu0 %v153
  %v657 = vpop.f32.mrf.mxu0
  %v658 = vadd.f32 0.0, %v657
  %659 = vmatmul.f32.gmra.mxu0 %v156
  %v660 = vpop.f32.mrf.mxu0
  %v661 = vadd.f32 0.0, %v660
  %662 = vmatmul.f32.gmra.mxu0 %v159
  %v663 = vpop.f32.mrf.mxu0
  %v664 = vadd.f32 0.0, %v663
  %665 = vmatmul.f32.gmra.mxu0 %v162
  %v666 = vpop.f32.mrf.mxu0
  %v667 = vadd.f32 0.0, %v666
  %668 = vmatmul.f32.gmra.mxu0 %v165
  %v669 = vpop.f32.mrf.mxu0
  %v670 = vadd.f32 0.0, %v669
  %671 = vmatmul.f32.gmra.mxu0 %v168
  %v672 = vpop.f32.mrf.mxu0
  %v673 = vadd.f32 0.0, %v672
  %674 = vmatmul.f32.gmra.mxu0 %v171
  %v675 = vpop.f32.mrf.mxu0
  %v676 = vadd.f32 0.0, %v675
  %677 = vmatmul.f32.gmra.mxu0 %v174
  %v678 = vpop.f32.mrf.mxu0
  %v679 = vadd.f32 0.0, %v678
  %680 = vmatmul.f32.gmra.mxu0 %v177
  %v681 = vpop.f32.mrf.mxu0
  %v682 = vadd.f32 0.0, %v681
  %683 = vmatmul.f32.gmra.mxu0 %v180
  %v684 = vpop.f32.mrf.mxu0
  %v685 = vadd.f32 0.0, %v684
  %686 = vmatmul.f32.gmra.mxu0 %v183
  %v687 = vpop.f32.mrf.mxu0
  %v688 = vadd.f32 0.0, %v687
  %689 = vmatmul.f32.gmra.mxu0 %v186
  %v690 = vpop.f32.mrf.mxu0
  %v691 = vadd.f32 0.0, %v690
  %692 = vmatmul.f32.gmra.mxu0 %v189
  %v693 = vpop.f32.mrf.mxu0
  %v694 = vadd.f32 0.0, %v693
  %695 = vmatmul.f32.gmra.mxu0 %v192
  %v696 = vpop.f32.mrf.mxu0
  %v697 = vadd.f32 0.0, %v696
  %698 = vdwg.mxu0
  %699 = vmatpush.msra.mxu0 0.0
  %700 = vmatpush.msra.mxu0 0.0
  %701 = vmatpush.msra.mxu0 0.0
  %702 = vmatpush.msra.mxu0 0.0
  %703 = vmatpush.msra.mxu0 0.0
  %704 = vmatpush.msra.mxu0 0.0
  %705 = vmatpush.msra.mxu0 0.0
  %706 = vmatpush.msra.mxu0 0.0
  %707 = vmatpush.msra.mxu0 0.0
  %708 = vmatpush.msra.mxu0 0.0
  %709 = vmatpush.msra.mxu0 0.0
  %710 = vmatpush.msra.mxu0 0.0
  %711 = vmatpush.msra.mxu0 %v107
  %712 = vmatpush.msra.mxu0 %v100
  %713 = vmatpush.msra.mxu0 %v93
  %714 = vmatpush.msra.mxu0 %v86
  %715 = vmatmul.f32.gmra.mxu0 %v111
  %v716 = vpop.f32.mrf.mxu0
  %v717 = vadd.f32 0.0, %v716
  %718 = vmatmul.f32.gmra.mxu0 %v114
  %v719 = vpop.f32.mrf.mxu0
  %v720 = vadd.f32 0.0, %v719
  %721 = vmatmul.f32.gmra.mxu0 %v117
  %v722 = vpop.f32.mrf.mxu0
  %v723 = vadd.f32 0.0, %v722
  %724 = vmatmul.f32.gmra.mxu0 %v120
  %v725 = vpop.f32.mrf.mxu0
  %v726 = vadd.f32 0.0, %v725
  %727 = vmatmul.f32.gmra.mxu0 %v123
  %v728 = vpop.f32.mrf.mxu0
  %v729 = vadd.f32 0.0, %v728
  %730 = vmatmul.f32.gmra.mxu0 %v126
  %v731 = vpop.f32.mrf.mxu0
  %v732 = vadd.f32 0.0, %v731
  %733 = vmatmul.f32.gmra.mxu0 %v129
  %v734 = vpop.f32.mrf.mxu0
  %v735 = vadd.f32 0.0, %v734
  %736 = vmatmul.f32.gmra.mxu0 %v132
  %v737 = vpop.f32.mrf.mxu0
  %v738 = vadd.f32 0.0, %v737
  %739 = vmatmul.f32.gmra.mxu0 %v135
  %v740 = vpop.f32.mrf.mxu0
  %v741 = vadd.f32 0.0, %v740
  %742 = vmatmul.f32.gmra.mxu0 %v138
  %v743 = vpop.f32.mrf.mxu0
  %v744 = vadd.f32 0.0, %v743
  %745 = vmatmul.f32.gmra.mxu0 %v141
  %v746 = vpop.f32.mrf.mxu0
  %v747 = vadd.f32 0.0, %v746
  %748 = vmatmul.f32.gmra.mxu0 %v144
  %v749 = vpop.f32.mrf.mxu0
  %v750 = vadd.f32 0.0, %v749
  %751 = vmatmul.f32.gmra.mxu0 %v147
  %v752 = vpop.f32.mrf.mxu0
  %v753 = vadd.f32 0.0, %v752
  %754 = vmatmul.f32.gmra.mxu0 %v150
  %v755 = vpop.f32.mrf.mxu0
  %v756 = vadd.f32 0.0, %v755
  %757 = vmatmul.f32.gmra.mxu0 %v153
  %v758 = vpop.f32.mrf.mxu0
  %v759 = vadd.f32 0.0, %v758
  %760 = vmatmul.f32.gmra.mxu0 %v156
  %v761 = vpop.f32.mrf.mxu0
  %v762 = vadd.f32 0.0, %v761
  %763 = vmatmul.f32.gmra.mxu0 %v159
  %v764 = vpop.f32.mrf.mxu0
  %v765 = vadd.f32 0.0, %v764
  %766 = vmatmul.f32.gmra.mxu0 %v162
  %v767 = vpop.f32.mrf.mxu0
  %v768 = vadd.f32 0.0, %v767
  %769 = vmatmul.f32.gmra.mxu0 %v165
  %v770 = vpop.f32.mrf.mxu0
  %v771 = vadd.f32 0.0, %v770
  %772 = vmatmul.f32.gmra.mxu0 %v168
  %v773 = vpop.f32.mrf.mxu0
  %v774 = vadd.f32 0.0, %v773
  %775 = vmatmul.f32.gmra.mxu0 %v171
  %v776 = vpop.f32.mrf.mxu0
  %v777 = vadd.f32 0.0, %v776
  %778 = vmatmul.f32.gmra.mxu0 %v174
  %v779 = vpop.f32.mrf.mxu0
  %v780 = vadd.f32 0.0, %v779
  %781 = vmatmul.f32.gmra.mxu0 %v177
  %v782 = vpop.f32.mrf.mxu0
  %v783 = vadd.f32 0.0, %v782
  %784 = vmatmul.f32.gmra.mxu0 %v180
  %v785 = vpop.f32.mrf.mxu0
  %v786 = vadd.f32 0.0, %v785
  %787 = vmatmul.f32.gmra.mxu0 %v183
  %v788 = vpop.f32.mrf.mxu0
  %v789 = vadd.f32 0.0, %v788
  %790 = vmatmul.f32.gmra.mxu0 %v186
  %v791 = vpop.f32.mrf.mxu0
  %v792 = vadd.f32 0.0, %v791
  %793 = vmatmul.f32.gmra.mxu0 %v189
  %v794 = vpop.f32.mrf.mxu0
  %v795 = vadd.f32 0.0, %v794
  %796 = vmatmul.f32.gmra.mxu0 %v192
  %v797 = vpop.f32.mrf.mxu0
  %v798 = vadd.f32 0.0, %v797
  %799 = vdwg.mxu0
  %800 = vmatpush.msra.mxu0 0.0
  %801 = vmatpush.msra.mxu0 0.0
  %802 = vmatpush.msra.mxu0 0.0
  %803 = vmatpush.msra.mxu0 0.0
  %804 = vmatpush.msra.mxu0 0.0
  %805 = vmatpush.msra.mxu0 0.0
  %806 = vmatpush.msra.mxu0 0.0
  %807 = vmatpush.msra.mxu0 0.0
  %808 = vmatpush.msra.mxu0 0.0
  %809 = vmatpush.msra.mxu0 0.0
  %810 = vmatpush.msra.mxu0 0.0
  %811 = vmatpush.msra.mxu0 0.0
  %812 = vmatpush.msra.mxu0 %v108
  %813 = vmatpush.msra.mxu0 %v101
  %814 = vmatpush.msra.mxu0 %v94
  %815 = vmatpush.msra.mxu0 %v87
  %816 = vmatmul.f32.gmra.mxu0 %v111
  %v817 = vpop.f32.mrf.mxu0
  %v818 = vadd.f32 0.0, %v817
  %819 = vmatmul.f32.gmra.mxu0 %v114
  %v820 = vpop.f32.mrf.mxu0
  %v821 = vadd.f32 0.0, %v820
  %822 = vmatmul.f32.gmra.mxu0 %v117
  %v823 = vpop.f32.mrf.mxu0
  %v824 = vadd.f32 0.0, %v823
  %825 = vmatmul.f32.gmra.mxu0 %v120
  %v826 = vpop.f32.mrf.mxu0
  %v827 = vadd.f32 0.0, %v826
  %828 = vmatmul.f32.gmra.mxu0 %v123
  %v829 = vpop.f32.mrf.mxu0
  %v830 = vadd.f32 0.0, %v829
  %831 = vmatmul.f32.gmra.mxu0 %v126
  %v832 = vpop.f32.mrf.mxu0
  %v833 = vadd.f32 0.0, %v832
  %834 = vmatmul.f32.gmra.mxu0 %v129
  %v835 = vpop.f32.mrf.mxu0
  %v836 = vadd.f32 0.0, %v835
  %837 = vmatmul.f32.gmra.mxu0 %v132
  %v838 = vpop.f32.mrf.mxu0
  %v839 = vadd.f32 0.0, %v838
  %840 = vmatmul.f32.gmra.mxu0 %v135
  %v841 = vpop.f32.mrf.mxu0
  %v842 = vadd.f32 0.0, %v841
  %843 = vmatmul.f32.gmra.mxu0 %v138
  %v844 = vpop.f32.mrf.mxu0
  %v845 = vadd.f32 0.0, %v844
  %846 = vmatmul.f32.gmra.mxu0 %v141
  %v847 = vpop.f32.mrf.mxu0
  %v848 = vadd.f32 0.0, %v847
  %849 = vmatmul.f32.gmra.mxu0 %v144
  %v850 = vpop.f32.mrf.mxu0
  %v851 = vadd.f32 0.0, %v850
  %852 = vmatmul.f32.gmra.mxu0 %v147
  %v853 = vpop.f32.mrf.mxu0
  %v854 = vadd.f32 0.0, %v853
  %855 = vmatmul.f32.gmra.mxu0 %v150
  %v856 = vpop.f32.mrf.mxu0
  %v857 = vadd.f32 0.0, %v856
  %858 = vmatmul.f32.gmra.mxu0 %v153
  %v859 = vpop.f32.mrf.mxu0
  %v860 = vadd.f32 0.0, %v859
  %861 = vmatmul.f32.gmra.mxu0 %v156
  %v862 = vpop.f32.mrf.mxu0
  %v863 = vadd.f32 0.0, %v862
  %864 = vmatmul.f32.gmra.mxu0 %v159
  %v865 = vpop.f32.mrf.mxu0
  %v866 = vadd.f32 0.0, %v865
  %867 = vmatmul.f32.gmra.mxu0 %v162
  %v868 = vpop.f32.mrf.mxu0
  %v869 = vadd.f32 0.0, %v868
  %870 = vmatmul.f32.gmra.mxu0 %v165
  %v871 = vpop.f32.mrf.mxu0
  %v872 = vadd.f32 0.0, %v871
  %873 = vmatmul.f32.gmra.mxu0 %v168
  %v874 = vpop.f32.mrf.mxu0
  %v875 = vadd.f32 0.0, %v874
  %876 = vmatmul.f32.gmra.mxu0 %v171
  %v877 = vpop.f32.mrf.mxu0
  %v878 = vadd.f32 0.0, %v877
  %879 = vmatmul.f32.gmra.mxu0 %v174
  %v880 = vpop.f32.mrf.mxu0
  %v881 = vadd.f32 0.0, %v880
  %882 = vmatmul.f32.gmra.mxu0 %v177
  %v883 = vpop.f32.mrf.mxu0
  %v884 = vadd.f32 0.0, %v883
  %885 = vmatmul.f32.gmra.mxu0 %v180
  %v886 = vpop.f32.mrf.mxu0
  %v887 = vadd.f32 0.0, %v886
  %888 = vmatmul.f32.gmra.mxu0 %v183
  %v889 = vpop.f32.mrf.mxu0
  %v890 = vadd.f32 0.0, %v889
  %891 = vmatmul.f32.gmra.mxu0 %v186
  %v892 = vpop.f32.mrf.mxu0
  %v893 = vadd.f32 0.0, %v892
  %894 = vmatmul.f32.gmra.mxu0 %v189
  %v895 = vpop.f32.mrf.mxu0
  %v896 = vadd.f32 0.0, %v895
  %897 = vmatmul.f32.gmra.mxu0 %v192
  %v898 = vpop.f32.mrf.mxu0
  %v899 = vadd.f32 0.0, %v898
  %900 = vdwg.mxu0
  %v902 = vsel %vm109, %v20, 0
  %904 = vmatpush.msra.mxu0 0.0
  %905 = vmatpush.msra.mxu0 0.0
  %906 = vmatpush.msra.mxu0 0.0
  %907 = vmatpush.msra.mxu0 0.0
  %908 = vmatpush.msra.mxu0 0.0
  %909 = vmatpush.msra.mxu0 0.0
  %910 = vmatpush.msra.mxu0 0.0
  %911 = vmatpush.msra.mxu0 0.0
  %912 = vmatpush.msra.mxu0 0.0
  %913 = vmatpush.msra.mxu0 0.0
  %914 = vmatpush.msra.mxu0 0.0
  %915 = vmatpush.msra.mxu0 0.0
  %916 = vmatpush.msra.mxu0 %v73
  %917 = vmatpush.msra.mxu0 %v66
  %918 = vmatpush.msra.mxu0 %v59
  %919 = vmatpush.msra.mxu0 %v52
  %920 = vmatmul.f32.gmra.mxu0 %v902
  %v921 = vpop.f32.mrf.mxu0
  %v922 = vadd.f32 %v212, %v921
  %923 = vmatmul.f32.gmra.mxu0 %v111
  %v924 = vpop.f32.mrf.mxu0
  %v925 = vadd.f32 %v215, %v924
  %926 = vmatmul.f32.gmra.mxu0 %v114
  %v927 = vpop.f32.mrf.mxu0
  %v928 = vadd.f32 %v218, %v927
  %929 = vmatmul.f32.gmra.mxu0 %v117
  %v930 = vpop.f32.mrf.mxu0
  %v931 = vadd.f32 %v221, %v930
  %932 = vmatmul.f32.gmra.mxu0 %v120
  %v933 = vpop.f32.mrf.mxu0
  %v934 = vadd.f32 %v224, %v933
  %935 = vmatmul.f32.gmra.mxu0 %v123
  %v936 = vpop.f32.mrf.mxu0
  %v937 = vadd.f32 %v227, %v936
  %938 = vmatmul.f32.gmra.mxu0 %v126
  %v939 = vpop.f32.mrf.mxu0
  %v940 = vadd.f32 %v230, %v939
  %941 = vmatmul.f32.gmra.mxu0 %v129
  %v942 = vpop.f32.mrf.mxu0
  %v943 = vadd.f32 %v233, %v942
  %944 = vmatmul.f32.gmra.mxu0 %v132
  %v945 = vpop.f32.mrf.mxu0
  %v946 = vadd.f32 %v236, %v945
  %947 = vmatmul.f32.gmra.mxu0 %v135
  %v948 = vpop.f32.mrf.mxu0
  %v949 = vadd.f32 %v239, %v948
  %950 = vmatmul.f32.gmra.mxu0 %v138
  %v951 = vpop.f32.mrf.mxu0
  %v952 = vadd.f32 %v242, %v951
  %953 = vmatmul.f32.gmra.mxu0 %v141
  %v954 = vpop.f32.mrf.mxu0
  %v955 = vadd.f32 %v245, %v954
  %956 = vmatmul.f32.gmra.mxu0 %v144
  %v957 = vpop.f32.mrf.mxu0
  %v958 = vadd.f32 %v248, %v957
  %959 = vmatmul.f32.gmra.mxu0 %v147
  %v960 = vpop.f32.mrf.mxu0
  %v961 = vadd.f32 %v251, %v960
  %962 = vmatmul.f32.gmra.mxu0 %v150
  %v963 = vpop.f32.mrf.mxu0
  %v964 = vadd.f32 %v254, %v963
  %965 = vmatmul.f32.gmra.mxu0 %v153
  %v966 = vpop.f32.mrf.mxu0
  %v967 = vadd.f32 %v257, %v966
  %968 = vmatmul.f32.gmra.mxu0 %v156
  %v969 = vpop.f32.mrf.mxu0
  %v970 = vadd.f32 %v260, %v969
  %971 = vmatmul.f32.gmra.mxu0 %v159
  %v972 = vpop.f32.mrf.mxu0
  %v973 = vadd.f32 %v263, %v972
  %974 = vmatmul.f32.gmra.mxu0 %v162
  %v975 = vpop.f32.mrf.mxu0
  %v976 = vadd.f32 %v266, %v975
  %977 = vmatmul.f32.gmra.mxu0 %v165
  %v978 = vpop.f32.mrf.mxu0
  %v979 = vadd.f32 %v269, %v978
  %980 = vmatmul.f32.gmra.mxu0 %v168
  %v981 = vpop.f32.mrf.mxu0
  %v982 = vadd.f32 %v272, %v981
  %983 = vmatmul.f32.gmra.mxu0 %v171
  %v984 = vpop.f32.mrf.mxu0
  %v985 = vadd.f32 %v275, %v984
  %986 = vmatmul.f32.gmra.mxu0 %v174
  %v987 = vpop.f32.mrf.mxu0
  %v988 = vadd.f32 %v278, %v987
  %989 = vmatmul.f32.gmra.mxu0 %v177
  %v990 = vpop.f32.mrf.mxu0
  %v991 = vadd.f32 %v281, %v990
  %992 = vmatmul.f32.gmra.mxu0 %v180
  %v993 = vpop.f32.mrf.mxu0
  %v994 = vadd.f32 %v284, %v993
  %995 = vmatmul.f32.gmra.mxu0 %v183
  %v996 = vpop.f32.mrf.mxu0
  %v997 = vadd.f32 %v287, %v996
  %998 = vmatmul.f32.gmra.mxu0 %v186
  %v999 = vpop.f32.mrf.mxu0
  %v1000 = vadd.f32 %v290, %v999
  %1001 = vmatmul.f32.gmra.mxu0 %v189
  %v1002 = vpop.f32.mrf.mxu0
  %v1003 = vadd.f32 %v293, %v1002
  %1004 = vdwg.mxu0
  %1005 = vmatpush.msra.mxu0 0.0
  %1006 = vmatpush.msra.mxu0 0.0
  %1007 = vmatpush.msra.mxu0 0.0
  %1008 = vmatpush.msra.mxu0 0.0
  %1009 = vmatpush.msra.mxu0 0.0
  %1010 = vmatpush.msra.mxu0 0.0
  %1011 = vmatpush.msra.mxu0 0.0
  %1012 = vmatpush.msra.mxu0 0.0
  %1013 = vmatpush.msra.mxu0 0.0
  %1014 = vmatpush.msra.mxu0 0.0
  %1015 = vmatpush.msra.mxu0 0.0
  %1016 = vmatpush.msra.mxu0 0.0
  %1017 = vmatpush.msra.mxu0 %v74
  %1018 = vmatpush.msra.mxu0 %v67
  %1019 = vmatpush.msra.mxu0 %v60
  %1020 = vmatpush.msra.mxu0 %v53
  %1021 = vmatmul.f32.gmra.mxu0 %v902
  %v1022 = vpop.f32.mrf.mxu0
  %v1023 = vadd.f32 %v313, %v1022
  %1024 = vmatmul.f32.gmra.mxu0 %v111
  %v1025 = vpop.f32.mrf.mxu0
  %v1026 = vadd.f32 %v316, %v1025
  %1027 = vmatmul.f32.gmra.mxu0 %v114
  %v1028 = vpop.f32.mrf.mxu0
  %v1029 = vadd.f32 %v319, %v1028
  %1030 = vmatmul.f32.gmra.mxu0 %v117
  %v1031 = vpop.f32.mrf.mxu0
  %v1032 = vadd.f32 %v322, %v1031
  %1033 = vmatmul.f32.gmra.mxu0 %v120
  %v1034 = vpop.f32.mrf.mxu0
  %v1035 = vadd.f32 %v325, %v1034
  %1036 = vmatmul.f32.gmra.mxu0 %v123
  %v1037 = vpop.f32.mrf.mxu0
  %v1038 = vadd.f32 %v328, %v1037
  %1039 = vmatmul.f32.gmra.mxu0 %v126
  %v1040 = vpop.f32.mrf.mxu0
  %v1041 = vadd.f32 %v331, %v1040
  %1042 = vmatmul.f32.gmra.mxu0 %v129
  %v1043 = vpop.f32.mrf.mxu0
  %v1044 = vadd.f32 %v334, %v1043
  %1045 = vmatmul.f32.gmra.mxu0 %v132
  %v1046 = vpop.f32.mrf.mxu0
  %v1047 = vadd.f32 %v337, %v1046
  %1048 = vmatmul.f32.gmra.mxu0 %v135
  %v1049 = vpop.f32.mrf.mxu0
  %v1050 = vadd.f32 %v340, %v1049
  %1051 = vmatmul.f32.gmra.mxu0 %v138
  %v1052 = vpop.f32.mrf.mxu0
  %v1053 = vadd.f32 %v343, %v1052
  %1054 = vmatmul.f32.gmra.mxu0 %v141
  %v1055 = vpop.f32.mrf.mxu0
  %v1056 = vadd.f32 %v346, %v1055
  %1057 = vmatmul.f32.gmra.mxu0 %v144
  %v1058 = vpop.f32.mrf.mxu0
  %v1059 = vadd.f32 %v349, %v1058
  %1060 = vmatmul.f32.gmra.mxu0 %v147
  %v1061 = vpop.f32.mrf.mxu0
  %v1062 = vadd.f32 %v352, %v1061
  %1063 = vmatmul.f32.gmra.mxu0 %v150
  %v1064 = vpop.f32.mrf.mxu0
  %v1065 = vadd.f32 %v355, %v1064
  %1066 = vmatmul.f32.gmra.mxu0 %v153
  %v1067 = vpop.f32.mrf.mxu0
  %v1068 = vadd.f32 %v358, %v1067
  %1069 = vmatmul.f32.gmra.mxu0 %v156
  %v1070 = vpop.f32.mrf.mxu0
  %v1071 = vadd.f32 %v361, %v1070
  %1072 = vmatmul.f32.gmra.mxu0 %v159
  %v1073 = vpop.f32.mrf.mxu0
  %v1074 = vadd.f32 %v364, %v1073
  %1075 = vmatmul.f32.gmra.mxu0 %v162
  %v1076 = vpop.f32.mrf.mxu0
  %v1077 = vadd.f32 %v367, %v1076
  %1078 = vmatmul.f32.gmra.mxu0 %v165
  %v1079 = vpop.f32.mrf.mxu0
  %v1080 = vadd.f32 %v370, %v1079
  %1081 = vmatmul.f32.gmra.mxu0 %v168
  %v1082 = vpop.f32.mrf.mxu0
  %v1083 = vadd.f32 %v373, %v1082
  %1084 = vmatmul.f32.gmra.mxu0 %v171
  %v1085 = vpop.f32.mrf.mxu0
  %v1086 = vadd.f32 %v376, %v1085
  %1087 = vmatmul.f32.gmra.mxu0 %v174
  %v1088 = vpop.f32.mrf.mxu0
  %v1089 = vadd.f32 %v379, %v1088
  %1090 = vmatmul.f32.gmra.mxu0 %v177
  %v1091 = vpop.f32.mrf.mxu0
  %v1092 = vadd.f32 %v382, %v1091
  %1093 = vmatmul.f32.gmra.mxu0 %v180
  %v1094 = vpop.f32.mrf.mxu0
  %v1095 = vadd.f32 %v385, %v1094
  %1096 = vmatmul.f32.gmra.mxu0 %v183
  %v1097 = vpop.f32.mrf.mxu0
  %v1098 = vadd.f32 %v388, %v1097
  %1099 = vmatmul.f32.gmra.mxu0 %v186
  %v1100 = vpop.f32.mrf.mxu0
  %v1101 = vadd.f32 %v391, %v1100
  %1102 = vmatmul.f32.gmra.mxu0 %v189
  %v1103 = vpop.f32.mrf.mxu0
  %v1104 = vadd.f32 %v394, %v1103
  %1105 = vdwg.mxu0
  %1106 = vmatpush.msra.mxu0 0.0
  %1107 = vmatpush.msra.mxu0 0.0
  %1108 = vmatpush.msra.mxu0 0.0
  %1109 = vmatpush.msra.mxu0 0.0
  %1110 = vmatpush.msra.mxu0 0.0
  %1111 = vmatpush.msra.mxu0 0.0
  %1112 = vmatpush.msra.mxu0 0.0
  %1113 = vmatpush.msra.mxu0 0.0
  %1114 = vmatpush.msra.mxu0 0.0
  %1115 = vmatpush.msra.mxu0 0.0
  %1116 = vmatpush.msra.mxu0 0.0
  %1117 = vmatpush.msra.mxu0 0.0
  %1118 = vmatpush.msra.mxu0 %v75
  %1119 = vmatpush.msra.mxu0 %v68
  %1120 = vmatpush.msra.mxu0 %v61
  %1121 = vmatpush.msra.mxu0 %v54
  %1122 = vmatmul.f32.gmra.mxu0 %v902
  %v1123 = vpop.f32.mrf.mxu0
  %v1124 = vadd.f32 %v414, %v1123
  %1125 = vmatmul.f32.gmra.mxu0 %v111
  %v1126 = vpop.f32.mrf.mxu0
  %v1127 = vadd.f32 %v417, %v1126
  %1128 = vmatmul.f32.gmra.mxu0 %v114
  %v1129 = vpop.f32.mrf.mxu0
  %v1130 = vadd.f32 %v420, %v1129
  %1131 = vmatmul.f32.gmra.mxu0 %v117
  %v1132 = vpop.f32.mrf.mxu0
  %v1133 = vadd.f32 %v423, %v1132
  %1134 = vmatmul.f32.gmra.mxu0 %v120
  %v1135 = vpop.f32.mrf.mxu0
  %v1136 = vadd.f32 %v426, %v1135
  %1137 = vmatmul.f32.gmra.mxu0 %v123
  %v1138 = vpop.f32.mrf.mxu0
  %v1139 = vadd.f32 %v429, %v1138
  %1140 = vmatmul.f32.gmra.mxu0 %v126
  %v1141 = vpop.f32.mrf.mxu0
  %v1142 = vadd.f32 %v432, %v1141
  %1143 = vmatmul.f32.gmra.mxu0 %v129
  %v1144 = vpop.f32.mrf.mxu0
  %v1145 = vadd.f32 %v435, %v1144
  %1146 = vmatmul.f32.gmra.mxu0 %v132
  %v1147 = vpop.f32.mrf.mxu0
  %v1148 = vadd.f32 %v438, %v1147
  %1149 = vmatmul.f32.gmra.mxu0 %v135
  %v1150 = vpop.f32.mrf.mxu0
  %v1151 = vadd.f32 %v441, %v1150
  %1152 = vmatmul.f32.gmra.mxu0 %v138
  %v1153 = vpop.f32.mrf.mxu0
  %v1154 = vadd.f32 %v444, %v1153
  %1155 = vmatmul.f32.gmra.mxu0 %v141
  %v1156 = vpop.f32.mrf.mxu0
  %v1157 = vadd.f32 %v447, %v1156
  %1158 = vmatmul.f32.gmra.mxu0 %v144
  %v1159 = vpop.f32.mrf.mxu0
  %v1160 = vadd.f32 %v450, %v1159
  %1161 = vmatmul.f32.gmra.mxu0 %v147
  %v1162 = vpop.f32.mrf.mxu0
  %v1163 = vadd.f32 %v453, %v1162
  %1164 = vmatmul.f32.gmra.mxu0 %v150
  %v1165 = vpop.f32.mrf.mxu0
  %v1166 = vadd.f32 %v456, %v1165
  %1167 = vmatmul.f32.gmra.mxu0 %v153
  %v1168 = vpop.f32.mrf.mxu0
  %v1169 = vadd.f32 %v459, %v1168
  %1170 = vmatmul.f32.gmra.mxu0 %v156
  %v1171 = vpop.f32.mrf.mxu0
  %v1172 = vadd.f32 %v462, %v1171
  %1173 = vmatmul.f32.gmra.mxu0 %v159
  %v1174 = vpop.f32.mrf.mxu0
  %v1175 = vadd.f32 %v465, %v1174
  %1176 = vmatmul.f32.gmra.mxu0 %v162
  %v1177 = vpop.f32.mrf.mxu0
  %v1178 = vadd.f32 %v468, %v1177
  %1179 = vmatmul.f32.gmra.mxu0 %v165
  %v1180 = vpop.f32.mrf.mxu0
  %v1181 = vadd.f32 %v471, %v1180
  %1182 = vmatmul.f32.gmra.mxu0 %v168
  %v1183 = vpop.f32.mrf.mxu0
  %v1184 = vadd.f32 %v474, %v1183
  %1185 = vmatmul.f32.gmra.mxu0 %v171
  %v1186 = vpop.f32.mrf.mxu0
  %v1187 = vadd.f32 %v477, %v1186
  %1188 = vmatmul.f32.gmra.mxu0 %v174
  %v1189 = vpop.f32.mrf.mxu0
  %v1190 = vadd.f32 %v480, %v1189
  %1191 = vmatmul.f32.gmra.mxu0 %v177
  %v1192 = vpop.f32.mrf.mxu0
  %v1193 = vadd.f32 %v483, %v1192
  %1194 = vmatmul.f32.gmra.mxu0 %v180
  %v1195 = vpop.f32.mrf.mxu0
  %v1196 = vadd.f32 %v486, %v1195
  %1197 = vmatmul.f32.gmra.mxu0 %v183
  %v1198 = vpop.f32.mrf.mxu0
  %v1199 = vadd.f32 %v489, %v1198
  %1200 = vmatmul.f32.gmra.mxu0 %v186
  %v1201 = vpop.f32.mrf.mxu0
  %v1202 = vadd.f32 %v492, %v1201
  %1203 = vmatmul.f32.gmra.mxu0 %v189
  %v1204 = vpop.f32.mrf.mxu0
  %v1205 = vadd.f32 %v495, %v1204
  %1206 = vdwg.mxu0
  %1207 = vmatpush.msra.mxu0 0.0
  %1208 = vmatpush.msra.mxu0 0.0
  %1209 = vmatpush.msra.mxu0 0.0
  %1210 = vmatpush.msra.mxu0 0.0
  %1211 = vmatpush.msra.mxu0 0.0
  %1212 = vmatpush.msra.mxu0 0.0
  %1213 = vmatpush.msra.mxu0 0.0
  %1214 = vmatpush.msra.mxu0 0.0
  %1215 = vmatpush.msra.mxu0 0.0
  %1216 = vmatpush.msra.mxu0 0.0
  %1217 = vmatpush.msra.mxu0 0.0
  %1218 = vmatpush.msra.mxu0 0.0
  %1219 = vmatpush.msra.mxu0 %v76
  %1220 = vmatpush.msra.mxu0 %v69
  %1221 = vmatpush.msra.mxu0 %v62
  %1222 = vmatpush.msra.mxu0 %v55
  %1223 = vmatmul.f32.gmra.mxu0 %v902
  %v1224 = vpop.f32.mrf.mxu0
  %v1225 = vadd.f32 %v515, %v1224
  %1226 = vmatmul.f32.gmra.mxu0 %v111
  %v1227 = vpop.f32.mrf.mxu0
  %v1228 = vadd.f32 %v518, %v1227
  %1229 = vmatmul.f32.gmra.mxu0 %v114
  %v1230 = vpop.f32.mrf.mxu0
  %v1231 = vadd.f32 %v521, %v1230
  %1232 = vmatmul.f32.gmra.mxu0 %v117
  %v1233 = vpop.f32.mrf.mxu0
  %v1234 = vadd.f32 %v524, %v1233
  %1235 = vmatmul.f32.gmra.mxu0 %v120
  %v1236 = vpop.f32.mrf.mxu0
  %v1237 = vadd.f32 %v527, %v1236
  %1238 = vmatmul.f32.gmra.mxu0 %v123
  %v1239 = vpop.f32.mrf.mxu0
  %v1240 = vadd.f32 %v530, %v1239
  %1241 = vmatmul.f32.gmra.mxu0 %v126
  %v1242 = vpop.f32.mrf.mxu0
  %v1243 = vadd.f32 %v533, %v1242
  %1244 = vmatmul.f32.gmra.mxu0 %v129
  %v1245 = vpop.f32.mrf.mxu0
  %v1246 = vadd.f32 %v536, %v1245
  %1247 = vmatmul.f32.gmra.mxu0 %v132
  %v1248 = vpop.f32.mrf.mxu0
  %v1249 = vadd.f32 %v539, %v1248
  %1250 = vmatmul.f32.gmra.mxu0 %v135
  %v1251 = vpop.f32.mrf.mxu0
  %v1252 = vadd.f32 %v542, %v1251
  %1253 = vmatmul.f32.gmra.mxu0 %v138
  %v1254 = vpop.f32.mrf.mxu0
  %v1255 = vadd.f32 %v545, %v1254
  %1256 = vmatmul.f32.gmra.mxu0 %v141
  %v1257 = vpop.f32.mrf.mxu0
  %v1258 = vadd.f32 %v548, %v1257
  %1259 = vmatmul.f32.gmra.mxu0 %v144
  %v1260 = vpop.f32.mrf.mxu0
  %v1261 = vadd.f32 %v551, %v1260
  %1262 = vmatmul.f32.gmra.mxu0 %v147
  %v1263 = vpop.f32.mrf.mxu0
  %v1264 = vadd.f32 %v554, %v1263
  %1265 = vmatmul.f32.gmra.mxu0 %v150
  %v1266 = vpop.f32.mrf.mxu0
  %v1267 = vadd.f32 %v557, %v1266
  %1268 = vmatmul.f32.gmra.mxu0 %v153
  %v1269 = vpop.f32.mrf.mxu0
  %v1270 = vadd.f32 %v560, %v1269
  %1271 = vmatmul.f32.gmra.mxu0 %v156
  %v1272 = vpop.f32.mrf.mxu0
  %v1273 = vadd.f32 %v563, %v1272
  %1274 = vmatmul.f32.gmra.mxu0 %v159
  %v1275 = vpop.f32.mrf.mxu0
  %v1276 = vadd.f32 %v566, %v1275
  %1277 = vmatmul.f32.gmra.mxu0 %v162
  %v1278 = vpop.f32.mrf.mxu0
  %v1279 = vadd.f32 %v569, %v1278
  %1280 = vmatmul.f32.gmra.mxu0 %v165
  %v1281 = vpop.f32.mrf.mxu0
  %v1282 = vadd.f32 %v572, %v1281
  %1283 = vmatmul.f32.gmra.mxu0 %v168
  %v1284 = vpop.f32.mrf.mxu0
  %v1285 = vadd.f32 %v575, %v1284
  %1286 = vmatmul.f32.gmra.mxu0 %v171
  %v1287 = vpop.f32.mrf.mxu0
  %v1288 = vadd.f32 %v578, %v1287
  %1289 = vmatmul.f32.gmra.mxu0 %v174
  %v1290 = vpop.f32.mrf.mxu0
  %v1291 = vadd.f32 %v581, %v1290
  %1292 = vmatmul.f32.gmra.mxu0 %v177
  %v1293 = vpop.f32.mrf.mxu0
  %v1294 = vadd.f32 %v584, %v1293
  %1295 = vmatmul.f32.gmra.mxu0 %v180
  %v1296 = vpop.f32.mrf.mxu0
  %v1297 = vadd.f32 %v587, %v1296
  %1298 = vmatmul.f32.gmra.mxu0 %v183
  %v1299 = vpop.f32.mrf.mxu0
  %v1300 = vadd.f32 %v590, %v1299
  %1301 = vmatmul.f32.gmra.mxu0 %v186
  %v1302 = vpop.f32.mrf.mxu0
  %v1303 = vadd.f32 %v593, %v1302
  %1304 = vmatmul.f32.gmra.mxu0 %v189
  %v1305 = vpop.f32.mrf.mxu0
  %v1306 = vadd.f32 %v596, %v1305
  %1307 = vdwg.mxu0
  %1308 = vmatpush.msra.mxu0 0.0
  %1309 = vmatpush.msra.mxu0 0.0
  %1310 = vmatpush.msra.mxu0 0.0
  %1311 = vmatpush.msra.mxu0 0.0
  %1312 = vmatpush.msra.mxu0 0.0
  %1313 = vmatpush.msra.mxu0 0.0
  %1314 = vmatpush.msra.mxu0 0.0
  %1315 = vmatpush.msra.mxu0 0.0
  %1316 = vmatpush.msra.mxu0 0.0
  %1317 = vmatpush.msra.mxu0 0.0
  %1318 = vmatpush.msra.mxu0 0.0
  %1319 = vmatpush.msra.mxu0 0.0
  %1320 = vmatpush.msra.mxu0 %v77
  %1321 = vmatpush.msra.mxu0 %v70
  %1322 = vmatpush.msra.mxu0 %v63
  %1323 = vmatpush.msra.mxu0 %v56
  %1324 = vmatmul.f32.gmra.mxu0 %v902
  %v1325 = vpop.f32.mrf.mxu0
  %v1326 = vadd.f32 %v616, %v1325
  %1327 = vmatmul.f32.gmra.mxu0 %v111
  %v1328 = vpop.f32.mrf.mxu0
  %v1329 = vadd.f32 %v619, %v1328
  %1330 = vmatmul.f32.gmra.mxu0 %v114
  %v1331 = vpop.f32.mrf.mxu0
  %v1332 = vadd.f32 %v622, %v1331
  %1333 = vmatmul.f32.gmra.mxu0 %v117
  %v1334 = vpop.f32.mrf.mxu0
  %v1335 = vadd.f32 %v625, %v1334
  %1336 = vmatmul.f32.gmra.mxu0 %v120
  %v1337 = vpop.f32.mrf.mxu0
  %v1338 = vadd.f32 %v628, %v1337
  %1339 = vmatmul.f32.gmra.mxu0 %v123
  %v1340 = vpop.f32.mrf.mxu0
  %v1341 = vadd.f32 %v631, %v1340
  %1342 = vmatmul.f32.gmra.mxu0 %v126
  %v1343 = vpop.f32.mrf.mxu0
  %v1344 = vadd.f32 %v634, %v1343
  %1345 = vmatmul.f32.gmra.mxu0 %v129
  %v1346 = vpop.f32.mrf.mxu0
  %v1347 = vadd.f32 %v637, %v1346
  %1348 = vmatmul.f32.gmra.mxu0 %v132
  %v1349 = vpop.f32.mrf.mxu0
  %v1350 = vadd.f32 %v640, %v1349
  %1351 = vmatmul.f32.gmra.mxu0 %v135
  %v1352 = vpop.f32.mrf.mxu0
  %v1353 = vadd.f32 %v643, %v1352
  %1354 = vmatmul.f32.gmra.mxu0 %v138
  %v1355 = vpop.f32.mrf.mxu0
  %v1356 = vadd.f32 %v646, %v1355
  %1357 = vmatmul.f32.gmra.mxu0 %v141
  %v1358 = vpop.f32.mrf.mxu0
  %v1359 = vadd.f32 %v649, %v1358
  %1360 = vmatmul.f32.gmra.mxu0 %v144
  %v1361 = vpop.f32.mrf.mxu0
  %v1362 = vadd.f32 %v652, %v1361
  %1363 = vmatmul.f32.gmra.mxu0 %v147
  %v1364 = vpop.f32.mrf.mxu0
  %v1365 = vadd.f32 %v655, %v1364
  %1366 = vmatmul.f32.gmra.mxu0 %v150
  %v1367 = vpop.f32.mrf.mxu0
  %v1368 = vadd.f32 %v658, %v1367
  %1369 = vmatmul.f32.gmra.mxu0 %v153
  %v1370 = vpop.f32.mrf.mxu0
  %v1371 = vadd.f32 %v661, %v1370
  %1372 = vmatmul.f32.gmra.mxu0 %v156
  %v1373 = vpop.f32.mrf.mxu0
  %v1374 = vadd.f32 %v664, %v1373
  %1375 = vmatmul.f32.gmra.mxu0 %v159
  %v1376 = vpop.f32.mrf.mxu0
  %v1377 = vadd.f32 %v667, %v1376
  %1378 = vmatmul.f32.gmra.mxu0 %v162
  %v1379 = vpop.f32.mrf.mxu0
  %v1380 = vadd.f32 %v670, %v1379
  %1381 = vmatmul.f32.gmra.mxu0 %v165
  %v1382 = vpop.f32.mrf.mxu0
  %v1383 = vadd.f32 %v673, %v1382
  %1384 = vmatmul.f32.gmra.mxu0 %v168
  %v1385 = vpop.f32.mrf.mxu0
  %v1386 = vadd.f32 %v676, %v1385
  %1387 = vmatmul.f32.gmra.mxu0 %v171
  %v1388 = vpop.f32.mrf.mxu0
  %v1389 = vadd.f32 %v679, %v1388
  %1390 = vmatmul.f32.gmra.mxu0 %v174
  %v1391 = vpop.f32.mrf.mxu0
  %v1392 = vadd.f32 %v682, %v1391
  %1393 = vmatmul.f32.gmra.mxu0 %v177
  %v1394 = vpop.f32.mrf.mxu0
  %v1395 = vadd.f32 %v685, %v1394
  %1396 = vmatmul.f32.gmra.mxu0 %v180
  %v1397 = vpop.f32.mrf.mxu0
  %v1398 = vadd.f32 %v688, %v1397
  %1399 = vmatmul.f32.gmra.mxu0 %v183
  %v1400 = vpop.f32.mrf.mxu0
  %v1401 = vadd.f32 %v691, %v1400
  %1402 = vmatmul.f32.gmra.mxu0 %v186
  %v1403 = vpop.f32.mrf.mxu0
  %v1404 = vadd.f32 %v694, %v1403
  %1405 = vmatmul.f32.gmra.mxu0 %v189
  %v1406 = vpop.f32.mrf.mxu0
  %v1407 = vadd.f32 %v697, %v1406
  %1408 = vdwg.mxu0
  %1409 = vmatpush.msra.mxu0 0.0
  %1410 = vmatpush.msra.mxu0 0.0
  %1411 = vmatpush.msra.mxu0 0.0
  %1412 = vmatpush.msra.mxu0 0.0
  %1413 = vmatpush.msra.mxu0 0.0
  %1414 = vmatpush.msra.mxu0 0.0
  %1415 = vmatpush.msra.mxu0 0.0
  %1416 = vmatpush.msra.mxu0 0.0
  %1417 = vmatpush.msra.mxu0 0.0
  %1418 = vmatpush.msra.mxu0 0.0
  %1419 = vmatpush.msra.mxu0 0.0
  %1420 = vmatpush.msra.mxu0 0.0
  %1421 = vmatpush.msra.mxu0 %v78
  %1422 = vmatpush.msra.mxu0 %v71
  %1423 = vmatpush.msra.mxu0 %v64
  %1424 = vmatpush.msra.mxu0 %v57
  %1425 = vmatmul.f32.gmra.mxu0 %v902
  %v1426 = vpop.f32.mrf.mxu0
  %v1427 = vadd.f32 %v717, %v1426
  %1428 = vmatmul.f32.gmra.mxu0 %v111
  %v1429 = vpop.f32.mrf.mxu0
  %v1430 = vadd.f32 %v720, %v1429
  %1431 = vmatmul.f32.gmra.mxu0 %v114
  %v1432 = vpop.f32.mrf.mxu0
  %v1433 = vadd.f32 %v723, %v1432
  %1434 = vmatmul.f32.gmra.mxu0 %v117
  %v1435 = vpop.f32.mrf.mxu0
  %v1436 = vadd.f32 %v726, %v1435
  %1437 = vmatmul.f32.gmra.mxu0 %v120
  %v1438 = vpop.f32.mrf.mxu0
  %v1439 = vadd.f32 %v729, %v1438
  %1440 = vmatmul.f32.gmra.mxu0 %v123
  %v1441 = vpop.f32.mrf.mxu0
  %v1442 = vadd.f32 %v732, %v1441
  %1443 = vmatmul.f32.gmra.mxu0 %v126
  %v1444 = vpop.f32.mrf.mxu0
  %v1445 = vadd.f32 %v735, %v1444
  %1446 = vmatmul.f32.gmra.mxu0 %v129
  %v1447 = vpop.f32.mrf.mxu0
  %v1448 = vadd.f32 %v738, %v1447
  %1449 = vmatmul.f32.gmra.mxu0 %v132
  %v1450 = vpop.f32.mrf.mxu0
  %v1451 = vadd.f32 %v741, %v1450
  %1452 = vmatmul.f32.gmra.mxu0 %v135
  %v1453 = vpop.f32.mrf.mxu0
  %v1454 = vadd.f32 %v744, %v1453
  %1455 = vmatmul.f32.gmra.mxu0 %v138
  %v1456 = vpop.f32.mrf.mxu0
  %v1457 = vadd.f32 %v747, %v1456
  %1458 = vmatmul.f32.gmra.mxu0 %v141
  %v1459 = vpop.f32.mrf.mxu0
  %v1460 = vadd.f32 %v750, %v1459
  %1461 = vmatmul.f32.gmra.mxu0 %v144
  %v1462 = vpop.f32.mrf.mxu0
  %v1463 = vadd.f32 %v753, %v1462
  %1464 = vmatmul.f32.gmra.mxu0 %v147
  %v1465 = vpop.f32.mrf.mxu0
  %v1466 = vadd.f32 %v756, %v1465
  %1467 = vmatmul.f32.gmra.mxu0 %v150
  %v1468 = vpop.f32.mrf.mxu0
  %v1469 = vadd.f32 %v759, %v1468
  %1470 = vmatmul.f32.gmra.mxu0 %v153
  %v1471 = vpop.f32.mrf.mxu0
  %v1472 = vadd.f32 %v762, %v1471
  %1473 = vmatmul.f32.gmra.mxu0 %v156
  %v1474 = vpop.f32.mrf.mxu0
  %v1475 = vadd.f32 %v765, %v1474
  %1476 = vmatmul.f32.gmra.mxu0 %v159
  %v1477 = vpop.f32.mrf.mxu0
  %v1478 = vadd.f32 %v768, %v1477
  %1479 = vmatmul.f32.gmra.mxu0 %v162
  %v1480 = vpop.f32.mrf.mxu0
  %v1481 = vadd.f32 %v771, %v1480
  %1482 = vmatmul.f32.gmra.mxu0 %v165
  %v1483 = vpop.f32.mrf.mxu0
  %v1484 = vadd.f32 %v774, %v1483
  %1485 = vmatmul.f32.gmra.mxu0 %v168
  %v1486 = vpop.f32.mrf.mxu0
  %v1487 = vadd.f32 %v777, %v1486
  %1488 = vmatmul.f32.gmra.mxu0 %v171
  %v1489 = vpop.f32.mrf.mxu0
  %v1490 = vadd.f32 %v780, %v1489
  %1491 = vmatmul.f32.gmra.mxu0 %v174
  %v1492 = vpop.f32.mrf.mxu0
  %v1493 = vadd.f32 %v783, %v1492
  %1494 = vmatmul.f32.gmra.mxu0 %v177
  %v1495 = vpop.f32.mrf.mxu0
  %v1496 = vadd.f32 %v786, %v1495
  %1497 = vmatmul.f32.gmra.mxu0 %v180
  %v1498 = vpop.f32.mrf.mxu0
  %v1499 = vadd.f32 %v789, %v1498
  %1500 = vmatmul.f32.gmra.mxu0 %v183
  %v1501 = vpop.f32.mrf.mxu0
  %v1502 = vadd.f32 %v792, %v1501
  %1503 = vmatmul.f32.gmra.mxu0 %v186
  %v1504 = vpop.f32.mrf.mxu0
  %v1505 = vadd.f32 %v795, %v1504
  %1506 = vmatmul.f32.gmra.mxu0 %v189
  %v1507 = vpop.f32.mrf.mxu0
  %v1508 = vadd.f32 %v798, %v1507
  %1509 = vdwg.mxu0
  %1510 = vmatpush.msra.mxu0 0.0
  %1511 = vmatpush.msra.mxu0 0.0
  %1512 = vmatpush.msra.mxu0 0.0
  %1513 = vmatpush.msra.mxu0 0.0
  %1514 = vmatpush.msra.mxu0 0.0
  %1515 = vmatpush.msra.mxu0 0.0
  %1516 = vmatpush.msra.mxu0 0.0
  %1517 = vmatpush.msra.mxu0 0.0
  %1518 = vmatpush.msra.mxu0 0.0
  %1519 = vmatpush.msra.mxu0 0.0
  %1520 = vmatpush.msra.mxu0 0.0
  %1521 = vmatpush.msra.mxu0 0.0
  %1522 = vmatpush.msra.mxu0 %v79
  %1523 = vmatpush.msra.mxu0 %v72
  %1524 = vmatpush.msra.mxu0 %v65
  %1525 = vmatpush.msra.mxu0 %v58
  %1526 = vmatmul.f32.gmra.mxu0 %v902
  %v1527 = vpop.f32.mrf.mxu0
  %v1528 = vadd.f32 %v818, %v1527
  %1529 = vmatmul.f32.gmra.mxu0 %v111
  %v1530 = vpop.f32.mrf.mxu0
  %v1531 = vadd.f32 %v821, %v1530
  %1532 = vmatmul.f32.gmra.mxu0 %v114
  %v1533 = vpop.f32.mrf.mxu0
  %v1534 = vadd.f32 %v824, %v1533
  %1535 = vmatmul.f32.gmra.mxu0 %v117
  %v1536 = vpop.f32.mrf.mxu0
  %v1537 = vadd.f32 %v827, %v1536
  %1538 = vmatmul.f32.gmra.mxu0 %v120
  %v1539 = vpop.f32.mrf.mxu0
  %v1540 = vadd.f32 %v830, %v1539
  %1541 = vmatmul.f32.gmra.mxu0 %v123
  %v1542 = vpop.f32.mrf.mxu0
  %v1543 = vadd.f32 %v833, %v1542
  %1544 = vmatmul.f32.gmra.mxu0 %v126
  %v1545 = vpop.f32.mrf.mxu0
  %v1546 = vadd.f32 %v836, %v1545
  %1547 = vmatmul.f32.gmra.mxu0 %v129
  %v1548 = vpop.f32.mrf.mxu0
  %v1549 = vadd.f32 %v839, %v1548
  %1550 = vmatmul.f32.gmra.mxu0 %v132
  %v1551 = vpop.f32.mrf.mxu0
  %v1552 = vadd.f32 %v842, %v1551
  %1553 = vmatmul.f32.gmra.mxu0 %v135
  %v1554 = vpop.f32.mrf.mxu0
  %v1555 = vadd.f32 %v845, %v1554
  %1556 = vmatmul.f32.gmra.mxu0 %v138
  %v1557 = vpop.f32.mrf.mxu0
  %v1558 = vadd.f32 %v848, %v1557
  %1559 = vmatmul.f32.gmra.mxu0 %v141
  %v1560 = vpop.f32.mrf.mxu0
  %v1561 = vadd.f32 %v851, %v1560
  %1562 = vmatmul.f32.gmra.mxu0 %v144
  %v1563 = vpop.f32.mrf.mxu0
  %v1564 = vadd.f32 %v854, %v1563
  %1565 = vmatmul.f32.gmra.mxu0 %v147
  %v1566 = vpop.f32.mrf.mxu0
  %v1567 = vadd.f32 %v857, %v1566
  %1568 = vmatmul.f32.gmra.mxu0 %v150
  %v1569 = vpop.f32.mrf.mxu0
  %v1570 = vadd.f32 %v860, %v1569
  %1571 = vmatmul.f32.gmra.mxu0 %v153
  %v1572 = vpop.f32.mrf.mxu0
  %v1573 = vadd.f32 %v863, %v1572
  %1574 = vmatmul.f32.gmra.mxu0 %v156
  %v1575 = vpop.f32.mrf.mxu0
  %v1576 = vadd.f32 %v866, %v1575
  %1577 = vmatmul.f32.gmra.mxu0 %v159
  %v1578 = vpop.f32.mrf.mxu0
  %v1579 = vadd.f32 %v869, %v1578
  %1580 = vmatmul.f32.gmra.mxu0 %v162
  %v1581 = vpop.f32.mrf.mxu0
  %v1582 = vadd.f32 %v872, %v1581
  %1583 = vmatmul.f32.gmra.mxu0 %v165
  %v1584 = vpop.f32.mrf.mxu0
  %v1585 = vadd.f32 %v875, %v1584
  %1586 = vmatmul.f32.gmra.mxu0 %v168
  %v1587 = vpop.f32.mrf.mxu0
  %v1588 = vadd.f32 %v878, %v1587
  %1589 = vmatmul.f32.gmra.mxu0 %v171
  %v1590 = vpop.f32.mrf.mxu0
  %v1591 = vadd.f32 %v881, %v1590
  %1592 = vmatmul.f32.gmra.mxu0 %v174
  %v1593 = vpop.f32.mrf.mxu0
  %v1594 = vadd.f32 %v884, %v1593
  %1595 = vmatmul.f32.gmra.mxu0 %v177
  %v1596 = vpop.f32.mrf.mxu0
  %v1597 = vadd.f32 %v887, %v1596
  %1598 = vmatmul.f32.gmra.mxu0 %v180
  %v1599 = vpop.f32.mrf.mxu0
  %v1600 = vadd.f32 %v890, %v1599
  %1601 = vmatmul.f32.gmra.mxu0 %v183
  %v1602 = vpop.f32.mrf.mxu0
  %v1603 = vadd.f32 %v893, %v1602
  %1604 = vmatmul.f32.gmra.mxu0 %v186
  %v1605 = vpop.f32.mrf.mxu0
  %v1606 = vadd.f32 %v896, %v1605
  %1607 = vmatmul.f32.gmra.mxu0 %v189
  %v1608 = vpop.f32.mrf.mxu0
  %v1609 = vadd.f32 %v899, %v1608
  %1610 = vdwg.mxu0
  %s1611 = scalar_lea.vmem %s1, 448
  %v1612 = vld [vmem:[%s1611] sm:$0xff]
  %v1613 = vld [vmem:[%s1611 + $0x8] sm:$0xff]
  %v1614 = vld [vmem:[%s1611 + $0x10] sm:$0xff]
  %v1615 = vld [vmem:[%s1611 + $0x18] sm:$0xff]
  %v1616 = vld [vmem:[%s1611 + $0x20] sm:$0xff]
  %v1617 = vld [vmem:[%s1611 + $0x28] sm:$0xff]
  %v1618 = vld [vmem:[%s1611 + $0x30] sm:$0xff]
  %v1619 = vld [vmem:[%s1611 + $0x38] sm:$0xff]
  %v1620 = vld [vmem:[%s1611 + $0x40] sm:$0xff]
  %v1621 = vld [vmem:[%s1611 + $0x48] sm:$0xff]
  %v1622 = vld [vmem:[%s1611 + $0x50] sm:$0xff]
  %v1623 = vld [vmem:[%s1611 + $0x58] sm:$0xff]
  %v1624 = vld [vmem:[%s1611 + $0x60] sm:$0xff]
  %v1625 = vld [vmem:[%s1611 + $0x68] sm:$0xff]
  %v1626 = vld [vmem:[%s1611 + $0x70] sm:$0xff]
  %v1627 = vld [vmem:[%s1611 + $0x78] sm:$0xff]
  %v1628 = vld [vmem:[%s1611 + $0x80] sm:$0xff]
  %v1629 = vld [vmem:[%s1611 + $0x88] sm:$0xff]
  %v1630 = vld [vmem:[%s1611 + $0x90] sm:$0xff]
  %v1631 = vld [vmem:[%s1611 + $0x98] sm:$0xff]
  %v1632 = vld [vmem:[%s1611 + $0xa0] sm:$0xff]
  %v1633 = vld [vmem:[%s1611 + $0xa8] sm:$0xff]
  %v1634 = vld [vmem:[%s1611 + $0xb0] sm:$0xff]
  %v1635 = vld [vmem:[%s1611 + $0xb8] sm:$0xff]
  %v1636 = vld [vmem:[%s1611 + $0xc0] sm:$0xff]
  %v1637 = vld [vmem:[%s1611 + $0xc8] sm:$0xff]
  %v1638 = vld [vmem:[%s1611 + $0xd0] sm:$0xff]
  %v1639 = vld [vmem:[%s1611 + $0xd8] sm:$0xff]
  %v1641 = vsel %vm109, %v49, 0
  %1643 = vmatpush.msra.mxu0 0.0
  %1644 = vmatpush.msra.mxu0 0.0
  %1645 = vmatpush.msra.mxu0 0.0
  %1646 = vmatpush.msra.mxu0 0.0
  %1647 = vmatpush.msra.mxu0 0.0
  %1648 = vmatpush.msra.mxu0 0.0
  %1649 = vmatpush.msra.mxu0 0.0
  %1650 = vmatpush.msra.mxu0 0.0
  %1651 = vmatpush.msra.mxu0 0.0
  %1652 = vmatpush.msra.mxu0 0.0
  %1653 = vmatpush.msra.mxu0 0.0
  %1654 = vmatpush.msra.mxu0 0.0
  %1655 = vmatpush.msra.mxu0 %v1633
  %1656 = vmatpush.msra.mxu0 %v1626
  %1657 = vmatpush.msra.mxu0 %v1619
  %1658 = vmatpush.msra.mxu0 %v1612
  %1659 = vmatmul.f32.gmra.mxu0 %v114
  %v1660 = vpop.f32.mrf.mxu0
  %v1661 = vadd.f32 0.0, %v1660
  %1662 = vmatmul.f32.gmra.mxu0 %v117
  %v1663 = vpop.f32.mrf.mxu0
  %v1664 = vadd.f32 0.0, %v1663
  %1665 = vmatmul.f32.gmra.mxu0 %v120
  %v1666 = vpop.f32.mrf.mxu0
  %v1667 = vadd.f32 0.0, %v1666
  %1668 = vmatmul.f32.gmra.mxu0 %v123
  %v1669 = vpop.f32.mrf.mxu0
  %v1670 = vadd.f32 0.0, %v1669
  %1671 = vmatmul.f32.gmra.mxu0 %v126
  %v1672 = vpop.f32.mrf.mxu0
  %v1673 = vadd.f32 0.0, %v1672
  %1674 = vmatmul.f32.gmra.mxu0 %v129
  %v1675 = vpop.f32.mrf.mxu0
  %v1676 = vadd.f32 0.0, %v1675
  %1677 = vmatmul.f32.gmra.mxu0 %v132
  %v1678 = vpop.f32.mrf.mxu0
  %v1679 = vadd.f32 0.0, %v1678
  %1680 = vmatmul.f32.gmra.mxu0 %v135
  %v1681 = vpop.f32.mrf.mxu0
  %v1682 = vadd.f32 0.0, %v1681
  %1683 = vmatmul.f32.gmra.mxu0 %v138
  %v1684 = vpop.f32.mrf.mxu0
  %v1685 = vadd.f32 0.0, %v1684
  %1686 = vmatmul.f32.gmra.mxu0 %v141
  %v1687 = vpop.f32.mrf.mxu0
  %v1688 = vadd.f32 0.0, %v1687
  %1689 = vmatmul.f32.gmra.mxu0 %v144
  %v1690 = vpop.f32.mrf.mxu0
  %v1691 = vadd.f32 0.0, %v1690
  %1692 = vmatmul.f32.gmra.mxu0 %v147
  %v1693 = vpop.f32.mrf.mxu0
  %v1694 = vadd.f32 0.0, %v1693
  %1695 = vmatmul.f32.gmra.mxu0 %v150
  %v1696 = vpop.f32.mrf.mxu0
  %v1697 = vadd.f32 0.0, %v1696
  %1698 = vmatmul.f32.gmra.mxu0 %v153
  %v1699 = vpop.f32.mrf.mxu0
  %v1700 = vadd.f32 0.0, %v1699
  %1701 = vmatmul.f32.gmra.mxu0 %v156
  %v1702 = vpop.f32.mrf.mxu0
  %v1703 = vadd.f32 0.0, %v1702
  %1704 = vmatmul.f32.gmra.mxu0 %v159
  %v1705 = vpop.f32.mrf.mxu0
  %v1706 = vadd.f32 0.0, %v1705
  %1707 = vmatmul.f32.gmra.mxu0 %v162
  %v1708 = vpop.f32.mrf.mxu0
  %v1709 = vadd.f32 0.0, %v1708
  %1710 = vmatmul.f32.gmra.mxu0 %v165
  %v1711 = vpop.f32.mrf.mxu0
  %v1712 = vadd.f32 0.0, %v1711
  %1713 = vmatmul.f32.gmra.mxu0 %v168
  %v1714 = vpop.f32.mrf.mxu0
  %v1715 = vadd.f32 0.0, %v1714
  %1716 = vmatmul.f32.gmra.mxu0 %v171
  %v1717 = vpop.f32.mrf.mxu0
  %v1718 = vadd.f32 0.0, %v1717
  %1719 = vmatmul.f32.gmra.mxu0 %v174
  %v1720 = vpop.f32.mrf.mxu0
  %v1721 = vadd.f32 0.0, %v1720
  %1722 = vmatmul.f32.gmra.mxu0 %v177
  %v1723 = vpop.f32.mrf.mxu0
  %v1724 = vadd.f32 0.0, %v1723
  %1725 = vmatmul.f32.gmra.mxu0 %v180
  %v1726 = vpop.f32.mrf.mxu0
  %v1727 = vadd.f32 0.0, %v1726
  %1728 = vmatmul.f32.gmra.mxu0 %v183
  %v1729 = vpop.f32.mrf.mxu0
  %v1730 = vadd.f32 0.0, %v1729
  %1731 = vmatmul.f32.gmra.mxu0 %v186
  %v1732 = vpop.f32.mrf.mxu0
  %v1733 = vadd.f32 0.0, %v1732
  %1734 = vmatmul.f32.gmra.mxu0 %v189
  %v1735 = vpop.f32.mrf.mxu0
  %v1736 = vadd.f32 0.0, %v1735
  %1737 = vmatmul.f32.gmra.mxu0 %v192
  %v1738 = vpop.f32.mrf.mxu0
  %v1739 = vadd.f32 0.0, %v1738
  %1740 = vmatmul.f32.gmra.mxu0 %v1641
  %v1741 = vpop.f32.mrf.mxu0
  %v1742 = vadd.f32 0.0, %v1741
  %1743 = vdwg.mxu0
  %1744 = vmatpush.msra.mxu0 0.0
  %1745 = vmatpush.msra.mxu0 0.0
  %1746 = vmatpush.msra.mxu0 0.0
  %1747 = vmatpush.msra.mxu0 0.0
  %1748 = vmatpush.msra.mxu0 0.0
  %1749 = vmatpush.msra.mxu0 0.0
  %1750 = vmatpush.msra.mxu0 0.0
  %1751 = vmatpush.msra.mxu0 0.0
  %1752 = vmatpush.msra.mxu0 0.0
  %1753 = vmatpush.msra.mxu0 0.0
  %1754 = vmatpush.msra.mxu0 0.0
  %1755 = vmatpush.msra.mxu0 0.0
  %1756 = vmatpush.msra.mxu0 %v1634
  %1757 = vmatpush.msra.mxu0 %v1627
  %1758 = vmatpush.msra.mxu0 %v1620
  %1759 = vmatpush.msra.mxu0 %v1613
  %1760 = vmatmul.f32.gmra.mxu0 %v114
  %v1761 = vpop.f32.mrf.mxu0
  %v1762 = vadd.f32 0.0, %v1761
  %1763 = vmatmul.f32.gmra.mxu0 %v117
  %v1764 = vpop.f32.mrf.mxu0
  %v1765 = vadd.f32 0.0, %v1764
  %1766 = vmatmul.f32.gmra.mxu0 %v120
  %v1767 = vpop.f32.mrf.mxu0
  %v1768 = vadd.f32 0.0, %v1767
  %1769 = vmatmul.f32.gmra.mxu0 %v123
  %v1770 = vpop.f32.mrf.mxu0
  %v1771 = vadd.f32 0.0, %v1770
  %1772 = vmatmul.f32.gmra.mxu0 %v126
  %v1773 = vpop.f32.mrf.mxu0
  %v1774 = vadd.f32 0.0, %v1773
  %1775 = vmatmul.f32.gmra.mxu0 %v129
  %v1776 = vpop.f32.mrf.mxu0
  %v1777 = vadd.f32 0.0, %v1776
  %1778 = vmatmul.f32.gmra.mxu0 %v132
  %v1779 = vpop.f32.mrf.mxu0
  %v1780 = vadd.f32 0.0, %v1779
  %1781 = vmatmul.f32.gmra.mxu0 %v135
  %v1782 = vpop.f32.mrf.mxu0
  %v1783 = vadd.f32 0.0, %v1782
  %1784 = vmatmul.f32.gmra.mxu0 %v138
  %v1785 = vpop.f32.mrf.mxu0
  %v1786 = vadd.f32 0.0, %v1785
  %1787 = vmatmul.f32.gmra.mxu0 %v141
  %v1788 = vpop.f32.mrf.mxu0
  %v1789 = vadd.f32 0.0, %v1788
  %1790 = vmatmul.f32.gmra.mxu0 %v144
  %v1791 = vpop.f32.mrf.mxu0
  %v1792 = vadd.f32 0.0, %v1791
  %1793 = vmatmul.f32.gmra.mxu0 %v147
  %v1794 = vpop.f32.mrf.mxu0
  %v1795 = vadd.f32 0.0, %v1794
  %1796 = vmatmul.f32.gmra.mxu0 %v150
  %v1797 = vpop.f32.mrf.mxu0
  %v1798 = vadd.f32 0.0, %v1797
  %1799 = vmatmul.f32.gmra.mxu0 %v153
  %v1800 = vpop.f32.mrf.mxu0
  %v1801 = vadd.f32 0.0, %v1800
  %1802 = vmatmul.f32.gmra.mxu0 %v156
  %v1803 = vpop.f32.mrf.mxu0
  %v1804 = vadd.f32 0.0, %v1803
  %1805 = vmatmul.f32.gmra.mxu0 %v159
  %v1806 = vpop.f32.mrf.mxu0
  %v1807 = vadd.f32 0.0, %v1806
  %1808 = vmatmul.f32.gmra.mxu0 %v162
  %v1809 = vpop.f32.mrf.mxu0
  %v1810 = vadd.f32 0.0, %v1809
  %1811 = vmatmul.f32.gmra.mxu0 %v165
  %v1812 = vpop.f32.mrf.mxu0
  %v1813 = vadd.f32 0.0, %v1812
  %1814 = vmatmul.f32.gmra.mxu0 %v168
  %v1815 = vpop.f32.mrf.mxu0
  %v1816 = vadd.f32 0.0, %v1815
  %1817 = vmatmul.f32.gmra.mxu0 %v171
  %v1818 = vpop.f32.mrf.mxu0
  %v1819 = vadd.f32 0.0, %v1818
  %1820 = vmatmul.f32.gmra.mxu0 %v174
  %v1821 = vpop.f32.mrf.mxu0
  %v1822 = vadd.f32 0.0, %v1821
  %1823 = vmatmul.f32.gmra.mxu0 %v177
  %v1824 = vpop.f32.mrf.mxu0
  %v1825 = vadd.f32 0.0, %v1824
  %1826 = vmatmul.f32.gmra.mxu0 %v180
  %v1827 = vpop.f32.mrf.mxu0
  %v1828 = vadd.f32 0.0, %v1827
  %1829 = vmatmul.f32.gmra.mxu0 %v183
  %v1830 = vpop.f32.mrf.mxu0
  %v1831 = vadd.f32 0.0, %v1830
  %1832 = vmatmul.f32.gmra.mxu0 %v186
  %v1833 = vpop.f32.mrf.mxu0
  %v1834 = vadd.f32 0.0, %v1833
  %1835 = vmatmul.f32.gmra.mxu0 %v189
  %v1836 = vpop.f32.mrf.mxu0
  %v1837 = vadd.f32 0.0, %v1836
  %1838 = vmatmul.f32.gmra.mxu0 %v192
  %v1839 = vpop.f32.mrf.mxu0
  %v1840 = vadd.f32 0.0, %v1839
  %1841 = vmatmul.f32.gmra.mxu0 %v1641
  %v1842 = vpop.f32.mrf.mxu0
  %v1843 = vadd.f32 0.0, %v1842
  %1844 = vdwg.mxu0
  %1845 = vmatpush.msra.mxu0 0.0
  %1846 = vmatpush.msra.mxu0 0.0
  %1847 = vmatpush.msra.mxu0 0.0
  %1848 = vmatpush.msra.mxu0 0.0
  %1849 = vmatpush.msra.mxu0 0.0
  %1850 = vmatpush.msra.mxu0 0.0
  %1851 = vmatpush.msra.mxu0 0.0
  %1852 = vmatpush.msra.mxu0 0.0
  %1853 = vmatpush.msra.mxu0 0.0
  %1854 = vmatpush.msra.mxu0 0.0
  %1855 = vmatpush.msra.mxu0 0.0
  %1856 = vmatpush.msra.mxu0 0.0
  %1857 = vmatpush.msra.mxu0 %v1635
  %1858 = vmatpush.msra.mxu0 %v1628
  %1859 = vmatpush.msra.mxu0 %v1621
  %1860 = vmatpush.msra.mxu0 %v1614
  %1861 = vmatmul.f32.gmra.mxu0 %v114
  %v1862 = vpop.f32.mrf.mxu0
  %v1863 = vadd.f32 0.0, %v1862
  %1864 = vmatmul.f32.gmra.mxu0 %v117
  %v1865 = vpop.f32.mrf.mxu0
  %v1866 = vadd.f32 0.0, %v1865
  %1867 = vmatmul.f32.gmra.mxu0 %v120
  %v1868 = vpop.f32.mrf.mxu0
  %v1869 = vadd.f32 0.0, %v1868
  %1870 = vmatmul.f32.gmra.mxu0 %v123
  %v1871 = vpop.f32.mrf.mxu0
  %v1872 = vadd.f32 0.0, %v1871
  %1873 = vmatmul.f32.gmra.mxu0 %v126
  %v1874 = vpop.f32.mrf.mxu0
  %v1875 = vadd.f32 0.0, %v1874
  %1876 = vmatmul.f32.gmra.mxu0 %v129
  %v1877 = vpop.f32.mrf.mxu0
  %v1878 = vadd.f32 0.0, %v1877
  %1879 = vmatmul.f32.gmra.mxu0 %v132
  %v1880 = vpop.f32.mrf.mxu0
  %v1881 = vadd.f32 0.0, %v1880
  %1882 = vmatmul.f32.gmra.mxu0 %v135
  %v1883 = vpop.f32.mrf.mxu0
  %v1884 = vadd.f32 0.0, %v1883
  %1885 = vmatmul.f32.gmra.mxu0 %v138
  %v1886 = vpop.f32.mrf.mxu0
  %v1887 = vadd.f32 0.0, %v1886
  %1888 = vmatmul.f32.gmra.mxu0 %v141
  %v1889 = vpop.f32.mrf.mxu0
  %v1890 = vadd.f32 0.0, %v1889
  %1891 = vmatmul.f32.gmra.mxu0 %v144
  %v1892 = vpop.f32.mrf.mxu0
  %v1893 = vadd.f32 0.0, %v1892
  %1894 = vmatmul.f32.gmra.mxu0 %v147
  %v1895 = vpop.f32.mrf.mxu0
  %v1896 = vadd.f32 0.0, %v1895
  %1897 = vmatmul.f32.gmra.mxu0 %v150
  %v1898 = vpop.f32.mrf.mxu0
  %v1899 = vadd.f32 0.0, %v1898
  %1900 = vmatmul.f32.gmra.mxu0 %v153
  %v1901 = vpop.f32.mrf.mxu0
  %v1902 = vadd.f32 0.0, %v1901
  %1903 = vmatmul.f32.gmra.mxu0 %v156
  %v1904 = vpop.f32.mrf.mxu0
  %v1905 = vadd.f32 0.0, %v1904
  %1906 = vmatmul.f32.gmra.mxu0 %v159
  %v1907 = vpop.f32.mrf.mxu0
  %v1908 = vadd.f32 0.0, %v1907
  %1909 = vmatmul.f32.gmra.mxu0 %v162
  %v1910 = vpop.f32.mrf.mxu0
  %v1911 = vadd.f32 0.0, %v1910
  %1912 = vmatmul.f32.gmra.mxu0 %v165
  %v1913 = vpop.f32.mrf.mxu0
  %v1914 = vadd.f32 0.0, %v1913
  %1915 = vmatmul.f32.gmra.mxu0 %v168
  %v1916 = vpop.f32.mrf.mxu0
  %v1917 = vadd.f32 0.0, %v1916
  %1918 = vmatmul.f32.gmra.mxu0 %v171
  %v1919 = vpop.f32.mrf.mxu0
  %v1920 = vadd.f32 0.0, %v1919
  %1921 = vmatmul.f32.gmra.mxu0 %v174
  %v1922 = vpop.f32.mrf.mxu0
  %v1923 = vadd.f32 0.0, %v1922
  %1924 = vmatmul.f32.gmra.mxu0 %v177
  %v1925 = vpop.f32.mrf.mxu0
  %v1926 = vadd.f32 0.0, %v1925
  %1927 = vmatmul.f32.gmra.mxu0 %v180
  %v1928 = vpop.f32.mrf.mxu0
  %v1929 = vadd.f32 0.0, %v1928
  %1930 = vmatmul.f32.gmra.mxu0 %v183
  %v1931 = vpop.f32.mrf.mxu0
  %v1932 = vadd.f32 0.0, %v1931
  %1933 = vmatmul.f32.gmra.mxu0 %v186
  %v1934 = vpop.f32.mrf.mxu0
  %v1935 = vadd.f32 0.0, %v1934
  %1936 = vmatmul.f32.gmra.mxu0 %v189
  %v1937 = vpop.f32.mrf.mxu0
  %v1938 = vadd.f32 0.0, %v1937
  %1939 = vmatmul.f32.gmra.mxu0 %v192
  %v1940 = vpop.f32.mrf.mxu0
  %v1941 = vadd.f32 0.0, %v1940
  %1942 = vmatmul.f32.gmra.mxu0 %v1641
  %v1943 = vpop.f32.mrf.mxu0
  %v1944 = vadd.f32 0.0, %v1943
  %1945 = vdwg.mxu0
  %1946 = vmatpush.msra.mxu0 0.0
  %1947 = vmatpush.msra.mxu0 0.0
  %1948 = vmatpush.msra.mxu0 0.0
  %1949 = vmatpush.msra.mxu0 0.0
  %1950 = vmatpush.msra.mxu0 0.0
  %1951 = vmatpush.msra.mxu0 0.0
  %1952 = vmatpush.msra.mxu0 0.0
  %1953 = vmatpush.msra.mxu0 0.0
  %1954 = vmatpush.msra.mxu0 0.0
  %1955 = vmatpush.msra.mxu0 0.0
  %1956 = vmatpush.msra.mxu0 0.0
  %1957 = vmatpush.msra.mxu0 0.0
  %1958 = vmatpush.msra.mxu0 %v1636
  %1959 = vmatpush.msra.mxu0 %v1629
  %1960 = vmatpush.msra.mxu0 %v1622
  %1961 = vmatpush.msra.mxu0 %v1615
  %1962 = vmatmul.f32.gmra.mxu0 %v114
  %v1963 = vpop.f32.mrf.mxu0
  %v1964 = vadd.f32 0.0, %v1963
  %1965 = vmatmul.f32.gmra.mxu0 %v117
  %v1966 = vpop.f32.mrf.mxu0
  %v1967 = vadd.f32 0.0, %v1966
  %1968 = vmatmul.f32.gmra.mxu0 %v120
  %v1969 = vpop.f32.mrf.mxu0
  %v1970 = vadd.f32 0.0, %v1969
  %1971 = vmatmul.f32.gmra.mxu0 %v123
  %v1972 = vpop.f32.mrf.mxu0
  %v1973 = vadd.f32 0.0, %v1972
  %1974 = vmatmul.f32.gmra.mxu0 %v126
  %v1975 = vpop.f32.mrf.mxu0
  %v1976 = vadd.f32 0.0, %v1975
  %1977 = vmatmul.f32.gmra.mxu0 %v129
  %v1978 = vpop.f32.mrf.mxu0
  %v1979 = vadd.f32 0.0, %v1978
  %1980 = vmatmul.f32.gmra.mxu0 %v132
  %v1981 = vpop.f32.mrf.mxu0
  %v1982 = vadd.f32 0.0, %v1981
  %1983 = vmatmul.f32.gmra.mxu0 %v135
  %v1984 = vpop.f32.mrf.mxu0
  %v1985 = vadd.f32 0.0, %v1984
  %1986 = vmatmul.f32.gmra.mxu0 %v138
  %v1987 = vpop.f32.mrf.mxu0
  %v1988 = vadd.f32 0.0, %v1987
  %1989 = vmatmul.f32.gmra.mxu0 %v141
  %v1990 = vpop.f32.mrf.mxu0
  %v1991 = vadd.f32 0.0, %v1990
  %1992 = vmatmul.f32.gmra.mxu0 %v144
  %v1993 = vpop.f32.mrf.mxu0
  %v1994 = vadd.f32 0.0, %v1993
  %1995 = vmatmul.f32.gmra.mxu0 %v147
  %v1996 = vpop.f32.mrf.mxu0
  %v1997 = vadd.f32 0.0, %v1996
  %1998 = vmatmul.f32.gmra.mxu0 %v150
  %v1999 = vpop.f32.mrf.mxu0
  %v2000 = vadd.f32 0.0, %v1999
  %2001 = vmatmul.f32.gmra.mxu0 %v153
  %v2002 = vpop.f32.mrf.mxu0
  %v2003 = vadd.f32 0.0, %v2002
  %2004 = vmatmul.f32.gmra.mxu0 %v156
  %v2005 = vpop.f32.mrf.mxu0
  %v2006 = vadd.f32 0.0, %v2005
  %2007 = vmatmul.f32.gmra.mxu0 %v159
  %v2008 = vpop.f32.mrf.mxu0
  %v2009 = vadd.f32 0.0, %v2008
  %2010 = vmatmul.f32.gmra.mxu0 %v162
  %v2011 = vpop.f32.mrf.mxu0
  %v2012 = vadd.f32 0.0, %v2011
  %2013 = vmatmul.f32.gmra.mxu0 %v165
  %v2014 = vpop.f32.mrf.mxu0
  %v2015 = vadd.f32 0.0, %v2014
  %2016 = vmatmul.f32.gmra.mxu0 %v168
  %v2017 = vpop.f32.mrf.mxu0
  %v2018 = vadd.f32 0.0, %v2017
  %2019 = vmatmul.f32.gmra.mxu0 %v171
  %v2020 = vpop.f32.mrf.mxu0
  %v2021 = vadd.f32 0.0, %v2020
  %2022 = vmatmul.f32.gmra.mxu0 %v174
  %v2023 = vpop.f32.mrf.mxu0
  %v2024 = vadd.f32 0.0, %v2023
  %2025 = vmatmul.f32.gmra.mxu0 %v177
  %v2026 = vpop.f32.mrf.mxu0
  %v2027 = vadd.f32 0.0, %v2026
  %2028 = vmatmul.f32.gmra.mxu0 %v180
  %v2029 = vpop.f32.mrf.mxu0
  %v2030 = vadd.f32 0.0, %v2029
  %2031 = vmatmul.f32.gmra.mxu0 %v183
  %v2032 = vpop.f32.mrf.mxu0
  %v2033 = vadd.f32 0.0, %v2032
  %2034 = vmatmul.f32.gmra.mxu0 %v186
  %v2035 = vpop.f32.mrf.mxu0
  %v2036 = vadd.f32 0.0, %v2035
  %2037 = vmatmul.f32.gmra.mxu0 %v189
  %v2038 = vpop.f32.mrf.mxu0
  %v2039 = vadd.f32 0.0, %v2038
  %2040 = vmatmul.f32.gmra.mxu0 %v192
  %v2041 = vpop.f32.mrf.mxu0
  %v2042 = vadd.f32 0.0, %v2041
  %2043 = vmatmul.f32.gmra.mxu0 %v1641
  %v2044 = vpop.f32.mrf.mxu0
  %v2045 = vadd.f32 0.0, %v2044
  %2046 = vdwg.mxu0
  %2047 = vmatpush.msra.mxu0 0.0
  %2048 = vmatpush.msra.mxu0 0.0
  %2049 = vmatpush.msra.mxu0 0.0
  %2050 = vmatpush.msra.mxu0 0.0
  %2051 = vmatpush.msra.mxu0 0.0
  %2052 = vmatpush.msra.mxu0 0.0
  %2053 = vmatpush.msra.mxu0 0.0
  %2054 = vmatpush.msra.mxu0 0.0
  %2055 = vmatpush.msra.mxu0 0.0
  %2056 = vmatpush.msra.mxu0 0.0
  %2057 = vmatpush.msra.mxu0 0.0
  %2058 = vmatpush.msra.mxu0 0.0
  %2059 = vmatpush.msra.mxu0 %v1637
  %2060 = vmatpush.msra.mxu0 %v1630
  %2061 = vmatpush.msra.mxu0 %v1623
  %2062 = vmatpush.msra.mxu0 %v1616
  %2063 = vmatmul.f32.gmra.mxu0 %v114
  %v2064 = vpop.f32.mrf.mxu0
  %v2065 = vadd.f32 0.0, %v2064
  %2066 = vmatmul.f32.gmra.mxu0 %v117
  %v2067 = vpop.f32.mrf.mxu0
  %v2068 = vadd.f32 0.0, %v2067
  %2069 = vmatmul.f32.gmra.mxu0 %v120
  %v2070 = vpop.f32.mrf.mxu0
  %v2071 = vadd.f32 0.0, %v2070
  %2072 = vmatmul.f32.gmra.mxu0 %v123
  %v2073 = vpop.f32.mrf.mxu0
  %v2074 = vadd.f32 0.0, %v2073
  %2075 = vmatmul.f32.gmra.mxu0 %v126
  %v2076 = vpop.f32.mrf.mxu0
  %v2077 = vadd.f32 0.0, %v2076
  %2078 = vmatmul.f32.gmra.mxu0 %v129
  %v2079 = vpop.f32.mrf.mxu0
  %v2080 = vadd.f32 0.0, %v2079
  %2081 = vmatmul.f32.gmra.mxu0 %v132
  %v2082 = vpop.f32.mrf.mxu0
  %v2083 = vadd.f32 0.0, %v2082
  %2084 = vmatmul.f32.gmra.mxu0 %v135
  %v2085 = vpop.f32.mrf.mxu0
  %v2086 = vadd.f32 0.0, %v2085
  %2087 = vmatmul.f32.gmra.mxu0 %v138
  %v2088 = vpop.f32.mrf.mxu0
  %v2089 = vadd.f32 0.0, %v2088
  %2090 = vmatmul.f32.gmra.mxu0 %v141
  %v2091 = vpop.f32.mrf.mxu0
  %v2092 = vadd.f32 0.0, %v2091
  %2093 = vmatmul.f32.gmra.mxu0 %v144
  %v2094 = vpop.f32.mrf.mxu0
  %v2095 = vadd.f32 0.0, %v2094
  %2096 = vmatmul.f32.gmra.mxu0 %v147
  %v2097 = vpop.f32.mrf.mxu0
  %v2098 = vadd.f32 0.0, %v2097
  %2099 = vmatmul.f32.gmra.mxu0 %v150
  %v2100 = vpop.f32.mrf.mxu0
  %v2101 = vadd.f32 0.0, %v2100
  %2102 = vmatmul.f32.gmra.mxu0 %v153
  %v2103 = vpop.f32.mrf.mxu0
  %v2104 = vadd.f32 0.0, %v2103
  %2105 = vmatmul.f32.gmra.mxu0 %v156
  %v2106 = vpop.f32.mrf.mxu0
  %v2107 = vadd.f32 0.0, %v2106
  %2108 = vmatmul.f32.gmra.mxu0 %v159
  %v2109 = vpop.f32.mrf.mxu0
  %v2110 = vadd.f32 0.0, %v2109
  %2111 = vmatmul.f32.gmra.mxu0 %v162
  %v2112 = vpop.f32.mrf.mxu0
  %v2113 = vadd.f32 0.0, %v2112
  %2114 = vmatmul.f32.gmra.mxu0 %v165
  %v2115 = vpop.f32.mrf.mxu0
  %v2116 = vadd.f32 0.0, %v2115
  %2117 = vmatmul.f32.gmra.mxu0 %v168
  %v2118 = vpop.f32.mrf.mxu0
  %v2119 = vadd.f32 0.0, %v2118
  %2120 = vmatmul.f32.gmra.mxu0 %v171
  %v2121 = vpop.f32.mrf.mxu0
  %v2122 = vadd.f32 0.0, %v2121
  %2123 = vmatmul.f32.gmra.mxu0 %v174
  %v2124 = vpop.f32.mrf.mxu0
  %v2125 = vadd.f32 0.0, %v2124
  %2126 = vmatmul.f32.gmra.mxu0 %v177
  %v2127 = vpop.f32.mrf.mxu0
  %v2128 = vadd.f32 0.0, %v2127
  %2129 = vmatmul.f32.gmra.mxu0 %v180
  %v2130 = vpop.f32.mrf.mxu0
  %v2131 = vadd.f32 0.0, %v2130
  %2132 = vmatmul.f32.gmra.mxu0 %v183
  %v2133 = vpop.f32.mrf.mxu0
  %v2134 = vadd.f32 0.0, %v2133
  %2135 = vmatmul.f32.gmra.mxu0 %v186
  %v2136 = vpop.f32.mrf.mxu0
  %v2137 = vadd.f32 0.0, %v2136
  %2138 = vmatmul.f32.gmra.mxu0 %v189
  %v2139 = vpop.f32.mrf.mxu0
  %v2140 = vadd.f32 0.0, %v2139
  %2141 = vmatmul.f32.gmra.mxu0 %v192
  %v2142 = vpop.f32.mrf.mxu0
  %v2143 = vadd.f32 0.0, %v2142
  %2144 = vmatmul.f32.gmra.mxu0 %v1641
  %v2145 = vpop.f32.mrf.mxu0
  %v2146 = vadd.f32 0.0, %v2145
  %2147 = vdwg.mxu0
  %2148 = vmatpush.msra.mxu0 0.0
  %2149 = vmatpush.msra.mxu0 0.0
  %2150 = vmatpush.msra.mxu0 0.0
  %2151 = vmatpush.msra.mxu0 0.0
  %2152 = vmatpush.msra.mxu0 0.0
  %2153 = vmatpush.msra.mxu0 0.0
  %2154 = vmatpush.msra.mxu0 0.0
  %2155 = vmatpush.msra.mxu0 0.0
  %2156 = vmatpush.msra.mxu0 0.0
  %2157 = vmatpush.msra.mxu0 0.0
  %2158 = vmatpush.msra.mxu0 0.0
  %2159 = vmatpush.msra.mxu0 0.0
  %2160 = vmatpush.msra.mxu0 %v1638
  %2161 = vmatpush.msra.mxu0 %v1631
  %2162 = vmatpush.msra.mxu0 %v1624
  %2163 = vmatpush.msra.mxu0 %v1617
  %2164 = vmatmul.f32.gmra.mxu0 %v114
  %v2165 = vpop.f32.mrf.mxu0
  %v2166 = vadd.f32 0.0, %v2165
  %2167 = vmatmul.f32.gmra.mxu0 %v117
  %v2168 = vpop.f32.mrf.mxu0
  %v2169 = vadd.f32 0.0, %v2168
  %2170 = vmatmul.f32.gmra.mxu0 %v120
  %v2171 = vpop.f32.mrf.mxu0
  %v2172 = vadd.f32 0.0, %v2171
  %2173 = vmatmul.f32.gmra.mxu0 %v123
  %v2174 = vpop.f32.mrf.mxu0
  %v2175 = vadd.f32 0.0, %v2174
  %2176 = vmatmul.f32.gmra.mxu0 %v126
  %v2177 = vpop.f32.mrf.mxu0
  %v2178 = vadd.f32 0.0, %v2177
  %2179 = vmatmul.f32.gmra.mxu0 %v129
  %v2180 = vpop.f32.mrf.mxu0
  %v2181 = vadd.f32 0.0, %v2180
  %2182 = vmatmul.f32.gmra.mxu0 %v132
  %v2183 = vpop.f32.mrf.mxu0
  %v2184 = vadd.f32 0.0, %v2183
  %2185 = vmatmul.f32.gmra.mxu0 %v135
  %v2186 = vpop.f32.mrf.mxu0
  %v2187 = vadd.f32 0.0, %v2186
  %2188 = vmatmul.f32.gmra.mxu0 %v138
  %v2189 = vpop.f32.mrf.mxu0
  %v2190 = vadd.f32 0.0, %v2189
  %2191 = vmatmul.f32.gmra.mxu0 %v141
  %v2192 = vpop.f32.mrf.mxu0
  %v2193 = vadd.f32 0.0, %v2192
  %2194 = vmatmul.f32.gmra.mxu0 %v144
  %v2195 = vpop.f32.mrf.mxu0
  %v2196 = vadd.f32 0.0, %v2195
  %2197 = vmatmul.f32.gmra.mxu0 %v147
  %v2198 = vpop.f32.mrf.mxu0
  %v2199 = vadd.f32 0.0, %v2198
  %2200 = vmatmul.f32.gmra.mxu0 %v150
  %v2201 = vpop.f32.mrf.mxu0
  %v2202 = vadd.f32 0.0, %v2201
  %2203 = vmatmul.f32.gmra.mxu0 %v153
  %v2204 = vpop.f32.mrf.mxu0
  %v2205 = vadd.f32 0.0, %v2204
  %2206 = vmatmul.f32.gmra.mxu0 %v156
  %v2207 = vpop.f32.mrf.mxu0
  %v2208 = vadd.f32 0.0, %v2207
  %2209 = vmatmul.f32.gmra.mxu0 %v159
  %v2210 = vpop.f32.mrf.mxu0
  %v2211 = vadd.f32 0.0, %v2210
  %2212 = vmatmul.f32.gmra.mxu0 %v162
  %v2213 = vpop.f32.mrf.mxu0
  %v2214 = vadd.f32 0.0, %v2213
  %2215 = vmatmul.f32.gmra.mxu0 %v165
  %v2216 = vpop.f32.mrf.mxu0
  %v2217 = vadd.f32 0.0, %v2216
  %2218 = vmatmul.f32.gmra.mxu0 %v168
  %v2219 = vpop.f32.mrf.mxu0
  %v2220 = vadd.f32 0.0, %v2219
  %2221 = vmatmul.f32.gmra.mxu0 %v171
  %v2222 = vpop.f32.mrf.mxu0
  %v2223 = vadd.f32 0.0, %v2222
  %2224 = vmatmul.f32.gmra.mxu0 %v174
  %v2225 = vpop.f32.mrf.mxu0
  %v2226 = vadd.f32 0.0, %v2225
  %2227 = vmatmul.f32.gmra.mxu0 %v177
  %v2228 = vpop.f32.mrf.mxu0
  %v2229 = vadd.f32 0.0, %v2228
  %2230 = vmatmul.f32.gmra.mxu0 %v180
  %v2231 = vpop.f32.mrf.mxu0
  %v2232 = vadd.f32 0.0, %v2231
  %2233 = vmatmul.f32.gmra.mxu0 %v183
  %v2234 = vpop.f32.mrf.mxu0
  %v2235 = vadd.f32 0.0, %v2234
  %2236 = vmatmul.f32.gmra.mxu0 %v186
  %v2237 = vpop.f32.mrf.mxu0
  %v2238 = vadd.f32 0.0, %v2237
  %2239 = vmatmul.f32.gmra.mxu0 %v189
  %v2240 = vpop.f32.mrf.mxu0
  %v2241 = vadd.f32 0.0, %v2240
  %2242 = vmatmul.f32.gmra.mxu0 %v192
  %v2243 = vpop.f32.mrf.mxu0
  %v2244 = vadd.f32 0.0, %v2243
  %2245 = vmatmul.f32.gmra.mxu0 %v1641
  %v2246 = vpop.f32.mrf.mxu0
  %v2247 = vadd.f32 0.0, %v2246
  %2248 = vdwg.mxu0
  %2249 = vmatpush.msra.mxu0 0.0
  %2250 = vmatpush.msra.mxu0 0.0
  %2251 = vmatpush.msra.mxu0 0.0
  %2252 = vmatpush.msra.mxu0 0.0
  %2253 = vmatpush.msra.mxu0 0.0
  %2254 = vmatpush.msra.mxu0 0.0
  %2255 = vmatpush.msra.mxu0 0.0
  %2256 = vmatpush.msra.mxu0 0.0
  %2257 = vmatpush.msra.mxu0 0.0
  %2258 = vmatpush.msra.mxu0 0.0
  %2259 = vmatpush.msra.mxu0 0.0
  %2260 = vmatpush.msra.mxu0 0.0
  %2261 = vmatpush.msra.mxu0 %v1639
  %2262 = vmatpush.msra.mxu0 %v1632
  %2263 = vmatpush.msra.mxu0 %v1625
  %2264 = vmatpush.msra.mxu0 %v1618
  %2265 = vmatmul.f32.gmra.mxu0 %v114
  %v2266 = vpop.f32.mrf.mxu0
  %v2267 = vadd.f32 0.0, %v2266
  %2268 = vmatmul.f32.gmra.mxu0 %v117
  %v2269 = vpop.f32.mrf.mxu0
  %v2270 = vadd.f32 0.0, %v2269
  %2271 = vmatmul.f32.gmra.mxu0 %v120
  %v2272 = vpop.f32.mrf.mxu0
  %v2273 = vadd.f32 0.0, %v2272
  %2274 = vmatmul.f32.gmra.mxu0 %v123
  %v2275 = vpop.f32.mrf.mxu0
  %v2276 = vadd.f32 0.0, %v2275
  %2277 = vmatmul.f32.gmra.mxu0 %v126
  %v2278 = vpop.f32.mrf.mxu0
  %v2279 = vadd.f32 0.0, %v2278
  %2280 = vmatmul.f32.gmra.mxu0 %v129
  %v2281 = vpop.f32.mrf.mxu0
  %v2282 = vadd.f32 0.0, %v2281
  %2283 = vmatmul.f32.gmra.mxu0 %v132
  %v2284 = vpop.f32.mrf.mxu0
  %v2285 = vadd.f32 0.0, %v2284
  %2286 = vmatmul.f32.gmra.mxu0 %v135
  %v2287 = vpop.f32.mrf.mxu0
  %v2288 = vadd.f32 0.0, %v2287
  %2289 = vmatmul.f32.gmra.mxu0 %v138
  %v2290 = vpop.f32.mrf.mxu0
  %v2291 = vadd.f32 0.0, %v2290
  %2292 = vmatmul.f32.gmra.mxu0 %v141
  %v2293 = vpop.f32.mrf.mxu0
  %v2294 = vadd.f32 0.0, %v2293
  %2295 = vmatmul.f32.gmra.mxu0 %v144
  %v2296 = vpop.f32.mrf.mxu0
  %v2297 = vadd.f32 0.0, %v2296
  %2298 = vmatmul.f32.gmra.mxu0 %v147
  %v2299 = vpop.f32.mrf.mxu0
  %v2300 = vadd.f32 0.0, %v2299
  %2301 = vmatmul.f32.gmra.mxu0 %v150
  %v2302 = vpop.f32.mrf.mxu0
  %v2303 = vadd.f32 0.0, %v2302
  %2304 = vmatmul.f32.gmra.mxu0 %v153
  %v2305 = vpop.f32.mrf.mxu0
  %v2306 = vadd.f32 0.0, %v2305
  %2307 = vmatmul.f32.gmra.mxu0 %v156
  %v2308 = vpop.f32.mrf.mxu0
  %v2309 = vadd.f32 0.0, %v2308
  %2310 = vmatmul.f32.gmra.mxu0 %v159
  %v2311 = vpop.f32.mrf.mxu0
  %v2312 = vadd.f32 0.0, %v2311
  %2313 = vmatmul.f32.gmra.mxu0 %v162
  %v2314 = vpop.f32.mrf.mxu0
  %v2315 = vadd.f32 0.0, %v2314
  %2316 = vmatmul.f32.gmra.mxu0 %v165
  %v2317 = vpop.f32.mrf.mxu0
  %v2318 = vadd.f32 0.0, %v2317
  %2319 = vmatmul.f32.gmra.mxu0 %v168
  %v2320 = vpop.f32.mrf.mxu0
  %v2321 = vadd.f32 0.0, %v2320
  %2322 = vmatmul.f32.gmra.mxu0 %v171
  %v2323 = vpop.f32.mrf.mxu0
  %v2324 = vadd.f32 0.0, %v2323
  %2325 = vmatmul.f32.gmra.mxu0 %v174
  %v2326 = vpop.f32.mrf.mxu0
  %v2327 = vadd.f32 0.0, %v2326
  %2328 = vmatmul.f32.gmra.mxu0 %v177
  %v2329 = vpop.f32.mrf.mxu0
  %v2330 = vadd.f32 0.0, %v2329
  %2331 = vmatmul.f32.gmra.mxu0 %v180
  %v2332 = vpop.f32.mrf.mxu0
  %v2333 = vadd.f32 0.0, %v2332
  %2334 = vmatmul.f32.gmra.mxu0 %v183
  %v2335 = vpop.f32.mrf.mxu0
  %v2336 = vadd.f32 0.0, %v2335
  %2337 = vmatmul.f32.gmra.mxu0 %v186
  %v2338 = vpop.f32.mrf.mxu0
  %v2339 = vadd.f32 0.0, %v2338
  %2340 = vmatmul.f32.gmra.mxu0 %v189
  %v2341 = vpop.f32.mrf.mxu0
  %v2342 = vadd.f32 0.0, %v2341
  %2343 = vmatmul.f32.gmra.mxu0 %v192
  %v2344 = vpop.f32.mrf.mxu0
  %v2345 = vadd.f32 0.0, %v2344
  %2346 = vmatmul.f32.gmra.mxu0 %v1641
  %v2347 = vpop.f32.mrf.mxu0
  %v2348 = vadd.f32 0.0, %v2347
  %2349 = vdwg.mxu0
  %v2350 = vadd.f32 %v922, %v1661
  %v2351 = vadd.f32 %v1023, %v1762
  %v2352 = vadd.f32 %v1124, %v1863
  %v2353 = vadd.f32 %v1225, %v1964
  %v2354 = vadd.f32 %v1326, %v2065
  %v2355 = vadd.f32 %v1427, %v2166
  %v2356 = vadd.f32 %v1528, %v2267
  %v2357 = vadd.f32 %v925, %v1664
  %v2358 = vadd.f32 %v1026, %v1765
  %v2359 = vadd.f32 %v1127, %v1866
  %v2360 = vadd.f32 %v1228, %v1967
  %v2361 = vadd.f32 %v1329, %v2068
  %v2362 = vadd.f32 %v1430, %v2169
  %v2363 = vadd.f32 %v1531, %v2270
  %v2364 = vadd.f32 %v928, %v1667
  %v2365 = vadd.f32 %v1029, %v1768
  %v2366 = vadd.f32 %v1130, %v1869
  %v2367 = vadd.f32 %v1231, %v1970
  %v2368 = vadd.f32 %v1332, %v2071
  %v2369 = vadd.f32 %v1433, %v2172
  %v2370 = vadd.f32 %v1534, %v2273
  %v2371 = vadd.f32 %v931, %v1670
  %v2372 = vadd.f32 %v1032, %v1771
  %v2373 = vadd.f32 %v1133, %v1872
  %v2374 = vadd.f32 %v1234, %v1973
  %v2375 = vadd.f32 %v1335, %v2074
  %v2376 = vadd.f32 %v1436, %v2175
  %v2377 = vadd.f32 %v1537, %v2276
  %v2378 = vadd.f32 %v934, %v1673
  %v2379 = vadd.f32 %v1035, %v1774
  %v2380 = vadd.f32 %v1136, %v1875
  %v2381 = vadd.f32 %v1237, %v1976
  %v2382 = vadd.f32 %v1338, %v2077
  %v2383 = vadd.f32 %v1439, %v2178
  %v2384 = vadd.f32 %v1540, %v2279
  %v2385 = vadd.f32 %v937, %v1676
  %v2386 = vadd.f32 %v1038, %v1777
  %v2387 = vadd.f32 %v1139, %v1878
  %v2388 = vadd.f32 %v1240, %v1979
  %v2389 = vadd.f32 %v1341, %v2080
  %v2390 = vadd.f32 %v1442, %v2181
  %v2391 = vadd.f32 %v1543, %v2282
  %v2392 = vadd.f32 %v940, %v1679
  %v2393 = vadd.f32 %v1041, %v1780
  %v2394 = vadd.f32 %v1142, %v1881
  %v2395 = vadd.f32 %v1243, %v1982
  %v2396 = vadd.f32 %v1344, %v2083
  %v2397 = vadd.f32 %v1445, %v2184
  %v2398 = vadd.f32 %v1546, %v2285
  %v2399 = vadd.f32 %v943, %v1682
  %v2400 = vadd.f32 %v1044, %v1783
  %v2401 = vadd.f32 %v1145, %v1884
  %v2402 = vadd.f32 %v1246, %v1985
  %v2403 = vadd.f32 %v1347, %v2086
  %v2404 = vadd.f32 %v1448, %v2187
  %v2405 = vadd.f32 %v1549, %v2288
  %v2406 = vadd.f32 %v946, %v1685
  %v2407 = vadd.f32 %v1047, %v1786
  %v2408 = vadd.f32 %v1148, %v1887
  %v2409 = vadd.f32 %v1249, %v1988
  %v2410 = vadd.f32 %v1350, %v2089
  %v2411 = vadd.f32 %v1451, %v2190
  %v2412 = vadd.f32 %v1552, %v2291
  %v2413 = vadd.f32 %v949, %v1688
  %v2414 = vadd.f32 %v1050, %v1789
  %v2415 = vadd.f32 %v1151, %v1890
  %v2416 = vadd.f32 %v1252, %v1991
  %v2417 = vadd.f32 %v1353, %v2092
  %v2418 = vadd.f32 %v1454, %v2193
  %v2419 = vadd.f32 %v1555, %v2294
  %v2420 = vadd.f32 %v952, %v1691
  %v2421 = vadd.f32 %v1053, %v1792
  %v2422 = vadd.f32 %v1154, %v1893
  %v2423 = vadd.f32 %v1255, %v1994
  %v2424 = vadd.f32 %v1356, %v2095
  %v2425 = vadd.f32 %v1457, %v2196
  %v2426 = vadd.f32 %v1558, %v2297
  %v2427 = vadd.f32 %v955, %v1694
  %v2428 = vadd.f32 %v1056, %v1795
  %v2429 = vadd.f32 %v1157, %v1896
  %v2430 = vadd.f32 %v1258, %v1997
  %v2431 = vadd.f32 %v1359, %v2098
  %v2432 = vadd.f32 %v1460, %v2199
  %v2433 = vadd.f32 %v1561, %v2300
  %v2434 = vadd.f32 %v958, %v1697
  %v2435 = vadd.f32 %v1059, %v1798
  %v2436 = vadd.f32 %v1160, %v1899
  %v2437 = vadd.f32 %v1261, %v2000
  %v2438 = vadd.f32 %v1362, %v2101
  %v2439 = vadd.f32 %v1463, %v2202
  %v2440 = vadd.f32 %v1564, %v2303
  %v2441 = vadd.f32 %v961, %v1700
  %v2442 = vadd.f32 %v1062, %v1801
  %v2443 = vadd.f32 %v1163, %v1902
  %v2444 = vadd.f32 %v1264, %v2003
  %v2445 = vadd.f32 %v1365, %v2104
  %v2446 = vadd.f32 %v1466, %v2205
  %v2447 = vadd.f32 %v1567, %v2306
  %v2448 = vadd.f32 %v964, %v1703
  %v2449 = vadd.f32 %v1065, %v1804
  %v2450 = vadd.f32 %v1166, %v1905
  %v2451 = vadd.f32 %v1267, %v2006
  %v2452 = vadd.f32 %v1368, %v2107
  %v2453 = vadd.f32 %v1469, %v2208
  %v2454 = vadd.f32 %v1570, %v2309
  %v2455 = vadd.f32 %v967, %v1706
  %v2456 = vadd.f32 %v1068, %v1807
  %v2457 = vadd.f32 %v1169, %v1908
  %v2458 = vadd.f32 %v1270, %v2009
  %v2459 = vadd.f32 %v1371, %v2110
  %v2460 = vadd.f32 %v1472, %v2211
  %v2461 = vadd.f32 %v1573, %v2312
  %v2462 = vadd.f32 %v970, %v1709
  %v2463 = vadd.f32 %v1071, %v1810
  %v2464 = vadd.f32 %v1172, %v1911
  %v2465 = vadd.f32 %v1273, %v2012
  %v2466 = vadd.f32 %v1374, %v2113
  %v2467 = vadd.f32 %v1475, %v2214
  %v2468 = vadd.f32 %v1576, %v2315
  %v2469 = vadd.f32 %v973, %v1712
  %v2470 = vadd.f32 %v1074, %v1813
  %v2471 = vadd.f32 %v1175, %v1914
  %v2472 = vadd.f32 %v1276, %v2015
  %v2473 = vadd.f32 %v1377, %v2116
  %v2474 = vadd.f32 %v1478, %v2217
  %v2475 = vadd.f32 %v1579, %v2318
  %v2476 = vadd.f32 %v976, %v1715
  %v2477 = vadd.f32 %v1077, %v1816
  %v2478 = vadd.f32 %v1178, %v1917
  %v2479 = vadd.f32 %v1279, %v2018
  %v2480 = vadd.f32 %v1380, %v2119
  %v2481 = vadd.f32 %v1481, %v2220
  %v2482 = vadd.f32 %v1582, %v2321
  %v2483 = vadd.f32 %v979, %v1718
  %v2484 = vadd.f32 %v1080, %v1819
  %v2485 = vadd.f32 %v1181, %v1920
  %v2486 = vadd.f32 %v1282, %v2021
  %v2487 = vadd.f32 %v1383, %v2122
  %v2488 = vadd.f32 %v1484, %v2223
  %v2489 = vadd.f32 %v1585, %v2324
  %v2490 = vadd.f32 %v982, %v1721
  %v2491 = vadd.f32 %v1083, %v1822
  %v2492 = vadd.f32 %v1184, %v1923
  %v2493 = vadd.f32 %v1285, %v2024
  %v2494 = vadd.f32 %v1386, %v2125
  %v2495 = vadd.f32 %v1487, %v2226
  %v2496 = vadd.f32 %v1588, %v2327
  %v2497 = vadd.f32 %v985, %v1724
  %v2498 = vadd.f32 %v1086, %v1825
  %v2499 = vadd.f32 %v1187, %v1926
  %v2500 = vadd.f32 %v1288, %v2027
  %v2501 = vadd.f32 %v1389, %v2128
  %v2502 = vadd.f32 %v1490, %v2229
  %v2503 = vadd.f32 %v1591, %v2330
  %v2504 = vadd.f32 %v988, %v1727
  %v2505 = vadd.f32 %v1089, %v1828
  %v2506 = vadd.f32 %v1190, %v1929
  %v2507 = vadd.f32 %v1291, %v2030
  %v2508 = vadd.f32 %v1392, %v2131
  %v2509 = vadd.f32 %v1493, %v2232
  %v2510 = vadd.f32 %v1594, %v2333
  %v2511 = vadd.f32 %v991, %v1730
  %v2512 = vadd.f32 %v1092, %v1831
  %v2513 = vadd.f32 %v1193, %v1932
  %v2514 = vadd.f32 %v1294, %v2033
  %v2515 = vadd.f32 %v1395, %v2134
  %v2516 = vadd.f32 %v1496, %v2235
  %v2517 = vadd.f32 %v1597, %v2336
  %v2518 = vadd.f32 %v994, %v1733
  %v2519 = vadd.f32 %v1095, %v1834
  %v2520 = vadd.f32 %v1196, %v1935
  %v2521 = vadd.f32 %v1297, %v2036
  %v2522 = vadd.f32 %v1398, %v2137
  %v2523 = vadd.f32 %v1499, %v2238
  %v2524 = vadd.f32 %v1600, %v2339
  %v2525 = vadd.f32 %v997, %v1736
  %v2526 = vadd.f32 %v1098, %v1837
  %v2527 = vadd.f32 %v1199, %v1938
  %v2528 = vadd.f32 %v1300, %v2039
  %v2529 = vadd.f32 %v1401, %v2140
  %v2530 = vadd.f32 %v1502, %v2241
  %v2531 = vadd.f32 %v1603, %v2342
  %v2532 = vadd.f32 %v1000, %v1739
  %v2533 = vadd.f32 %v1101, %v1840
  %v2534 = vadd.f32 %v1202, %v1941
  %v2535 = vadd.f32 %v1303, %v2042
  %v2536 = vadd.f32 %v1404, %v2143
  %v2537 = vadd.f32 %v1505, %v2244
  %v2538 = vadd.f32 %v1606, %v2345
  %v2539 = vadd.f32 %v1003, %v1742
  %v2540 = vadd.f32 %v1104, %v1843
  %v2541 = vadd.f32 %v1205, %v1944
  %v2542 = vadd.f32 %v1306, %v2045
  %v2543 = vadd.f32 %v1407, %v2146
  %v2544 = vadd.f32 %v1508, %v2247
  %v2545 = vadd.f32 %v1609, %v2348
  %s2546 = scalar_lea.vmem %s1, 672
  %v2547 = vld [vmem:[%s2546] sm:$0xff]
  %v2548 = vld [vmem:[%s2546 + $0x8] sm:$0xff]
  %v2549 = vld [vmem:[%s2546 + $0x10] sm:$0xff]
  %v2550 = vld [vmem:[%s2546 + $0x18] sm:$0xff]
  %v2551 = vld [vmem:[%s2546 + $0x20] sm:$0xff]
  %v2552 = vld [vmem:[%s2546 + $0x28] sm:$0xff]
  %v2553 = vld [vmem:[%s2546 + $0x30] sm:$0xff]
  %v2554 = vld [vmem:[%s2546 + $0x38] sm:$0xff]
  %v2555 = vld [vmem:[%s2546 + $0x40] sm:$0xff]
  %v2556 = vld [vmem:[%s2546 + $0x48] sm:$0xff]
  %v2557 = vld [vmem:[%s2546 + $0x50] sm:$0xff]
  %v2558 = vld [vmem:[%s2546 + $0x58] sm:$0xff]
  %v2559 = vld [vmem:[%s2546 + $0x60] sm:$0xff]
  %v2560 = vld [vmem:[%s2546 + $0x68] sm:$0xff]
  %v2561 = vld [vmem:[%s2546 + $0x70] sm:$0xff]
  %v2562 = vld [vmem:[%s2546 + $0x78] sm:$0xff]
  %v2563 = vld [vmem:[%s2546 + $0x80] sm:$0xff]
  %v2564 = vld [vmem:[%s2546 + $0x88] sm:$0xff]
  %v2565 = vld [vmem:[%s2546 + $0x90] sm:$0xff]
  %v2566 = vld [vmem:[%s2546 + $0x98] sm:$0xff]
  %v2567 = vld [vmem:[%s2546 + $0xa0] sm:$0xff]
  %v2568 = vld [vmem:[%s2546 + $0xa8] sm:$0xff]
  %v2569 = vld [vmem:[%s2546 + $0xb0] sm:$0xff]
  %v2570 = vld [vmem:[%s2546 + $0xb8] sm:$0xff]
  %v2571 = vld [vmem:[%s2546 + $0xc0] sm:$0xff]
  %v2572 = vld [vmem:[%s2546 + $0xc8] sm:$0xff]
  %v2573 = vld [vmem:[%s2546 + $0xd0] sm:$0xff]
  %v2574 = vld [vmem:[%s2546 + $0xd8] sm:$0xff]
  %v2576 = vsel %vm109, %v50, 0
  %2578 = vmatpush.msra.mxu0 0.0
  %2579 = vmatpush.msra.mxu0 0.0
  %2580 = vmatpush.msra.mxu0 0.0
  %2581 = vmatpush.msra.mxu0 0.0
  %2582 = vmatpush.msra.mxu0 0.0
  %2583 = vmatpush.msra.mxu0 0.0
  %2584 = vmatpush.msra.mxu0 0.0
  %2585 = vmatpush.msra.mxu0 0.0
  %2586 = vmatpush.msra.mxu0 0.0
  %2587 = vmatpush.msra.mxu0 0.0
  %2588 = vmatpush.msra.mxu0 0.0
  %2589 = vmatpush.msra.mxu0 0.0
  %2590 = vmatpush.msra.mxu0 %v2568
  %2591 = vmatpush.msra.mxu0 %v2561
  %2592 = vmatpush.msra.mxu0 %v2554
  %2593 = vmatpush.msra.mxu0 %v2547
  %2594 = vmatmul.f32.gmra.mxu0 %v117
  %v2595 = vpop.f32.mrf.mxu0
  %v2596 = vadd.f32 0.0, %v2595
  %2597 = vmatmul.f32.gmra.mxu0 %v120
  %v2598 = vpop.f32.mrf.mxu0
  %v2599 = vadd.f32 0.0, %v2598
  %2600 = vmatmul.f32.gmra.mxu0 %v123
  %v2601 = vpop.f32.mrf.mxu0
  %v2602 = vadd.f32 0.0, %v2601
  %2603 = vmatmul.f32.gmra.mxu0 %v126
  %v2604 = vpop.f32.mrf.mxu0
  %v2605 = vadd.f32 0.0, %v2604
  %2606 = vmatmul.f32.gmra.mxu0 %v129
  %v2607 = vpop.f32.mrf.mxu0
  %v2608 = vadd.f32 0.0, %v2607
  %2609 = vmatmul.f32.gmra.mxu0 %v132
  %v2610 = vpop.f32.mrf.mxu0
  %v2611 = vadd.f32 0.0, %v2610
  %2612 = vmatmul.f32.gmra.mxu0 %v135
  %v2613 = vpop.f32.mrf.mxu0
  %v2614 = vadd.f32 0.0, %v2613
  %2615 = vmatmul.f32.gmra.mxu0 %v138
  %v2616 = vpop.f32.mrf.mxu0
  %v2617 = vadd.f32 0.0, %v2616
  %2618 = vmatmul.f32.gmra.mxu0 %v141
  %v2619 = vpop.f32.mrf.mxu0
  %v2620 = vadd.f32 0.0, %v2619
  %2621 = vmatmul.f32.gmra.mxu0 %v144
  %v2622 = vpop.f32.mrf.mxu0
  %v2623 = vadd.f32 0.0, %v2622
  %2624 = vmatmul.f32.gmra.mxu0 %v147
  %v2625 = vpop.f32.mrf.mxu0
  %v2626 = vadd.f32 0.0, %v2625
  %2627 = vmatmul.f32.gmra.mxu0 %v150
  %v2628 = vpop.f32.mrf.mxu0
  %v2629 = vadd.f32 0.0, %v2628
  %2630 = vmatmul.f32.gmra.mxu0 %v153
  %v2631 = vpop.f32.mrf.mxu0
  %v2632 = vadd.f32 0.0, %v2631
  %2633 = vmatmul.f32.gmra.mxu0 %v156
  %v2634 = vpop.f32.mrf.mxu0
  %v2635 = vadd.f32 0.0, %v2634
  %2636 = vmatmul.f32.gmra.mxu0 %v159
  %v2637 = vpop.f32.mrf.mxu0
  %v2638 = vadd.f32 0.0, %v2637
  %2639 = vmatmul.f32.gmra.mxu0 %v162
  %v2640 = vpop.f32.mrf.mxu0
  %v2641 = vadd.f32 0.0, %v2640
  %2642 = vmatmul.f32.gmra.mxu0 %v165
  %v2643 = vpop.f32.mrf.mxu0
  %v2644 = vadd.f32 0.0, %v2643
  %2645 = vmatmul.f32.gmra.mxu0 %v168
  %v2646 = vpop.f32.mrf.mxu0
  %v2647 = vadd.f32 0.0, %v2646
  %2648 = vmatmul.f32.gmra.mxu0 %v171
  %v2649 = vpop.f32.mrf.mxu0
  %v2650 = vadd.f32 0.0, %v2649
  %2651 = vmatmul.f32.gmra.mxu0 %v174
  %v2652 = vpop.f32.mrf.mxu0
  %v2653 = vadd.f32 0.0, %v2652
  %2654 = vmatmul.f32.gmra.mxu0 %v177
  %v2655 = vpop.f32.mrf.mxu0
  %v2656 = vadd.f32 0.0, %v2655
  %2657 = vmatmul.f32.gmra.mxu0 %v180
  %v2658 = vpop.f32.mrf.mxu0
  %v2659 = vadd.f32 0.0, %v2658
  %2660 = vmatmul.f32.gmra.mxu0 %v183
  %v2661 = vpop.f32.mrf.mxu0
  %v2662 = vadd.f32 0.0, %v2661
  %2663 = vmatmul.f32.gmra.mxu0 %v186
  %v2664 = vpop.f32.mrf.mxu0
  %v2665 = vadd.f32 0.0, %v2664
  %2666 = vmatmul.f32.gmra.mxu0 %v189
  %v2667 = vpop.f32.mrf.mxu0
  %v2668 = vadd.f32 0.0, %v2667
  %2669 = vmatmul.f32.gmra.mxu0 %v192
  %v2670 = vpop.f32.mrf.mxu0
  %v2671 = vadd.f32 0.0, %v2670
  %2672 = vmatmul.f32.gmra.mxu0 %v1641
  %v2673 = vpop.f32.mrf.mxu0
  %v2674 = vadd.f32 0.0, %v2673
  %2675 = vmatmul.f32.gmra.mxu0 %v2576
  %v2676 = vpop.f32.mrf.mxu0
  %v2677 = vadd.f32 0.0, %v2676
  %2678 = vdwg.mxu0
  %2679 = vmatpush.msra.mxu0 0.0
  %2680 = vmatpush.msra.mxu0 0.0
  %2681 = vmatpush.msra.mxu0 0.0
  %2682 = vmatpush.msra.mxu0 0.0
  %2683 = vmatpush.msra.mxu0 0.0
  %2684 = vmatpush.msra.mxu0 0.0
  %2685 = vmatpush.msra.mxu0 0.0
  %2686 = vmatpush.msra.mxu0 0.0
  %2687 = vmatpush.msra.mxu0 0.0
  %2688 = vmatpush.msra.mxu0 0.0
  %2689 = vmatpush.msra.mxu0 0.0
  %2690 = vmatpush.msra.mxu0 0.0
  %2691 = vmatpush.msra.mxu0 %v2569
  %2692 = vmatpush.msra.mxu0 %v2562
  %2693 = vmatpush.msra.mxu0 %v2555
  %2694 = vmatpush.msra.mxu0 %v2548
  %2695 = vmatmul.f32.gmra.mxu0 %v117
  %v2696 = vpop.f32.mrf.mxu0
  %v2697 = vadd.f32 0.0, %v2696
  %2698 = vmatmul.f32.gmra.mxu0 %v120
  %v2699 = vpop.f32.mrf.mxu0
  %v2700 = vadd.f32 0.0, %v2699
  %2701 = vmatmul.f32.gmra.mxu0 %v123
  %v2702 = vpop.f32.mrf.mxu0
  %v2703 = vadd.f32 0.0, %v2702
  %2704 = vmatmul.f32.gmra.mxu0 %v126
  %v2705 = vpop.f32.mrf.mxu0
  %v2706 = vadd.f32 0.0, %v2705
  %2707 = vmatmul.f32.gmra.mxu0 %v129
  %v2708 = vpop.f32.mrf.mxu0
  %v2709 = vadd.f32 0.0, %v2708
  %2710 = vmatmul.f32.gmra.mxu0 %v132
  %v2711 = vpop.f32.mrf.mxu0
  %v2712 = vadd.f32 0.0, %v2711
  %2713 = vmatmul.f32.gmra.mxu0 %v135
  %v2714 = vpop.f32.mrf.mxu0
  %v2715 = vadd.f32 0.0, %v2714
  %2716 = vmatmul.f32.gmra.mxu0 %v138
  %v2717 = vpop.f32.mrf.mxu0
  %v2718 = vadd.f32 0.0, %v2717
  %2719 = vmatmul.f32.gmra.mxu0 %v141
  %v2720 = vpop.f32.mrf.mxu0
  %v2721 = vadd.f32 0.0, %v2720
  %2722 = vmatmul.f32.gmra.mxu0 %v144
  %v2723 = vpop.f32.mrf.mxu0
  %v2724 = vadd.f32 0.0, %v2723
  %2725 = vmatmul.f32.gmra.mxu0 %v147
  %v2726 = vpop.f32.mrf.mxu0
  %v2727 = vadd.f32 0.0, %v2726
  %2728 = vmatmul.f32.gmra.mxu0 %v150
  %v2729 = vpop.f32.mrf.mxu0
  %v2730 = vadd.f32 0.0, %v2729
  %2731 = vmatmul.f32.gmra.mxu0 %v153
  %v2732 = vpop.f32.mrf.mxu0
  %v2733 = vadd.f32 0.0, %v2732
  %2734 = vmatmul.f32.gmra.mxu0 %v156
  %v2735 = vpop.f32.mrf.mxu0
  %v2736 = vadd.f32 0.0, %v2735
  %2737 = vmatmul.f32.gmra.mxu0 %v159
  %v2738 = vpop.f32.mrf.mxu0
  %v2739 = vadd.f32 0.0, %v2738
  %2740 = vmatmul.f32.gmra.mxu0 %v162
  %v2741 = vpop.f32.mrf.mxu0
  %v2742 = vadd.f32 0.0, %v2741
  %2743 = vmatmul.f32.gmra.mxu0 %v165
  %v2744 = vpop.f32.mrf.mxu0
  %v2745 = vadd.f32 0.0, %v2744
  %2746 = vmatmul.f32.gmra.mxu0 %v168
  %v2747 = vpop.f32.mrf.mxu0
  %v2748 = vadd.f32 0.0, %v2747
  %2749 = vmatmul.f32.gmra.mxu0 %v171
  %v2750 = vpop.f32.mrf.mxu0
  %v2751 = vadd.f32 0.0, %v2750
  %2752 = vmatmul.f32.gmra.mxu0 %v174
  %v2753 = vpop.f32.mrf.mxu0
  %v2754 = vadd.f32 0.0, %v2753
  %2755 = vmatmul.f32.gmra.mxu0 %v177
  %v2756 = vpop.f32.mrf.mxu0
  %v2757 = vadd.f32 0.0, %v2756
  %2758 = vmatmul.f32.gmra.mxu0 %v180
  %v2759 = vpop.f32.mrf.mxu0
  %v2760 = vadd.f32 0.0, %v2759
  %2761 = vmatmul.f32.gmra.mxu0 %v183
  %v2762 = vpop.f32.mrf.mxu0
  %v2763 = vadd.f32 0.0, %v2762
  %2764 = vmatmul.f32.gmra.mxu0 %v186
  %v2765 = vpop.f32.mrf.mxu0
  %v2766 = vadd.f32 0.0, %v2765
  %2767 = vmatmul.f32.gmra.mxu0 %v189
  %v2768 = vpop.f32.mrf.mxu0
  %v2769 = vadd.f32 0.0, %v2768
  %2770 = vmatmul.f32.gmra.mxu0 %v192
  %v2771 = vpop.f32.mrf.mxu0
  %v2772 = vadd.f32 0.0, %v2771
  %2773 = vmatmul.f32.gmra.mxu0 %v1641
  %v2774 = vpop.f32.mrf.mxu0
  %v2775 = vadd.f32 0.0, %v2774
  %2776 = vmatmul.f32.gmra.mxu0 %v2576
  %v2777 = vpop.f32.mrf.mxu0
  %v2778 = vadd.f32 0.0, %v2777
  %2779 = vdwg.mxu0
  %2780 = vmatpush.msra.mxu0 0.0
  %2781 = vmatpush.msra.mxu0 0.0
  %2782 = vmatpush.msra.mxu0 0.0
  %2783 = vmatpush.msra.mxu0 0.0
  %2784 = vmatpush.msra.mxu0 0.0
  %2785 = vmatpush.msra.mxu0 0.0
  %2786 = vmatpush.msra.mxu0 0.0
  %2787 = vmatpush.msra.mxu0 0.0
  %2788 = vmatpush.msra.mxu0 0.0
  %2789 = vmatpush.msra.mxu0 0.0
  %2790 = vmatpush.msra.mxu0 0.0
  %2791 = vmatpush.msra.mxu0 0.0
  %2792 = vmatpush.msra.mxu0 %v2570
  %2793 = vmatpush.msra.mxu0 %v2563
  %2794 = vmatpush.msra.mxu0 %v2556
  %2795 = vmatpush.msra.mxu0 %v2549
  %2796 = vmatmul.f32.gmra.mxu0 %v117
  %v2797 = vpop.f32.mrf.mxu0
  %v2798 = vadd.f32 0.0, %v2797
  %2799 = vmatmul.f32.gmra.mxu0 %v120
  %v2800 = vpop.f32.mrf.mxu0
  %v2801 = vadd.f32 0.0, %v2800
  %2802 = vmatmul.f32.gmra.mxu0 %v123
  %v2803 = vpop.f32.mrf.mxu0
  %v2804 = vadd.f32 0.0, %v2803
  %2805 = vmatmul.f32.gmra.mxu0 %v126
  %v2806 = vpop.f32.mrf.mxu0
  %v2807 = vadd.f32 0.0, %v2806
  %2808 = vmatmul.f32.gmra.mxu0 %v129
  %v2809 = vpop.f32.mrf.mxu0
  %v2810 = vadd.f32 0.0, %v2809
  %2811 = vmatmul.f32.gmra.mxu0 %v132
  %v2812 = vpop.f32.mrf.mxu0
  %v2813 = vadd.f32 0.0, %v2812
  %2814 = vmatmul.f32.gmra.mxu0 %v135
  %v2815 = vpop.f32.mrf.mxu0
  %v2816 = vadd.f32 0.0, %v2815
  %2817 = vmatmul.f32.gmra.mxu0 %v138
  %v2818 = vpop.f32.mrf.mxu0
  %v2819 = vadd.f32 0.0, %v2818
  %2820 = vmatmul.f32.gmra.mxu0 %v141
  %v2821 = vpop.f32.mrf.mxu0
  %v2822 = vadd.f32 0.0, %v2821
  %2823 = vmatmul.f32.gmra.mxu0 %v144
  %v2824 = vpop.f32.mrf.mxu0
  %v2825 = vadd.f32 0.0, %v2824
  %2826 = vmatmul.f32.gmra.mxu0 %v147
  %v2827 = vpop.f32.mrf.mxu0
  %v2828 = vadd.f32 0.0, %v2827
  %2829 = vmatmul.f32.gmra.mxu0 %v150
  %v2830 = vpop.f32.mrf.mxu0
  %v2831 = vadd.f32 0.0, %v2830
  %2832 = vmatmul.f32.gmra.mxu0 %v153
  %v2833 = vpop.f32.mrf.mxu0
  %v2834 = vadd.f32 0.0, %v2833
  %2835 = vmatmul.f32.gmra.mxu0 %v156
  %v2836 = vpop.f32.mrf.mxu0
  %v2837 = vadd.f32 0.0, %v2836
  %2838 = vmatmul.f32.gmra.mxu0 %v159
  %v2839 = vpop.f32.mrf.mxu0
  %v2840 = vadd.f32 0.0, %v2839
  %2841 = vmatmul.f32.gmra.mxu0 %v162
  %v2842 = vpop.f32.mrf.mxu0
  %v2843 = vadd.f32 0.0, %v2842
  %2844 = vmatmul.f32.gmra.mxu0 %v165
  %v2845 = vpop.f32.mrf.mxu0
  %v2846 = vadd.f32 0.0, %v2845
  %2847 = vmatmul.f32.gmra.mxu0 %v168
  %v2848 = vpop.f32.mrf.mxu0
  %v2849 = vadd.f32 0.0, %v2848
  %2850 = vmatmul.f32.gmra.mxu0 %v171
  %v2851 = vpop.f32.mrf.mxu0
  %v2852 = vadd.f32 0.0, %v2851
  %2853 = vmatmul.f32.gmra.mxu0 %v174
  %v2854 = vpop.f32.mrf.mxu0
  %v2855 = vadd.f32 0.0, %v2854
  %2856 = vmatmul.f32.gmra.mxu0 %v177
  %v2857 = vpop.f32.mrf.mxu0
  %v2858 = vadd.f32 0.0, %v2857
  %2859 = vmatmul.f32.gmra.mxu0 %v180
  %v2860 = vpop.f32.mrf.mxu0
  %v2861 = vadd.f32 0.0, %v2860
  %2862 = vmatmul.f32.gmra.mxu0 %v183
  %v2863 = vpop.f32.mrf.mxu0
  %v2864 = vadd.f32 0.0, %v2863
  %2865 = vmatmul.f32.gmra.mxu0 %v186
  %v2866 = vpop.f32.mrf.mxu0
  %v2867 = vadd.f32 0.0, %v2866
  %2868 = vmatmul.f32.gmra.mxu0 %v189
  %v2869 = vpop.f32.mrf.mxu0
  %v2870 = vadd.f32 0.0, %v2869
  %2871 = vmatmul.f32.gmra.mxu0 %v192
  %v2872 = vpop.f32.mrf.mxu0
  %v2873 = vadd.f32 0.0, %v2872
  %2874 = vmatmul.f32.gmra.mxu0 %v1641
  %v2875 = vpop.f32.mrf.mxu0
  %v2876 = vadd.f32 0.0, %v2875
  %2877 = vmatmul.f32.gmra.mxu0 %v2576
  %v2878 = vpop.f32.mrf.mxu0
  %v2879 = vadd.f32 0.0, %v2878
  %2880 = vdwg.mxu0
  %2881 = vmatpush.msra.mxu0 0.0
  %2882 = vmatpush.msra.mxu0 0.0
  %2883 = vmatpush.msra.mxu0 0.0
  %2884 = vmatpush.msra.mxu0 0.0
  %2885 = vmatpush.msra.mxu0 0.0
  %2886 = vmatpush.msra.mxu0 0.0
  %2887 = vmatpush.msra.mxu0 0.0
  %2888 = vmatpush.msra.mxu0 0.0
  %2889 = vmatpush.msra.mxu0 0.0
  %2890 = vmatpush.msra.mxu0 0.0
  %2891 = vmatpush.msra.mxu0 0.0
  %2892 = vmatpush.msra.mxu0 0.0
  %2893 = vmatpush.msra.mxu0 %v2571
  %2894 = vmatpush.msra.mxu0 %v2564
  %2895 = vmatpush.msra.mxu0 %v2557
  %2896 = vmatpush.msra.mxu0 %v2550
  %2897 = vmatmul.f32.gmra.mxu0 %v117
  %v2898 = vpop.f32.mrf.mxu0
  %v2899 = vadd.f32 0.0, %v2898
  %2900 = vmatmul.f32.gmra.mxu0 %v120
  %v2901 = vpop.f32.mrf.mxu0
  %v2902 = vadd.f32 0.0, %v2901
  %2903 = vmatmul.f32.gmra.mxu0 %v123
  %v2904 = vpop.f32.mrf.mxu0
  %v2905 = vadd.f32 0.0, %v2904
  %2906 = vmatmul.f32.gmra.mxu0 %v126
  %v2907 = vpop.f32.mrf.mxu0
  %v2908 = vadd.f32 0.0, %v2907
  %2909 = vmatmul.f32.gmra.mxu0 %v129
  %v2910 = vpop.f32.mrf.mxu0
  %v2911 = vadd.f32 0.0, %v2910
  %2912 = vmatmul.f32.gmra.mxu0 %v132
  %v2913 = vpop.f32.mrf.mxu0
  %v2914 = vadd.f32 0.0, %v2913
  %2915 = vmatmul.f32.gmra.mxu0 %v135
  %v2916 = vpop.f32.mrf.mxu0
  %v2917 = vadd.f32 0.0, %v2916
  %2918 = vmatmul.f32.gmra.mxu0 %v138
  %v2919 = vpop.f32.mrf.mxu0
  %v2920 = vadd.f32 0.0, %v2919
  %2921 = vmatmul.f32.gmra.mxu0 %v141
  %v2922 = vpop.f32.mrf.mxu0
  %v2923 = vadd.f32 0.0, %v2922
  %2924 = vmatmul.f32.gmra.mxu0 %v144
  %v2925 = vpop.f32.mrf.mxu0
  %v2926 = vadd.f32 0.0, %v2925
  %2927 = vmatmul.f32.gmra.mxu0 %v147
  %v2928 = vpop.f32.mrf.mxu0
  %v2929 = vadd.f32 0.0, %v2928
  %2930 = vmatmul.f32.gmra.mxu0 %v150
  %v2931 = vpop.f32.mrf.mxu0
  %v2932 = vadd.f32 0.0, %v2931
  %2933 = vmatmul.f32.gmra.mxu0 %v153
  %v2934 = vpop.f32.mrf.mxu0
  %v2935 = vadd.f32 0.0, %v2934
  %2936 = vmatmul.f32.gmra.mxu0 %v156
  %v2937 = vpop.f32.mrf.mxu0
  %v2938 = vadd.f32 0.0, %v2937
  %2939 = vmatmul.f32.gmra.mxu0 %v159
  %v2940 = vpop.f32.mrf.mxu0
  %v2941 = vadd.f32 0.0, %v2940
  %2942 = vmatmul.f32.gmra.mxu0 %v162
  %v2943 = vpop.f32.mrf.mxu0
  %v2944 = vadd.f32 0.0, %v2943
  %2945 = vmatmul.f32.gmra.mxu0 %v165
  %v2946 = vpop.f32.mrf.mxu0
  %v2947 = vadd.f32 0.0, %v2946
  %2948 = vmatmul.f32.gmra.mxu0 %v168
  %v2949 = vpop.f32.mrf.mxu0
  %v2950 = vadd.f32 0.0, %v2949
  %2951 = vmatmul.f32.gmra.mxu0 %v171
  %v2952 = vpop.f32.mrf.mxu0
  %v2953 = vadd.f32 0.0, %v2952
  %2954 = vmatmul.f32.gmra.mxu0 %v174
  %v2955 = vpop.f32.mrf.mxu0
  %v2956 = vadd.f32 0.0, %v2955
  %2957 = vmatmul.f32.gmra.mxu0 %v177
  %v2958 = vpop.f32.mrf.mxu0
  %v2959 = vadd.f32 0.0, %v2958
  %2960 = vmatmul.f32.gmra.mxu0 %v180
  %v2961 = vpop.f32.mrf.mxu0
  %v2962 = vadd.f32 0.0, %v2961
  %2963 = vmatmul.f32.gmra.mxu0 %v183
  %v2964 = vpop.f32.mrf.mxu0
  %v2965 = vadd.f32 0.0, %v2964
  %2966 = vmatmul.f32.gmra.mxu0 %v186
  %v2967 = vpop.f32.mrf.mxu0
  %v2968 = vadd.f32 0.0, %v2967
  %2969 = vmatmul.f32.gmra.mxu0 %v189
  %v2970 = vpop.f32.mrf.mxu0
  %v2971 = vadd.f32 0.0, %v2970
  %2972 = vmatmul.f32.gmra.mxu0 %v192
  %v2973 = vpop.f32.mrf.mxu0
  %v2974 = vadd.f32 0.0, %v2973
  %2975 = vmatmul.f32.gmra.mxu0 %v1641
  %v2976 = vpop.f32.mrf.mxu0
  %v2977 = vadd.f32 0.0, %v2976
  %2978 = vmatmul.f32.gmra.mxu0 %v2576
  %v2979 = vpop.f32.mrf.mxu0
  %v2980 = vadd.f32 0.0, %v2979
  %2981 = vdwg.mxu0
  %2982 = vmatpush.msra.mxu0 0.0
  %2983 = vmatpush.msra.mxu0 0.0
  %2984 = vmatpush.msra.mxu0 0.0
  %2985 = vmatpush.msra.mxu0 0.0
  %2986 = vmatpush.msra.mxu0 0.0
  %2987 = vmatpush.msra.mxu0 0.0
  %2988 = vmatpush.msra.mxu0 0.0
  %2989 = vmatpush.msra.mxu0 0.0
  %2990 = vmatpush.msra.mxu0 0.0
  %2991 = vmatpush.msra.mxu0 0.0
  %2992 = vmatpush.msra.mxu0 0.0
  %2993 = vmatpush.msra.mxu0 0.0
  %2994 = vmatpush.msra.mxu0 %v2572
  %2995 = vmatpush.msra.mxu0 %v2565
  %2996 = vmatpush.msra.mxu0 %v2558
  %2997 = vmatpush.msra.mxu0 %v2551
  %2998 = vmatmul.f32.gmra.mxu0 %v117
  %v2999 = vpop.f32.mrf.mxu0
  %v3000 = vadd.f32 0.0, %v2999
  %3001 = vmatmul.f32.gmra.mxu0 %v120
  %v3002 = vpop.f32.mrf.mxu0
  %v3003 = vadd.f32 0.0, %v3002
  %3004 = vmatmul.f32.gmra.mxu0 %v123
  %v3005 = vpop.f32.mrf.mxu0
  %v3006 = vadd.f32 0.0, %v3005
  %3007 = vmatmul.f32.gmra.mxu0 %v126
  %v3008 = vpop.f32.mrf.mxu0
  %v3009 = vadd.f32 0.0, %v3008
  %3010 = vmatmul.f32.gmra.mxu0 %v129
  %v3011 = vpop.f32.mrf.mxu0
  %v3012 = vadd.f32 0.0, %v3011
  %3013 = vmatmul.f32.gmra.mxu0 %v132
  %v3014 = vpop.f32.mrf.mxu0
  %v3015 = vadd.f32 0.0, %v3014
  %3016 = vmatmul.f32.gmra.mxu0 %v135
  %v3017 = vpop.f32.mrf.mxu0
  %v3018 = vadd.f32 0.0, %v3017
  %3019 = vmatmul.f32.gmra.mxu0 %v138
  %v3020 = vpop.f32.mrf.mxu0
  %v3021 = vadd.f32 0.0, %v3020
  %3022 = vmatmul.f32.gmra.mxu0 %v141
  %v3023 = vpop.f32.mrf.mxu0
  %v3024 = vadd.f32 0.0, %v3023
  %3025 = vmatmul.f32.gmra.mxu0 %v144
  %v3026 = vpop.f32.mrf.mxu0
  %v3027 = vadd.f32 0.0, %v3026
  %3028 = vmatmul.f32.gmra.mxu0 %v147
  %v3029 = vpop.f32.mrf.mxu0
  %v3030 = vadd.f32 0.0, %v3029
  %3031 = vmatmul.f32.gmra.mxu0 %v150
  %v3032 = vpop.f32.mrf.mxu0
  %v3033 = vadd.f32 0.0, %v3032
  %3034 = vmatmul.f32.gmra.mxu0 %v153
  %v3035 = vpop.f32.mrf.mxu0
  %v3036 = vadd.f32 0.0, %v3035
  %3037 = vmatmul.f32.gmra.mxu0 %v156
  %v3038 = vpop.f32.mrf.mxu0
  %v3039 = vadd.f32 0.0, %v3038
  %3040 = vmatmul.f32.gmra.mxu0 %v159
  %v3041 = vpop.f32.mrf.mxu0
  %v3042 = vadd.f32 0.0, %v3041
  %3043 = vmatmul.f32.gmra.mxu0 %v162
  %v3044 = vpop.f32.mrf.mxu0
  %v3045 = vadd.f32 0.0, %v3044
  %3046 = vmatmul.f32.gmra.mxu0 %v165
  %v3047 = vpop.f32.mrf.mxu0
  %v3048 = vadd.f32 0.0, %v3047
  %3049 = vmatmul.f32.gmra.mxu0 %v168
  %v3050 = vpop.f32.mrf.mxu0
  %v3051 = vadd.f32 0.0, %v3050
  %3052 = vmatmul.f32.gmra.mxu0 %v171
  %v3053 = vpop.f32.mrf.mxu0
  %v3054 = vadd.f32 0.0, %v3053
  %3055 = vmatmul.f32.gmra.mxu0 %v174
  %v3056 = vpop.f32.mrf.mxu0
  %v3057 = vadd.f32 0.0, %v3056
  %3058 = vmatmul.f32.gmra.mxu0 %v177
  %v3059 = vpop.f32.mrf.mxu0
  %v3060 = vadd.f32 0.0, %v3059
  %3061 = vmatmul.f32.gmra.mxu0 %v180
  %v3062 = vpop.f32.mrf.mxu0
  %v3063 = vadd.f32 0.0, %v3062
  %3064 = vmatmul.f32.gmra.mxu0 %v183
  %v3065 = vpop.f32.mrf.mxu0
  %v3066 = vadd.f32 0.0, %v3065
  %3067 = vmatmul.f32.gmra.mxu0 %v186
  %v3068 = vpop.f32.mrf.mxu0
  %v3069 = vadd.f32 0.0, %v3068
  %3070 = vmatmul.f32.gmra.mxu0 %v189
  %v3071 = vpop.f32.mrf.mxu0
  %v3072 = vadd.f32 0.0, %v3071
  %3073 = vmatmul.f32.gmra.mxu0 %v192
  %v3074 = vpop.f32.mrf.mxu0
  %v3075 = vadd.f32 0.0, %v3074
  %3076 = vmatmul.f32.gmra.mxu0 %v1641
  %v3077 = vpop.f32.mrf.mxu0
  %v3078 = vadd.f32 0.0, %v3077
  %3079 = vmatmul.f32.gmra.mxu0 %v2576
  %v3080 = vpop.f32.mrf.mxu0
  %v3081 = vadd.f32 0.0, %v3080
  %3082 = vdwg.mxu0
  %3083 = vmatpush.msra.mxu0 0.0
  %3084 = vmatpush.msra.mxu0 0.0
  %3085 = vmatpush.msra.mxu0 0.0
  %3086 = vmatpush.msra.mxu0 0.0
  %3087 = vmatpush.msra.mxu0 0.0
  %3088 = vmatpush.msra.mxu0 0.0
  %3089 = vmatpush.msra.mxu0 0.0
  %3090 = vmatpush.msra.mxu0 0.0
  %3091 = vmatpush.msra.mxu0 0.0
  %3092 = vmatpush.msra.mxu0 0.0
  %3093 = vmatpush.msra.mxu0 0.0
  %3094 = vmatpush.msra.mxu0 0.0
  %3095 = vmatpush.msra.mxu0 %v2573
  %3096 = vmatpush.msra.mxu0 %v2566
  %3097 = vmatpush.msra.mxu0 %v2559
  %3098 = vmatpush.msra.mxu0 %v2552
  %3099 = vmatmul.f32.gmra.mxu0 %v117
  %v3100 = vpop.f32.mrf.mxu0
  %v3101 = vadd.f32 0.0, %v3100
  %3102 = vmatmul.f32.gmra.mxu0 %v120
  %v3103 = vpop.f32.mrf.mxu0
  %v3104 = vadd.f32 0.0, %v3103
  %3105 = vmatmul.f32.gmra.mxu0 %v123
  %v3106 = vpop.f32.mrf.mxu0
  %v3107 = vadd.f32 0.0, %v3106
  %3108 = vmatmul.f32.gmra.mxu0 %v126
  %v3109 = vpop.f32.mrf.mxu0
  %v3110 = vadd.f32 0.0, %v3109
  %3111 = vmatmul.f32.gmra.mxu0 %v129
  %v3112 = vpop.f32.mrf.mxu0
  %v3113 = vadd.f32 0.0, %v3112
  %3114 = vmatmul.f32.gmra.mxu0 %v132
  %v3115 = vpop.f32.mrf.mxu0
  %v3116 = vadd.f32 0.0, %v3115
  %3117 = vmatmul.f32.gmra.mxu0 %v135
  %v3118 = vpop.f32.mrf.mxu0
  %v3119 = vadd.f32 0.0, %v3118
  %3120 = vmatmul.f32.gmra.mxu0 %v138
  %v3121 = vpop.f32.mrf.mxu0
  %v3122 = vadd.f32 0.0, %v3121
  %3123 = vmatmul.f32.gmra.mxu0 %v141
  %v3124 = vpop.f32.mrf.mxu0
  %v3125 = vadd.f32 0.0, %v3124
  %3126 = vmatmul.f32.gmra.mxu0 %v144
  %v3127 = vpop.f32.mrf.mxu0
  %v3128 = vadd.f32 0.0, %v3127
  %3129 = vmatmul.f32.gmra.mxu0 %v147
  %v3130 = vpop.f32.mrf.mxu0
  %v3131 = vadd.f32 0.0, %v3130
  %3132 = vmatmul.f32.gmra.mxu0 %v150
  %v3133 = vpop.f32.mrf.mxu0
  %v3134 = vadd.f32 0.0, %v3133
  %3135 = vmatmul.f32.gmra.mxu0 %v153
  %v3136 = vpop.f32.mrf.mxu0
  %v3137 = vadd.f32 0.0, %v3136
  %3138 = vmatmul.f32.gmra.mxu0 %v156
  %v3139 = vpop.f32.mrf.mxu0
  %v3140 = vadd.f32 0.0, %v3139
  %3141 = vmatmul.f32.gmra.mxu0 %v159
  %v3142 = vpop.f32.mrf.mxu0
  %v3143 = vadd.f32 0.0, %v3142
  %3144 = vmatmul.f32.gmra.mxu0 %v162
  %v3145 = vpop.f32.mrf.mxu0
  %v3146 = vadd.f32 0.0, %v3145
  %3147 = vmatmul.f32.gmra.mxu0 %v165
  %v3148 = vpop.f32.mrf.mxu0
  %v3149 = vadd.f32 0.0, %v3148
  %3150 = vmatmul.f32.gmra.mxu0 %v168
  %v3151 = vpop.f32.mrf.mxu0
  %v3152 = vadd.f32 0.0, %v3151
  %3153 = vmatmul.f32.gmra.mxu0 %v171
  %v3154 = vpop.f32.mrf.mxu0
  %v3155 = vadd.f32 0.0, %v3154
  %3156 = vmatmul.f32.gmra.mxu0 %v174
  %v3157 = vpop.f32.mrf.mxu0
  %v3158 = vadd.f32 0.0, %v3157
  %3159 = vmatmul.f32.gmra.mxu0 %v177
  %v3160 = vpop.f32.mrf.mxu0
  %v3161 = vadd.f32 0.0, %v3160
  %3162 = vmatmul.f32.gmra.mxu0 %v180
  %v3163 = vpop.f32.mrf.mxu0
  %v3164 = vadd.f32 0.0, %v3163
  %3165 = vmatmul.f32.gmra.mxu0 %v183
  %v3166 = vpop.f32.mrf.mxu0
  %v3167 = vadd.f32 0.0, %v3166
  %3168 = vmatmul.f32.gmra.mxu0 %v186
  %v3169 = vpop.f32.mrf.mxu0
  %v3170 = vadd.f32 0.0, %v3169
  %3171 = vmatmul.f32.gmra.mxu0 %v189
  %v3172 = vpop.f32.mrf.mxu0
  %v3173 = vadd.f32 0.0, %v3172
  %3174 = vmatmul.f32.gmra.mxu0 %v192
  %v3175 = vpop.f32.mrf.mxu0
  %v3176 = vadd.f32 0.0, %v3175
  %3177 = vmatmul.f32.gmra.mxu0 %v1641
  %v3178 = vpop.f32.mrf.mxu0
  %v3179 = vadd.f32 0.0, %v3178
  %3180 = vmatmul.f32.gmra.mxu0 %v2576
  %v3181 = vpop.f32.mrf.mxu0
  %v3182 = vadd.f32 0.0, %v3181
  %3183 = vdwg.mxu0
  %3184 = vmatpush.msra.mxu0 0.0
  %3185 = vmatpush.msra.mxu0 0.0
  %3186 = vmatpush.msra.mxu0 0.0
  %3187 = vmatpush.msra.mxu0 0.0
  %3188 = vmatpush.msra.mxu0 0.0
  %3189 = vmatpush.msra.mxu0 0.0
  %3190 = vmatpush.msra.mxu0 0.0
  %3191 = vmatpush.msra.mxu0 0.0
  %3192 = vmatpush.msra.mxu0 0.0
  %3193 = vmatpush.msra.mxu0 0.0
  %3194 = vmatpush.msra.mxu0 0.0
  %3195 = vmatpush.msra.mxu0 0.0
  %3196 = vmatpush.msra.mxu0 %v2574
  %3197 = vmatpush.msra.mxu0 %v2567
  %3198 = vmatpush.msra.mxu0 %v2560
  %3199 = vmatpush.msra.mxu0 %v2553
  %3200 = vmatmul.f32.gmra.mxu0 %v117
  %v3201 = vpop.f32.mrf.mxu0
  %v3202 = vadd.f32 0.0, %v3201
  %3203 = vmatmul.f32.gmra.mxu0 %v120
  %v3204 = vpop.f32.mrf.mxu0
  %v3205 = vadd.f32 0.0, %v3204
  %3206 = vmatmul.f32.gmra.mxu0 %v123
  %v3207 = vpop.f32.mrf.mxu0
  %v3208 = vadd.f32 0.0, %v3207
  %3209 = vmatmul.f32.gmra.mxu0 %v126
  %v3210 = vpop.f32.mrf.mxu0
  %v3211 = vadd.f32 0.0, %v3210
  %3212 = vmatmul.f32.gmra.mxu0 %v129
  %v3213 = vpop.f32.mrf.mxu0
  %v3214 = vadd.f32 0.0, %v3213
  %3215 = vmatmul.f32.gmra.mxu0 %v132
  %v3216 = vpop.f32.mrf.mxu0
  %v3217 = vadd.f32 0.0, %v3216
  %3218 = vmatmul.f32.gmra.mxu0 %v135
  %v3219 = vpop.f32.mrf.mxu0
  %v3220 = vadd.f32 0.0, %v3219
  %3221 = vmatmul.f32.gmra.mxu0 %v138
  %v3222 = vpop.f32.mrf.mxu0
  %v3223 = vadd.f32 0.0, %v3222
  %3224 = vmatmul.f32.gmra.mxu0 %v141
  %v3225 = vpop.f32.mrf.mxu0
  %v3226 = vadd.f32 0.0, %v3225
  %3227 = vmatmul.f32.gmra.mxu0 %v144
  %v3228 = vpop.f32.mrf.mxu0
  %v3229 = vadd.f32 0.0, %v3228
  %3230 = vmatmul.f32.gmra.mxu0 %v147
  %v3231 = vpop.f32.mrf.mxu0
  %v3232 = vadd.f32 0.0, %v3231
  %3233 = vmatmul.f32.gmra.mxu0 %v150
  %v3234 = vpop.f32.mrf.mxu0
  %v3235 = vadd.f32 0.0, %v3234
  %3236 = vmatmul.f32.gmra.mxu0 %v153
  %v3237 = vpop.f32.mrf.mxu0
  %v3238 = vadd.f32 0.0, %v3237
  %3239 = vmatmul.f32.gmra.mxu0 %v156
  %v3240 = vpop.f32.mrf.mxu0
  %v3241 = vadd.f32 0.0, %v3240
  %3242 = vmatmul.f32.gmra.mxu0 %v159
  %v3243 = vpop.f32.mrf.mxu0
  %v3244 = vadd.f32 0.0, %v3243
  %3245 = vmatmul.f32.gmra.mxu0 %v162
  %v3246 = vpop.f32.mrf.mxu0
  %v3247 = vadd.f32 0.0, %v3246
  %3248 = vmatmul.f32.gmra.mxu0 %v165
  %v3249 = vpop.f32.mrf.mxu0
  %v3250 = vadd.f32 0.0, %v3249
  %3251 = vmatmul.f32.gmra.mxu0 %v168
  %v3252 = vpop.f32.mrf.mxu0
  %v3253 = vadd.f32 0.0, %v3252
  %3254 = vmatmul.f32.gmra.mxu0 %v171
  %v3255 = vpop.f32.mrf.mxu0
  %v3256 = vadd.f32 0.0, %v3255
  %3257 = vmatmul.f32.gmra.mxu0 %v174
  %v3258 = vpop.f32.mrf.mxu0
  %v3259 = vadd.f32 0.0, %v3258
  %3260 = vmatmul.f32.gmra.mxu0 %v177
  %v3261 = vpop.f32.mrf.mxu0
  %v3262 = vadd.f32 0.0, %v3261
  %3263 = vmatmul.f32.gmra.mxu0 %v180
  %v3264 = vpop.f32.mrf.mxu0
  %v3265 = vadd.f32 0.0, %v3264
  %3266 = vmatmul.f32.gmra.mxu0 %v183
  %v3267 = vpop.f32.mrf.mxu0
  %v3268 = vadd.f32 0.0, %v3267
  %3269 = vmatmul.f32.gmra.mxu0 %v186
  %v3270 = vpop.f32.mrf.mxu0
  %v3271 = vadd.f32 0.0, %v3270
  %3272 = vmatmul.f32.gmra.mxu0 %v189
  %v3273 = vpop.f32.mrf.mxu0
  %v3274 = vadd.f32 0.0, %v3273
  %3275 = vmatmul.f32.gmra.mxu0 %v192
  %v3276 = vpop.f32.mrf.mxu0
  %v3277 = vadd.f32 0.0, %v3276
  %3278 = vmatmul.f32.gmra.mxu0 %v1641
  %v3279 = vpop.f32.mrf.mxu0
  %v3280 = vadd.f32 0.0, %v3279
  %3281 = vmatmul.f32.gmra.mxu0 %v2576
  %v3282 = vpop.f32.mrf.mxu0
  %v3283 = vadd.f32 0.0, %v3282
  %3284 = vdwg.mxu0
  %v3285 = vadd.f32 %v2350, %v2596
  %v3286 = vadd.f32 %v2351, %v2697
  %v3287 = vadd.f32 %v2352, %v2798
  %v3288 = vadd.f32 %v2353, %v2899
  %v3289 = vadd.f32 %v2354, %v3000
  %v3290 = vadd.f32 %v2355, %v3101
  %v3291 = vadd.f32 %v2356, %v3202
  %v3292 = vadd.f32 %v2357, %v2599
  %v3293 = vadd.f32 %v2358, %v2700
  %v3294 = vadd.f32 %v2359, %v2801
  %v3295 = vadd.f32 %v2360, %v2902
  %v3296 = vadd.f32 %v2361, %v3003
  %v3297 = vadd.f32 %v2362, %v3104
  %v3298 = vadd.f32 %v2363, %v3205
  %v3299 = vadd.f32 %v2364, %v2602
  %v3300 = vadd.f32 %v2365, %v2703
  %v3301 = vadd.f32 %v2366, %v2804
  %v3302 = vadd.f32 %v2367, %v2905
  %v3303 = vadd.f32 %v2368, %v3006
  %v3304 = vadd.f32 %v2369, %v3107
  %v3305 = vadd.f32 %v2370, %v3208
  %v3306 = vadd.f32 %v2371, %v2605
  %v3307 = vadd.f32 %v2372, %v2706
  %v3308 = vadd.f32 %v2373, %v2807
  %v3309 = vadd.f32 %v2374, %v2908
  %v3310 = vadd.f32 %v2375, %v3009
  %v3311 = vadd.f32 %v2376, %v3110
  %v3312 = vadd.f32 %v2377, %v3211
  %v3313 = vadd.f32 %v2378, %v2608
  %v3314 = vadd.f32 %v2379, %v2709
  %v3315 = vadd.f32 %v2380, %v2810
  %v3316 = vadd.f32 %v2381, %v2911
  %v3317 = vadd.f32 %v2382, %v3012
  %v3318 = vadd.f32 %v2383, %v3113
  %v3319 = vadd.f32 %v2384, %v3214
  %v3320 = vadd.f32 %v2385, %v2611
  %v3321 = vadd.f32 %v2386, %v2712
  %v3322 = vadd.f32 %v2387, %v2813
  %v3323 = vadd.f32 %v2388, %v2914
  %v3324 = vadd.f32 %v2389, %v3015
  %v3325 = vadd.f32 %v2390, %v3116
  %v3326 = vadd.f32 %v2391, %v3217
  %v3327 = vadd.f32 %v2392, %v2614
  %v3328 = vadd.f32 %v2393, %v2715
  %v3329 = vadd.f32 %v2394, %v2816
  %v3330 = vadd.f32 %v2395, %v2917
  %v3331 = vadd.f32 %v2396, %v3018
  %v3332 = vadd.f32 %v2397, %v3119
  %v3333 = vadd.f32 %v2398, %v3220
  %v3334 = vadd.f32 %v2399, %v2617
  %v3335 = vadd.f32 %v2400, %v2718
  %v3336 = vadd.f32 %v2401, %v2819
  %v3337 = vadd.f32 %v2402, %v2920
  %v3338 = vadd.f32 %v2403, %v3021
  %v3339 = vadd.f32 %v2404, %v3122
  %v3340 = vadd.f32 %v2405, %v3223
  %v3341 = vadd.f32 %v2406, %v2620
  %v3342 = vadd.f32 %v2407, %v2721
  %v3343 = vadd.f32 %v2408, %v2822
  %v3344 = vadd.f32 %v2409, %v2923
  %v3345 = vadd.f32 %v2410, %v3024
  %v3346 = vadd.f32 %v2411, %v3125
  %v3347 = vadd.f32 %v2412, %v3226
  %v3348 = vadd.f32 %v2413, %v2623
  %v3349 = vadd.f32 %v2414, %v2724
  %v3350 = vadd.f32 %v2415, %v2825
  %v3351 = vadd.f32 %v2416, %v2926
  %v3352 = vadd.f32 %v2417, %v3027
  %v3353 = vadd.f32 %v2418, %v3128
  %v3354 = vadd.f32 %v2419, %v3229
  %v3355 = vadd.f32 %v2420, %v2626
  %v3356 = vadd.f32 %v2421, %v2727
  %v3357 = vadd.f32 %v2422, %v2828
  %v3358 = vadd.f32 %v2423, %v2929
  %v3359 = vadd.f32 %v2424, %v3030
  %v3360 = vadd.f32 %v2425, %v3131
  %v3361 = vadd.f32 %v2426, %v3232
  %v3362 = vadd.f32 %v2427, %v2629
  %v3363 = vadd.f32 %v2428, %v2730
  %v3364 = vadd.f32 %v2429, %v2831
  %v3365 = vadd.f32 %v2430, %v2932
  %v3366 = vadd.f32 %v2431, %v3033
  %v3367 = vadd.f32 %v2432, %v3134
  %v3368 = vadd.f32 %v2433, %v3235
  %v3369 = vadd.f32 %v2434, %v2632
  %v3370 = vadd.f32 %v2435, %v2733
  %v3371 = vadd.f32 %v2436, %v2834
  %v3372 = vadd.f32 %v2437, %v2935
  %v3373 = vadd.f32 %v2438, %v3036
  %v3374 = vadd.f32 %v2439, %v3137
  %v3375 = vadd.f32 %v2440, %v3238
  %v3376 = vadd.f32 %v2441, %v2635
  %v3377 = vadd.f32 %v2442, %v2736
  %v3378 = vadd.f32 %v2443, %v2837
  %v3379 = vadd.f32 %v2444, %v2938
  %v3380 = vadd.f32 %v2445, %v3039
  %v3381 = vadd.f32 %v2446, %v3140
  %v3382 = vadd.f32 %v2447, %v3241
  %v3383 = vadd.f32 %v2448, %v2638
  %v3384 = vadd.f32 %v2449, %v2739
  %v3385 = vadd.f32 %v2450, %v2840
  %v3386 = vadd.f32 %v2451, %v2941
  %v3387 = vadd.f32 %v2452, %v3042
  %v3388 = vadd.f32 %v2453, %v3143
  %v3389 = vadd.f32 %v2454, %v3244
  %v3390 = vadd.f32 %v2455, %v2641
  %v3391 = vadd.f32 %v2456, %v2742
  %v3392 = vadd.f32 %v2457, %v2843
  %v3393 = vadd.f32 %v2458, %v2944
  %v3394 = vadd.f32 %v2459, %v3045
  %v3395 = vadd.f32 %v2460, %v3146
  %v3396 = vadd.f32 %v2461, %v3247
  %v3397 = vadd.f32 %v2462, %v2644
  %v3398 = vadd.f32 %v2463, %v2745
  %v3399 = vadd.f32 %v2464, %v2846
  %v3400 = vadd.f32 %v2465, %v2947
  %v3401 = vadd.f32 %v2466, %v3048
  %v3402 = vadd.f32 %v2467, %v3149
  %v3403 = vadd.f32 %v2468, %v3250
  %v3404 = vadd.f32 %v2469, %v2647
  %v3405 = vadd.f32 %v2470, %v2748
  %v3406 = vadd.f32 %v2471, %v2849
  %v3407 = vadd.f32 %v2472, %v2950
  %v3408 = vadd.f32 %v2473, %v3051
  %v3409 = vadd.f32 %v2474, %v3152
  %v3410 = vadd.f32 %v2475, %v3253
  %v3411 = vadd.f32 %v2476, %v2650
  %v3412 = vadd.f32 %v2477, %v2751
  %v3413 = vadd.f32 %v2478, %v2852
  %v3414 = vadd.f32 %v2479, %v2953
  %v3415 = vadd.f32 %v2480, %v3054
  %v3416 = vadd.f32 %v2481, %v3155
  %v3417 = vadd.f32 %v2482, %v3256
  %v3418 = vadd.f32 %v2483, %v2653
  %v3419 = vadd.f32 %v2484, %v2754
  %v3420 = vadd.f32 %v2485, %v2855
  %v3421 = vadd.f32 %v2486, %v2956
  %v3422 = vadd.f32 %v2487, %v3057
  %v3423 = vadd.f32 %v2488, %v3158
  %v3424 = vadd.f32 %v2489, %v3259
  %v3425 = vadd.f32 %v2490, %v2656
  %v3426 = vadd.f32 %v2491, %v2757
  %v3427 = vadd.f32 %v2492, %v2858
  %v3428 = vadd.f32 %v2493, %v2959
  %v3429 = vadd.f32 %v2494, %v3060
  %v3430 = vadd.f32 %v2495, %v3161
  %v3431 = vadd.f32 %v2496, %v3262
  %v3432 = vadd.f32 %v2497, %v2659
  %v3433 = vadd.f32 %v2498, %v2760
  %v3434 = vadd.f32 %v2499, %v2861
  %v3435 = vadd.f32 %v2500, %v2962
  %v3436 = vadd.f32 %v2501, %v3063
  %v3437 = vadd.f32 %v2502, %v3164
  %v3438 = vadd.f32 %v2503, %v3265
  %v3439 = vadd.f32 %v2504, %v2662
  %v3440 = vadd.f32 %v2505, %v2763
  %v3441 = vadd.f32 %v2506, %v2864
  %v3442 = vadd.f32 %v2507, %v2965
  %v3443 = vadd.f32 %v2508, %v3066
  %v3444 = vadd.f32 %v2509, %v3167
  %v3445 = vadd.f32 %v2510, %v3268
  %v3446 = vadd.f32 %v2511, %v2665
  %v3447 = vadd.f32 %v2512, %v2766
  %v3448 = vadd.f32 %v2513, %v2867
  %v3449 = vadd.f32 %v2514, %v2968
  %v3450 = vadd.f32 %v2515, %v3069
  %v3451 = vadd.f32 %v2516, %v3170
  %v3452 = vadd.f32 %v2517, %v3271
  %v3453 = vadd.f32 %v2518, %v2668
  %v3454 = vadd.f32 %v2519, %v2769
  %v3455 = vadd.f32 %v2520, %v2870
  %v3456 = vadd.f32 %v2521, %v2971
  %v3457 = vadd.f32 %v2522, %v3072
  %v3458 = vadd.f32 %v2523, %v3173
  %v3459 = vadd.f32 %v2524, %v3274
  %v3460 = vadd.f32 %v2525, %v2671
  %v3461 = vadd.f32 %v2526, %v2772
  %v3462 = vadd.f32 %v2527, %v2873
  %v3463 = vadd.f32 %v2528, %v2974
  %v3464 = vadd.f32 %v2529, %v3075
  %v3465 = vadd.f32 %v2530, %v3176
  %v3466 = vadd.f32 %v2531, %v3277
  %v3467 = vadd.f32 %v2532, %v2674
  %v3468 = vadd.f32 %v2533, %v2775
  %v3469 = vadd.f32 %v2534, %v2876
  %v3470 = vadd.f32 %v2535, %v2977
  %v3471 = vadd.f32 %v2536, %v3078
  %v3472 = vadd.f32 %v2537, %v3179
  %v3473 = vadd.f32 %v2538, %v3280
  %v3474 = vadd.f32 %v2539, %v2677
  %v3475 = vadd.f32 %v2540, %v2778
  %v3476 = vadd.f32 %v2541, %v2879
  %v3477 = vadd.f32 %v2542, %v2980
  %v3478 = vadd.f32 %v2543, %v3081
  %v3479 = vadd.f32 %v2544, %v3182
  %v3480 = vadd.f32 %v2545, %v3283
  %s3481 = scalar_lea.vmem %s1, 896
  %v3482 = vld [vmem:[%s3481] sm:$0xff]
  %v3483 = vld [vmem:[%s3481 + $0x8] sm:$0xff]
  %v3484 = vld [vmem:[%s3481 + $0x10] sm:$0xff]
  %v3485 = vld [vmem:[%s3481 + $0x18] sm:$0xff]
  %v3486 = vld [vmem:[%s3481 + $0x20] sm:$0xff]
  %v3487 = vld [vmem:[%s3481 + $0x28] sm:$0xff]
  %v3488 = vld [vmem:[%s3481 + $0x30] sm:$0xff]
  %v3489 = vld [vmem:[%s3481 + $0x38] sm:$0xff]
  %v3490 = vld [vmem:[%s3481 + $0x40] sm:$0xff]
  %v3491 = vld [vmem:[%s3481 + $0x48] sm:$0xff]
  %v3492 = vld [vmem:[%s3481 + $0x50] sm:$0xff]
  %v3493 = vld [vmem:[%s3481 + $0x58] sm:$0xff]
  %v3494 = vld [vmem:[%s3481 + $0x60] sm:$0xff]
  %v3495 = vld [vmem:[%s3481 + $0x68] sm:$0xff]
  %v3496 = vld [vmem:[%s3481 + $0x70] sm:$0xff]
  %v3497 = vld [vmem:[%s3481 + $0x78] sm:$0xff]
  %v3498 = vld [vmem:[%s3481 + $0x80] sm:$0xff]
  %v3499 = vld [vmem:[%s3481 + $0x88] sm:$0xff]
  %v3500 = vld [vmem:[%s3481 + $0x90] sm:$0xff]
  %v3501 = vld [vmem:[%s3481 + $0x98] sm:$0xff]
  %v3502 = vld [vmem:[%s3481 + $0xa0] sm:$0xff]
  %v3503 = vld [vmem:[%s3481 + $0xa8] sm:$0xff]
  %v3504 = vld [vmem:[%s3481 + $0xb0] sm:$0xff]
  %v3505 = vld [vmem:[%s3481 + $0xb8] sm:$0xff]
  %v3506 = vld [vmem:[%s3481 + $0xc0] sm:$0xff]
  %v3507 = vld [vmem:[%s3481 + $0xc8] sm:$0xff]
  %v3508 = vld [vmem:[%s3481 + $0xd0] sm:$0xff]
  %v3509 = vld [vmem:[%s3481 + $0xd8] sm:$0xff]
  %v3511 = vsel %vm109, %v51, 0
  %3513 = vmatpush.msra.mxu0 0.0
  %3514 = vmatpush.msra.mxu0 0.0
  %3515 = vmatpush.msra.mxu0 0.0
  %3516 = vmatpush.msra.mxu0 0.0
  %3517 = vmatpush.msra.mxu0 0.0
  %3518 = vmatpush.msra.mxu0 0.0
  %3519 = vmatpush.msra.mxu0 0.0
  %3520 = vmatpush.msra.mxu0 0.0
  %3521 = vmatpush.msra.mxu0 0.0
  %3522 = vmatpush.msra.mxu0 0.0
  %3523 = vmatpush.msra.mxu0 0.0
  %3524 = vmatpush.msra.mxu0 0.0
  %3525 = vmatpush.msra.mxu0 %v3503
  %3526 = vmatpush.msra.mxu0 %v3496
  %3527 = vmatpush.msra.mxu0 %v3489
  %3528 = vmatpush.msra.mxu0 %v3482
  %3529 = vmatmul.f32.gmra.mxu0 %v120
  %v3530 = vpop.f32.mrf.mxu0
  %v3531 = vadd.f32 0.0, %v3530
  %3532 = vmatmul.f32.gmra.mxu0 %v123
  %v3533 = vpop.f32.mrf.mxu0
  %v3534 = vadd.f32 0.0, %v3533
  %3535 = vmatmul.f32.gmra.mxu0 %v126
  %v3536 = vpop.f32.mrf.mxu0
  %v3537 = vadd.f32 0.0, %v3536
  %3538 = vmatmul.f32.gmra.mxu0 %v129
  %v3539 = vpop.f32.mrf.mxu0
  %v3540 = vadd.f32 0.0, %v3539
  %3541 = vmatmul.f32.gmra.mxu0 %v132
  %v3542 = vpop.f32.mrf.mxu0
  %v3543 = vadd.f32 0.0, %v3542
  %3544 = vmatmul.f32.gmra.mxu0 %v135
  %v3545 = vpop.f32.mrf.mxu0
  %v3546 = vadd.f32 0.0, %v3545
  %3547 = vmatmul.f32.gmra.mxu0 %v138
  %v3548 = vpop.f32.mrf.mxu0
  %v3549 = vadd.f32 0.0, %v3548
  %3550 = vmatmul.f32.gmra.mxu0 %v141
  %v3551 = vpop.f32.mrf.mxu0
  %v3552 = vadd.f32 0.0, %v3551
  %3553 = vmatmul.f32.gmra.mxu0 %v144
  %v3554 = vpop.f32.mrf.mxu0
  %v3555 = vadd.f32 0.0, %v3554
  %3556 = vmatmul.f32.gmra.mxu0 %v147
  %v3557 = vpop.f32.mrf.mxu0
  %v3558 = vadd.f32 0.0, %v3557
  %3559 = vmatmul.f32.gmra.mxu0 %v150
  %v3560 = vpop.f32.mrf.mxu0
  %v3561 = vadd.f32 0.0, %v3560
  %3562 = vmatmul.f32.gmra.mxu0 %v153
  %v3563 = vpop.f32.mrf.mxu0
  %v3564 = vadd.f32 0.0, %v3563
  %3565 = vmatmul.f32.gmra.mxu0 %v156
  %v3566 = vpop.f32.mrf.mxu0
  %v3567 = vadd.f32 0.0, %v3566
  %3568 = vmatmul.f32.gmra.mxu0 %v159
  %v3569 = vpop.f32.mrf.mxu0
  %v3570 = vadd.f32 0.0, %v3569
  %3571 = vmatmul.f32.gmra.mxu0 %v162
  %v3572 = vpop.f32.mrf.mxu0
  %v3573 = vadd.f32 0.0, %v3572
  %3574 = vmatmul.f32.gmra.mxu0 %v165
  %v3575 = vpop.f32.mrf.mxu0
  %v3576 = vadd.f32 0.0, %v3575
  %3577 = vmatmul.f32.gmra.mxu0 %v168
  %v3578 = vpop.f32.mrf.mxu0
  %v3579 = vadd.f32 0.0, %v3578
  %3580 = vmatmul.f32.gmra.mxu0 %v171
  %v3581 = vpop.f32.mrf.mxu0
  %v3582 = vadd.f32 0.0, %v3581
  %3583 = vmatmul.f32.gmra.mxu0 %v174
  %v3584 = vpop.f32.mrf.mxu0
  %v3585 = vadd.f32 0.0, %v3584
  %3586 = vmatmul.f32.gmra.mxu0 %v177
  %v3587 = vpop.f32.mrf.mxu0
  %v3588 = vadd.f32 0.0, %v3587
  %3589 = vmatmul.f32.gmra.mxu0 %v180
  %v3590 = vpop.f32.mrf.mxu0
  %v3591 = vadd.f32 0.0, %v3590
  %3592 = vmatmul.f32.gmra.mxu0 %v183
  %v3593 = vpop.f32.mrf.mxu0
  %v3594 = vadd.f32 0.0, %v3593
  %3595 = vmatmul.f32.gmra.mxu0 %v186
  %v3596 = vpop.f32.mrf.mxu0
  %v3597 = vadd.f32 0.0, %v3596
  %3598 = vmatmul.f32.gmra.mxu0 %v189
  %v3599 = vpop.f32.mrf.mxu0
  %v3600 = vadd.f32 0.0, %v3599
  %3601 = vmatmul.f32.gmra.mxu0 %v192
  %v3602 = vpop.f32.mrf.mxu0
  %v3603 = vadd.f32 0.0, %v3602
  %3604 = vmatmul.f32.gmra.mxu0 %v1641
  %v3605 = vpop.f32.mrf.mxu0
  %v3606 = vadd.f32 0.0, %v3605
  %3607 = vmatmul.f32.gmra.mxu0 %v2576
  %v3608 = vpop.f32.mrf.mxu0
  %v3609 = vadd.f32 0.0, %v3608
  %3610 = vmatmul.f32.gmra.mxu0 %v3511
  %v3611 = vpop.f32.mrf.mxu0
  %v3612 = vadd.f32 0.0, %v3611
  %3613 = vdwg.mxu0
  %3614 = vmatpush.msra.mxu0 0.0
  %3615 = vmatpush.msra.mxu0 0.0
  %3616 = vmatpush.msra.mxu0 0.0
  %3617 = vmatpush.msra.mxu0 0.0
  %3618 = vmatpush.msra.mxu0 0.0
  %3619 = vmatpush.msra.mxu0 0.0
  %3620 = vmatpush.msra.mxu0 0.0
  %3621 = vmatpush.msra.mxu0 0.0
  %3622 = vmatpush.msra.mxu0 0.0
  %3623 = vmatpush.msra.mxu0 0.0
  %3624 = vmatpush.msra.mxu0 0.0
  %3625 = vmatpush.msra.mxu0 0.0
  %3626 = vmatpush.msra.mxu0 %v3504
  %3627 = vmatpush.msra.mxu0 %v3497
  %3628 = vmatpush.msra.mxu0 %v3490
  %3629 = vmatpush.msra.mxu0 %v3483
  %3630 = vmatmul.f32.gmra.mxu0 %v120
  %v3631 = vpop.f32.mrf.mxu0
  %v3632 = vadd.f32 0.0, %v3631
  %3633 = vmatmul.f32.gmra.mxu0 %v123
  %v3634 = vpop.f32.mrf.mxu0
  %v3635 = vadd.f32 0.0, %v3634
  %3636 = vmatmul.f32.gmra.mxu0 %v126
  %v3637 = vpop.f32.mrf.mxu0
  %v3638 = vadd.f32 0.0, %v3637
  %3639 = vmatmul.f32.gmra.mxu0 %v129
  %v3640 = vpop.f32.mrf.mxu0
  %v3641 = vadd.f32 0.0, %v3640
  %3642 = vmatmul.f32.gmra.mxu0 %v132
  %v3643 = vpop.f32.mrf.mxu0
  %v3644 = vadd.f32 0.0, %v3643
  %3645 = vmatmul.f32.gmra.mxu0 %v135
  %v3646 = vpop.f32.mrf.mxu0
  %v3647 = vadd.f32 0.0, %v3646
  %3648 = vmatmul.f32.gmra.mxu0 %v138
  %v3649 = vpop.f32.mrf.mxu0
  %v3650 = vadd.f32 0.0, %v3649
  %3651 = vmatmul.f32.gmra.mxu0 %v141
  %v3652 = vpop.f32.mrf.mxu0
  %v3653 = vadd.f32 0.0, %v3652
  %3654 = vmatmul.f32.gmra.mxu0 %v144
  %v3655 = vpop.f32.mrf.mxu0
  %v3656 = vadd.f32 0.0, %v3655
  %3657 = vmatmul.f32.gmra.mxu0 %v147
  %v3658 = vpop.f32.mrf.mxu0
  %v3659 = vadd.f32 0.0, %v3658
  %3660 = vmatmul.f32.gmra.mxu0 %v150
  %v3661 = vpop.f32.mrf.mxu0
  %v3662 = vadd.f32 0.0, %v3661
  %3663 = vmatmul.f32.gmra.mxu0 %v153
  %v3664 = vpop.f32.mrf.mxu0
  %v3665 = vadd.f32 0.0, %v3664
  %3666 = vmatmul.f32.gmra.mxu0 %v156
  %v3667 = vpop.f32.mrf.mxu0
  %v3668 = vadd.f32 0.0, %v3667
  %3669 = vmatmul.f32.gmra.mxu0 %v159
  %v3670 = vpop.f32.mrf.mxu0
  %v3671 = vadd.f32 0.0, %v3670
  %3672 = vmatmul.f32.gmra.mxu0 %v162
  %v3673 = vpop.f32.mrf.mxu0
  %v3674 = vadd.f32 0.0, %v3673
  %3675 = vmatmul.f32.gmra.mxu0 %v165
  %v3676 = vpop.f32.mrf.mxu0
  %v3677 = vadd.f32 0.0, %v3676
  %3678 = vmatmul.f32.gmra.mxu0 %v168
  %v3679 = vpop.f32.mrf.mxu0
  %v3680 = vadd.f32 0.0, %v3679
  %3681 = vmatmul.f32.gmra.mxu0 %v171
  %v3682 = vpop.f32.mrf.mxu0
  %v3683 = vadd.f32 0.0, %v3682
  %3684 = vmatmul.f32.gmra.mxu0 %v174
  %v3685 = vpop.f32.mrf.mxu0
  %v3686 = vadd.f32 0.0, %v3685
  %3687 = vmatmul.f32.gmra.mxu0 %v177
  %v3688 = vpop.f32.mrf.mxu0
  %v3689 = vadd.f32 0.0, %v3688
  %3690 = vmatmul.f32.gmra.mxu0 %v180
  %v3691 = vpop.f32.mrf.mxu0
  %v3692 = vadd.f32 0.0, %v3691
  %3693 = vmatmul.f32.gmra.mxu0 %v183
  %v3694 = vpop.f32.mrf.mxu0
  %v3695 = vadd.f32 0.0, %v3694
  %3696 = vmatmul.f32.gmra.mxu0 %v186
  %v3697 = vpop.f32.mrf.mxu0
  %v3698 = vadd.f32 0.0, %v3697
  %3699 = vmatmul.f32.gmra.mxu0 %v189
  %v3700 = vpop.f32.mrf.mxu0
  %v3701 = vadd.f32 0.0, %v3700
  %3702 = vmatmul.f32.gmra.mxu0 %v192
  %v3703 = vpop.f32.mrf.mxu0
  %v3704 = vadd.f32 0.0, %v3703
  %3705 = vmatmul.f32.gmra.mxu0 %v1641
  %v3706 = vpop.f32.mrf.mxu0
  %v3707 = vadd.f32 0.0, %v3706
  %3708 = vmatmul.f32.gmra.mxu0 %v2576
  %v3709 = vpop.f32.mrf.mxu0
  %v3710 = vadd.f32 0.0, %v3709
  %3711 = vmatmul.f32.gmra.mxu0 %v3511
  %v3712 = vpop.f32.mrf.mxu0
  %v3713 = vadd.f32 0.0, %v3712
  %3714 = vdwg.mxu0
  %3715 = vmatpush.msra.mxu0 0.0
  %3716 = vmatpush.msra.mxu0 0.0
  %3717 = vmatpush.msra.mxu0 0.0
  %3718 = vmatpush.msra.mxu0 0.0
  %3719 = vmatpush.msra.mxu0 0.0
  %3720 = vmatpush.msra.mxu0 0.0
  %3721 = vmatpush.msra.mxu0 0.0
  %3722 = vmatpush.msra.mxu0 0.0
  %3723 = vmatpush.msra.mxu0 0.0
  %3724 = vmatpush.msra.mxu0 0.0
  %3725 = vmatpush.msra.mxu0 0.0
  %3726 = vmatpush.msra.mxu0 0.0
  %3727 = vmatpush.msra.mxu0 %v3505
  %3728 = vmatpush.msra.mxu0 %v3498
  %3729 = vmatpush.msra.mxu0 %v3491
  %3730 = vmatpush.msra.mxu0 %v3484
  %3731 = vmatmul.f32.gmra.mxu0 %v120
  %v3732 = vpop.f32.mrf.mxu0
  %v3733 = vadd.f32 0.0, %v3732
  %3734 = vmatmul.f32.gmra.mxu0 %v123
  %v3735 = vpop.f32.mrf.mxu0
  %v3736 = vadd.f32 0.0, %v3735
  %3737 = vmatmul.f32.gmra.mxu0 %v126
  %v3738 = vpop.f32.mrf.mxu0
  %v3739 = vadd.f32 0.0, %v3738
  %3740 = vmatmul.f32.gmra.mxu0 %v129
  %v3741 = vpop.f32.mrf.mxu0
  %v3742 = vadd.f32 0.0, %v3741
  %3743 = vmatmul.f32.gmra.mxu0 %v132
  %v3744 = vpop.f32.mrf.mxu0
  %v3745 = vadd.f32 0.0, %v3744
  %3746 = vmatmul.f32.gmra.mxu0 %v135
  %v3747 = vpop.f32.mrf.mxu0
  %v3748 = vadd.f32 0.0, %v3747
  %3749 = vmatmul.f32.gmra.mxu0 %v138
  %v3750 = vpop.f32.mrf.mxu0
  %v3751 = vadd.f32 0.0, %v3750
  %3752 = vmatmul.f32.gmra.mxu0 %v141
  %v3753 = vpop.f32.mrf.mxu0
  %v3754 = vadd.f32 0.0, %v3753
  %3755 = vmatmul.f32.gmra.mxu0 %v144
  %v3756 = vpop.f32.mrf.mxu0
  %v3757 = vadd.f32 0.0, %v3756
  %3758 = vmatmul.f32.gmra.mxu0 %v147
  %v3759 = vpop.f32.mrf.mxu0
  %v3760 = vadd.f32 0.0, %v3759
  %3761 = vmatmul.f32.gmra.mxu0 %v150
  %v3762 = vpop.f32.mrf.mxu0
  %v3763 = vadd.f32 0.0, %v3762
  %3764 = vmatmul.f32.gmra.mxu0 %v153
  %v3765 = vpop.f32.mrf.mxu0
  %v3766 = vadd.f32 0.0, %v3765
  %3767 = vmatmul.f32.gmra.mxu0 %v156
  %v3768 = vpop.f32.mrf.mxu0
  %v3769 = vadd.f32 0.0, %v3768
  %3770 = vmatmul.f32.gmra.mxu0 %v159
  %v3771 = vpop.f32.mrf.mxu0
  %v3772 = vadd.f32 0.0, %v3771
  %3773 = vmatmul.f32.gmra.mxu0 %v162
  %v3774 = vpop.f32.mrf.mxu0
  %v3775 = vadd.f32 0.0, %v3774
  %3776 = vmatmul.f32.gmra.mxu0 %v165
  %v3777 = vpop.f32.mrf.mxu0
  %v3778 = vadd.f32 0.0, %v3777
  %3779 = vmatmul.f32.gmra.mxu0 %v168
  %v3780 = vpop.f32.mrf.mxu0
  %v3781 = vadd.f32 0.0, %v3780
  %3782 = vmatmul.f32.gmra.mxu0 %v171
  %v3783 = vpop.f32.mrf.mxu0
  %v3784 = vadd.f32 0.0, %v3783
  %3785 = vmatmul.f32.gmra.mxu0 %v174
  %v3786 = vpop.f32.mrf.mxu0
  %v3787 = vadd.f32 0.0, %v3786
  %3788 = vmatmul.f32.gmra.mxu0 %v177
  %v3789 = vpop.f32.mrf.mxu0
  %v3790 = vadd.f32 0.0, %v3789
  %3791 = vmatmul.f32.gmra.mxu0 %v180
  %v3792 = vpop.f32.mrf.mxu0
  %v3793 = vadd.f32 0.0, %v3792
  %3794 = vmatmul.f32.gmra.mxu0 %v183
  %v3795 = vpop.f32.mrf.mxu0
  %v3796 = vadd.f32 0.0, %v3795
  %3797 = vmatmul.f32.gmra.mxu0 %v186
  %v3798 = vpop.f32.mrf.mxu0
  %v3799 = vadd.f32 0.0, %v3798
  %3800 = vmatmul.f32.gmra.mxu0 %v189
  %v3801 = vpop.f32.mrf.mxu0
  %v3802 = vadd.f32 0.0, %v3801
  %3803 = vmatmul.f32.gmra.mxu0 %v192
  %v3804 = vpop.f32.mrf.mxu0
  %v3805 = vadd.f32 0.0, %v3804
  %3806 = vmatmul.f32.gmra.mxu0 %v1641
  %v3807 = vpop.f32.mrf.mxu0
  %v3808 = vadd.f32 0.0, %v3807
  %3809 = vmatmul.f32.gmra.mxu0 %v2576
  %v3810 = vpop.f32.mrf.mxu0
  %v3811 = vadd.f32 0.0, %v3810
  %3812 = vmatmul.f32.gmra.mxu0 %v3511
  %v3813 = vpop.f32.mrf.mxu0
  %v3814 = vadd.f32 0.0, %v3813
  %3815 = vdwg.mxu0
  %3816 = vmatpush.msra.mxu0 0.0
  %3817 = vmatpush.msra.mxu0 0.0
  %3818 = vmatpush.msra.mxu0 0.0
  %3819 = vmatpush.msra.mxu0 0.0
  %3820 = vmatpush.msra.mxu0 0.0
  %3821 = vmatpush.msra.mxu0 0.0
  %3822 = vmatpush.msra.mxu0 0.0
  %3823 = vmatpush.msra.mxu0 0.0
  %3824 = vmatpush.msra.mxu0 0.0
  %3825 = vmatpush.msra.mxu0 0.0
  %3826 = vmatpush.msra.mxu0 0.0
  %3827 = vmatpush.msra.mxu0 0.0
  %3828 = vmatpush.msra.mxu0 %v3506
  %3829 = vmatpush.msra.mxu0 %v3499
  %3830 = vmatpush.msra.mxu0 %v3492
  %3831 = vmatpush.msra.mxu0 %v3485
  %3832 = vmatmul.f32.gmra.mxu0 %v120
  %v3833 = vpop.f32.mrf.mxu0
  %v3834 = vadd.f32 0.0, %v3833
  %3835 = vmatmul.f32.gmra.mxu0 %v123
  %v3836 = vpop.f32.mrf.mxu0
  %v3837 = vadd.f32 0.0, %v3836
  %3838 = vmatmul.f32.gmra.mxu0 %v126
  %v3839 = vpop.f32.mrf.mxu0
  %v3840 = vadd.f32 0.0, %v3839
  %3841 = vmatmul.f32.gmra.mxu0 %v129
  %v3842 = vpop.f32.mrf.mxu0
  %v3843 = vadd.f32 0.0, %v3842
  %3844 = vmatmul.f32.gmra.mxu0 %v132
  %v3845 = vpop.f32.mrf.mxu0
  %v3846 = vadd.f32 0.0, %v3845
  %3847 = vmatmul.f32.gmra.mxu0 %v135
  %v3848 = vpop.f32.mrf.mxu0
  %v3849 = vadd.f32 0.0, %v3848
  %3850 = vmatmul.f32.gmra.mxu0 %v138
  %v3851 = vpop.f32.mrf.mxu0
  %v3852 = vadd.f32 0.0, %v3851
  %3853 = vmatmul.f32.gmra.mxu0 %v141
  %v3854 = vpop.f32.mrf.mxu0
  %v3855 = vadd.f32 0.0, %v3854
  %3856 = vmatmul.f32.gmra.mxu0 %v144
  %v3857 = vpop.f32.mrf.mxu0
  %v3858 = vadd.f32 0.0, %v3857
  %3859 = vmatmul.f32.gmra.mxu0 %v147
  %v3860 = vpop.f32.mrf.mxu0
  %v3861 = vadd.f32 0.0, %v3860
  %3862 = vmatmul.f32.gmra.mxu0 %v150
  %v3863 = vpop.f32.mrf.mxu0
  %v3864 = vadd.f32 0.0, %v3863
  %3865 = vmatmul.f32.gmra.mxu0 %v153
  %v3866 = vpop.f32.mrf.mxu0
  %v3867 = vadd.f32 0.0, %v3866
  %3868 = vmatmul.f32.gmra.mxu0 %v156
  %v3869 = vpop.f32.mrf.mxu0
  %v3870 = vadd.f32 0.0, %v3869
  %3871 = vmatmul.f32.gmra.mxu0 %v159
  %v3872 = vpop.f32.mrf.mxu0
  %v3873 = vadd.f32 0.0, %v3872
  %3874 = vmatmul.f32.gmra.mxu0 %v162
  %v3875 = vpop.f32.mrf.mxu0
  %v3876 = vadd.f32 0.0, %v3875
  %3877 = vmatmul.f32.gmra.mxu0 %v165
  %v3878 = vpop.f32.mrf.mxu0
  %v3879 = vadd.f32 0.0, %v3878
  %3880 = vmatmul.f32.gmra.mxu0 %v168
  %v3881 = vpop.f32.mrf.mxu0
  %v3882 = vadd.f32 0.0, %v3881
  %3883 = vmatmul.f32.gmra.mxu0 %v171
  %v3884 = vpop.f32.mrf.mxu0
  %v3885 = vadd.f32 0.0, %v3884
  %3886 = vmatmul.f32.gmra.mxu0 %v174
  %v3887 = vpop.f32.mrf.mxu0
  %v3888 = vadd.f32 0.0, %v3887
  %3889 = vmatmul.f32.gmra.mxu0 %v177
  %v3890 = vpop.f32.mrf.mxu0
  %v3891 = vadd.f32 0.0, %v3890
  %3892 = vmatmul.f32.gmra.mxu0 %v180
  %v3893 = vpop.f32.mrf.mxu0
  %v3894 = vadd.f32 0.0, %v3893
  %3895 = vmatmul.f32.gmra.mxu0 %v183
  %v3896 = vpop.f32.mrf.mxu0
  %v3897 = vadd.f32 0.0, %v3896
  %3898 = vmatmul.f32.gmra.mxu0 %v186
  %v3899 = vpop.f32.mrf.mxu0
  %v3900 = vadd.f32 0.0, %v3899
  %3901 = vmatmul.f32.gmra.mxu0 %v189
  %v3902 = vpop.f32.mrf.mxu0
  %v3903 = vadd.f32 0.0, %v3902
  %3904 = vmatmul.f32.gmra.mxu0 %v192
  %v3905 = vpop.f32.mrf.mxu0
  %v3906 = vadd.f32 0.0, %v3905
  %3907 = vmatmul.f32.gmra.mxu0 %v1641
  %v3908 = vpop.f32.mrf.mxu0
  %v3909 = vadd.f32 0.0, %v3908
  %3910 = vmatmul.f32.gmra.mxu0 %v2576
  %v3911 = vpop.f32.mrf.mxu0
  %v3912 = vadd.f32 0.0, %v3911
  %3913 = vmatmul.f32.gmra.mxu0 %v3511
  %v3914 = vpop.f32.mrf.mxu0
  %v3915 = vadd.f32 0.0, %v3914
  %3916 = vdwg.mxu0
  %3917 = vmatpush.msra.mxu0 0.0
  %3918 = vmatpush.msra.mxu0 0.0
  %3919 = vmatpush.msra.mxu0 0.0
  %3920 = vmatpush.msra.mxu0 0.0
  %3921 = vmatpush.msra.mxu0 0.0
  %3922 = vmatpush.msra.mxu0 0.0
  %3923 = vmatpush.msra.mxu0 0.0
  %3924 = vmatpush.msra.mxu0 0.0
  %3925 = vmatpush.msra.mxu0 0.0
  %3926 = vmatpush.msra.mxu0 0.0
  %3927 = vmatpush.msra.mxu0 0.0
  %3928 = vmatpush.msra.mxu0 0.0
  %3929 = vmatpush.msra.mxu0 %v3507
  %3930 = vmatpush.msra.mxu0 %v3500
  %3931 = vmatpush.msra.mxu0 %v3493
  %3932 = vmatpush.msra.mxu0 %v3486
  %3933 = vmatmul.f32.gmra.mxu0 %v120
  %v3934 = vpop.f32.mrf.mxu0
  %v3935 = vadd.f32 0.0, %v3934
  %3936 = vmatmul.f32.gmra.mxu0 %v123
  %v3937 = vpop.f32.mrf.mxu0
  %v3938 = vadd.f32 0.0, %v3937
  %3939 = vmatmul.f32.gmra.mxu0 %v126
  %v3940 = vpop.f32.mrf.mxu0
  %v3941 = vadd.f32 0.0, %v3940
  %3942 = vmatmul.f32.gmra.mxu0 %v129
  %v3943 = vpop.f32.mrf.mxu0
  %v3944 = vadd.f32 0.0, %v3943
  %3945 = vmatmul.f32.gmra.mxu0 %v132
  %v3946 = vpop.f32.mrf.mxu0
  %v3947 = vadd.f32 0.0, %v3946
  %3948 = vmatmul.f32.gmra.mxu0 %v135
  %v3949 = vpop.f32.mrf.mxu0
  %v3950 = vadd.f32 0.0, %v3949
  %3951 = vmatmul.f32.gmra.mxu0 %v138
  %v3952 = vpop.f32.mrf.mxu0
  %v3953 = vadd.f32 0.0, %v3952
  %3954 = vmatmul.f32.gmra.mxu0 %v141
  %v3955 = vpop.f32.mrf.mxu0
  %v3956 = vadd.f32 0.0, %v3955
  %3957 = vmatmul.f32.gmra.mxu0 %v144
  %v3958 = vpop.f32.mrf.mxu0
  %v3959 = vadd.f32 0.0, %v3958
  %3960 = vmatmul.f32.gmra.mxu0 %v147
  %v3961 = vpop.f32.mrf.mxu0
  %v3962 = vadd.f32 0.0, %v3961
  %3963 = vmatmul.f32.gmra.mxu0 %v150
  %v3964 = vpop.f32.mrf.mxu0
  %v3965 = vadd.f32 0.0, %v3964
  %3966 = vmatmul.f32.gmra.mxu0 %v153
  %v3967 = vpop.f32.mrf.mxu0
  %v3968 = vadd.f32 0.0, %v3967
  %3969 = vmatmul.f32.gmra.mxu0 %v156
  %v3970 = vpop.f32.mrf.mxu0
  %v3971 = vadd.f32 0.0, %v3970
  %3972 = vmatmul.f32.gmra.mxu0 %v159
  %v3973 = vpop.f32.mrf.mxu0
  %v3974 = vadd.f32 0.0, %v3973
  %3975 = vmatmul.f32.gmra.mxu0 %v162
  %v3976 = vpop.f32.mrf.mxu0
  %v3977 = vadd.f32 0.0, %v3976
  %3978 = vmatmul.f32.gmra.mxu0 %v165
  %v3979 = vpop.f32.mrf.mxu0
  %v3980 = vadd.f32 0.0, %v3979
  %3981 = vmatmul.f32.gmra.mxu0 %v168
  %v3982 = vpop.f32.mrf.mxu0
  %v3983 = vadd.f32 0.0, %v3982
  %3984 = vmatmul.f32.gmra.mxu0 %v171
  %v3985 = vpop.f32.mrf.mxu0
  %v3986 = vadd.f32 0.0, %v3985
  %3987 = vmatmul.f32.gmra.mxu0 %v174
  %v3988 = vpop.f32.mrf.mxu0
  %v3989 = vadd.f32 0.0, %v3988
  %3990 = vmatmul.f32.gmra.mxu0 %v177
  %v3991 = vpop.f32.mrf.mxu0
  %v3992 = vadd.f32 0.0, %v3991
  %3993 = vmatmul.f32.gmra.mxu0 %v180
  %v3994 = vpop.f32.mrf.mxu0
  %v3995 = vadd.f32 0.0, %v3994
  %3996 = vmatmul.f32.gmra.mxu0 %v183
  %v3997 = vpop.f32.mrf.mxu0
  %v3998 = vadd.f32 0.0, %v3997
  %3999 = vmatmul.f32.gmra.mxu0 %v186
  %v4000 = vpop.f32.mrf.mxu0
  %v4001 = vadd.f32 0.0, %v4000
  %4002 = vmatmul.f32.gmra.mxu0 %v189
  %v4003 = vpop.f32.mrf.mxu0
  %v4004 = vadd.f32 0.0, %v4003
  %4005 = vmatmul.f32.gmra.mxu0 %v192
  %v4006 = vpop.f32.mrf.mxu0
  %v4007 = vadd.f32 0.0, %v4006
  %4008 = vmatmul.f32.gmra.mxu0 %v1641
  %v4009 = vpop.f32.mrf.mxu0
  %v4010 = vadd.f32 0.0, %v4009
  %4011 = vmatmul.f32.gmra.mxu0 %v2576
  %v4012 = vpop.f32.mrf.mxu0
  %v4013 = vadd.f32 0.0, %v4012
  %4014 = vmatmul.f32.gmra.mxu0 %v3511
  %v4015 = vpop.f32.mrf.mxu0
  %v4016 = vadd.f32 0.0, %v4015
  %4017 = vdwg.mxu0
  %4018 = vmatpush.msra.mxu0 0.0
  %4019 = vmatpush.msra.mxu0 0.0
  %4020 = vmatpush.msra.mxu0 0.0
  %4021 = vmatpush.msra.mxu0 0.0
  %4022 = vmatpush.msra.mxu0 0.0
  %4023 = vmatpush.msra.mxu0 0.0
  %4024 = vmatpush.msra.mxu0 0.0
  %4025 = vmatpush.msra.mxu0 0.0
  %4026 = vmatpush.msra.mxu0 0.0
  %4027 = vmatpush.msra.mxu0 0.0
  %4028 = vmatpush.msra.mxu0 0.0
  %4029 = vmatpush.msra.mxu0 0.0
  %4030 = vmatpush.msra.mxu0 %v3508
  %4031 = vmatpush.msra.mxu0 %v3501
  %4032 = vmatpush.msra.mxu0 %v3494
  %4033 = vmatpush.msra.mxu0 %v3487
  %4034 = vmatmul.f32.gmra.mxu0 %v120
  %v4035 = vpop.f32.mrf.mxu0
  %v4036 = vadd.f32 0.0, %v4035
  %4037 = vmatmul.f32.gmra.mxu0 %v123
  %v4038 = vpop.f32.mrf.mxu0
  %v4039 = vadd.f32 0.0, %v4038
  %4040 = vmatmul.f32.gmra.mxu0 %v126
  %v4041 = vpop.f32.mrf.mxu0
  %v4042 = vadd.f32 0.0, %v4041
  %4043 = vmatmul.f32.gmra.mxu0 %v129
  %v4044 = vpop.f32.mrf.mxu0
  %v4045 = vadd.f32 0.0, %v4044
  %4046 = vmatmul.f32.gmra.mxu0 %v132
  %v4047 = vpop.f32.mrf.mxu0
  %v4048 = vadd.f32 0.0, %v4047
  %4049 = vmatmul.f32.gmra.mxu0 %v135
  %v4050 = vpop.f32.mrf.mxu0
  %v4051 = vadd.f32 0.0, %v4050
  %4052 = vmatmul.f32.gmra.mxu0 %v138
  %v4053 = vpop.f32.mrf.mxu0
  %v4054 = vadd.f32 0.0, %v4053
  %4055 = vmatmul.f32.gmra.mxu0 %v141
  %v4056 = vpop.f32.mrf.mxu0
  %v4057 = vadd.f32 0.0, %v4056
  %4058 = vmatmul.f32.gmra.mxu0 %v144
  %v4059 = vpop.f32.mrf.mxu0
  %v4060 = vadd.f32 0.0, %v4059
  %4061 = vmatmul.f32.gmra.mxu0 %v147
  %v4062 = vpop.f32.mrf.mxu0
  %v4063 = vadd.f32 0.0, %v4062
  %4064 = vmatmul.f32.gmra.mxu0 %v150
  %v4065 = vpop.f32.mrf.mxu0
  %v4066 = vadd.f32 0.0, %v4065
  %4067 = vmatmul.f32.gmra.mxu0 %v153
  %v4068 = vpop.f32.mrf.mxu0
  %v4069 = vadd.f32 0.0, %v4068
  %4070 = vmatmul.f32.gmra.mxu0 %v156
  %v4071 = vpop.f32.mrf.mxu0
  %v4072 = vadd.f32 0.0, %v4071
  %4073 = vmatmul.f32.gmra.mxu0 %v159
  %v4074 = vpop.f32.mrf.mxu0
  %v4075 = vadd.f32 0.0, %v4074
  %4076 = vmatmul.f32.gmra.mxu0 %v162
  %v4077 = vpop.f32.mrf.mxu0
  %v4078 = vadd.f32 0.0, %v4077
  %4079 = vmatmul.f32.gmra.mxu0 %v165
  %v4080 = vpop.f32.mrf.mxu0
  %v4081 = vadd.f32 0.0, %v4080
  %4082 = vmatmul.f32.gmra.mxu0 %v168
  %v4083 = vpop.f32.mrf.mxu0
  %v4084 = vadd.f32 0.0, %v4083
  %4085 = vmatmul.f32.gmra.mxu0 %v171
  %v4086 = vpop.f32.mrf.mxu0
  %v4087 = vadd.f32 0.0, %v4086
  %4088 = vmatmul.f32.gmra.mxu0 %v174
  %v4089 = vpop.f32.mrf.mxu0
  %v4090 = vadd.f32 0.0, %v4089
  %4091 = vmatmul.f32.gmra.mxu0 %v177
  %v4092 = vpop.f32.mrf.mxu0
  %v4093 = vadd.f32 0.0, %v4092
  %4094 = vmatmul.f32.gmra.mxu0 %v180
  %v4095 = vpop.f32.mrf.mxu0
  %v4096 = vadd.f32 0.0, %v4095
  %4097 = vmatmul.f32.gmra.mxu0 %v183
  %v4098 = vpop.f32.mrf.mxu0
  %v4099 = vadd.f32 0.0, %v4098
  %4100 = vmatmul.f32.gmra.mxu0 %v186
  %v4101 = vpop.f32.mrf.mxu0
  %v4102 = vadd.f32 0.0, %v4101
  %4103 = vmatmul.f32.gmra.mxu0 %v189
  %v4104 = vpop.f32.mrf.mxu0
  %v4105 = vadd.f32 0.0, %v4104
  %4106 = vmatmul.f32.gmra.mxu0 %v192
  %v4107 = vpop.f32.mrf.mxu0
  %v4108 = vadd.f32 0.0, %v4107
  %4109 = vmatmul.f32.gmra.mxu0 %v1641
  %v4110 = vpop.f32.mrf.mxu0
  %v4111 = vadd.f32 0.0, %v4110
  %4112 = vmatmul.f32.gmra.mxu0 %v2576
  %v4113 = vpop.f32.mrf.mxu0
  %v4114 = vadd.f32 0.0, %v4113
  %4115 = vmatmul.f32.gmra.mxu0 %v3511
  %v4116 = vpop.f32.mrf.mxu0
  %v4117 = vadd.f32 0.0, %v4116
  %4118 = vdwg.mxu0
  %4119 = vmatpush.msra.mxu0 0.0
  %4120 = vmatpush.msra.mxu0 0.0
  %4121 = vmatpush.msra.mxu0 0.0
  %4122 = vmatpush.msra.mxu0 0.0
  %4123 = vmatpush.msra.mxu0 0.0
  %4124 = vmatpush.msra.mxu0 0.0
  %4125 = vmatpush.msra.mxu0 0.0
  %4126 = vmatpush.msra.mxu0 0.0
  %4127 = vmatpush.msra.mxu0 0.0
  %4128 = vmatpush.msra.mxu0 0.0
  %4129 = vmatpush.msra.mxu0 0.0
  %4130 = vmatpush.msra.mxu0 0.0
  %4131 = vmatpush.msra.mxu0 %v3509
  %4132 = vmatpush.msra.mxu0 %v3502
  %4133 = vmatpush.msra.mxu0 %v3495
  %4134 = vmatpush.msra.mxu0 %v3488
  %4135 = vmatmul.f32.gmra.mxu0 %v120
  %v4136 = vpop.f32.mrf.mxu0
  %v4137 = vadd.f32 0.0, %v4136
  %4138 = vmatmul.f32.gmra.mxu0 %v123
  %v4139 = vpop.f32.mrf.mxu0
  %v4140 = vadd.f32 0.0, %v4139
  %4141 = vmatmul.f32.gmra.mxu0 %v126
  %v4142 = vpop.f32.mrf.mxu0
  %v4143 = vadd.f32 0.0, %v4142
  %4144 = vmatmul.f32.gmra.mxu0 %v129
  %v4145 = vpop.f32.mrf.mxu0
  %v4146 = vadd.f32 0.0, %v4145
  %4147 = vmatmul.f32.gmra.mxu0 %v132
  %v4148 = vpop.f32.mrf.mxu0
  %v4149 = vadd.f32 0.0, %v4148
  %4150 = vmatmul.f32.gmra.mxu0 %v135
  %v4151 = vpop.f32.mrf.mxu0
  %v4152 = vadd.f32 0.0, %v4151
  %4153 = vmatmul.f32.gmra.mxu0 %v138
  %v4154 = vpop.f32.mrf.mxu0
  %v4155 = vadd.f32 0.0, %v4154
  %4156 = vmatmul.f32.gmra.mxu0 %v141
  %v4157 = vpop.f32.mrf.mxu0
  %v4158 = vadd.f32 0.0, %v4157
  %4159 = vmatmul.f32.gmra.mxu0 %v144
  %v4160 = vpop.f32.mrf.mxu0
  %v4161 = vadd.f32 0.0, %v4160
  %4162 = vmatmul.f32.gmra.mxu0 %v147
  %v4163 = vpop.f32.mrf.mxu0
  %v4164 = vadd.f32 0.0, %v4163
  %4165 = vmatmul.f32.gmra.mxu0 %v150
  %v4166 = vpop.f32.mrf.mxu0
  %v4167 = vadd.f32 0.0, %v4166
  %4168 = vmatmul.f32.gmra.mxu0 %v153
  %v4169 = vpop.f32.mrf.mxu0
  %v4170 = vadd.f32 0.0, %v4169
  %4171 = vmatmul.f32.gmra.mxu0 %v156
  %v4172 = vpop.f32.mrf.mxu0
  %v4173 = vadd.f32 0.0, %v4172
  %4174 = vmatmul.f32.gmra.mxu0 %v159
  %v4175 = vpop.f32.mrf.mxu0
  %v4176 = vadd.f32 0.0, %v4175
  %4177 = vmatmul.f32.gmra.mxu0 %v162
  %v4178 = vpop.f32.mrf.mxu0
  %v4179 = vadd.f32 0.0, %v4178
  %4180 = vmatmul.f32.gmra.mxu0 %v165
  %v4181 = vpop.f32.mrf.mxu0
  %v4182 = vadd.f32 0.0, %v4181
  %4183 = vmatmul.f32.gmra.mxu0 %v168
  %v4184 = vpop.f32.mrf.mxu0
  %v4185 = vadd.f32 0.0, %v4184
  %4186 = vmatmul.f32.gmra.mxu0 %v171
  %v4187 = vpop.f32.mrf.mxu0
  %v4188 = vadd.f32 0.0, %v4187
  %4189 = vmatmul.f32.gmra.mxu0 %v174
  %v4190 = vpop.f32.mrf.mxu0
  %v4191 = vadd.f32 0.0, %v4190
  %4192 = vmatmul.f32.gmra.mxu0 %v177
  %v4193 = vpop.f32.mrf.mxu0
  %v4194 = vadd.f32 0.0, %v4193
  %4195 = vmatmul.f32.gmra.mxu0 %v180
  %v4196 = vpop.f32.mrf.mxu0
  %v4197 = vadd.f32 0.0, %v4196
  %4198 = vmatmul.f32.gmra.mxu0 %v183
  %v4199 = vpop.f32.mrf.mxu0
  %v4200 = vadd.f32 0.0, %v4199
  %4201 = vmatmul.f32.gmra.mxu0 %v186
  %v4202 = vpop.f32.mrf.mxu0
  %v4203 = vadd.f32 0.0, %v4202
  %4204 = vmatmul.f32.gmra.mxu0 %v189
  %v4205 = vpop.f32.mrf.mxu0
  %v4206 = vadd.f32 0.0, %v4205
  %4207 = vmatmul.f32.gmra.mxu0 %v192
  %v4208 = vpop.f32.mrf.mxu0
  %v4209 = vadd.f32 0.0, %v4208
  %4210 = vmatmul.f32.gmra.mxu0 %v1641
  %v4211 = vpop.f32.mrf.mxu0
  %v4212 = vadd.f32 0.0, %v4211
  %4213 = vmatmul.f32.gmra.mxu0 %v2576
  %v4214 = vpop.f32.mrf.mxu0
  %v4215 = vadd.f32 0.0, %v4214
  %4216 = vmatmul.f32.gmra.mxu0 %v3511
  %v4217 = vpop.f32.mrf.mxu0
  %v4218 = vadd.f32 0.0, %v4217
  %4219 = vdwg.mxu0
  %v4220 = vadd.f32 %v3285, %v3531
  %v4221 = vadd.f32 %v3286, %v3632
  %v4222 = vadd.f32 %v3287, %v3733
  %v4223 = vadd.f32 %v3288, %v3834
  %v4224 = vadd.f32 %v3289, %v3935
  %v4225 = vadd.f32 %v3290, %v4036
  %v4226 = vadd.f32 %v3291, %v4137
  %v4227 = vadd.f32 %v3292, %v3534
  %v4228 = vadd.f32 %v3293, %v3635
  %v4229 = vadd.f32 %v3294, %v3736
  %v4230 = vadd.f32 %v3295, %v3837
  %v4231 = vadd.f32 %v3296, %v3938
  %v4232 = vadd.f32 %v3297, %v4039
  %v4233 = vadd.f32 %v3298, %v4140
  %v4234 = vadd.f32 %v3299, %v3537
  %v4235 = vadd.f32 %v3300, %v3638
  %v4236 = vadd.f32 %v3301, %v3739
  %v4237 = vadd.f32 %v3302, %v3840
  %v4238 = vadd.f32 %v3303, %v3941
  %v4239 = vadd.f32 %v3304, %v4042
  %v4240 = vadd.f32 %v3305, %v4143
  %v4241 = vadd.f32 %v3306, %v3540
  %v4242 = vadd.f32 %v3307, %v3641
  %v4243 = vadd.f32 %v3308, %v3742
  %v4244 = vadd.f32 %v3309, %v3843
  %v4245 = vadd.f32 %v3310, %v3944
  %v4246 = vadd.f32 %v3311, %v4045
  %v4247 = vadd.f32 %v3312, %v4146
  %v4248 = vadd.f32 %v3313, %v3543
  %v4249 = vadd.f32 %v3314, %v3644
  %v4250 = vadd.f32 %v3315, %v3745
  %v4251 = vadd.f32 %v3316, %v3846
  %v4252 = vadd.f32 %v3317, %v3947
  %v4253 = vadd.f32 %v3318, %v4048
  %v4254 = vadd.f32 %v3319, %v4149
  %v4255 = vadd.f32 %v3320, %v3546
  %v4256 = vadd.f32 %v3321, %v3647
  %v4257 = vadd.f32 %v3322, %v3748
  %v4258 = vadd.f32 %v3323, %v3849
  %v4259 = vadd.f32 %v3324, %v3950
  %v4260 = vadd.f32 %v3325, %v4051
  %v4261 = vadd.f32 %v3326, %v4152
  %v4262 = vadd.f32 %v3327, %v3549
  %v4263 = vadd.f32 %v3328, %v3650
  %v4264 = vadd.f32 %v3329, %v3751
  %v4265 = vadd.f32 %v3330, %v3852
  %v4266 = vadd.f32 %v3331, %v3953
  %v4267 = vadd.f32 %v3332, %v4054
  %v4268 = vadd.f32 %v3333, %v4155
  %v4269 = vadd.f32 %v3334, %v3552
  %v4270 = vadd.f32 %v3335, %v3653
  %v4271 = vadd.f32 %v3336, %v3754
  %v4272 = vadd.f32 %v3337, %v3855
  %v4273 = vadd.f32 %v3338, %v3956
  %v4274 = vadd.f32 %v3339, %v4057
  %v4275 = vadd.f32 %v3340, %v4158
  %v4276 = vadd.f32 %v3341, %v3555
  %v4277 = vadd.f32 %v3342, %v3656
  %v4278 = vadd.f32 %v3343, %v3757
  %v4279 = vadd.f32 %v3344, %v3858
  %v4280 = vadd.f32 %v3345, %v3959
  %v4281 = vadd.f32 %v3346, %v4060
  %v4282 = vadd.f32 %v3347, %v4161
  %v4283 = vadd.f32 %v3348, %v3558
  %v4284 = vadd.f32 %v3349, %v3659
  %v4285 = vadd.f32 %v3350, %v3760
  %v4286 = vadd.f32 %v3351, %v3861
  %v4287 = vadd.f32 %v3352, %v3962
  %v4288 = vadd.f32 %v3353, %v4063
  %v4289 = vadd.f32 %v3354, %v4164
  %v4290 = vadd.f32 %v3355, %v3561
  %v4291 = vadd.f32 %v3356, %v3662
  %v4292 = vadd.f32 %v3357, %v3763
  %v4293 = vadd.f32 %v3358, %v3864
  %v4294 = vadd.f32 %v3359, %v3965
  %v4295 = vadd.f32 %v3360, %v4066
  %v4296 = vadd.f32 %v3361, %v4167
  %v4297 = vadd.f32 %v3362, %v3564
  %v4298 = vadd.f32 %v3363, %v3665
  %v4299 = vadd.f32 %v3364, %v3766
  %v4300 = vadd.f32 %v3365, %v3867
  %v4301 = vadd.f32 %v3366, %v3968
  %v4302 = vadd.f32 %v3367, %v4069
  %v4303 = vadd.f32 %v3368, %v4170
  %v4304 = vadd.f32 %v3369, %v3567
  %v4305 = vadd.f32 %v3370, %v3668
  %v4306 = vadd.f32 %v3371, %v3769
  %v4307 = vadd.f32 %v3372, %v3870
  %v4308 = vadd.f32 %v3373, %v3971
  %v4309 = vadd.f32 %v3374, %v4072
  %v4310 = vadd.f32 %v3375, %v4173
  %v4311 = vadd.f32 %v3376, %v3570
  %v4312 = vadd.f32 %v3377, %v3671
  %v4313 = vadd.f32 %v3378, %v3772
  %v4314 = vadd.f32 %v3379, %v3873
  %v4315 = vadd.f32 %v3380, %v3974
  %v4316 = vadd.f32 %v3381, %v4075
  %v4317 = vadd.f32 %v3382, %v4176
  %v4318 = vadd.f32 %v3383, %v3573
  %v4319 = vadd.f32 %v3384, %v3674
  %v4320 = vadd.f32 %v3385, %v3775
  %v4321 = vadd.f32 %v3386, %v3876
  %v4322 = vadd.f32 %v3387, %v3977
  %v4323 = vadd.f32 %v3388, %v4078
  %v4324 = vadd.f32 %v3389, %v4179
  %v4325 = vadd.f32 %v3390, %v3576
  %v4326 = vadd.f32 %v3391, %v3677
  %v4327 = vadd.f32 %v3392, %v3778
  %v4328 = vadd.f32 %v3393, %v3879
  %v4329 = vadd.f32 %v3394, %v3980
  %v4330 = vadd.f32 %v3395, %v4081
  %v4331 = vadd.f32 %v3396, %v4182
  %v4332 = vadd.f32 %v3397, %v3579
  %v4333 = vadd.f32 %v3398, %v3680
  %v4334 = vadd.f32 %v3399, %v3781
  %v4335 = vadd.f32 %v3400, %v3882
  %v4336 = vadd.f32 %v3401, %v3983
  %v4337 = vadd.f32 %v3402, %v4084
  %v4338 = vadd.f32 %v3403, %v4185
  %v4339 = vadd.f32 %v3404, %v3582
  %v4340 = vadd.f32 %v3405, %v3683
  %v4341 = vadd.f32 %v3406, %v3784
  %v4342 = vadd.f32 %v3407, %v3885
  %v4343 = vadd.f32 %v3408, %v3986
  %v4344 = vadd.f32 %v3409, %v4087
  %v4345 = vadd.f32 %v3410, %v4188
  %v4346 = vadd.f32 %v3411, %v3585
  %v4347 = vadd.f32 %v3412, %v3686
  %v4348 = vadd.f32 %v3413, %v3787
  %v4349 = vadd.f32 %v3414, %v3888
  %v4350 = vadd.f32 %v3415, %v3989
  %v4351 = vadd.f32 %v3416, %v4090
  %v4352 = vadd.f32 %v3417, %v4191
  %v4353 = vadd.f32 %v3418, %v3588
  %v4354 = vadd.f32 %v3419, %v3689
  %v4355 = vadd.f32 %v3420, %v3790
  %v4356 = vadd.f32 %v3421, %v3891
  %v4357 = vadd.f32 %v3422, %v3992
  %v4358 = vadd.f32 %v3423, %v4093
  %v4359 = vadd.f32 %v3424, %v4194
  %v4360 = vadd.f32 %v3425, %v3591
  %v4361 = vadd.f32 %v3426, %v3692
  %v4362 = vadd.f32 %v3427, %v3793
  %v4363 = vadd.f32 %v3428, %v3894
  %v4364 = vadd.f32 %v3429, %v3995
  %v4365 = vadd.f32 %v3430, %v4096
  %v4366 = vadd.f32 %v3431, %v4197
  %v4367 = vadd.f32 %v3432, %v3594
  %v4368 = vadd.f32 %v3433, %v3695
  %v4369 = vadd.f32 %v3434, %v3796
  %v4370 = vadd.f32 %v3435, %v3897
  %v4371 = vadd.f32 %v3436, %v3998
  %v4372 = vadd.f32 %v3437, %v4099
  %v4373 = vadd.f32 %v3438, %v4200
  %v4374 = vadd.f32 %v3439, %v3597
  %v4375 = vadd.f32 %v3440, %v3698
  %v4376 = vadd.f32 %v3441, %v3799
  %v4377 = vadd.f32 %v3442, %v3900
  %v4378 = vadd.f32 %v3443, %v4001
  %v4379 = vadd.f32 %v3444, %v4102
  %v4380 = vadd.f32 %v3445, %v4203
  %v4381 = vadd.f32 %v3446, %v3600
  %v4382 = vadd.f32 %v3447, %v3701
  %v4383 = vadd.f32 %v3448, %v3802
  %v4384 = vadd.f32 %v3449, %v3903
  %v4385 = vadd.f32 %v3450, %v4004
  %v4386 = vadd.f32 %v3451, %v4105
  %v4387 = vadd.f32 %v3452, %v4206
  %v4388 = vadd.f32 %v3453, %v3603
  %v4389 = vadd.f32 %v3454, %v3704
  %v4390 = vadd.f32 %v3455, %v3805
  %v4391 = vadd.f32 %v3456, %v3906
  %v4392 = vadd.f32 %v3457, %v4007
  %v4393 = vadd.f32 %v3458, %v4108
  %v4394 = vadd.f32 %v3459, %v4209
  %v4395 = vadd.f32 %v3460, %v3606
  %v4396 = vadd.f32 %v3461, %v3707
  %v4397 = vadd.f32 %v3462, %v3808
  %v4398 = vadd.f32 %v3463, %v3909
  %v4399 = vadd.f32 %v3464, %v4010
  %v4400 = vadd.f32 %v3465, %v4111
  %v4401 = vadd.f32 %v3466, %v4212
  %v4402 = vadd.f32 %v3467, %v3609
  %v4403 = vadd.f32 %v3468, %v3710
  %v4404 = vadd.f32 %v3469, %v3811
  %v4405 = vadd.f32 %v3470, %v3912
  %v4406 = vadd.f32 %v3471, %v4013
  %v4407 = vadd.f32 %v3472, %v4114
  %v4408 = vadd.f32 %v3473, %v4215
  %v4409 = vadd.f32 %v3474, %v3612
  %v4410 = vadd.f32 %v3475, %v3713
  %v4411 = vadd.f32 %v3476, %v3814
  %v4412 = vadd.f32 %v3477, %v3915
  %v4413 = vadd.f32 %v3478, %v4016
  %v4414 = vadd.f32 %v3479, %v4117
  %v4415 = vadd.f32 %v3480, %v4218
  %v4416 = vld [vmem:[%s2] sm:$0xff]
  %v4418 = vperm.slane %v4416, 0
  %v4419 = vperm.slane %v4416, 1
  %v4420 = vperm.slane %v4416, 2
  %v4421 = vperm.slane %v4416, 3
  %v4422 = vperm.slane %v4416, 4
  %v4423 = vperm.slane %v4416, 5
  %v4424 = vperm.slane %v4416, 6
  %v4432 = vadd.f32 %v4220, %v4418
  %v4433 = vadd.f32 %v4221, %v4419
  %v4434 = vadd.f32 %v4222, %v4420
  %v4435 = vadd.f32 %v4223, %v4421
  %v4436 = vadd.f32 %v4224, %v4422
  %v4437 = vadd.f32 %v4225, %v4423
  %v4438 = vadd.f32 %v4226, %v4424
  %v4439 = vadd.f32 %v4227, %v4418
  %v4440 = vadd.f32 %v4228, %v4419
  %v4441 = vadd.f32 %v4229, %v4420
  %v4442 = vadd.f32 %v4230, %v4421
  %v4443 = vadd.f32 %v4231, %v4422
  %v4444 = vadd.f32 %v4232, %v4423
  %v4445 = vadd.f32 %v4233, %v4424
  %v4446 = vadd.f32 %v4234, %v4418
  %v4447 = vadd.f32 %v4235, %v4419
  %v4448 = vadd.f32 %v4236, %v4420
  %v4449 = vadd.f32 %v4237, %v4421
  %v4450 = vadd.f32 %v4238, %v4422
  %v4451 = vadd.f32 %v4239, %v4423
  %v4452 = vadd.f32 %v4240, %v4424
  %v4453 = vadd.f32 %v4241, %v4418
  %v4454 = vadd.f32 %v4242, %v4419
  %v4455 = vadd.f32 %v4243, %v4420
  %v4456 = vadd.f32 %v4244, %v4421
  %v4457 = vadd.f32 %v4245, %v4422
  %v4458 = vadd.f32 %v4246, %v4423
  %v4459 = vadd.f32 %v4247, %v4424
  %v4460 = vadd.f32 %v4248, %v4418
  %v4461 = vadd.f32 %v4249, %v4419
  %v4462 = vadd.f32 %v4250, %v4420
  %v4463 = vadd.f32 %v4251, %v4421
  %v4464 = vadd.f32 %v4252, %v4422
  %v4465 = vadd.f32 %v4253, %v4423
  %v4466 = vadd.f32 %v4254, %v4424
  %v4467 = vadd.f32 %v4255, %v4418
  %v4468 = vadd.f32 %v4256, %v4419
  %v4469 = vadd.f32 %v4257, %v4420
  %v4470 = vadd.f32 %v4258, %v4421
  %v4471 = vadd.f32 %v4259, %v4422
  %v4472 = vadd.f32 %v4260, %v4423
  %v4473 = vadd.f32 %v4261, %v4424
  %v4474 = vadd.f32 %v4262, %v4418
  %v4475 = vadd.f32 %v4263, %v4419
  %v4476 = vadd.f32 %v4264, %v4420
  %v4477 = vadd.f32 %v4265, %v4421
  %v4478 = vadd.f32 %v4266, %v4422
  %v4479 = vadd.f32 %v4267, %v4423
  %v4480 = vadd.f32 %v4268, %v4424
  %v4481 = vadd.f32 %v4269, %v4418
  %v4482 = vadd.f32 %v4270, %v4419
  %v4483 = vadd.f32 %v4271, %v4420
  %v4484 = vadd.f32 %v4272, %v4421
  %v4485 = vadd.f32 %v4273, %v4422
  %v4486 = vadd.f32 %v4274, %v4423
  %v4487 = vadd.f32 %v4275, %v4424
  %v4488 = vadd.f32 %v4276, %v4418
  %v4489 = vadd.f32 %v4277, %v4419
  %v4490 = vadd.f32 %v4278, %v4420
  %v4491 = vadd.f32 %v4279, %v4421
  %v4492 = vadd.f32 %v4280, %v4422
  %v4493 = vadd.f32 %v4281, %v4423
  %v4494 = vadd.f32 %v4282, %v4424
  %v4495 = vadd.f32 %v4283, %v4418
  %v4496 = vadd.f32 %v4284, %v4419
  %v4497 = vadd.f32 %v4285, %v4420
  %v4498 = vadd.f32 %v4286, %v4421
  %v4499 = vadd.f32 %v4287, %v4422
  %v4500 = vadd.f32 %v4288, %v4423
  %v4501 = vadd.f32 %v4289, %v4424
  %v4502 = vadd.f32 %v4290, %v4418
  %v4503 = vadd.f32 %v4291, %v4419
  %v4504 = vadd.f32 %v4292, %v4420
  %v4505 = vadd.f32 %v4293, %v4421
  %v4506 = vadd.f32 %v4294, %v4422
  %v4507 = vadd.f32 %v4295, %v4423
  %v4508 = vadd.f32 %v4296, %v4424
  %v4509 = vadd.f32 %v4297, %v4418
  %v4510 = vadd.f32 %v4298, %v4419
  %v4511 = vadd.f32 %v4299, %v4420
  %v4512 = vadd.f32 %v4300, %v4421
  %v4513 = vadd.f32 %v4301, %v4422
  %v4514 = vadd.f32 %v4302, %v4423
  %v4515 = vadd.f32 %v4303, %v4424
  %v4516 = vadd.f32 %v4304, %v4418
  %v4517 = vadd.f32 %v4305, %v4419
  %v4518 = vadd.f32 %v4306, %v4420
  %v4519 = vadd.f32 %v4307, %v4421
  %v4520 = vadd.f32 %v4308, %v4422
  %v4521 = vadd.f32 %v4309, %v4423
  %v4522 = vadd.f32 %v4310, %v4424
  %v4523 = vadd.f32 %v4311, %v4418
  %v4524 = vadd.f32 %v4312, %v4419
  %v4525 = vadd.f32 %v4313, %v4420
  %v4526 = vadd.f32 %v4314, %v4421
  %v4527 = vadd.f32 %v4315, %v4422
  %v4528 = vadd.f32 %v4316, %v4423
  %v4529 = vadd.f32 %v4317, %v4424
  %v4530 = vadd.f32 %v4318, %v4418
  %v4531 = vadd.f32 %v4319, %v4419
  %v4532 = vadd.f32 %v4320, %v4420
  %v4533 = vadd.f32 %v4321, %v4421
  %v4534 = vadd.f32 %v4322, %v4422
  %v4535 = vadd.f32 %v4323, %v4423
  %v4536 = vadd.f32 %v4324, %v4424
  %v4537 = vadd.f32 %v4325, %v4418
  %v4538 = vadd.f32 %v4326, %v4419
  %v4539 = vadd.f32 %v4327, %v4420
  %v4540 = vadd.f32 %v4328, %v4421
  %v4541 = vadd.f32 %v4329, %v4422
  %v4542 = vadd.f32 %v4330, %v4423
  %v4543 = vadd.f32 %v4331, %v4424
  %v4544 = vadd.f32 %v4332, %v4418
  %v4545 = vadd.f32 %v4333, %v4419
  %v4546 = vadd.f32 %v4334, %v4420
  %v4547 = vadd.f32 %v4335, %v4421
  %v4548 = vadd.f32 %v4336, %v4422
  %v4549 = vadd.f32 %v4337, %v4423
  %v4550 = vadd.f32 %v4338, %v4424
  %v4551 = vadd.f32 %v4339, %v4418
  %v4552 = vadd.f32 %v4340, %v4419
  %v4553 = vadd.f32 %v4341, %v4420
  %v4554 = vadd.f32 %v4342, %v4421
  %v4555 = vadd.f32 %v4343, %v4422
  %v4556 = vadd.f32 %v4344, %v4423
  %v4557 = vadd.f32 %v4345, %v4424
  %v4558 = vadd.f32 %v4346, %v4418
  %v4559 = vadd.f32 %v4347, %v4419
  %v4560 = vadd.f32 %v4348, %v4420
  %v4561 = vadd.f32 %v4349, %v4421
  %v4562 = vadd.f32 %v4350, %v4422
  %v4563 = vadd.f32 %v4351, %v4423
  %v4564 = vadd.f32 %v4352, %v4424
  %v4565 = vadd.f32 %v4353, %v4418
  %v4566 = vadd.f32 %v4354, %v4419
  %v4567 = vadd.f32 %v4355, %v4420
  %v4568 = vadd.f32 %v4356, %v4421
  %v4569 = vadd.f32 %v4357, %v4422
  %v4570 = vadd.f32 %v4358, %v4423
  %v4571 = vadd.f32 %v4359, %v4424
  %v4572 = vadd.f32 %v4360, %v4418
  %v4573 = vadd.f32 %v4361, %v4419
  %v4574 = vadd.f32 %v4362, %v4420
  %v4575 = vadd.f32 %v4363, %v4421
  %v4576 = vadd.f32 %v4364, %v4422
  %v4577 = vadd.f32 %v4365, %v4423
  %v4578 = vadd.f32 %v4366, %v4424
  %v4579 = vadd.f32 %v4367, %v4418
  %v4580 = vadd.f32 %v4368, %v4419
  %v4581 = vadd.f32 %v4369, %v4420
  %v4582 = vadd.f32 %v4370, %v4421
  %v4583 = vadd.f32 %v4371, %v4422
  %v4584 = vadd.f32 %v4372, %v4423
  %v4585 = vadd.f32 %v4373, %v4424
  %v4586 = vadd.f32 %v4374, %v4418
  %v4587 = vadd.f32 %v4375, %v4419
  %v4588 = vadd.f32 %v4376, %v4420
  %v4589 = vadd.f32 %v4377, %v4421
  %v4590 = vadd.f32 %v4378, %v4422
  %v4591 = vadd.f32 %v4379, %v4423
  %v4592 = vadd.f32 %v4380, %v4424
  %v4593 = vadd.f32 %v4381, %v4418
  %v4594 = vadd.f32 %v4382, %v4419
  %v4595 = vadd.f32 %v4383, %v4420
  %v4596 = vadd.f32 %v4384, %v4421
  %v4597 = vadd.f32 %v4385, %v4422
  %v4598 = vadd.f32 %v4386, %v4423
  %v4599 = vadd.f32 %v4387, %v4424
  %v4600 = vadd.f32 %v4388, %v4418
  %v4601 = vadd.f32 %v4389, %v4419
  %v4602 = vadd.f32 %v4390, %v4420
  %v4603 = vadd.f32 %v4391, %v4421
  %v4604 = vadd.f32 %v4392, %v4422
  %v4605 = vadd.f32 %v4393, %v4423
  %v4606 = vadd.f32 %v4394, %v4424
  %v4607 = vadd.f32 %v4395, %v4418
  %v4608 = vadd.f32 %v4396, %v4419
  %v4609 = vadd.f32 %v4397, %v4420
  %v4610 = vadd.f32 %v4398, %v4421
  %v4611 = vadd.f32 %v4399, %v4422
  %v4612 = vadd.f32 %v4400, %v4423
  %v4613 = vadd.f32 %v4401, %v4424
  %v4614 = vadd.f32 %v4402, %v4418
  %v4615 = vadd.f32 %v4403, %v4419
  %v4616 = vadd.f32 %v4404, %v4420
  %v4617 = vadd.f32 %v4405, %v4421
  %v4618 = vadd.f32 %v4406, %v4422
  %v4619 = vadd.f32 %v4407, %v4423
  %v4620 = vadd.f32 %v4408, %v4424
  %v4621 = vadd.f32 %v4409, %v4418
  %v4622 = vadd.f32 %v4410, %v4419
  %v4623 = vadd.f32 %v4411, %v4420
  %v4624 = vadd.f32 %v4412, %v4421
  %v4625 = vadd.f32 %v4413, %v4422
  %v4626 = vadd.f32 %v4414, %v4423
  %v4627 = vadd.f32 %v4415, %v4424
  %v4628 = vmax.f32 %v4432, 0.0
  %v4629 = vmax.f32 %v4433, 0.0
  %v4630 = vmax.f32 %v4434, 0.0
  %v4631 = vmax.f32 %v4435, 0.0
  %v4632 = vmax.f32 %v4436, 0.0
  %v4633 = vmax.f32 %v4437, 0.0
  %v4634 = vmax.f32 %v4438, 0.0
  %v4635 = vmax.f32 %v4439, 0.0
  %v4636 = vmax.f32 %v4440, 0.0
  %v4637 = vmax.f32 %v4441, 0.0
  %v4638 = vmax.f32 %v4442, 0.0
  %v4639 = vmax.f32 %v4443, 0.0
  %v4640 = vmax.f32 %v4444, 0.0
  %v4641 = vmax.f32 %v4445, 0.0
  %v4642 = vmax.f32 %v4446, 0.0
  %v4643 = vmax.f32 %v4447, 0.0
  %v4644 = vmax.f32 %v4448, 0.0
  %v4645 = vmax.f32 %v4449, 0.0
  %v4646 = vmax.f32 %v4450, 0.0
  %v4647 = vmax.f32 %v4451, 0.0
  %v4648 = vmax.f32 %v4452, 0.0
  %v4649 = vmax.f32 %v4453, 0.0
  %v4650 = vmax.f32 %v4454, 0.0
  %v4651 = vmax.f32 %v4455, 0.0
  %v4652 = vmax.f32 %v4456, 0.0
  %v4653 = vmax.f32 %v4457, 0.0
  %v4654 = vmax.f32 %v4458, 0.0
  %v4655 = vmax.f32 %v4459, 0.0
  %v4656 = vmax.f32 %v4460, 0.0
  %v4657 = vmax.f32 %v4461, 0.0
  %v4658 = vmax.f32 %v4462, 0.0
  %v4659 = vmax.f32 %v4463, 0.0
  %v4660 = vmax.f32 %v4464, 0.0
  %v4661 = vmax.f32 %v4465, 0.0
  %v4662 = vmax.f32 %v4466, 0.0
  %v4663 = vmax.f32 %v4467, 0.0
  %v4664 = vmax.f32 %v4468, 0.0
  %v4665 = vmax.f32 %v4469, 0.0
  %v4666 = vmax.f32 %v4470, 0.0
  %v4667 = vmax.f32 %v4471, 0.0
  %v4668 = vmax.f32 %v4472, 0.0
  %v4669 = vmax.f32 %v4473, 0.0
  %v4670 = vmax.f32 %v4474, 0.0
  %v4671 = vmax.f32 %v4475, 0.0
  %v4672 = vmax.f32 %v4476, 0.0
  %v4673 = vmax.f32 %v4477, 0.0
  %v4674 = vmax.f32 %v4478, 0.0
  %v4675 = vmax.f32 %v4479, 0.0
  %v4676 = vmax.f32 %v4480, 0.0
  %v4677 = vmax.f32 %v4481, 0.0
  %v4678 = vmax.f32 %v4482, 0.0
  %v4679 = vmax.f32 %v4483, 0.0
  %v4680 = vmax.f32 %v4484, 0.0
  %v4681 = vmax.f32 %v4485, 0.0
  %v4682 = vmax.f32 %v4486, 0.0
  %v4683 = vmax.f32 %v4487, 0.0
  %v4684 = vmax.f32 %v4488, 0.0
  %v4685 = vmax.f32 %v4489, 0.0
  %v4686 = vmax.f32 %v4490, 0.0
  %v4687 = vmax.f32 %v4491, 0.0
  %v4688 = vmax.f32 %v4492, 0.0
  %v4689 = vmax.f32 %v4493, 0.0
  %v4690 = vmax.f32 %v4494, 0.0
  %v4691 = vmax.f32 %v4495, 0.0
  %v4692 = vmax.f32 %v4496, 0.0
  %v4693 = vmax.f32 %v4497, 0.0
  %v4694 = vmax.f32 %v4498, 0.0
  %v4695 = vmax.f32 %v4499, 0.0
  %v4696 = vmax.f32 %v4500, 0.0
  %v4697 = vmax.f32 %v4501, 0.0
  %v4698 = vmax.f32 %v4502, 0.0
  %v4699 = vmax.f32 %v4503, 0.0
  %v4700 = vmax.f32 %v4504, 0.0
  %v4701 = vmax.f32 %v4505, 0.0
  %v4702 = vmax.f32 %v4506, 0.0
  %v4703 = vmax.f32 %v4507, 0.0
  %v4704 = vmax.f32 %v4508, 0.0
  %v4705 = vmax.f32 %v4509, 0.0
  %v4706 = vmax.f32 %v4510, 0.0
  %v4707 = vmax.f32 %v4511, 0.0
  %v4708 = vmax.f32 %v4512, 0.0
  %v4709 = vmax.f32 %v4513, 0.0
  %v4710 = vmax.f32 %v4514, 0.0
  %v4711 = vmax.f32 %v4515, 0.0
  %v4712 = vmax.f32 %v4516, 0.0
  %v4713 = vmax.f32 %v4517, 0.0
  %v4714 = vmax.f32 %v4518, 0.0
  %v4715 = vmax.f32 %v4519, 0.0
  %v4716 = vmax.f32 %v4520, 0.0
  %v4717 = vmax.f32 %v4521, 0.0
  %v4718 = vmax.f32 %v4522, 0.0
  %v4719 = vmax.f32 %v4523, 0.0
  %v4720 = vmax.f32 %v4524, 0.0
  %v4721 = vmax.f32 %v4525, 0.0
  %v4722 = vmax.f32 %v4526, 0.0
  %v4723 = vmax.f32 %v4527, 0.0
  %v4724 = vmax.f32 %v4528, 0.0
  %v4725 = vmax.f32 %v4529, 0.0
  %v4726 = vmax.f32 %v4530, 0.0
  %v4727 = vmax.f32 %v4531, 0.0
  %v4728 = vmax.f32 %v4532, 0.0
  %v4729 = vmax.f32 %v4533, 0.0
  %v4730 = vmax.f32 %v4534, 0.0
  %v4731 = vmax.f32 %v4535, 0.0
  %v4732 = vmax.f32 %v4536, 0.0
  %v4733 = vmax.f32 %v4537, 0.0
  %v4734 = vmax.f32 %v4538, 0.0
  %v4735 = vmax.f32 %v4539, 0.0
  %v4736 = vmax.f32 %v4540, 0.0
  %v4737 = vmax.f32 %v4541, 0.0
  %v4738 = vmax.f32 %v4542, 0.0
  %v4739 = vmax.f32 %v4543, 0.0
  %v4740 = vmax.f32 %v4544, 0.0
  %v4741 = vmax.f32 %v4545, 0.0
  %v4742 = vmax.f32 %v4546, 0.0
  %v4743 = vmax.f32 %v4547, 0.0
  %v4744 = vmax.f32 %v4548, 0.0
  %v4745 = vmax.f32 %v4549, 0.0
  %v4746 = vmax.f32 %v4550, 0.0
  %v4747 = vmax.f32 %v4551, 0.0
  %v4748 = vmax.f32 %v4552, 0.0
  %v4749 = vmax.f32 %v4553, 0.0
  %v4750 = vmax.f32 %v4554, 0.0
  %v4751 = vmax.f32 %v4555, 0.0
  %v4752 = vmax.f32 %v4556, 0.0
  %v4753 = vmax.f32 %v4557, 0.0
  %v4754 = vmax.f32 %v4558, 0.0
  %v4755 = vmax.f32 %v4559, 0.0
  %v4756 = vmax.f32 %v4560, 0.0
  %v4757 = vmax.f32 %v4561, 0.0
  %v4758 = vmax.f32 %v4562, 0.0
  %v4759 = vmax.f32 %v4563, 0.0
  %v4760 = vmax.f32 %v4564, 0.0
  %v4761 = vmax.f32 %v4565, 0.0
  %v4762 = vmax.f32 %v4566, 0.0
  %v4763 = vmax.f32 %v4567, 0.0
  %v4764 = vmax.f32 %v4568, 0.0
  %v4765 = vmax.f32 %v4569, 0.0
  %v4766 = vmax.f32 %v4570, 0.0
  %v4767 = vmax.f32 %v4571, 0.0
  %v4768 = vmax.f32 %v4572, 0.0
  %v4769 = vmax.f32 %v4573, 0.0
  %v4770 = vmax.f32 %v4574, 0.0
  %v4771 = vmax.f32 %v4575, 0.0
  %v4772 = vmax.f32 %v4576, 0.0
  %v4773 = vmax.f32 %v4577, 0.0
  %v4774 = vmax.f32 %v4578, 0.0
  %v4775 = vmax.f32 %v4579, 0.0
  %v4776 = vmax.f32 %v4580, 0.0
  %v4777 = vmax.f32 %v4581, 0.0
  %v4778 = vmax.f32 %v4582, 0.0
  %v4779 = vmax.f32 %v4583, 0.0
  %v4780 = vmax.f32 %v4584, 0.0
  %v4781 = vmax.f32 %v4585, 0.0
  %v4782 = vmax.f32 %v4586, 0.0
  %v4783 = vmax.f32 %v4587, 0.0
  %v4784 = vmax.f32 %v4588, 0.0
  %v4785 = vmax.f32 %v4589, 0.0
  %v4786 = vmax.f32 %v4590, 0.0
  %v4787 = vmax.f32 %v4591, 0.0
  %v4788 = vmax.f32 %v4592, 0.0
  %v4789 = vmax.f32 %v4593, 0.0
  %v4790 = vmax.f32 %v4594, 0.0
  %v4791 = vmax.f32 %v4595, 0.0
  %v4792 = vmax.f32 %v4596, 0.0
  %v4793 = vmax.f32 %v4597, 0.0
  %v4794 = vmax.f32 %v4598, 0.0
  %v4795 = vmax.f32 %v4599, 0.0
  %v4796 = vmax.f32 %v4600, 0.0
  %v4797 = vmax.f32 %v4601, 0.0
  %v4798 = vmax.f32 %v4602, 0.0
  %v4799 = vmax.f32 %v4603, 0.0
  %v4800 = vmax.f32 %v4604, 0.0
  %v4801 = vmax.f32 %v4605, 0.0
  %v4802 = vmax.f32 %v4606, 0.0
  %v4803 = vmax.f32 %v4607, 0.0
  %v4804 = vmax.f32 %v4608, 0.0
  %v4805 = vmax.f32 %v4609, 0.0
  %v4806 = vmax.f32 %v4610, 0.0
  %v4807 = vmax.f32 %v4611, 0.0
  %v4808 = vmax.f32 %v4612, 0.0
  %v4809 = vmax.f32 %v4613, 0.0
  %v4810 = vmax.f32 %v4614, 0.0
  %v4811 = vmax.f32 %v4615, 0.0
  %v4812 = vmax.f32 %v4616, 0.0
  %v4813 = vmax.f32 %v4617, 0.0
  %v4814 = vmax.f32 %v4618, 0.0
  %v4815 = vmax.f32 %v4619, 0.0
  %v4816 = vmax.f32 %v4620, 0.0
  %v4817 = vmax.f32 %v4621, 0.0
  %v4818 = vmax.f32 %v4622, 0.0
  %v4819 = vmax.f32 %v4623, 0.0
  %v4820 = vmax.f32 %v4624, 0.0
  %v4821 = vmax.f32 %v4625, 0.0
  %v4822 = vmax.f32 %v4626, 0.0
  %v4823 = vmax.f32 %v4627, 0.0
  %v4824 = vmax.f32 %v4628, %v4635
  %v4825 = vmax.f32 %v4629, %v4636
  %v4826 = vmax.f32 %v4630, %v4637
  %v4827 = vmax.f32 %v4631, %v4638
  %v4828 = vmax.f32 %v4632, %v4639
  %v4829 = vmax.f32 %v4633, %v4640
  %v4830 = vmax.f32 %v4634, %v4641
  %v4831 = vmax.f32 %v4642, %v4649
  %v4832 = vmax.f32 %v4643, %v4650
  %v4833 = vmax.f32 %v4644, %v4651
  %v4834 = vmax.f32 %v4645, %v4652
  %v4835 = vmax.f32 %v4646, %v4653
  %v4836 = vmax.f32 %v4647, %v4654
  %v4837 = vmax.f32 %v4648, %v4655
  %v4838 = vmax.f32 %v4656, %v4663
  %v4839 = vmax.f32 %v4657, %v4664
  %v4840 = vmax.f32 %v4658, %v4665
  %v4841 = vmax.f32 %v4659, %v4666
  %v4842 = vmax.f32 %v4660, %v4667
  %v4843 = vmax.f32 %v4661, %v4668
  %v4844 = vmax.f32 %v4662, %v4669
  %v4845 = vmax.f32 %v4670, %v4677
  %v4846 = vmax.f32 %v4671, %v4678
  %v4847 = vmax.f32 %v4672, %v4679
  %v4848 = vmax.f32 %v4673, %v4680
  %v4849 = vmax.f32 %v4674, %v4681
  %v4850 = vmax.f32 %v4675, %v4682
  %v4851 = vmax.f32 %v4676, %v4683
  %v4852 = vmax.f32 %v4684, %v4691
  %v4853 = vmax.f32 %v4685, %v4692
  %v4854 = vmax.f32 %v4686, %v4693
  %v4855 = vmax.f32 %v4687, %v4694
  %v4856 = vmax.f32 %v4688, %v4695
  %v4857 = vmax.f32 %v4689, %v4696
  %v4858 = vmax.f32 %v4690, %v4697
  %v4859 = vmax.f32 %v4698, %v4705
  %v4860 = vmax.f32 %v4699, %v4706
  %v4861 = vmax.f32 %v4700, %v4707
  %v4862 = vmax.f32 %v4701, %v4708
  %v4863 = vmax.f32 %v4702, %v4709
  %v4864 = vmax.f32 %v4703, %v4710
  %v4865 = vmax.f32 %v4704, %v4711
  %v4866 = vmax.f32 %v4712, %v4719
  %v4867 = vmax.f32 %v4713, %v4720
  %v4868 = vmax.f32 %v4714, %v4721
  %v4869 = vmax.f32 %v4715, %v4722
  %v4870 = vmax.f32 %v4716, %v4723
  %v4871 = vmax.f32 %v4717, %v4724
  %v4872 = vmax.f32 %v4718, %v4725
  %v4873 = vmax.f32 %v4726, %v4733
  %v4874 = vmax.f32 %v4727, %v4734
  %v4875 = vmax.f32 %v4728, %v4735
  %v4876 = vmax.f32 %v4729, %v4736
  %v4877 = vmax.f32 %v4730, %v4737
  %v4878 = vmax.f32 %v4731, %v4738
  %v4879 = vmax.f32 %v4732, %v4739
  %v4880 = vmax.f32 %v4740, %v4747
  %v4881 = vmax.f32 %v4741, %v4748
  %v4882 = vmax.f32 %v4742, %v4749
  %v4883 = vmax.f32 %v4743, %v4750
  %v4884 = vmax.f32 %v4744, %v4751
  %v4885 = vmax.f32 %v4745, %v4752
  %v4886 = vmax.f32 %v4746, %v4753
  %v4887 = vmax.f32 %v4754, %v4761
  %v4888 = vmax.f32 %v4755, %v4762
  %v4889 = vmax.f32 %v4756, %v4763
  %v4890 = vmax.f32 %v4757, %v4764
  %v4891 = vmax.f32 %v4758, %v4765
  %v4892 = vmax.f32 %v4759, %v4766
  %v4893 = vmax.f32 %v4760, %v4767
  %v4894 = vmax.f32 %v4768, %v4775
  %v4895 = vmax.f32 %v4769, %v4776
  %v4896 = vmax.f32 %v4770, %v4777
  %v4897 = vmax.f32 %v4771, %v4778
  %v4898 = vmax.f32 %v4772, %v4779
  %v4899 = vmax.f32 %v4773, %v4780
  %v4900 = vmax.f32 %v4774, %v4781
  %v4901 = vmax.f32 %v4782, %v4789
  %v4902 = vmax.f32 %v4783, %v4790
  %v4903 = vmax.f32 %v4784, %v4791
  %v4904 = vmax.f32 %v4785, %v4792
  %v4905 = vmax.f32 %v4786, %v4793
  %v4906 = vmax.f32 %v4787, %v4794
  %v4907 = vmax.f32 %v4788, %v4795
  %v4908 = vmax.f32 %v4796, %v4803
  %v4909 = vmax.f32 %v4797, %v4804
  %v4910 = vmax.f32 %v4798, %v4805
  %v4911 = vmax.f32 %v4799, %v4806
  %v4912 = vmax.f32 %v4800, %v4807
  %v4913 = vmax.f32 %v4801, %v4808
  %v4914 = vmax.f32 %v4802, %v4809
  %v4915 = vmax.f32 %v4810, %v4817
  %v4916 = vmax.f32 %v4811, %v4818
  %v4917 = vmax.f32 %v4812, %v4819
  %v4918 = vmax.f32 %v4813, %v4820
  %v4919 = vmax.f32 %v4814, %v4821
  %v4920 = vmax.f32 %v4815, %v4822
  %v4921 = vmax.f32 %v4816, %v4823
  %5020 = vrot.lane.b32.xlu0 %v4824, 96
  %v5021 = vpop.permute.xlu0 %5020
  %5022 = vrot.lane.b32.xlu0 %v4825, 96
  %v5023 = vpop.permute.xlu0 %5022
  %5024 = vrot.lane.b32.xlu0 %v4826, 96
  %v5025 = vpop.permute.xlu0 %5024
  %5026 = vrot.lane.b32.xlu0 %v4827, 96
  %v5027 = vpop.permute.xlu0 %5026
  %5028 = vrot.lane.b32.xlu0 %v4828, 96
  %v5029 = vpop.permute.xlu0 %5028
  %5030 = vrot.lane.b32.xlu0 %v4829, 96
  %v5031 = vpop.permute.xlu0 %5030
  %5032 = vrot.lane.b32.xlu0 %v4830, 96
  %v5033 = vpop.permute.xlu0 %5032
  %5034 = vrot.lane.b32.xlu0 %v4831, 96
  %v5035 = vpop.permute.xlu0 %5034
  %5036 = vrot.lane.b32.xlu0 %v4832, 96
  %v5037 = vpop.permute.xlu0 %5036
  %5038 = vrot.lane.b32.xlu0 %v4833, 96
  %v5039 = vpop.permute.xlu0 %5038
  %5040 = vrot.lane.b32.xlu0 %v4834, 96
  %v5041 = vpop.permute.xlu0 %5040
  %5042 = vrot.lane.b32.xlu0 %v4835, 96
  %v5043 = vpop.permute.xlu0 %5042
  %5044 = vrot.lane.b32.xlu0 %v4836, 96
  %v5045 = vpop.permute.xlu0 %5044
  %5046 = vrot.lane.b32.xlu0 %v4837, 96
  %v5047 = vpop.permute.xlu0 %5046
  %5048 = vrot.lane.b32.xlu0 %v4838, 96
  %v5049 = vpop.permute.xlu0 %5048
  %5050 = vrot.lane.b32.xlu0 %v4839, 96
  %v5051 = vpop.permute.xlu0 %5050
  %5052 = vrot.lane.b32.xlu0 %v4840, 96
  %v5053 = vpop.permute.xlu0 %5052
  %5054 = vrot.lane.b32.xlu0 %v4841, 96
  %v5055 = vpop.permute.xlu0 %5054
  %5056 = vrot.lane.b32.xlu0 %v4842, 96
  %v5057 = vpop.permute.xlu0 %5056
  %5058 = vrot.lane.b32.xlu0 %v4843, 96
  %v5059 = vpop.permute.xlu0 %5058
  %5060 = vrot.lane.b32.xlu0 %v4844, 96
  %v5061 = vpop.permute.xlu0 %5060
  %5062 = vrot.lane.b32.xlu0 %v4845, 96
  %v5063 = vpop.permute.xlu0 %5062
  %5064 = vrot.lane.b32.xlu0 %v4846, 96
  %v5065 = vpop.permute.xlu0 %5064
  %5066 = vrot.lane.b32.xlu0 %v4847, 96
  %v5067 = vpop.permute.xlu0 %5066
  %5068 = vrot.lane.b32.xlu0 %v4848, 96
  %v5069 = vpop.permute.xlu0 %5068
  %5070 = vrot.lane.b32.xlu0 %v4849, 96
  %v5071 = vpop.permute.xlu0 %5070
  %5072 = vrot.lane.b32.xlu0 %v4850, 96
  %v5073 = vpop.permute.xlu0 %5072
  %5074 = vrot.lane.b32.xlu0 %v4851, 96
  %v5075 = vpop.permute.xlu0 %5074
  %5076 = vrot.lane.b32.xlu0 %v4852, 96
  %v5077 = vpop.permute.xlu0 %5076
  %5078 = vrot.lane.b32.xlu0 %v4853, 96
  %v5079 = vpop.permute.xlu0 %5078
  %5080 = vrot.lane.b32.xlu0 %v4854, 96
  %v5081 = vpop.permute.xlu0 %5080
  %5082 = vrot.lane.b32.xlu0 %v4855, 96
  %v5083 = vpop.permute.xlu0 %5082
  %5084 = vrot.lane.b32.xlu0 %v4856, 96
  %v5085 = vpop.permute.xlu0 %5084
  %5086 = vrot.lane.b32.xlu0 %v4857, 96
  %v5087 = vpop.permute.xlu0 %5086
  %5088 = vrot.lane.b32.xlu0 %v4858, 96
  %v5089 = vpop.permute.xlu0 %5088
  %5090 = vrot.lane.b32.xlu0 %v4859, 96
  %v5091 = vpop.permute.xlu0 %5090
  %5092 = vrot.lane.b32.xlu0 %v4860, 96
  %v5093 = vpop.permute.xlu0 %5092
  %5094 = vrot.lane.b32.xlu0 %v4861, 96
  %v5095 = vpop.permute.xlu0 %5094
  %5096 = vrot.lane.b32.xlu0 %v4862, 96
  %v5097 = vpop.permute.xlu0 %5096
  %5098 = vrot.lane.b32.xlu0 %v4863, 96
  %v5099 = vpop.permute.xlu0 %5098
  %5100 = vrot.lane.b32.xlu0 %v4864, 96
  %v5101 = vpop.permute.xlu0 %5100
  %5102 = vrot.lane.b32.xlu0 %v4865, 96
  %v5103 = vpop.permute.xlu0 %5102
  %5104 = vrot.lane.b32.xlu0 %v4866, 96
  %v5105 = vpop.permute.xlu0 %5104
  %5106 = vrot.lane.b32.xlu0 %v4867, 96
  %v5107 = vpop.permute.xlu0 %5106
  %5108 = vrot.lane.b32.xlu0 %v4868, 96
  %v5109 = vpop.permute.xlu0 %5108
  %5110 = vrot.lane.b32.xlu0 %v4869, 96
  %v5111 = vpop.permute.xlu0 %5110
  %5112 = vrot.lane.b32.xlu0 %v4870, 96
  %v5113 = vpop.permute.xlu0 %5112
  %5114 = vrot.lane.b32.xlu0 %v4871, 96
  %v5115 = vpop.permute.xlu0 %5114
  %5116 = vrot.lane.b32.xlu0 %v4872, 96
  %v5117 = vpop.permute.xlu0 %5116
  %5118 = vrot.lane.b32.xlu0 %v4873, 96
  %v5119 = vpop.permute.xlu0 %5118
  %5120 = vrot.lane.b32.xlu0 %v4874, 96
  %v5121 = vpop.permute.xlu0 %5120
  %5122 = vrot.lane.b32.xlu0 %v4875, 96
  %v5123 = vpop.permute.xlu0 %5122
  %5124 = vrot.lane.b32.xlu0 %v4876, 96
  %v5125 = vpop.permute.xlu0 %5124
  %5126 = vrot.lane.b32.xlu0 %v4877, 96
  %v5127 = vpop.permute.xlu0 %5126
  %5128 = vrot.lane.b32.xlu0 %v4878, 96
  %v5129 = vpop.permute.xlu0 %5128
  %5130 = vrot.lane.b32.xlu0 %v4879, 96
  %v5131 = vpop.permute.xlu0 %5130
  %5132 = vrot.lane.b32.xlu0 %v4880, 96
  %v5133 = vpop.permute.xlu0 %5132
  %5134 = vrot.lane.b32.xlu0 %v4881, 96
  %v5135 = vpop.permute.xlu0 %5134
  %5136 = vrot.lane.b32.xlu0 %v4882, 96
  %v5137 = vpop.permute.xlu0 %5136
  %5138 = vrot.lane.b32.xlu0 %v4883, 96
  %v5139 = vpop.permute.xlu0 %5138
  %5140 = vrot.lane.b32.xlu0 %v4884, 96
  %v5141 = vpop.permute.xlu0 %5140
  %5142 = vrot.lane.b32.xlu0 %v4885, 96
  %v5143 = vpop.permute.xlu0 %5142
  %5144 = vrot.lane.b32.xlu0 %v4886, 96
  %v5145 = vpop.permute.xlu0 %5144
  %5146 = vrot.lane.b32.xlu0 %v4887, 96
  %v5147 = vpop.permute.xlu0 %5146
  %5148 = vrot.lane.b32.xlu0 %v4888, 96
  %v5149 = vpop.permute.xlu0 %5148
  %5150 = vrot.lane.b32.xlu0 %v4889, 96
  %v5151 = vpop.permute.xlu0 %5150
  %5152 = vrot.lane.b32.xlu0 %v4890, 96
  %v5153 = vpop.permute.xlu0 %5152
  %5154 = vrot.lane.b32.xlu0 %v4891, 96
  %v5155 = vpop.permute.xlu0 %5154
  %5156 = vrot.lane.b32.xlu0 %v4892, 96
  %v5157 = vpop.permute.xlu0 %5156
  %5158 = vrot.lane.b32.xlu0 %v4893, 96
  %v5159 = vpop.permute.xlu0 %5158
  %5160 = vrot.lane.b32.xlu0 %v4894, 96
  %v5161 = vpop.permute.xlu0 %5160
  %5162 = vrot.lane.b32.xlu0 %v4895, 96
  %v5163 = vpop.permute.xlu0 %5162
  %5164 = vrot.lane.b32.xlu0 %v4896, 96
  %v5165 = vpop.permute.xlu0 %5164
  %5166 = vrot.lane.b32.xlu0 %v4897, 96
  %v5167 = vpop.permute.xlu0 %5166
  %5168 = vrot.lane.b32.xlu0 %v4898, 96
  %v5169 = vpop.permute.xlu0 %5168
  %5170 = vrot.lane.b32.xlu0 %v4899, 96
  %v5171 = vpop.permute.xlu0 %5170
  %5172 = vrot.lane.b32.xlu0 %v4900, 96
  %v5173 = vpop.permute.xlu0 %5172
  %5174 = vrot.lane.b32.xlu0 %v4901, 96
  %v5175 = vpop.permute.xlu0 %5174
  %5176 = vrot.lane.b32.xlu0 %v4902, 96
  %v5177 = vpop.permute.xlu0 %5176
  %5178 = vrot.lane.b32.xlu0 %v4903, 96
  %v5179 = vpop.permute.xlu0 %5178
  %5180 = vrot.lane.b32.xlu0 %v4904, 96
  %v5181 = vpop.permute.xlu0 %5180
  %5182 = vrot.lane.b32.xlu0 %v4905, 96
  %v5183 = vpop.permute.xlu0 %5182
  %5184 = vrot.lane.b32.xlu0 %v4906, 96
  %v5185 = vpop.permute.xlu0 %5184
  %5186 = vrot.lane.b32.xlu0 %v4907, 96
  %v5187 = vpop.permute.xlu0 %5186
  %5188 = vrot.lane.b32.xlu0 %v4908, 96
  %v5189 = vpop.permute.xlu0 %5188
  %5190 = vrot.lane.b32.xlu0 %v4909, 96
  %v5191 = vpop.permute.xlu0 %5190
  %5192 = vrot.lane.b32.xlu0 %v4910, 96
  %v5193 = vpop.permute.xlu0 %5192
  %5194 = vrot.lane.b32.xlu0 %v4911, 96
  %v5195 = vpop.permute.xlu0 %5194
  %5196 = vrot.lane.b32.xlu0 %v4912, 96
  %v5197 = vpop.permute.xlu0 %5196
  %5198 = vrot.lane.b32.xlu0 %v4913, 96
  %v5199 = vpop.permute.xlu0 %5198
  %5200 = vrot.lane.b32.xlu0 %v4914, 96
  %v5201 = vpop.permute.xlu0 %5200
  %5202 = vrot.lane.b32.xlu0 %v4915, 96
  %v5203 = vpop.permute.xlu0 %5202
  %5204 = vrot.lane.b32.xlu0 %v4916, 96
  %v5205 = vpop.permute.xlu0 %5204
  %5206 = vrot.lane.b32.xlu0 %v4917, 96
  %v5207 = vpop.permute.xlu0 %5206
  %5208 = vrot.lane.b32.xlu0 %v4918, 96
  %v5209 = vpop.permute.xlu0 %5208
  %5210 = vrot.lane.b32.xlu0 %v4919, 96
  %v5211 = vpop.permute.xlu0 %5210
  %5212 = vrot.lane.b32.xlu0 %v4920, 96
  %v5213 = vpop.permute.xlu0 %5212
  %5214 = vrot.lane.b32.xlu0 %v4921, 96
  %v5215 = vpop.permute.xlu0 %5214
  %vm5216 = vcmask 785408
  %v5217 = vsel %vm5216, %v5021, %v5023
  %v5218 = vsel %vm5216, %v5023, %v5025
  %v5219 = vsel %vm5216, %v5025, %v5027
  %v5220 = vsel %vm5216, %v5027, %v5029
  %v5221 = vsel %vm5216, %v5029, %v5031
  %v5222 = vsel %vm5216, %v5031, %v5033
  %v5223 = vsel %vm5216, %v5035, %v5037
  %v5224 = vsel %vm5216, %v5037, %v5039
  %v5225 = vsel %vm5216, %v5039, %v5041
  %v5226 = vsel %vm5216, %v5041, %v5043
  %v5227 = vsel %vm5216, %v5043, %v5045
  %v5228 = vsel %vm5216, %v5045, %v5047
  %v5229 = vsel %vm5216, %v5049, %v5051
  %v5230 = vsel %vm5216, %v5051, %v5053
  %v5231 = vsel %vm5216, %v5053, %v5055
  %v5232 = vsel %vm5216, %v5055, %v5057
  %v5233 = vsel %vm5216, %v5057, %v5059
  %v5234 = vsel %vm5216, %v5059, %v5061
  %v5235 = vsel %vm5216, %v5063, %v5065
  %v5236 = vsel %vm5216, %v5065, %v5067
  %v5237 = vsel %vm5216, %v5067, %v5069
  %v5238 = vsel %vm5216, %v5069, %v5071
  %v5239 = vsel %vm5216, %v5071, %v5073
  %v5240 = vsel %vm5216, %v5073, %v5075
  %v5241 = vsel %vm5216, %v5077, %v5079
  %v5242 = vsel %vm5216, %v5079, %v5081
  %v5243 = vsel %vm5216, %v5081, %v5083
  %v5244 = vsel %vm5216, %v5083, %v5085
  %v5245 = vsel %vm5216, %v5085, %v5087
  %v5246 = vsel %vm5216, %v5087, %v5089
  %v5247 = vsel %vm5216, %v5091, %v5093
  %v5248 = vsel %vm5216, %v5093, %v5095
  %v5249 = vsel %vm5216, %v5095, %v5097
  %v5250 = vsel %vm5216, %v5097, %v5099
  %v5251 = vsel %vm5216, %v5099, %v5101
  %v5252 = vsel %vm5216, %v5101, %v5103
  %v5253 = vsel %vm5216, %v5105, %v5107
  %v5254 = vsel %vm5216, %v5107, %v5109
  %v5255 = vsel %vm5216, %v5109, %v5111
  %v5256 = vsel %vm5216, %v5111, %v5113
  %v5257 = vsel %vm5216, %v5113, %v5115
  %v5258 = vsel %vm5216, %v5115, %v5117
  %v5259 = vsel %vm5216, %v5119, %v5121
  %v5260 = vsel %vm5216, %v5121, %v5123
  %v5261 = vsel %vm5216, %v5123, %v5125
  %v5262 = vsel %vm5216, %v5125, %v5127
  %v5263 = vsel %vm5216, %v5127, %v5129
  %v5264 = vsel %vm5216, %v5129, %v5131
  %v5265 = vsel %vm5216, %v5133, %v5135
  %v5266 = vsel %vm5216, %v5135, %v5137
  %v5267 = vsel %vm5216, %v5137, %v5139
  %v5268 = vsel %vm5216, %v5139, %v5141
  %v5269 = vsel %vm5216, %v5141, %v5143
  %v5270 = vsel %vm5216, %v5143, %v5145
  %v5271 = vsel %vm5216, %v5147, %v5149
  %v5272 = vsel %vm5216, %v5149, %v5151
  %v5273 = vsel %vm5216, %v5151, %v5153
  %v5274 = vsel %vm5216, %v5153, %v5155
  %v5275 = vsel %vm5216, %v5155, %v5157
  %v5276 = vsel %vm5216, %v5157, %v5159
  %v5277 = vsel %vm5216, %v5161, %v5163
  %v5278 = vsel %vm5216, %v5163, %v5165
  %v5279 = vsel %vm5216, %v5165, %v5167
  %v5280 = vsel %vm5216, %v5167, %v5169
  %v5281 = vsel %vm5216, %v5169, %v5171
  %v5282 = vsel %vm5216, %v5171, %v5173
  %v5283 = vsel %vm5216, %v5175, %v5177
  %v5284 = vsel %vm5216, %v5177, %v5179
  %v5285 = vsel %vm5216, %v5179, %v5181
  %v5286 = vsel %vm5216, %v5181, %v5183
  %v5287 = vsel %vm5216, %v5183, %v5185
  %v5288 = vsel %vm5216, %v5185, %v5187
  %v5289 = vsel %vm5216, %v5189, %v5191
  %v5290 = vsel %vm5216, %v5191, %v5193
  %v5291 = vsel %vm5216, %v5193, %v5195
  %v5292 = vsel %vm5216, %v5195, %v5197
  %v5293 = vsel %vm5216, %v5197, %v5199
  %v5294 = vsel %vm5216, %v5199, %v5201
  %v5295 = vsel %vm5216, %v5203, %v5205
  %v5296 = vsel %vm5216, %v5205, %v5207
  %v5297 = vsel %vm5216, %v5207, %v5209
  %v5298 = vsel %vm5216, %v5209, %v5211
  %v5299 = vsel %vm5216, %v5211, %v5213
  %v5300 = vsel %vm5216, %v5213, %v5215
  %v5413 = vsel %vm5216, %v5033, %v5021
  %v5414 = vsel %vm5216, %v5047, %v5035
  %v5415 = vsel %vm5216, %v5061, %v5049
  %v5416 = vsel %vm5216, %v5075, %v5063
  %v5417 = vsel %vm5216, %v5089, %v5077
  %v5418 = vsel %vm5216, %v5103, %v5091
  %v5419 = vsel %vm5216, %v5117, %v5105
  %v5420 = vsel %vm5216, %v5131, %v5119
  %v5421 = vsel %vm5216, %v5145, %v5133
  %v5422 = vsel %vm5216, %v5159, %v5147
  %v5423 = vsel %vm5216, %v5173, %v5161
  %v5424 = vsel %vm5216, %v5187, %v5175
  %v5425 = vsel %vm5216, %v5201, %v5189
  %v5426 = vsel %vm5216, %v5215, %v5203
  %v5427 = vmax.f32 %v4824, %v5217
  %v5428 = vmax.f32 %v4825, %v5218
  %v5429 = vmax.f32 %v4826, %v5219
  %v5430 = vmax.f32 %v4827, %v5220
  %v5431 = vmax.f32 %v4828, %v5221
  %v5432 = vmax.f32 %v4829, %v5222
  %v5433 = vmax.f32 %v4830, %v5413
  %v5434 = vmax.f32 %v4831, %v5223
  %v5435 = vmax.f32 %v4832, %v5224
  %v5436 = vmax.f32 %v4833, %v5225
  %v5437 = vmax.f32 %v4834, %v5226
  %v5438 = vmax.f32 %v4835, %v5227
  %v5439 = vmax.f32 %v4836, %v5228
  %v5440 = vmax.f32 %v4837, %v5414
  %v5441 = vmax.f32 %v4838, %v5229
  %v5442 = vmax.f32 %v4839, %v5230
  %v5443 = vmax.f32 %v4840, %v5231
  %v5444 = vmax.f32 %v4841, %v5232
  %v5445 = vmax.f32 %v4842, %v5233
  %v5446 = vmax.f32 %v4843, %v5234
  %v5447 = vmax.f32 %v4844, %v5415
  %v5448 = vmax.f32 %v4845, %v5235
  %v5449 = vmax.f32 %v4846, %v5236
  %v5450 = vmax.f32 %v4847, %v5237
  %v5451 = vmax.f32 %v4848, %v5238
  %v5452 = vmax.f32 %v4849, %v5239
  %v5453 = vmax.f32 %v4850, %v5240
  %v5454 = vmax.f32 %v4851, %v5416
  %v5455 = vmax.f32 %v4852, %v5241
  %v5456 = vmax.f32 %v4853, %v5242
  %v5457 = vmax.f32 %v4854, %v5243
  %v5458 = vmax.f32 %v4855, %v5244
  %v5459 = vmax.f32 %v4856, %v5245
  %v5460 = vmax.f32 %v4857, %v5246
  %v5461 = vmax.f32 %v4858, %v5417
  %v5462 = vmax.f32 %v4859, %v5247
  %v5463 = vmax.f32 %v4860, %v5248
  %v5464 = vmax.f32 %v4861, %v5249
  %v5465 = vmax.f32 %v4862, %v5250
  %v5466 = vmax.f32 %v4863, %v5251
  %v5467 = vmax.f32 %v4864, %v5252
  %v5468 = vmax.f32 %v4865, %v5418
  %v5469 = vmax.f32 %v4866, %v5253
  %v5470 = vmax.f32 %v4867, %v5254
  %v5471 = vmax.f32 %v4868, %v5255
  %v5472 = vmax.f32 %v4869, %v5256
  %v5473 = vmax.f32 %v4870, %v5257
  %v5474 = vmax.f32 %v4871, %v5258
  %v5475 = vmax.f32 %v4872, %v5419
  %v5476 = vmax.f32 %v4873, %v5259
  %v5477 = vmax.f32 %v4874, %v5260
  %v5478 = vmax.f32 %v4875, %v5261
  %v5479 = vmax.f32 %v4876, %v5262
  %v5480 = vmax.f32 %v4877, %v5263
  %v5481 = vmax.f32 %v4878, %v5264
  %v5482 = vmax.f32 %v4879, %v5420
  %v5483 = vmax.f32 %v4880, %v5265
  %v5484 = vmax.f32 %v4881, %v5266
  %v5485 = vmax.f32 %v4882, %v5267
  %v5486 = vmax.f32 %v4883, %v5268
  %v5487 = vmax.f32 %v4884, %v5269
  %v5488 = vmax.f32 %v4885, %v5270
  %v5489 = vmax.f32 %v4886, %v5421
  %v5490 = vmax.f32 %v4887, %v5271
  %v5491 = vmax.f32 %v4888, %v5272
  %v5492 = vmax.f32 %v4889, %v5273
  %v5493 = vmax.f32 %v4890, %v5274
  %v5494 = vmax.f32 %v4891, %v5275
  %v5495 = vmax.f32 %v4892, %v5276
  %v5496 = vmax.f32 %v4893, %v5422
  %v5497 = vmax.f32 %v4894, %v5277
  %v5498 = vmax.f32 %v4895, %v5278
  %v5499 = vmax.f32 %v4896, %v5279
  %v5500 = vmax.f32 %v4897, %v5280
  %v5501 = vmax.f32 %v4898, %v5281
  %v5502 = vmax.f32 %v4899, %v5282
  %v5503 = vmax.f32 %v4900, %v5423
  %v5504 = vmax.f32 %v4901, %v5283
  %v5505 = vmax.f32 %v4902, %v5284
  %v5506 = vmax.f32 %v4903, %v5285
  %v5507 = vmax.f32 %v4904, %v5286
  %v5508 = vmax.f32 %v4905, %v5287
  %v5509 = vmax.f32 %v4906, %v5288
  %v5510 = vmax.f32 %v4907, %v5424
  %v5511 = vmax.f32 %v4908, %v5289
  %v5512 = vmax.f32 %v4909, %v5290
  %v5513 = vmax.f32 %v4910, %v5291
  %v5514 = vmax.f32 %v4911, %v5292
  %v5515 = vmax.f32 %v4912, %v5293
  %v5516 = vmax.f32 %v4913, %v5294
  %v5517 = vmax.f32 %v4914, %v5425
  %v5518 = vmax.f32 %v4915, %v5295
  %v5519 = vmax.f32 %v4916, %v5296
  %v5520 = vmax.f32 %v4917, %v5297
  %v5521 = vmax.f32 %v4918, %v5298
  %v5522 = vmax.f32 %v4919, %v5299
  %v5523 = vmax.f32 %v4920, %v5300
  %v5524 = vmax.f32 %v4921, %v5426
  %v5525 = vld [vmem:[%s3] sm:$0xff]
  %v5526 = vld [vmem:[%s3 + $0x8] sm:$0xff]
  %v5527 = vld [vmem:[%s3 + $0x10] sm:$0xff]
  %v5528 = vld [vmem:[%s3 + $0x18] sm:$0xff]
  %v5529 = vld [vmem:[%s3 + $0x20] sm:$0xff]
  %v5530 = vld [vmem:[%s3 + $0x28] sm:$0xff]
  %v5531 = vld [vmem:[%s3 + $0x30] sm:$0xff]
  %v5532 = vld [vmem:[%s3 + $0x38] sm:$0x3]
  %v5533 = vld [vmem:[%s3 + $0x40] sm:$0x3]
  %v5534 = vld [vmem:[%s3 + $0x48] sm:$0x3]
  %v5535 = vld [vmem:[%s3 + $0x50] sm:$0x3]
  %v5536 = vld [vmem:[%s3 + $0x58] sm:$0x3]
  %v5537 = vld [vmem:[%s3 + $0x60] sm:$0x3]
  %v5538 = vld [vmem:[%s3 + $0x68] sm:$0x3]
  %v5539 = vld [vmem:[%s3 + $0x70] sm:$0xff]
  %v5540 = vld [vmem:[%s3 + $0x78] sm:$0xff]
  %v5541 = vld [vmem:[%s3 + $0x80] sm:$0xff]
  %v5542 = vld [vmem:[%s3 + $0x88] sm:$0xff]
  %v5543 = vld [vmem:[%s3 + $0x90] sm:$0xff]
  %v5544 = vld [vmem:[%s3 + $0x98] sm:$0xff]
  %v5545 = vld [vmem:[%s3 + $0xa0] sm:$0xff]
  %v5546 = vld [vmem:[%s3 + $0xa8] sm:$0x3]
  %v5547 = vld [vmem:[%s3 + $0xb0] sm:$0x3]
  %v5548 = vld [vmem:[%s3 + $0xb8] sm:$0x3]
  %v5549 = vld [vmem:[%s3 + $0xc0] sm:$0x3]
  %v5550 = vld [vmem:[%s3 + $0xc8] sm:$0x3]
  %v5551 = vld [vmem:[%s3 + $0xd0] sm:$0x3]
  %v5552 = vld [vmem:[%s3 + $0xd8] sm:$0x3]
  %v5553 = vld [vmem:[%s3 + $0xe0] sm:$0xff]
  %v5554 = vld [vmem:[%s3 + $0xe8] sm:$0xff]
  %v5555 = vld [vmem:[%s3 + $0xf0] sm:$0xff]
  %v5556 = vld [vmem:[%s3 + $0xf8] sm:$0xff]
  %v5557 = vld [vmem:[%s3 + $0x100] sm:$0xff]
  %v5558 = vld [vmem:[%s3 + $0x108] sm:$0xff]
  %v5559 = vld [vmem:[%s3 + $0x110] sm:$0xff]
  %v5560 = vld [vmem:[%s3 + $0x118] sm:$0x3]
  %v5561 = vld [vmem:[%s3 + $0x120] sm:$0x3]
  %v5562 = vld [vmem:[%s3 + $0x128] sm:$0x3]
  %v5563 = vld [vmem:[%s3 + $0x130] sm:$0x3]
  %v5564 = vld [vmem:[%s3 + $0x138] sm:$0x3]
  %v5565 = vld [vmem:[%s3 + $0x140] sm:$0x3]
  %v5566 = vld [vmem:[%s3 + $0x148] sm:$0x3]
  %v5567 = vld [vmem:[%s3 + $0x150] sm:$0xff]
  %v5568 = vld [vmem:[%s3 + $0x158] sm:$0xff]
  %v5569 = vld [vmem:[%s3 + $0x160] sm:$0xff]
  %v5570 = vld [vmem:[%s3 + $0x168] sm:$0xff]
  %v5571 = vld [vmem:[%s3 + $0x170] sm:$0xff]
  %v5572 = vld [vmem:[%s3 + $0x178] sm:$0xff]
  %v5573 = vld [vmem:[%s3 + $0x180] sm:$0xff]
  %v5574 = vld [vmem:[%s3 + $0x188] sm:$0x3]
  %v5575 = vld [vmem:[%s3 + $0x190] sm:$0x3]
  %v5576 = vld [vmem:[%s3 + $0x198] sm:$0x3]
  %v5577 = vld [vmem:[%s3 + $0x1a0] sm:$0x3]
  %v5578 = vld [vmem:[%s3 + $0x1a8] sm:$0x3]
  %v5579 = vld [vmem:[%s3 + $0x1b0] sm:$0x3]
  %v5580 = vld [vmem:[%s3 + $0x1b8] sm:$0x3]
  %v5581 = vld [vmem:[%s3 + $0x1c0] sm:$0xff]
  %v5582 = vld [vmem:[%s3 + $0x1c8] sm:$0xff]
  %v5583 = vld [vmem:[%s3 + $0x1d0] sm:$0xff]
  %v5584 = vld [vmem:[%s3 + $0x1d8] sm:$0xff]
  %v5585 = vld [vmem:[%s3 + $0x1e0] sm:$0xff]
  %v5586 = vld [vmem:[%s3 + $0x1e8] sm:$0xff]
  %v5587 = vld [vmem:[%s3 + $0x1f0] sm:$0xff]
  %v5588 = vld [vmem:[%s3 + $0x1f8] sm:$0x3]
  %v5589 = vld [vmem:[%s3 + $0x200] sm:$0x3]
  %v5590 = vld [vmem:[%s3 + $0x208] sm:$0x3]
  %v5591 = vld [vmem:[%s3 + $0x210] sm:$0x3]
  %v5592 = vld [vmem:[%s3 + $0x218] sm:$0x3]
  %v5593 = vld [vmem:[%s3 + $0x220] sm:$0x3]
  %v5594 = vld [vmem:[%s3 + $0x228] sm:$0x3]
  %v5595 = vld [vmem:[%s3 + $0x230] sm:$0xff]
  %v5596 = vld [vmem:[%s3 + $0x238] sm:$0xff]
  %v5597 = vld [vmem:[%s3 + $0x240] sm:$0xff]
  %v5598 = vld [vmem:[%s3 + $0x248] sm:$0xff]
  %v5599 = vld [vmem:[%s3 + $0x250] sm:$0xff]
  %v5600 = vld [vmem:[%s3 + $0x258] sm:$0xff]
  %v5601 = vld [vmem:[%s3 + $0x260] sm:$0xff]
  %v5602 = vld [vmem:[%s3 + $0x268] sm:$0x3]
  %v5603 = vld [vmem:[%s3 + $0x270] sm:$0x3]
  %v5604 = vld [vmem:[%s3 + $0x278] sm:$0x3]
  %v5605 = vld [vmem:[%s3 + $0x280] sm:$0x3]
  %v5606 = vld [vmem:[%s3 + $0x288] sm:$0x3]
  %v5607 = vld [vmem:[%s3 + $0x290] sm:$0x3]
  %v5608 = vld [vmem:[%s3 + $0x298] sm:$0x3]
  %v5609 = vld [vmem:[%s3 + $0x2a0] sm:$0xff]
  %v5610 = vld [vmem:[%s3 + $0x2a8] sm:$0xff]
  %v5611 = vld [vmem:[%s3 + $0x2b0] sm:$0xff]
  %v5612 = vld [vmem:[%s3 + $0x2b8] sm:$0xff]
  %v5613 = vld [vmem:[%s3 + $0x2c0] sm:$0xff]
  %v5614 = vld [vmem:[%s3 + $0x2c8] sm:$0xff]
  %v5615 = vld [vmem:[%s3 + $0x2d0] sm:$0xff]
  %v5616 = vld [vmem:[%s3 + $0x2d8] sm:$0x3]
  %v5617 = vld [vmem:[%s3 + $0x2e0] sm:$0x3]
  %v5618 = vld [vmem:[%s3 + $0x2e8] sm:$0x3]
  %v5619 = vld [vmem:[%s3 + $0x2f0] sm:$0x3]
  %v5620 = vld [vmem:[%s3 + $0x2f8] sm:$0x3]
  %v5621 = vld [vmem:[%s3 + $0x300] sm:$0x3]
  %v5622 = vld [vmem:[%s3 + $0x308] sm:$0x3]
  %v5623 = vld [vmem:[%s3 + $0x310] sm:$0xff]
  %v5624 = vld [vmem:[%s3 + $0x318] sm:$0xff]
  %v5625 = vld [vmem:[%s3 + $0x320] sm:$0xff]
  %v5626 = vld [vmem:[%s3 + $0x328] sm:$0xff]
  %v5627 = vld [vmem:[%s3 + $0x330] sm:$0xff]
  %v5628 = vld [vmem:[%s3 + $0x338] sm:$0xff]
  %v5629 = vld [vmem:[%s3 + $0x340] sm:$0xff]
  %v5630 = vld [vmem:[%s3 + $0x348] sm:$0x3]
  %v5631 = vld [vmem:[%s3 + $0x350] sm:$0x3]
  %v5632 = vld [vmem:[%s3 + $0x358] sm:$0x3]
  %v5633 = vld [vmem:[%s3 + $0x360] sm:$0x3]
  %v5634 = vld [vmem:[%s3 + $0x368] sm:$0x3]
  %v5635 = vld [vmem:[%s3 + $0x370] sm:$0x3]
  %v5636 = vld [vmem:[%s3 + $0x378] sm:$0x3]
  %v5637 = vld [vmem:[%s3 + $0x380] sm:$0xff]
  %v5638 = vld [vmem:[%s3 + $0x388] sm:$0xff]
  %v5639 = vld [vmem:[%s3 + $0x390] sm:$0xff]
  %v5640 = vld [vmem:[%s3 + $0x398] sm:$0xff]
  %v5641 = vld [vmem:[%s3 + $0x3a0] sm:$0xff]
  %v5642 = vld [vmem:[%s3 + $0x3a8] sm:$0xff]
  %v5643 = vld [vmem:[%s3 + $0x3b0] sm:$0xff]
  %v5644 = vld [vmem:[%s3 + $0x3b8] sm:$0x3]
  %v5645 = vld [vmem:[%s3 + $0x3c0] sm:$0x3]
  %v5646 = vld [vmem:[%s3 + $0x3c8] sm:$0x3]
  %v5647 = vld [vmem:[%s3 + $0x3d0] sm:$0x3]
  %v5648 = vld [vmem:[%s3 + $0x3d8] sm:$0x3]
  %v5649 = vld [vmem:[%s3 + $0x3e0] sm:$0x3]
  %v5650 = vld [vmem:[%s3 + $0x3e8] sm:$0x3]
  %v5651 = vld [vmem:[%s3 + $0x3f0] sm:$0xff]
  %v5652 = vld [vmem:[%s3 + $0x3f8] sm:$0xff]
  %v5653 = vld [vmem:[%s3 + $0x400] sm:$0xff]
  %v5654 = vld [vmem:[%s3 + $0x408] sm:$0xff]
  %v5655 = vld [vmem:[%s3 + $0x410] sm:$0xff]
  %v5656 = vld [vmem:[%s3 + $0x418] sm:$0xff]
  %v5657 = vld [vmem:[%s3 + $0x420] sm:$0xff]
  %v5658 = vld [vmem:[%s3 + $0x428] sm:$0x3]
  %v5659 = vld [vmem:[%s3 + $0x430] sm:$0x3]
  %v5660 = vld [vmem:[%s3 + $0x438] sm:$0x3]
  %v5661 = vld [vmem:[%s3 + $0x440] sm:$0x3]
  %v5662 = vld [vmem:[%s3 + $0x448] sm:$0x3]
  %v5663 = vld [vmem:[%s3 + $0x450] sm:$0x3]
  %v5664 = vld [vmem:[%s3 + $0x458] sm:$0x3]
  %v5665 = vld [vmem:[%s3 + $0x460] sm:$0xff]
  %v5666 = vld [vmem:[%s3 + $0x468] sm:$0xff]
  %v5667 = vld [vmem:[%s3 + $0x470] sm:$0xff]
  %v5668 = vld [vmem:[%s3 + $0x478] sm:$0xff]
  %v5669 = vld [vmem:[%s3 + $0x480] sm:$0xff]
  %v5670 = vld [vmem:[%s3 + $0x488] sm:$0xff]
  %v5671 = vld [vmem:[%s3 + $0x490] sm:$0xff]
  %v5672 = vld [vmem:[%s3 + $0x498] sm:$0x3]
  %v5673 = vld [vmem:[%s3 + $0x4a0] sm:$0x3]
  %v5674 = vld [vmem:[%s3 + $0x4a8] sm:$0x3]
  %v5675 = vld [vmem:[%s3 + $0x4b0] sm:$0x3]
  %v5676 = vld [vmem:[%s3 + $0x4b8] sm:$0x3]
  %v5677 = vld [vmem:[%s3 + $0x4c0] sm:$0x3]
  %v5678 = vld [vmem:[%s3 + $0x4c8] sm:$0x3]
  %v5679 = vld [vmem:[%s3 + $0x4d0] sm:$0xff]
  %v5680 = vld [vmem:[%s3 + $0x4d8] sm:$0xff]
  %v5681 = vld [vmem:[%s3 + $0x4e0] sm:$0xff]
  %v5682 = vld [vmem:[%s3 + $0x4e8] sm:$0xff]
  %v5683 = vld [vmem:[%s3 + $0x4f0] sm:$0xff]
  %v5684 = vld [vmem:[%s3 + $0x4f8] sm:$0xff]
  %v5685 = vld [vmem:[%s3 + $0x500] sm:$0xff]
  %v5686 = vld [vmem:[%s3 + $0x508] sm:$0x3]
  %v5687 = vld [vmem:[%s3 + $0x510] sm:$0x3]
  %v5688 = vld [vmem:[%s3 + $0x518] sm:$0x3]
  %v5689 = vld [vmem:[%s3 + $0x520] sm:$0x3]
  %v5690 = vld [vmem:[%s3 + $0x528] sm:$0x3]
  %v5691 = vld [vmem:[%s3 + $0x530] sm:$0x3]
  %v5692 = vld [vmem:[%s3 + $0x538] sm:$0x3]
  %v5693 = vld [vmem:[%s3 + $0x540] sm:$0xff]
  %v5694 = vld [vmem:[%s3 + $0x548] sm:$0xff]
  %v5695 = vld [vmem:[%s3 + $0x550] sm:$0xff]
  %v5696 = vld [vmem:[%s3 + $0x558] sm:$0xff]
  %v5697 = vld [vmem:[%s3 + $0x560] sm:$0xff]
  %v5698 = vld [vmem:[%s3 + $0x568] sm:$0xff]
  %v5699 = vld [vmem:[%s3 + $0x570] sm:$0xff]
  %v5700 = vld [vmem:[%s3 + $0x578] sm:$0x3]
  %v5701 = vld [vmem:[%s3 + $0x580] sm:$0x3]
  %v5702 = vld [vmem:[%s3 + $0x588] sm:$0x3]
  %v5703 = vld [vmem:[%s3 + $0x590] sm:$0x3]
  %v5704 = vld [vmem:[%s3 + $0x598] sm:$0x3]
  %v5705 = vld [vmem:[%s3 + $0x5a0] sm:$0x3]
  %v5706 = vld [vmem:[%s3 + $0x5a8] sm:$0x3]
  %v5707 = vld [vmem:[%s3 + $0x5b0] sm:$0xff]
  %v5708 = vld [vmem:[%s3 + $0x5b8] sm:$0xff]
  %v5709 = vld [vmem:[%s3 + $0x5c0] sm:$0xff]
  %v5710 = vld [vmem:[%s3 + $0x5c8] sm:$0xff]
  %v5711 = vld [vmem:[%s3 + $0x5d0] sm:$0xff]
  %v5712 = vld [vmem:[%s3 + $0x5d8] sm:$0xff]
  %v5713 = vld [vmem:[%s3 + $0x5e0] sm:$0xff]
  %v5714 = vld [vmem:[%s3 + $0x5e8] sm:$0x3]
  %v5715 = vld [vmem:[%s3 + $0x5f0] sm:$0x3]
  %v5716 = vld [vmem:[%s3 + $0x5f8] sm:$0x3]
  %v5717 = vld [vmem:[%s3 + $0x600] sm:$0x3]
  %v5718 = vld [vmem:[%s3 + $0x608] sm:$0x3]
  %v5719 = vld [vmem:[%s3 + $0x610] sm:$0x3]
  %v5720 = vld [vmem:[%s3 + $0x618] sm:$0x3]
  %5721 = vmatpush.xpose.msra.mxu0 0.0
  %5722 = vmatpush.xpose.msra.mxu0 0.0
  %5723 = vmatpush.xpose.msra.mxu0 0.0
  %5724 = vmatpush.xpose.msra.mxu0 0.0
  %5725 = vmatpush.xpose.msra.mxu0 0.0
  %5726 = vmatpush.xpose.msra.mxu0 0.0
  %5727 = vmatpush.xpose.msra.mxu0 0.0
  %5728 = vmatpush.xpose.msra.mxu0 0.0
  %5729 = vmatpush.xpose.msra.mxu0 0.0
  %5730 = vmatpush.xpose.msra.mxu0 0.0
  %5731 = vmatpush.xpose.msra.mxu0 0.0
  %5732 = vmatpush.xpose.msra.mxu0 0.0
  %5733 = vmatpush.xpose.msra.mxu0 0.0
  %5734 = vmatpush.xpose.msra.mxu0 0.0
  %5735 = vmatpush.xpose.msra.mxu0 %v5532
  %5736 = vmatpush.xpose.msra.mxu0 %v5525
  %5737 = vmatmul.f32.gmra.mxu0 %v5427
  %v5738 = vpop.f32.mrf.mxu0
  %v5739 = vadd.f32 0.0, %v5738
  %5740 = vdwg.mxu0
  %5741 = vmatpush.xpose.msra.mxu0 0.0
  %5742 = vmatpush.xpose.msra.mxu0 0.0
  %5743 = vmatpush.xpose.msra.mxu0 0.0
  %5744 = vmatpush.xpose.msra.mxu0 0.0
  %5745 = vmatpush.xpose.msra.mxu0 0.0
  %5746 = vmatpush.xpose.msra.mxu0 0.0
  %5747 = vmatpush.xpose.msra.mxu0 0.0
  %5748 = vmatpush.xpose.msra.mxu0 0.0
  %5749 = vmatpush.xpose.msra.mxu0 0.0
  %5750 = vmatpush.xpose.msra.mxu0 0.0
  %5751 = vmatpush.xpose.msra.mxu0 0.0
  %5752 = vmatpush.xpose.msra.mxu0 0.0
  %5753 = vmatpush.xpose.msra.mxu0 0.0
  %5754 = vmatpush.xpose.msra.mxu0 0.0
  %5755 = vmatpush.xpose.msra.mxu0 %v5533
  %5756 = vmatpush.xpose.msra.mxu0 %v5526
  %5757 = vmatmul.f32.gmra.mxu0 %v5428
  %v5758 = vpop.f32.mrf.mxu0
  %v5759 = vadd.f32 %v5739, %v5758
  %5760 = vdwg.mxu0
  %5761 = vmatpush.xpose.msra.mxu0 0.0
  %5762 = vmatpush.xpose.msra.mxu0 0.0
  %5763 = vmatpush.xpose.msra.mxu0 0.0
  %5764 = vmatpush.xpose.msra.mxu0 0.0
  %5765 = vmatpush.xpose.msra.mxu0 0.0
  %5766 = vmatpush.xpose.msra.mxu0 0.0
  %5767 = vmatpush.xpose.msra.mxu0 0.0
  %5768 = vmatpush.xpose.msra.mxu0 0.0
  %5769 = vmatpush.xpose.msra.mxu0 0.0
  %5770 = vmatpush.xpose.msra.mxu0 0.0
  %5771 = vmatpush.xpose.msra.mxu0 0.0
  %5772 = vmatpush.xpose.msra.mxu0 0.0
  %5773 = vmatpush.xpose.msra.mxu0 0.0
  %5774 = vmatpush.xpose.msra.mxu0 0.0
  %5775 = vmatpush.xpose.msra.mxu0 %v5534
  %5776 = vmatpush.xpose.msra.mxu0 %v5527
  %5777 = vmatmul.f32.gmra.mxu0 %v5429
  %v5778 = vpop.f32.mrf.mxu0
  %v5779 = vadd.f32 %v5759, %v5778
  %5780 = vdwg.mxu0
  %5781 = vmatpush.xpose.msra.mxu0 0.0
  %5782 = vmatpush.xpose.msra.mxu0 0.0
  %5783 = vmatpush.xpose.msra.mxu0 0.0
  %5784 = vmatpush.xpose.msra.mxu0 0.0
  %5785 = vmatpush.xpose.msra.mxu0 0.0
  %5786 = vmatpush.xpose.msra.mxu0 0.0
  %5787 = vmatpush.xpose.msra.mxu0 0.0
  %5788 = vmatpush.xpose.msra.mxu0 0.0
  %5789 = vmatpush.xpose.msra.mxu0 0.0
  %5790 = vmatpush.xpose.msra.mxu0 0.0
  %5791 = vmatpush.xpose.msra.mxu0 0.0
  %5792 = vmatpush.xpose.msra.mxu0 0.0
  %5793 = vmatpush.xpose.msra.mxu0 0.0
  %5794 = vmatpush.xpose.msra.mxu0 0.0
  %5795 = vmatpush.xpose.msra.mxu0 %v5535
  %5796 = vmatpush.xpose.msra.mxu0 %v5528
  %5797 = vmatmul.f32.gmra.mxu0 %v5430
  %v5798 = vpop.f32.mrf.mxu0
  %v5799 = vadd.f32 %v5779, %v5798
  %5800 = vdwg.mxu0
  %5801 = vmatpush.xpose.msra.mxu0 0.0
  %5802 = vmatpush.xpose.msra.mxu0 0.0
  %5803 = vmatpush.xpose.msra.mxu0 0.0
  %5804 = vmatpush.xpose.msra.mxu0 0.0
  %5805 = vmatpush.xpose.msra.mxu0 0.0
  %5806 = vmatpush.xpose.msra.mxu0 0.0
  %5807 = vmatpush.xpose.msra.mxu0 0.0
  %5808 = vmatpush.xpose.msra.mxu0 0.0
  %5809 = vmatpush.xpose.msra.mxu0 0.0
  %5810 = vmatpush.xpose.msra.mxu0 0.0
  %5811 = vmatpush.xpose.msra.mxu0 0.0
  %5812 = vmatpush.xpose.msra.mxu0 0.0
  %5813 = vmatpush.xpose.msra.mxu0 0.0
  %5814 = vmatpush.xpose.msra.mxu0 0.0
  %5815 = vmatpush.xpose.msra.mxu0 %v5536
  %5816 = vmatpush.xpose.msra.mxu0 %v5529
  %5817 = vmatmul.f32.gmra.mxu0 %v5431
  %v5818 = vpop.f32.mrf.mxu0
  %v5819 = vadd.f32 %v5799, %v5818
  %5820 = vdwg.mxu0
  %5821 = vmatpush.xpose.msra.mxu0 0.0
  %5822 = vmatpush.xpose.msra.mxu0 0.0
  %5823 = vmatpush.xpose.msra.mxu0 0.0
  %5824 = vmatpush.xpose.msra.mxu0 0.0
  %5825 = vmatpush.xpose.msra.mxu0 0.0
  %5826 = vmatpush.xpose.msra.mxu0 0.0
  %5827 = vmatpush.xpose.msra.mxu0 0.0
  %5828 = vmatpush.xpose.msra.mxu0 0.0
  %5829 = vmatpush.xpose.msra.mxu0 0.0
  %5830 = vmatpush.xpose.msra.mxu0 0.0
  %5831 = vmatpush.xpose.msra.mxu0 0.0
  %5832 = vmatpush.xpose.msra.mxu0 0.0
  %5833 = vmatpush.xpose.msra.mxu0 0.0
  %5834 = vmatpush.xpose.msra.mxu0 0.0
  %5835 = vmatpush.xpose.msra.mxu0 %v5537
  %5836 = vmatpush.xpose.msra.mxu0 %v5530
  %5837 = vmatmul.f32.gmra.mxu0 %v5432
  %v5838 = vpop.f32.mrf.mxu0
  %v5839 = vadd.f32 %v5819, %v5838
  %5840 = vdwg.mxu0
  %5841 = vmatpush.xpose.msra.mxu0 0.0
  %5842 = vmatpush.xpose.msra.mxu0 0.0
  %5843 = vmatpush.xpose.msra.mxu0 0.0
  %5844 = vmatpush.xpose.msra.mxu0 0.0
  %5845 = vmatpush.xpose.msra.mxu0 0.0
  %5846 = vmatpush.xpose.msra.mxu0 0.0
  %5847 = vmatpush.xpose.msra.mxu0 0.0
  %5848 = vmatpush.xpose.msra.mxu0 0.0
  %5849 = vmatpush.xpose.msra.mxu0 0.0
  %5850 = vmatpush.xpose.msra.mxu0 0.0
  %5851 = vmatpush.xpose.msra.mxu0 0.0
  %5852 = vmatpush.xpose.msra.mxu0 0.0
  %5853 = vmatpush.xpose.msra.mxu0 0.0
  %5854 = vmatpush.xpose.msra.mxu0 0.0
  %5855 = vmatpush.xpose.msra.mxu0 %v5538
  %5856 = vmatpush.xpose.msra.mxu0 %v5531
  %5857 = vmatmul.f32.gmra.mxu0 %v5433
  %v5858 = vpop.f32.mrf.mxu0
  %v5859 = vadd.f32 %v5839, %v5858
  %5860 = vdwg.mxu0
  %5861 = vmatpush.xpose.msra.mxu0 0.0
  %5862 = vmatpush.xpose.msra.mxu0 0.0
  %5863 = vmatpush.xpose.msra.mxu0 0.0
  %5864 = vmatpush.xpose.msra.mxu0 0.0
  %5865 = vmatpush.xpose.msra.mxu0 0.0
  %5866 = vmatpush.xpose.msra.mxu0 0.0
  %5867 = vmatpush.xpose.msra.mxu0 0.0
  %5868 = vmatpush.xpose.msra.mxu0 0.0
  %5869 = vmatpush.xpose.msra.mxu0 0.0
  %5870 = vmatpush.xpose.msra.mxu0 0.0
  %5871 = vmatpush.xpose.msra.mxu0 0.0
  %5872 = vmatpush.xpose.msra.mxu0 0.0
  %5873 = vmatpush.xpose.msra.mxu0 0.0
  %5874 = vmatpush.xpose.msra.mxu0 0.0
  %5875 = vmatpush.xpose.msra.mxu0 %v5546
  %5876 = vmatpush.xpose.msra.mxu0 %v5539
  %5877 = vmatmul.f32.gmra.mxu0 %v5434
  %v5878 = vpop.f32.mrf.mxu0
  %v5879 = vadd.f32 0.0, %v5878
  %5880 = vdwg.mxu0
  %5881 = vmatpush.xpose.msra.mxu0 0.0
  %5882 = vmatpush.xpose.msra.mxu0 0.0
  %5883 = vmatpush.xpose.msra.mxu0 0.0
  %5884 = vmatpush.xpose.msra.mxu0 0.0
  %5885 = vmatpush.xpose.msra.mxu0 0.0
  %5886 = vmatpush.xpose.msra.mxu0 0.0
  %5887 = vmatpush.xpose.msra.mxu0 0.0
  %5888 = vmatpush.xpose.msra.mxu0 0.0
  %5889 = vmatpush.xpose.msra.mxu0 0.0
  %5890 = vmatpush.xpose.msra.mxu0 0.0
  %5891 = vmatpush.xpose.msra.mxu0 0.0
  %5892 = vmatpush.xpose.msra.mxu0 0.0
  %5893 = vmatpush.xpose.msra.mxu0 0.0
  %5894 = vmatpush.xpose.msra.mxu0 0.0
  %5895 = vmatpush.xpose.msra.mxu0 %v5547
  %5896 = vmatpush.xpose.msra.mxu0 %v5540
  %5897 = vmatmul.f32.gmra.mxu0 %v5435
  %v5898 = vpop.f32.mrf.mxu0
  %v5899 = vadd.f32 %v5879, %v5898
  %5900 = vdwg.mxu0
  %5901 = vmatpush.xpose.msra.mxu0 0.0
  %5902 = vmatpush.xpose.msra.mxu0 0.0
  %5903 = vmatpush.xpose.msra.mxu0 0.0
  %5904 = vmatpush.xpose.msra.mxu0 0.0
  %5905 = vmatpush.xpose.msra.mxu0 0.0
  %5906 = vmatpush.xpose.msra.mxu0 0.0
  %5907 = vmatpush.xpose.msra.mxu0 0.0
  %5908 = vmatpush.xpose.msra.mxu0 0.0
  %5909 = vmatpush.xpose.msra.mxu0 0.0
  %5910 = vmatpush.xpose.msra.mxu0 0.0
  %5911 = vmatpush.xpose.msra.mxu0 0.0
  %5912 = vmatpush.xpose.msra.mxu0 0.0
  %5913 = vmatpush.xpose.msra.mxu0 0.0
  %5914 = vmatpush.xpose.msra.mxu0 0.0
  %5915 = vmatpush.xpose.msra.mxu0 %v5548
  %5916 = vmatpush.xpose.msra.mxu0 %v5541
  %5917 = vmatmul.f32.gmra.mxu0 %v5436
  %v5918 = vpop.f32.mrf.mxu0
  %v5919 = vadd.f32 %v5899, %v5918
  %5920 = vdwg.mxu0
  %5921 = vmatpush.xpose.msra.mxu0 0.0
  %5922 = vmatpush.xpose.msra.mxu0 0.0
  %5923 = vmatpush.xpose.msra.mxu0 0.0
  %5924 = vmatpush.xpose.msra.mxu0 0.0
  %5925 = vmatpush.xpose.msra.mxu0 0.0
  %5926 = vmatpush.xpose.msra.mxu0 0.0
  %5927 = vmatpush.xpose.msra.mxu0 0.0
  %5928 = vmatpush.xpose.msra.mxu0 0.0
  %5929 = vmatpush.xpose.msra.mxu0 0.0
  %5930 = vmatpush.xpose.msra.mxu0 0.0
  %5931 = vmatpush.xpose.msra.mxu0 0.0
  %5932 = vmatpush.xpose.msra.mxu0 0.0
  %5933 = vmatpush.xpose.msra.mxu0 0.0
  %5934 = vmatpush.xpose.msra.mxu0 0.0
  %5935 = vmatpush.xpose.msra.mxu0 %v5549
  %5936 = vmatpush.xpose.msra.mxu0 %v5542
  %5937 = vmatmul.f32.gmra.mxu0 %v5437
  %v5938 = vpop.f32.mrf.mxu0
  %v5939 = vadd.f32 %v5919, %v5938
  %5940 = vdwg.mxu0
  %5941 = vmatpush.xpose.msra.mxu0 0.0
  %5942 = vmatpush.xpose.msra.mxu0 0.0
  %5943 = vmatpush.xpose.msra.mxu0 0.0
  %5944 = vmatpush.xpose.msra.mxu0 0.0
  %5945 = vmatpush.xpose.msra.mxu0 0.0
  %5946 = vmatpush.xpose.msra.mxu0 0.0
  %5947 = vmatpush.xpose.msra.mxu0 0.0
  %5948 = vmatpush.xpose.msra.mxu0 0.0
  %5949 = vmatpush.xpose.msra.mxu0 0.0
  %5950 = vmatpush.xpose.msra.mxu0 0.0
  %5951 = vmatpush.xpose.msra.mxu0 0.0
  %5952 = vmatpush.xpose.msra.mxu0 0.0
  %5953 = vmatpush.xpose.msra.mxu0 0.0
  %5954 = vmatpush.xpose.msra.mxu0 0.0
  %5955 = vmatpush.xpose.msra.mxu0 %v5550
  %5956 = vmatpush.xpose.msra.mxu0 %v5543
  %5957 = vmatmul.f32.gmra.mxu0 %v5438
  %v5958 = vpop.f32.mrf.mxu0
  %v5959 = vadd.f32 %v5939, %v5958
  %5960 = vdwg.mxu0
  %5961 = vmatpush.xpose.msra.mxu0 0.0
  %5962 = vmatpush.xpose.msra.mxu0 0.0
  %5963 = vmatpush.xpose.msra.mxu0 0.0
  %5964 = vmatpush.xpose.msra.mxu0 0.0
  %5965 = vmatpush.xpose.msra.mxu0 0.0
  %5966 = vmatpush.xpose.msra.mxu0 0.0
  %5967 = vmatpush.xpose.msra.mxu0 0.0
  %5968 = vmatpush.xpose.msra.mxu0 0.0
  %5969 = vmatpush.xpose.msra.mxu0 0.0
  %5970 = vmatpush.xpose.msra.mxu0 0.0
  %5971 = vmatpush.xpose.msra.mxu0 0.0
  %5972 = vmatpush.xpose.msra.mxu0 0.0
  %5973 = vmatpush.xpose.msra.mxu0 0.0
  %5974 = vmatpush.xpose.msra.mxu0 0.0
  %5975 = vmatpush.xpose.msra.mxu0 %v5551
  %5976 = vmatpush.xpose.msra.mxu0 %v5544
  %5977 = vmatmul.f32.gmra.mxu0 %v5439
  %v5978 = vpop.f32.mrf.mxu0
  %v5979 = vadd.f32 %v5959, %v5978
  %5980 = vdwg.mxu0
  %5981 = vmatpush.xpose.msra.mxu0 0.0
  %5982 = vmatpush.xpose.msra.mxu0 0.0
  %5983 = vmatpush.xpose.msra.mxu0 0.0
  %5984 = vmatpush.xpose.msra.mxu0 0.0
  %5985 = vmatpush.xpose.msra.mxu0 0.0
  %5986 = vmatpush.xpose.msra.mxu0 0.0
  %5987 = vmatpush.xpose.msra.mxu0 0.0
  %5988 = vmatpush.xpose.msra.mxu0 0.0
  %5989 = vmatpush.xpose.msra.mxu0 0.0
  %5990 = vmatpush.xpose.msra.mxu0 0.0
  %5991 = vmatpush.xpose.msra.mxu0 0.0
  %5992 = vmatpush.xpose.msra.mxu0 0.0
  %5993 = vmatpush.xpose.msra.mxu0 0.0
  %5994 = vmatpush.xpose.msra.mxu0 0.0
  %5995 = vmatpush.xpose.msra.mxu0 %v5552
  %5996 = vmatpush.xpose.msra.mxu0 %v5545
  %5997 = vmatmul.f32.gmra.mxu0 %v5440
  %v5998 = vpop.f32.mrf.mxu0
  %v5999 = vadd.f32 %v5979, %v5998
  %6000 = vdwg.mxu0
  %6001 = vmatpush.xpose.msra.mxu0 0.0
  %6002 = vmatpush.xpose.msra.mxu0 0.0
  %6003 = vmatpush.xpose.msra.mxu0 0.0
  %6004 = vmatpush.xpose.msra.mxu0 0.0
  %6005 = vmatpush.xpose.msra.mxu0 0.0
  %6006 = vmatpush.xpose.msra.mxu0 0.0
  %6007 = vmatpush.xpose.msra.mxu0 0.0
  %6008 = vmatpush.xpose.msra.mxu0 0.0
  %6009 = vmatpush.xpose.msra.mxu0 0.0
  %6010 = vmatpush.xpose.msra.mxu0 0.0
  %6011 = vmatpush.xpose.msra.mxu0 0.0
  %6012 = vmatpush.xpose.msra.mxu0 0.0
  %6013 = vmatpush.xpose.msra.mxu0 0.0
  %6014 = vmatpush.xpose.msra.mxu0 0.0
  %6015 = vmatpush.xpose.msra.mxu0 %v5560
  %6016 = vmatpush.xpose.msra.mxu0 %v5553
  %6017 = vmatmul.f32.gmra.mxu0 %v5441
  %v6018 = vpop.f32.mrf.mxu0
  %v6019 = vadd.f32 0.0, %v6018
  %6020 = vdwg.mxu0
  %6021 = vmatpush.xpose.msra.mxu0 0.0
  %6022 = vmatpush.xpose.msra.mxu0 0.0
  %6023 = vmatpush.xpose.msra.mxu0 0.0
  %6024 = vmatpush.xpose.msra.mxu0 0.0
  %6025 = vmatpush.xpose.msra.mxu0 0.0
  %6026 = vmatpush.xpose.msra.mxu0 0.0
  %6027 = vmatpush.xpose.msra.mxu0 0.0
  %6028 = vmatpush.xpose.msra.mxu0 0.0
  %6029 = vmatpush.xpose.msra.mxu0 0.0
  %6030 = vmatpush.xpose.msra.mxu0 0.0
  %6031 = vmatpush.xpose.msra.mxu0 0.0
  %6032 = vmatpush.xpose.msra.mxu0 0.0
  %6033 = vmatpush.xpose.msra.mxu0 0.0
  %6034 = vmatpush.xpose.msra.mxu0 0.0
  %6035 = vmatpush.xpose.msra.mxu0 %v5561
  %6036 = vmatpush.xpose.msra.mxu0 %v5554
  %6037 = vmatmul.f32.gmra.mxu0 %v5442
  %v6038 = vpop.f32.mrf.mxu0
  %v6039 = vadd.f32 %v6019, %v6038
  %6040 = vdwg.mxu0
  %6041 = vmatpush.xpose.msra.mxu0 0.0
  %6042 = vmatpush.xpose.msra.mxu0 0.0
  %6043 = vmatpush.xpose.msra.mxu0 0.0
  %6044 = vmatpush.xpose.msra.mxu0 0.0
  %6045 = vmatpush.xpose.msra.mxu0 0.0
  %6046 = vmatpush.xpose.msra.mxu0 0.0
  %6047 = vmatpush.xpose.msra.mxu0 0.0
  %6048 = vmatpush.xpose.msra.mxu0 0.0
  %6049 = vmatpush.xpose.msra.mxu0 0.0
  %6050 = vmatpush.xpose.msra.mxu0 0.0
  %6051 = vmatpush.xpose.msra.mxu0 0.0
  %6052 = vmatpush.xpose.msra.mxu0 0.0
  %6053 = vmatpush.xpose.msra.mxu0 0.0
  %6054 = vmatpush.xpose.msra.mxu0 0.0
  %6055 = vmatpush.xpose.msra.mxu0 %v5562
  %6056 = vmatpush.xpose.msra.mxu0 %v5555
  %6057 = vmatmul.f32.gmra.mxu0 %v5443
  %v6058 = vpop.f32.mrf.mxu0
  %v6059 = vadd.f32 %v6039, %v6058
  %6060 = vdwg.mxu0
  %6061 = vmatpush.xpose.msra.mxu0 0.0
  %6062 = vmatpush.xpose.msra.mxu0 0.0
  %6063 = vmatpush.xpose.msra.mxu0 0.0
  %6064 = vmatpush.xpose.msra.mxu0 0.0
  %6065 = vmatpush.xpose.msra.mxu0 0.0
  %6066 = vmatpush.xpose.msra.mxu0 0.0
  %6067 = vmatpush.xpose.msra.mxu0 0.0
  %6068 = vmatpush.xpose.msra.mxu0 0.0
  %6069 = vmatpush.xpose.msra.mxu0 0.0
  %6070 = vmatpush.xpose.msra.mxu0 0.0
  %6071 = vmatpush.xpose.msra.mxu0 0.0
  %6072 = vmatpush.xpose.msra.mxu0 0.0
  %6073 = vmatpush.xpose.msra.mxu0 0.0
  %6074 = vmatpush.xpose.msra.mxu0 0.0
  %6075 = vmatpush.xpose.msra.mxu0 %v5563
  %6076 = vmatpush.xpose.msra.mxu0 %v5556
  %6077 = vmatmul.f32.gmra.mxu0 %v5444
  %v6078 = vpop.f32.mrf.mxu0
  %v6079 = vadd.f32 %v6059, %v6078
  %6080 = vdwg.mxu0
  %6081 = vmatpush.xpose.msra.mxu0 0.0
  %6082 = vmatpush.xpose.msra.mxu0 0.0
  %6083 = vmatpush.xpose.msra.mxu0 0.0
  %6084 = vmatpush.xpose.msra.mxu0 0.0
  %6085 = vmatpush.xpose.msra.mxu0 0.0
  %6086 = vmatpush.xpose.msra.mxu0 0.0
  %6087 = vmatpush.xpose.msra.mxu0 0.0
  %6088 = vmatpush.xpose.msra.mxu0 0.0
  %6089 = vmatpush.xpose.msra.mxu0 0.0
  %6090 = vmatpush.xpose.msra.mxu0 0.0
  %6091 = vmatpush.xpose.msra.mxu0 0.0
  %6092 = vmatpush.xpose.msra.mxu0 0.0
  %6093 = vmatpush.xpose.msra.mxu0 0.0
  %6094 = vmatpush.xpose.msra.mxu0 0.0
  %6095 = vmatpush.xpose.msra.mxu0 %v5564
  %6096 = vmatpush.xpose.msra.mxu0 %v5557
  %6097 = vmatmul.f32.gmra.mxu0 %v5445
  %v6098 = vpop.f32.mrf.mxu0
  %v6099 = vadd.f32 %v6079, %v6098
  %6100 = vdwg.mxu0
  %6101 = vmatpush.xpose.msra.mxu0 0.0
  %6102 = vmatpush.xpose.msra.mxu0 0.0
  %6103 = vmatpush.xpose.msra.mxu0 0.0
  %6104 = vmatpush.xpose.msra.mxu0 0.0
  %6105 = vmatpush.xpose.msra.mxu0 0.0
  %6106 = vmatpush.xpose.msra.mxu0 0.0
  %6107 = vmatpush.xpose.msra.mxu0 0.0
  %6108 = vmatpush.xpose.msra.mxu0 0.0
  %6109 = vmatpush.xpose.msra.mxu0 0.0
  %6110 = vmatpush.xpose.msra.mxu0 0.0
  %6111 = vmatpush.xpose.msra.mxu0 0.0
  %6112 = vmatpush.xpose.msra.mxu0 0.0
  %6113 = vmatpush.xpose.msra.mxu0 0.0
  %6114 = vmatpush.xpose.msra.mxu0 0.0
  %6115 = vmatpush.xpose.msra.mxu0 %v5565
  %6116 = vmatpush.xpose.msra.mxu0 %v5558
  %6117 = vmatmul.f32.gmra.mxu0 %v5446
  %v6118 = vpop.f32.mrf.mxu0
  %v6119 = vadd.f32 %v6099, %v6118
  %6120 = vdwg.mxu0
  %6121 = vmatpush.xpose.msra.mxu0 0.0
  %6122 = vmatpush.xpose.msra.mxu0 0.0
  %6123 = vmatpush.xpose.msra.mxu0 0.0
  %6124 = vmatpush.xpose.msra.mxu0 0.0
  %6125 = vmatpush.xpose.msra.mxu0 0.0
  %6126 = vmatpush.xpose.msra.mxu0 0.0
  %6127 = vmatpush.xpose.msra.mxu0 0.0
  %6128 = vmatpush.xpose.msra.mxu0 0.0
  %6129 = vmatpush.xpose.msra.mxu0 0.0
  %6130 = vmatpush.xpose.msra.mxu0 0.0
  %6131 = vmatpush.xpose.msra.mxu0 0.0
  %6132 = vmatpush.xpose.msra.mxu0 0.0
  %6133 = vmatpush.xpose.msra.mxu0 0.0
  %6134 = vmatpush.xpose.msra.mxu0 0.0
  %6135 = vmatpush.xpose.msra.mxu0 %v5566
  %6136 = vmatpush.xpose.msra.mxu0 %v5559
  %6137 = vmatmul.f32.gmra.mxu0 %v5447
  %v6138 = vpop.f32.mrf.mxu0
  %v6139 = vadd.f32 %v6119, %v6138
  %6140 = vdwg.mxu0
  %6141 = vmatpush.xpose.msra.mxu0 0.0
  %6142 = vmatpush.xpose.msra.mxu0 0.0
  %6143 = vmatpush.xpose.msra.mxu0 0.0
  %6144 = vmatpush.xpose.msra.mxu0 0.0
  %6145 = vmatpush.xpose.msra.mxu0 0.0
  %6146 = vmatpush.xpose.msra.mxu0 0.0
  %6147 = vmatpush.xpose.msra.mxu0 0.0
  %6148 = vmatpush.xpose.msra.mxu0 0.0
  %6149 = vmatpush.xpose.msra.mxu0 0.0
  %6150 = vmatpush.xpose.msra.mxu0 0.0
  %6151 = vmatpush.xpose.msra.mxu0 0.0
  %6152 = vmatpush.xpose.msra.mxu0 0.0
  %6153 = vmatpush.xpose.msra.mxu0 0.0
  %6154 = vmatpush.xpose.msra.mxu0 0.0
  %6155 = vmatpush.xpose.msra.mxu0 %v5574
  %6156 = vmatpush.xpose.msra.mxu0 %v5567
  %6157 = vmatmul.f32.gmra.mxu0 %v5448
  %v6158 = vpop.f32.mrf.mxu0
  %v6159 = vadd.f32 0.0, %v6158
  %6160 = vdwg.mxu0
  %6161 = vmatpush.xpose.msra.mxu0 0.0
  %6162 = vmatpush.xpose.msra.mxu0 0.0
  %6163 = vmatpush.xpose.msra.mxu0 0.0
  %6164 = vmatpush.xpose.msra.mxu0 0.0
  %6165 = vmatpush.xpose.msra.mxu0 0.0
  %6166 = vmatpush.xpose.msra.mxu0 0.0
  %6167 = vmatpush.xpose.msra.mxu0 0.0
  %6168 = vmatpush.xpose.msra.mxu0 0.0
  %6169 = vmatpush.xpose.msra.mxu0 0.0
  %6170 = vmatpush.xpose.msra.mxu0 0.0
  %6171 = vmatpush.xpose.msra.mxu0 0.0
  %6172 = vmatpush.xpose.msra.mxu0 0.0
  %6173 = vmatpush.xpose.msra.mxu0 0.0
  %6174 = vmatpush.xpose.msra.mxu0 0.0
  %6175 = vmatpush.xpose.msra.mxu0 %v5575
  %6176 = vmatpush.xpose.msra.mxu0 %v5568
  %6177 = vmatmul.f32.gmra.mxu0 %v5449
  %v6178 = vpop.f32.mrf.mxu0
  %v6179 = vadd.f32 %v6159, %v6178
  %6180 = vdwg.mxu0
  %6181 = vmatpush.xpose.msra.mxu0 0.0
  %6182 = vmatpush.xpose.msra.mxu0 0.0
  %6183 = vmatpush.xpose.msra.mxu0 0.0
  %6184 = vmatpush.xpose.msra.mxu0 0.0
  %6185 = vmatpush.xpose.msra.mxu0 0.0
  %6186 = vmatpush.xpose.msra.mxu0 0.0
  %6187 = vmatpush.xpose.msra.mxu0 0.0
  %6188 = vmatpush.xpose.msra.mxu0 0.0
  %6189 = vmatpush.xpose.msra.mxu0 0.0
  %6190 = vmatpush.xpose.msra.mxu0 0.0
  %6191 = vmatpush.xpose.msra.mxu0 0.0
  %6192 = vmatpush.xpose.msra.mxu0 0.0
  %6193 = vmatpush.xpose.msra.mxu0 0.0
  %6194 = vmatpush.xpose.msra.mxu0 0.0
  %6195 = vmatpush.xpose.msra.mxu0 %v5576
  %6196 = vmatpush.xpose.msra.mxu0 %v5569
  %6197 = vmatmul.f32.gmra.mxu0 %v5450
  %v6198 = vpop.f32.mrf.mxu0
  %v6199 = vadd.f32 %v6179, %v6198
  %6200 = vdwg.mxu0
  %6201 = vmatpush.xpose.msra.mxu0 0.0
  %6202 = vmatpush.xpose.msra.mxu0 0.0
  %6203 = vmatpush.xpose.msra.mxu0 0.0
  %6204 = vmatpush.xpose.msra.mxu0 0.0
  %6205 = vmatpush.xpose.msra.mxu0 0.0
  %6206 = vmatpush.xpose.msra.mxu0 0.0
  %6207 = vmatpush.xpose.msra.mxu0 0.0
  %6208 = vmatpush.xpose.msra.mxu0 0.0
  %6209 = vmatpush.xpose.msra.mxu0 0.0
  %6210 = vmatpush.xpose.msra.mxu0 0.0
  %6211 = vmatpush.xpose.msra.mxu0 0.0
  %6212 = vmatpush.xpose.msra.mxu0 0.0
  %6213 = vmatpush.xpose.msra.mxu0 0.0
  %6214 = vmatpush.xpose.msra.mxu0 0.0
  %6215 = vmatpush.xpose.msra.mxu0 %v5577
  %6216 = vmatpush.xpose.msra.mxu0 %v5570
  %6217 = vmatmul.f32.gmra.mxu0 %v5451
  %v6218 = vpop.f32.mrf.mxu0
  %v6219 = vadd.f32 %v6199, %v6218
  %6220 = vdwg.mxu0
  %6221 = vmatpush.xpose.msra.mxu0 0.0
  %6222 = vmatpush.xpose.msra.mxu0 0.0
  %6223 = vmatpush.xpose.msra.mxu0 0.0
  %6224 = vmatpush.xpose.msra.mxu0 0.0
  %6225 = vmatpush.xpose.msra.mxu0 0.0
  %6226 = vmatpush.xpose.msra.mxu0 0.0
  %6227 = vmatpush.xpose.msra.mxu0 0.0
  %6228 = vmatpush.xpose.msra.mxu0 0.0
  %6229 = vmatpush.xpose.msra.mxu0 0.0
  %6230 = vmatpush.xpose.msra.mxu0 0.0
  %6231 = vmatpush.xpose.msra.mxu0 0.0
  %6232 = vmatpush.xpose.msra.mxu0 0.0
  %6233 = vmatpush.xpose.msra.mxu0 0.0
  %6234 = vmatpush.xpose.msra.mxu0 0.0
  %6235 = vmatpush.xpose.msra.mxu0 %v5578
  %6236 = vmatpush.xpose.msra.mxu0 %v5571
  %6237 = vmatmul.f32.gmra.mxu0 %v5452
  %v6238 = vpop.f32.mrf.mxu0
  %v6239 = vadd.f32 %v6219, %v6238
  %6240 = vdwg.mxu0
  %6241 = vmatpush.xpose.msra.mxu0 0.0
  %6242 = vmatpush.xpose.msra.mxu0 0.0
  %6243 = vmatpush.xpose.msra.mxu0 0.0
  %6244 = vmatpush.xpose.msra.mxu0 0.0
  %6245 = vmatpush.xpose.msra.mxu0 0.0
  %6246 = vmatpush.xpose.msra.mxu0 0.0
  %6247 = vmatpush.xpose.msra.mxu0 0.0
  %6248 = vmatpush.xpose.msra.mxu0 0.0
  %6249 = vmatpush.xpose.msra.mxu0 0.0
  %6250 = vmatpush.xpose.msra.mxu0 0.0
  %6251 = vmatpush.xpose.msra.mxu0 0.0
  %6252 = vmatpush.xpose.msra.mxu0 0.0
  %6253 = vmatpush.xpose.msra.mxu0 0.0
  %6254 = vmatpush.xpose.msra.mxu0 0.0
  %6255 = vmatpush.xpose.msra.mxu0 %v5579
  %6256 = vmatpush.xpose.msra.mxu0 %v5572
  %6257 = vmatmul.f32.gmra.mxu0 %v5453
  %v6258 = vpop.f32.mrf.mxu0
  %v6259 = vadd.f32 %v6239, %v6258
  %6260 = vdwg.mxu0
  %6261 = vmatpush.xpose.msra.mxu0 0.0
  %6262 = vmatpush.xpose.msra.mxu0 0.0
  %6263 = vmatpush.xpose.msra.mxu0 0.0
  %6264 = vmatpush.xpose.msra.mxu0 0.0
  %6265 = vmatpush.xpose.msra.mxu0 0.0
  %6266 = vmatpush.xpose.msra.mxu0 0.0
  %6267 = vmatpush.xpose.msra.mxu0 0.0
  %6268 = vmatpush.xpose.msra.mxu0 0.0
  %6269 = vmatpush.xpose.msra.mxu0 0.0
  %6270 = vmatpush.xpose.msra.mxu0 0.0
  %6271 = vmatpush.xpose.msra.mxu0 0.0
  %6272 = vmatpush.xpose.msra.mxu0 0.0
  %6273 = vmatpush.xpose.msra.mxu0 0.0
  %6274 = vmatpush.xpose.msra.mxu0 0.0
  %6275 = vmatpush.xpose.msra.mxu0 %v5580
  %6276 = vmatpush.xpose.msra.mxu0 %v5573
  %6277 = vmatmul.f32.gmra.mxu0 %v5454
  %v6278 = vpop.f32.mrf.mxu0
  %v6279 = vadd.f32 %v6259, %v6278
  %6280 = vdwg.mxu0
  %6281 = vmatpush.xpose.msra.mxu0 0.0
  %6282 = vmatpush.xpose.msra.mxu0 0.0
  %6283 = vmatpush.xpose.msra.mxu0 0.0
  %6284 = vmatpush.xpose.msra.mxu0 0.0
  %6285 = vmatpush.xpose.msra.mxu0 0.0
  %6286 = vmatpush.xpose.msra.mxu0 0.0
  %6287 = vmatpush.xpose.msra.mxu0 0.0
  %6288 = vmatpush.xpose.msra.mxu0 0.0
  %6289 = vmatpush.xpose.msra.mxu0 0.0
  %6290 = vmatpush.xpose.msra.mxu0 0.0
  %6291 = vmatpush.xpose.msra.mxu0 0.0
  %6292 = vmatpush.xpose.msra.mxu0 0.0
  %6293 = vmatpush.xpose.msra.mxu0 0.0
  %6294 = vmatpush.xpose.msra.mxu0 0.0
  %6295 = vmatpush.xpose.msra.mxu0 %v5588
  %6296 = vmatpush.xpose.msra.mxu0 %v5581
  %6297 = vmatmul.f32.gmra.mxu0 %v5455
  %v6298 = vpop.f32.mrf.mxu0
  %v6299 = vadd.f32 0.0, %v6298
  %6300 = vdwg.mxu0
  %6301 = vmatpush.xpose.msra.mxu0 0.0
  %6302 = vmatpush.xpose.msra.mxu0 0.0
  %6303 = vmatpush.xpose.msra.mxu0 0.0
  %6304 = vmatpush.xpose.msra.mxu0 0.0
  %6305 = vmatpush.xpose.msra.mxu0 0.0
  %6306 = vmatpush.xpose.msra.mxu0 0.0
  %6307 = vmatpush.xpose.msra.mxu0 0.0
  %6308 = vmatpush.xpose.msra.mxu0 0.0
  %6309 = vmatpush.xpose.msra.mxu0 0.0
  %6310 = vmatpush.xpose.msra.mxu0 0.0
  %6311 = vmatpush.xpose.msra.mxu0 0.0
  %6312 = vmatpush.xpose.msra.mxu0 0.0
  %6313 = vmatpush.xpose.msra.mxu0 0.0
  %6314 = vmatpush.xpose.msra.mxu0 0.0
  %6315 = vmatpush.xpose.msra.mxu0 %v5589
  %6316 = vmatpush.xpose.msra.mxu0 %v5582
  %6317 = vmatmul.f32.gmra.mxu0 %v5456
  %v6318 = vpop.f32.mrf.mxu0
  %v6319 = vadd.f32 %v6299, %v6318
  %6320 = vdwg.mxu0
  %6321 = vmatpush.xpose.msra.mxu0 0.0
  %6322 = vmatpush.xpose.msra.mxu0 0.0
  %6323 = vmatpush.xpose.msra.mxu0 0.0
  %6324 = vmatpush.xpose.msra.mxu0 0.0
  %6325 = vmatpush.xpose.msra.mxu0 0.0
  %6326 = vmatpush.xpose.msra.mxu0 0.0
  %6327 = vmatpush.xpose.msra.mxu0 0.0
  %6328 = vmatpush.xpose.msra.mxu0 0.0
  %6329 = vmatpush.xpose.msra.mxu0 0.0
  %6330 = vmatpush.xpose.msra.mxu0 0.0
  %6331 = vmatpush.xpose.msra.mxu0 0.0
  %6332 = vmatpush.xpose.msra.mxu0 0.0
  %6333 = vmatpush.xpose.msra.mxu0 0.0
  %6334 = vmatpush.xpose.msra.mxu0 0.0
  %6335 = vmatpush.xpose.msra.mxu0 %v5590
  %6336 = vmatpush.xpose.msra.mxu0 %v5583
  %6337 = vmatmul.f32.gmra.mxu0 %v5457
  %v6338 = vpop.f32.mrf.mxu0
  %v6339 = vadd.f32 %v6319, %v6338
  %6340 = vdwg.mxu0
  %6341 = vmatpush.xpose.msra.mxu0 0.0
  %6342 = vmatpush.xpose.msra.mxu0 0.0
  %6343 = vmatpush.xpose.msra.mxu0 0.0
  %6344 = vmatpush.xpose.msra.mxu0 0.0
  %6345 = vmatpush.xpose.msra.mxu0 0.0
  %6346 = vmatpush.xpose.msra.mxu0 0.0
  %6347 = vmatpush.xpose.msra.mxu0 0.0
  %6348 = vmatpush.xpose.msra.mxu0 0.0
  %6349 = vmatpush.xpose.msra.mxu0 0.0
  %6350 = vmatpush.xpose.msra.mxu0 0.0
  %6351 = vmatpush.xpose.msra.mxu0 0.0
  %6352 = vmatpush.xpose.msra.mxu0 0.0
  %6353 = vmatpush.xpose.msra.mxu0 0.0
  %6354 = vmatpush.xpose.msra.mxu0 0.0
  %6355 = vmatpush.xpose.msra.mxu0 %v5591
  %6356 = vmatpush.xpose.msra.mxu0 %v5584
  %6357 = vmatmul.f32.gmra.mxu0 %v5458
  %v6358 = vpop.f32.mrf.mxu0
  %v6359 = vadd.f32 %v6339, %v6358
  %6360 = vdwg.mxu0
  %6361 = vmatpush.xpose.msra.mxu0 0.0
  %6362 = vmatpush.xpose.msra.mxu0 0.0
  %6363 = vmatpush.xpose.msra.mxu0 0.0
  %6364 = vmatpush.xpose.msra.mxu0 0.0
  %6365 = vmatpush.xpose.msra.mxu0 0.0
  %6366 = vmatpush.xpose.msra.mxu0 0.0
  %6367 = vmatpush.xpose.msra.mxu0 0.0
  %6368 = vmatpush.xpose.msra.mxu0 0.0
  %6369 = vmatpush.xpose.msra.mxu0 0.0
  %6370 = vmatpush.xpose.msra.mxu0 0.0
  %6371 = vmatpush.xpose.msra.mxu0 0.0
  %6372 = vmatpush.xpose.msra.mxu0 0.0
  %6373 = vmatpush.xpose.msra.mxu0 0.0
  %6374 = vmatpush.xpose.msra.mxu0 0.0
  %6375 = vmatpush.xpose.msra.mxu0 %v5592
  %6376 = vmatpush.xpose.msra.mxu0 %v5585
  %6377 = vmatmul.f32.gmra.mxu0 %v5459
  %v6378 = vpop.f32.mrf.mxu0
  %v6379 = vadd.f32 %v6359, %v6378
  %6380 = vdwg.mxu0
  %6381 = vmatpush.xpose.msra.mxu0 0.0
  %6382 = vmatpush.xpose.msra.mxu0 0.0
  %6383 = vmatpush.xpose.msra.mxu0 0.0
  %6384 = vmatpush.xpose.msra.mxu0 0.0
  %6385 = vmatpush.xpose.msra.mxu0 0.0
  %6386 = vmatpush.xpose.msra.mxu0 0.0
  %6387 = vmatpush.xpose.msra.mxu0 0.0
  %6388 = vmatpush.xpose.msra.mxu0 0.0
  %6389 = vmatpush.xpose.msra.mxu0 0.0
  %6390 = vmatpush.xpose.msra.mxu0 0.0
  %6391 = vmatpush.xpose.msra.mxu0 0.0
  %6392 = vmatpush.xpose.msra.mxu0 0.0
  %6393 = vmatpush.xpose.msra.mxu0 0.0
  %6394 = vmatpush.xpose.msra.mxu0 0.0
  %6395 = vmatpush.xpose.msra.mxu0 %v5593
  %6396 = vmatpush.xpose.msra.mxu0 %v5586
  %6397 = vmatmul.f32.gmra.mxu0 %v5460
  %v6398 = vpop.f32.mrf.mxu0
  %v6399 = vadd.f32 %v6379, %v6398
  %6400 = vdwg.mxu0
  %6401 = vmatpush.xpose.msra.mxu0 0.0
  %6402 = vmatpush.xpose.msra.mxu0 0.0
  %6403 = vmatpush.xpose.msra.mxu0 0.0
  %6404 = vmatpush.xpose.msra.mxu0 0.0
  %6405 = vmatpush.xpose.msra.mxu0 0.0
  %6406 = vmatpush.xpose.msra.mxu0 0.0
  %6407 = vmatpush.xpose.msra.mxu0 0.0
  %6408 = vmatpush.xpose.msra.mxu0 0.0
  %6409 = vmatpush.xpose.msra.mxu0 0.0
  %6410 = vmatpush.xpose.msra.mxu0 0.0
  %6411 = vmatpush.xpose.msra.mxu0 0.0
  %6412 = vmatpush.xpose.msra.mxu0 0.0
  %6413 = vmatpush.xpose.msra.mxu0 0.0
  %6414 = vmatpush.xpose.msra.mxu0 0.0
  %6415 = vmatpush.xpose.msra.mxu0 %v5594
  %6416 = vmatpush.xpose.msra.mxu0 %v5587
  %6417 = vmatmul.f32.gmra.mxu0 %v5461
  %v6418 = vpop.f32.mrf.mxu0
  %v6419 = vadd.f32 %v6399, %v6418
  %6420 = vdwg.mxu0
  %6421 = vmatpush.xpose.msra.mxu0 0.0
  %6422 = vmatpush.xpose.msra.mxu0 0.0
  %6423 = vmatpush.xpose.msra.mxu0 0.0
  %6424 = vmatpush.xpose.msra.mxu0 0.0
  %6425 = vmatpush.xpose.msra.mxu0 0.0
  %6426 = vmatpush.xpose.msra.mxu0 0.0
  %6427 = vmatpush.xpose.msra.mxu0 0.0
  %6428 = vmatpush.xpose.msra.mxu0 0.0
  %6429 = vmatpush.xpose.msra.mxu0 0.0
  %6430 = vmatpush.xpose.msra.mxu0 0.0
  %6431 = vmatpush.xpose.msra.mxu0 0.0
  %6432 = vmatpush.xpose.msra.mxu0 0.0
  %6433 = vmatpush.xpose.msra.mxu0 0.0
  %6434 = vmatpush.xpose.msra.mxu0 0.0
  %6435 = vmatpush.xpose.msra.mxu0 %v5602
  %6436 = vmatpush.xpose.msra.mxu0 %v5595
  %6437 = vmatmul.f32.gmra.mxu0 %v5462
  %v6438 = vpop.f32.mrf.mxu0
  %v6439 = vadd.f32 0.0, %v6438
  %6440 = vdwg.mxu0
  %6441 = vmatpush.xpose.msra.mxu0 0.0
  %6442 = vmatpush.xpose.msra.mxu0 0.0
  %6443 = vmatpush.xpose.msra.mxu0 0.0
  %6444 = vmatpush.xpose.msra.mxu0 0.0
  %6445 = vmatpush.xpose.msra.mxu0 0.0
  %6446 = vmatpush.xpose.msra.mxu0 0.0
  %6447 = vmatpush.xpose.msra.mxu0 0.0
  %6448 = vmatpush.xpose.msra.mxu0 0.0
  %6449 = vmatpush.xpose.msra.mxu0 0.0
  %6450 = vmatpush.xpose.msra.mxu0 0.0
  %6451 = vmatpush.xpose.msra.mxu0 0.0
  %6452 = vmatpush.xpose.msra.mxu0 0.0
  %6453 = vmatpush.xpose.msra.mxu0 0.0
  %6454 = vmatpush.xpose.msra.mxu0 0.0
  %6455 = vmatpush.xpose.msra.mxu0 %v5603
  %6456 = vmatpush.xpose.msra.mxu0 %v5596
  %6457 = vmatmul.f32.gmra.mxu0 %v5463
  %v6458 = vpop.f32.mrf.mxu0
  %v6459 = vadd.f32 %v6439, %v6458
  %6460 = vdwg.mxu0
  %6461 = vmatpush.xpose.msra.mxu0 0.0
  %6462 = vmatpush.xpose.msra.mxu0 0.0
  %6463 = vmatpush.xpose.msra.mxu0 0.0
  %6464 = vmatpush.xpose.msra.mxu0 0.0
  %6465 = vmatpush.xpose.msra.mxu0 0.0
  %6466 = vmatpush.xpose.msra.mxu0 0.0
  %6467 = vmatpush.xpose.msra.mxu0 0.0
  %6468 = vmatpush.xpose.msra.mxu0 0.0
  %6469 = vmatpush.xpose.msra.mxu0 0.0
  %6470 = vmatpush.xpose.msra.mxu0 0.0
  %6471 = vmatpush.xpose.msra.mxu0 0.0
  %6472 = vmatpush.xpose.msra.mxu0 0.0
  %6473 = vmatpush.xpose.msra.mxu0 0.0
  %6474 = vmatpush.xpose.msra.mxu0 0.0
  %6475 = vmatpush.xpose.msra.mxu0 %v5604
  %6476 = vmatpush.xpose.msra.mxu0 %v5597
  %6477 = vmatmul.f32.gmra.mxu0 %v5464
  %v6478 = vpop.f32.mrf.mxu0
  %v6479 = vadd.f32 %v6459, %v6478
  %6480 = vdwg.mxu0
  %6481 = vmatpush.xpose.msra.mxu0 0.0
  %6482 = vmatpush.xpose.msra.mxu0 0.0
  %6483 = vmatpush.xpose.msra.mxu0 0.0
  %6484 = vmatpush.xpose.msra.mxu0 0.0
  %6485 = vmatpush.xpose.msra.mxu0 0.0
  %6486 = vmatpush.xpose.msra.mxu0 0.0
  %6487 = vmatpush.xpose.msra.mxu0 0.0
  %6488 = vmatpush.xpose.msra.mxu0 0.0
  %6489 = vmatpush.xpose.msra.mxu0 0.0
  %6490 = vmatpush.xpose.msra.mxu0 0.0
  %6491 = vmatpush.xpose.msra.mxu0 0.0
  %6492 = vmatpush.xpose.msra.mxu0 0.0
  %6493 = vmatpush.xpose.msra.mxu0 0.0
  %6494 = vmatpush.xpose.msra.mxu0 0.0
  %6495 = vmatpush.xpose.msra.mxu0 %v5605
  %6496 = vmatpush.xpose.msra.mxu0 %v5598
  %6497 = vmatmul.f32.gmra.mxu0 %v5465
  %v6498 = vpop.f32.mrf.mxu0
  %v6499 = vadd.f32 %v6479, %v6498
  %6500 = vdwg.mxu0
  %6501 = vmatpush.xpose.msra.mxu0 0.0
  %6502 = vmatpush.xpose.msra.mxu0 0.0
  %6503 = vmatpush.xpose.msra.mxu0 0.0
  %6504 = vmatpush.xpose.msra.mxu0 0.0
  %6505 = vmatpush.xpose.msra.mxu0 0.0
  %6506 = vmatpush.xpose.msra.mxu0 0.0
  %6507 = vmatpush.xpose.msra.mxu0 0.0
  %6508 = vmatpush.xpose.msra.mxu0 0.0
  %6509 = vmatpush.xpose.msra.mxu0 0.0
  %6510 = vmatpush.xpose.msra.mxu0 0.0
  %6511 = vmatpush.xpose.msra.mxu0 0.0
  %6512 = vmatpush.xpose.msra.mxu0 0.0
  %6513 = vmatpush.xpose.msra.mxu0 0.0
  %6514 = vmatpush.xpose.msra.mxu0 0.0
  %6515 = vmatpush.xpose.msra.mxu0 %v5606
  %6516 = vmatpush.xpose.msra.mxu0 %v5599
  %6517 = vmatmul.f32.gmra.mxu0 %v5466
  %v6518 = vpop.f32.mrf.mxu0
  %v6519 = vadd.f32 %v6499, %v6518
  %6520 = vdwg.mxu0
  %6521 = vmatpush.xpose.msra.mxu0 0.0
  %6522 = vmatpush.xpose.msra.mxu0 0.0
  %6523 = vmatpush.xpose.msra.mxu0 0.0
  %6524 = vmatpush.xpose.msra.mxu0 0.0
  %6525 = vmatpush.xpose.msra.mxu0 0.0
  %6526 = vmatpush.xpose.msra.mxu0 0.0
  %6527 = vmatpush.xpose.msra.mxu0 0.0
  %6528 = vmatpush.xpose.msra.mxu0 0.0
  %6529 = vmatpush.xpose.msra.mxu0 0.0
  %6530 = vmatpush.xpose.msra.mxu0 0.0
  %6531 = vmatpush.xpose.msra.mxu0 0.0
  %6532 = vmatpush.xpose.msra.mxu0 0.0
  %6533 = vmatpush.xpose.msra.mxu0 0.0
  %6534 = vmatpush.xpose.msra.mxu0 0.0
  %6535 = vmatpush.xpose.msra.mxu0 %v5607
  %6536 = vmatpush.xpose.msra.mxu0 %v5600
  %6537 = vmatmul.f32.gmra.mxu0 %v5467
  %v6538 = vpop.f32.mrf.mxu0
  %v6539 = vadd.f32 %v6519, %v6538
  %6540 = vdwg.mxu0
  %6541 = vmatpush.xpose.msra.mxu0 0.0
  %6542 = vmatpush.xpose.msra.mxu0 0.0
  %6543 = vmatpush.xpose.msra.mxu0 0.0
  %6544 = vmatpush.xpose.msra.mxu0 0.0
  %6545 = vmatpush.xpose.msra.mxu0 0.0
  %6546 = vmatpush.xpose.msra.mxu0 0.0
  %6547 = vmatpush.xpose.msra.mxu0 0.0
  %6548 = vmatpush.xpose.msra.mxu0 0.0
  %6549 = vmatpush.xpose.msra.mxu0 0.0
  %6550 = vmatpush.xpose.msra.mxu0 0.0
  %6551 = vmatpush.xpose.msra.mxu0 0.0
  %6552 = vmatpush.xpose.msra.mxu0 0.0
  %6553 = vmatpush.xpose.msra.mxu0 0.0
  %6554 = vmatpush.xpose.msra.mxu0 0.0
  %6555 = vmatpush.xpose.msra.mxu0 %v5608
  %6556 = vmatpush.xpose.msra.mxu0 %v5601
  %6557 = vmatmul.f32.gmra.mxu0 %v5468
  %v6558 = vpop.f32.mrf.mxu0
  %v6559 = vadd.f32 %v6539, %v6558
  %6560 = vdwg.mxu0
  %6561 = vmatpush.xpose.msra.mxu0 0.0
  %6562 = vmatpush.xpose.msra.mxu0 0.0
  %6563 = vmatpush.xpose.msra.mxu0 0.0
  %6564 = vmatpush.xpose.msra.mxu0 0.0
  %6565 = vmatpush.xpose.msra.mxu0 0.0
  %6566 = vmatpush.xpose.msra.mxu0 0.0
  %6567 = vmatpush.xpose.msra.mxu0 0.0
  %6568 = vmatpush.xpose.msra.mxu0 0.0
  %6569 = vmatpush.xpose.msra.mxu0 0.0
  %6570 = vmatpush.xpose.msra.mxu0 0.0
  %6571 = vmatpush.xpose.msra.mxu0 0.0
  %6572 = vmatpush.xpose.msra.mxu0 0.0
  %6573 = vmatpush.xpose.msra.mxu0 0.0
  %6574 = vmatpush.xpose.msra.mxu0 0.0
  %6575 = vmatpush.xpose.msra.mxu0 %v5616
  %6576 = vmatpush.xpose.msra.mxu0 %v5609
  %6577 = vmatmul.f32.gmra.mxu0 %v5469
  %v6578 = vpop.f32.mrf.mxu0
  %v6579 = vadd.f32 0.0, %v6578
  %6580 = vdwg.mxu0
  %6581 = vmatpush.xpose.msra.mxu0 0.0
  %6582 = vmatpush.xpose.msra.mxu0 0.0
  %6583 = vmatpush.xpose.msra.mxu0 0.0
  %6584 = vmatpush.xpose.msra.mxu0 0.0
  %6585 = vmatpush.xpose.msra.mxu0 0.0
  %6586 = vmatpush.xpose.msra.mxu0 0.0
  %6587 = vmatpush.xpose.msra.mxu0 0.0
  %6588 = vmatpush.xpose.msra.mxu0 0.0
  %6589 = vmatpush.xpose.msra.mxu0 0.0
  %6590 = vmatpush.xpose.msra.mxu0 0.0
  %6591 = vmatpush.xpose.msra.mxu0 0.0
  %6592 = vmatpush.xpose.msra.mxu0 0.0
  %6593 = vmatpush.xpose.msra.mxu0 0.0
  %6594 = vmatpush.xpose.msra.mxu0 0.0
  %6595 = vmatpush.xpose.msra.mxu0 %v5617
  %6596 = vmatpush.xpose.msra.mxu0 %v5610
  %6597 = vmatmul.f32.gmra.mxu0 %v5470
  %v6598 = vpop.f32.mrf.mxu0
  %v6599 = vadd.f32 %v6579, %v6598
  %6600 = vdwg.mxu0
  %6601 = vmatpush.xpose.msra.mxu0 0.0
  %6602 = vmatpush.xpose.msra.mxu0 0.0
  %6603 = vmatpush.xpose.msra.mxu0 0.0
  %6604 = vmatpush.xpose.msra.mxu0 0.0
  %6605 = vmatpush.xpose.msra.mxu0 0.0
  %6606 = vmatpush.xpose.msra.mxu0 0.0
  %6607 = vmatpush.xpose.msra.mxu0 0.0
  %6608 = vmatpush.xpose.msra.mxu0 0.0
  %6609 = vmatpush.xpose.msra.mxu0 0.0
  %6610 = vmatpush.xpose.msra.mxu0 0.0
  %6611 = vmatpush.xpose.msra.mxu0 0.0
  %6612 = vmatpush.xpose.msra.mxu0 0.0
  %6613 = vmatpush.xpose.msra.mxu0 0.0
  %6614 = vmatpush.xpose.msra.mxu0 0.0
  %6615 = vmatpush.xpose.msra.mxu0 %v5618
  %6616 = vmatpush.xpose.msra.mxu0 %v5611
  %6617 = vmatmul.f32.gmra.mxu0 %v5471
  %v6618 = vpop.f32.mrf.mxu0
  %v6619 = vadd.f32 %v6599, %v6618
  %6620 = vdwg.mxu0
  %6621 = vmatpush.xpose.msra.mxu0 0.0
  %6622 = vmatpush.xpose.msra.mxu0 0.0
  %6623 = vmatpush.xpose.msra.mxu0 0.0
  %6624 = vmatpush.xpose.msra.mxu0 0.0
  %6625 = vmatpush.xpose.msra.mxu0 0.0
  %6626 = vmatpush.xpose.msra.mxu0 0.0
  %6627 = vmatpush.xpose.msra.mxu0 0.0
  %6628 = vmatpush.xpose.msra.mxu0 0.0
  %6629 = vmatpush.xpose.msra.mxu0 0.0
  %6630 = vmatpush.xpose.msra.mxu0 0.0
  %6631 = vmatpush.xpose.msra.mxu0 0.0
  %6632 = vmatpush.xpose.msra.mxu0 0.0
  %6633 = vmatpush.xpose.msra.mxu0 0.0
  %6634 = vmatpush.xpose.msra.mxu0 0.0
  %6635 = vmatpush.xpose.msra.mxu0 %v5619
  %6636 = vmatpush.xpose.msra.mxu0 %v5612
  %6637 = vmatmul.f32.gmra.mxu0 %v5472
  %v6638 = vpop.f32.mrf.mxu0
  %v6639 = vadd.f32 %v6619, %v6638
  %6640 = vdwg.mxu0
  %6641 = vmatpush.xpose.msra.mxu0 0.0
  %6642 = vmatpush.xpose.msra.mxu0 0.0
  %6643 = vmatpush.xpose.msra.mxu0 0.0
  %6644 = vmatpush.xpose.msra.mxu0 0.0
  %6645 = vmatpush.xpose.msra.mxu0 0.0
  %6646 = vmatpush.xpose.msra.mxu0 0.0
  %6647 = vmatpush.xpose.msra.mxu0 0.0
  %6648 = vmatpush.xpose.msra.mxu0 0.0
  %6649 = vmatpush.xpose.msra.mxu0 0.0
  %6650 = vmatpush.xpose.msra.mxu0 0.0
  %6651 = vmatpush.xpose.msra.mxu0 0.0
  %6652 = vmatpush.xpose.msra.mxu0 0.0
  %6653 = vmatpush.xpose.msra.mxu0 0.0
  %6654 = vmatpush.xpose.msra.mxu0 0.0
  %6655 = vmatpush.xpose.msra.mxu0 %v5620
  %6656 = vmatpush.xpose.msra.mxu0 %v5613
  %6657 = vmatmul.f32.gmra.mxu0 %v5473
  %v6658 = vpop.f32.mrf.mxu0
  %v6659 = vadd.f32 %v6639, %v6658
  %6660 = vdwg.mxu0
  %6661 = vmatpush.xpose.msra.mxu0 0.0
  %6662 = vmatpush.xpose.msra.mxu0 0.0
  %6663 = vmatpush.xpose.msra.mxu0 0.0
  %6664 = vmatpush.xpose.msra.mxu0 0.0
  %6665 = vmatpush.xpose.msra.mxu0 0.0
  %6666 = vmatpush.xpose.msra.mxu0 0.0
  %6667 = vmatpush.xpose.msra.mxu0 0.0
  %6668 = vmatpush.xpose.msra.mxu0 0.0
  %6669 = vmatpush.xpose.msra.mxu0 0.0
  %6670 = vmatpush.xpose.msra.mxu0 0.0
  %6671 = vmatpush.xpose.msra.mxu0 0.0
  %6672 = vmatpush.xpose.msra.mxu0 0.0
  %6673 = vmatpush.xpose.msra.mxu0 0.0
  %6674 = vmatpush.xpose.msra.mxu0 0.0
  %6675 = vmatpush.xpose.msra.mxu0 %v5621
  %6676 = vmatpush.xpose.msra.mxu0 %v5614
  %6677 = vmatmul.f32.gmra.mxu0 %v5474
  %v6678 = vpop.f32.mrf.mxu0
  %v6679 = vadd.f32 %v6659, %v6678
  %6680 = vdwg.mxu0
  %6681 = vmatpush.xpose.msra.mxu0 0.0
  %6682 = vmatpush.xpose.msra.mxu0 0.0
  %6683 = vmatpush.xpose.msra.mxu0 0.0
  %6684 = vmatpush.xpose.msra.mxu0 0.0
  %6685 = vmatpush.xpose.msra.mxu0 0.0
  %6686 = vmatpush.xpose.msra.mxu0 0.0
  %6687 = vmatpush.xpose.msra.mxu0 0.0
  %6688 = vmatpush.xpose.msra.mxu0 0.0
  %6689 = vmatpush.xpose.msra.mxu0 0.0
  %6690 = vmatpush.xpose.msra.mxu0 0.0
  %6691 = vmatpush.xpose.msra.mxu0 0.0
  %6692 = vmatpush.xpose.msra.mxu0 0.0
  %6693 = vmatpush.xpose.msra.mxu0 0.0
  %6694 = vmatpush.xpose.msra.mxu0 0.0
  %6695 = vmatpush.xpose.msra.mxu0 %v5622
  %6696 = vmatpush.xpose.msra.mxu0 %v5615
  %6697 = vmatmul.f32.gmra.mxu0 %v5475
  %v6698 = vpop.f32.mrf.mxu0
  %v6699 = vadd.f32 %v6679, %v6698
  %6700 = vdwg.mxu0
  %6701 = vmatpush.xpose.msra.mxu0 0.0
  %6702 = vmatpush.xpose.msra.mxu0 0.0
  %6703 = vmatpush.xpose.msra.mxu0 0.0
  %6704 = vmatpush.xpose.msra.mxu0 0.0
  %6705 = vmatpush.xpose.msra.mxu0 0.0
  %6706 = vmatpush.xpose.msra.mxu0 0.0
  %6707 = vmatpush.xpose.msra.mxu0 0.0
  %6708 = vmatpush.xpose.msra.mxu0 0.0
  %6709 = vmatpush.xpose.msra.mxu0 0.0
  %6710 = vmatpush.xpose.msra.mxu0 0.0
  %6711 = vmatpush.xpose.msra.mxu0 0.0
  %6712 = vmatpush.xpose.msra.mxu0 0.0
  %6713 = vmatpush.xpose.msra.mxu0 0.0
  %6714 = vmatpush.xpose.msra.mxu0 0.0
  %6715 = vmatpush.xpose.msra.mxu0 %v5630
  %6716 = vmatpush.xpose.msra.mxu0 %v5623
  %6717 = vmatmul.f32.gmra.mxu0 %v5476
  %v6718 = vpop.f32.mrf.mxu0
  %v6719 = vadd.f32 0.0, %v6718
  %6720 = vdwg.mxu0
  %6721 = vmatpush.xpose.msra.mxu0 0.0
  %6722 = vmatpush.xpose.msra.mxu0 0.0
  %6723 = vmatpush.xpose.msra.mxu0 0.0
  %6724 = vmatpush.xpose.msra.mxu0 0.0
  %6725 = vmatpush.xpose.msra.mxu0 0.0
  %6726 = vmatpush.xpose.msra.mxu0 0.0
  %6727 = vmatpush.xpose.msra.mxu0 0.0
  %6728 = vmatpush.xpose.msra.mxu0 0.0
  %6729 = vmatpush.xpose.msra.mxu0 0.0
  %6730 = vmatpush.xpose.msra.mxu0 0.0
  %6731 = vmatpush.xpose.msra.mxu0 0.0
  %6732 = vmatpush.xpose.msra.mxu0 0.0
  %6733 = vmatpush.xpose.msra.mxu0 0.0
  %6734 = vmatpush.xpose.msra.mxu0 0.0
  %6735 = vmatpush.xpose.msra.mxu0 %v5631
  %6736 = vmatpush.xpose.msra.mxu0 %v5624
  %6737 = vmatmul.f32.gmra.mxu0 %v5477
  %v6738 = vpop.f32.mrf.mxu0
  %v6739 = vadd.f32 %v6719, %v6738
  %6740 = vdwg.mxu0
  %6741 = vmatpush.xpose.msra.mxu0 0.0
  %6742 = vmatpush.xpose.msra.mxu0 0.0
  %6743 = vmatpush.xpose.msra.mxu0 0.0
  %6744 = vmatpush.xpose.msra.mxu0 0.0
  %6745 = vmatpush.xpose.msra.mxu0 0.0
  %6746 = vmatpush.xpose.msra.mxu0 0.0
  %6747 = vmatpush.xpose.msra.mxu0 0.0
  %6748 = vmatpush.xpose.msra.mxu0 0.0
  %6749 = vmatpush.xpose.msra.mxu0 0.0
  %6750 = vmatpush.xpose.msra.mxu0 0.0
  %6751 = vmatpush.xpose.msra.mxu0 0.0
  %6752 = vmatpush.xpose.msra.mxu0 0.0
  %6753 = vmatpush.xpose.msra.mxu0 0.0
  %6754 = vmatpush.xpose.msra.mxu0 0.0
  %6755 = vmatpush.xpose.msra.mxu0 %v5632
  %6756 = vmatpush.xpose.msra.mxu0 %v5625
  %6757 = vmatmul.f32.gmra.mxu0 %v5478
  %v6758 = vpop.f32.mrf.mxu0
  %v6759 = vadd.f32 %v6739, %v6758
  %6760 = vdwg.mxu0
  %6761 = vmatpush.xpose.msra.mxu0 0.0
  %6762 = vmatpush.xpose.msra.mxu0 0.0
  %6763 = vmatpush.xpose.msra.mxu0 0.0
  %6764 = vmatpush.xpose.msra.mxu0 0.0
  %6765 = vmatpush.xpose.msra.mxu0 0.0
  %6766 = vmatpush.xpose.msra.mxu0 0.0
  %6767 = vmatpush.xpose.msra.mxu0 0.0
  %6768 = vmatpush.xpose.msra.mxu0 0.0
  %6769 = vmatpush.xpose.msra.mxu0 0.0
  %6770 = vmatpush.xpose.msra.mxu0 0.0
  %6771 = vmatpush.xpose.msra.mxu0 0.0
  %6772 = vmatpush.xpose.msra.mxu0 0.0
  %6773 = vmatpush.xpose.msra.mxu0 0.0
  %6774 = vmatpush.xpose.msra.mxu0 0.0
  %6775 = vmatpush.xpose.msra.mxu0 %v5633
  %6776 = vmatpush.xpose.msra.mxu0 %v5626
  %6777 = vmatmul.f32.gmra.mxu0 %v5479
  %v6778 = vpop.f32.mrf.mxu0
  %v6779 = vadd.f32 %v6759, %v6778
  %6780 = vdwg.mxu0
  %6781 = vmatpush.xpose.msra.mxu0 0.0
  %6782 = vmatpush.xpose.msra.mxu0 0.0
  %6783 = vmatpush.xpose.msra.mxu0 0.0
  %6784 = vmatpush.xpose.msra.mxu0 0.0
  %6785 = vmatpush.xpose.msra.mxu0 0.0
  %6786 = vmatpush.xpose.msra.mxu0 0.0
  %6787 = vmatpush.xpose.msra.mxu0 0.0
  %6788 = vmatpush.xpose.msra.mxu0 0.0
  %6789 = vmatpush.xpose.msra.mxu0 0.0
  %6790 = vmatpush.xpose.msra.mxu0 0.0
  %6791 = vmatpush.xpose.msra.mxu0 0.0
  %6792 = vmatpush.xpose.msra.mxu0 0.0
  %6793 = vmatpush.xpose.msra.mxu0 0.0
  %6794 = vmatpush.xpose.msra.mxu0 0.0
  %6795 = vmatpush.xpose.msra.mxu0 %v5634
  %6796 = vmatpush.xpose.msra.mxu0 %v5627
  %6797 = vmatmul.f32.gmra.mxu0 %v5480
  %v6798 = vpop.f32.mrf.mxu0
  %v6799 = vadd.f32 %v6779, %v6798
  %6800 = vdwg.mxu0
  %6801 = vmatpush.xpose.msra.mxu0 0.0
  %6802 = vmatpush.xpose.msra.mxu0 0.0
  %6803 = vmatpush.xpose.msra.mxu0 0.0
  %6804 = vmatpush.xpose.msra.mxu0 0.0
  %6805 = vmatpush.xpose.msra.mxu0 0.0
  %6806 = vmatpush.xpose.msra.mxu0 0.0
  %6807 = vmatpush.xpose.msra.mxu0 0.0
  %6808 = vmatpush.xpose.msra.mxu0 0.0
  %6809 = vmatpush.xpose.msra.mxu0 0.0
  %6810 = vmatpush.xpose.msra.mxu0 0.0
  %6811 = vmatpush.xpose.msra.mxu0 0.0
  %6812 = vmatpush.xpose.msra.mxu0 0.0
  %6813 = vmatpush.xpose.msra.mxu0 0.0
  %6814 = vmatpush.xpose.msra.mxu0 0.0
  %6815 = vmatpush.xpose.msra.mxu0 %v5635
  %6816 = vmatpush.xpose.msra.mxu0 %v5628
  %6817 = vmatmul.f32.gmra.mxu0 %v5481
  %v6818 = vpop.f32.mrf.mxu0
  %v6819 = vadd.f32 %v6799, %v6818
  %6820 = vdwg.mxu0
  %6821 = vmatpush.xpose.msra.mxu0 0.0
  %6822 = vmatpush.xpose.msra.mxu0 0.0
  %6823 = vmatpush.xpose.msra.mxu0 0.0
  %6824 = vmatpush.xpose.msra.mxu0 0.0
  %6825 = vmatpush.xpose.msra.mxu0 0.0
  %6826 = vmatpush.xpose.msra.mxu0 0.0
  %6827 = vmatpush.xpose.msra.mxu0 0.0
  %6828 = vmatpush.xpose.msra.mxu0 0.0
  %6829 = vmatpush.xpose.msra.mxu0 0.0
  %6830 = vmatpush.xpose.msra.mxu0 0.0
  %6831 = vmatpush.xpose.msra.mxu0 0.0
  %6832 = vmatpush.xpose.msra.mxu0 0.0
  %6833 = vmatpush.xpose.msra.mxu0 0.0
  %6834 = vmatpush.xpose.msra.mxu0 0.0
  %6835 = vmatpush.xpose.msra.mxu0 %v5636
  %6836 = vmatpush.xpose.msra.mxu0 %v5629
  %6837 = vmatmul.f32.gmra.mxu0 %v5482
  %v6838 = vpop.f32.mrf.mxu0
  %v6839 = vadd.f32 %v6819, %v6838
  %6840 = vdwg.mxu0
  %6841 = vmatpush.xpose.msra.mxu0 0.0
  %6842 = vmatpush.xpose.msra.mxu0 0.0
  %6843 = vmatpush.xpose.msra.mxu0 0.0
  %6844 = vmatpush.xpose.msra.mxu0 0.0
  %6845 = vmatpush.xpose.msra.mxu0 0.0
  %6846 = vmatpush.xpose.msra.mxu0 0.0
  %6847 = vmatpush.xpose.msra.mxu0 0.0
  %6848 = vmatpush.xpose.msra.mxu0 0.0
  %6849 = vmatpush.xpose.msra.mxu0 0.0
  %6850 = vmatpush.xpose.msra.mxu0 0.0
  %6851 = vmatpush.xpose.msra.mxu0 0.0
  %6852 = vmatpush.xpose.msra.mxu0 0.0
  %6853 = vmatpush.xpose.msra.mxu0 0.0
  %6854 = vmatpush.xpose.msra.mxu0 0.0
  %6855 = vmatpush.xpose.msra.mxu0 %v5644
  %6856 = vmatpush.xpose.msra.mxu0 %v5637
  %6857 = vmatmul.f32.gmra.mxu0 %v5483
  %v6858 = vpop.f32.mrf.mxu0
  %v6859 = vadd.f32 0.0, %v6858
  %6860 = vdwg.mxu0
  %6861 = vmatpush.xpose.msra.mxu0 0.0
  %6862 = vmatpush.xpose.msra.mxu0 0.0
  %6863 = vmatpush.xpose.msra.mxu0 0.0
  %6864 = vmatpush.xpose.msra.mxu0 0.0
  %6865 = vmatpush.xpose.msra.mxu0 0.0
  %6866 = vmatpush.xpose.msra.mxu0 0.0
  %6867 = vmatpush.xpose.msra.mxu0 0.0
  %6868 = vmatpush.xpose.msra.mxu0 0.0
  %6869 = vmatpush.xpose.msra.mxu0 0.0
  %6870 = vmatpush.xpose.msra.mxu0 0.0
  %6871 = vmatpush.xpose.msra.mxu0 0.0
  %6872 = vmatpush.xpose.msra.mxu0 0.0
  %6873 = vmatpush.xpose.msra.mxu0 0.0
  %6874 = vmatpush.xpose.msra.mxu0 0.0
  %6875 = vmatpush.xpose.msra.mxu0 %v5645
  %6876 = vmatpush.xpose.msra.mxu0 %v5638
  %6877 = vmatmul.f32.gmra.mxu0 %v5484
  %v6878 = vpop.f32.mrf.mxu0
  %v6879 = vadd.f32 %v6859, %v6878
  %6880 = vdwg.mxu0
  %6881 = vmatpush.xpose.msra.mxu0 0.0
  %6882 = vmatpush.xpose.msra.mxu0 0.0
  %6883 = vmatpush.xpose.msra.mxu0 0.0
  %6884 = vmatpush.xpose.msra.mxu0 0.0
  %6885 = vmatpush.xpose.msra.mxu0 0.0
  %6886 = vmatpush.xpose.msra.mxu0 0.0
  %6887 = vmatpush.xpose.msra.mxu0 0.0
  %6888 = vmatpush.xpose.msra.mxu0 0.0
  %6889 = vmatpush.xpose.msra.mxu0 0.0
  %6890 = vmatpush.xpose.msra.mxu0 0.0
  %6891 = vmatpush.xpose.msra.mxu0 0.0
  %6892 = vmatpush.xpose.msra.mxu0 0.0
  %6893 = vmatpush.xpose.msra.mxu0 0.0
  %6894 = vmatpush.xpose.msra.mxu0 0.0
  %6895 = vmatpush.xpose.msra.mxu0 %v5646
  %6896 = vmatpush.xpose.msra.mxu0 %v5639
  %6897 = vmatmul.f32.gmra.mxu0 %v5485
  %v6898 = vpop.f32.mrf.mxu0
  %v6899 = vadd.f32 %v6879, %v6898
  %6900 = vdwg.mxu0
  %6901 = vmatpush.xpose.msra.mxu0 0.0
  %6902 = vmatpush.xpose.msra.mxu0 0.0
  %6903 = vmatpush.xpose.msra.mxu0 0.0
  %6904 = vmatpush.xpose.msra.mxu0 0.0
  %6905 = vmatpush.xpose.msra.mxu0 0.0
  %6906 = vmatpush.xpose.msra.mxu0 0.0
  %6907 = vmatpush.xpose.msra.mxu0 0.0
  %6908 = vmatpush.xpose.msra.mxu0 0.0
  %6909 = vmatpush.xpose.msra.mxu0 0.0
  %6910 = vmatpush.xpose.msra.mxu0 0.0
  %6911 = vmatpush.xpose.msra.mxu0 0.0
  %6912 = vmatpush.xpose.msra.mxu0 0.0
  %6913 = vmatpush.xpose.msra.mxu0 0.0
  %6914 = vmatpush.xpose.msra.mxu0 0.0
  %6915 = vmatpush.xpose.msra.mxu0 %v5647
  %6916 = vmatpush.xpose.msra.mxu0 %v5640
  %6917 = vmatmul.f32.gmra.mxu0 %v5486
  %v6918 = vpop.f32.mrf.mxu0
  %v6919 = vadd.f32 %v6899, %v6918
  %6920 = vdwg.mxu0
  %6921 = vmatpush.xpose.msra.mxu0 0.0
  %6922 = vmatpush.xpose.msra.mxu0 0.0
  %6923 = vmatpush.xpose.msra.mxu0 0.0
  %6924 = vmatpush.xpose.msra.mxu0 0.0
  %6925 = vmatpush.xpose.msra.mxu0 0.0
  %6926 = vmatpush.xpose.msra.mxu0 0.0
  %6927 = vmatpush.xpose.msra.mxu0 0.0
  %6928 = vmatpush.xpose.msra.mxu0 0.0
  %6929 = vmatpush.xpose.msra.mxu0 0.0
  %6930 = vmatpush.xpose.msra.mxu0 0.0
  %6931 = vmatpush.xpose.msra.mxu0 0.0
  %6932 = vmatpush.xpose.msra.mxu0 0.0
  %6933 = vmatpush.xpose.msra.mxu0 0.0
  %6934 = vmatpush.xpose.msra.mxu0 0.0
  %6935 = vmatpush.xpose.msra.mxu0 %v5648
  %6936 = vmatpush.xpose.msra.mxu0 %v5641
  %6937 = vmatmul.f32.gmra.mxu0 %v5487
  %v6938 = vpop.f32.mrf.mxu0
  %v6939 = vadd.f32 %v6919, %v6938
  %6940 = vdwg.mxu0
  %6941 = vmatpush.xpose.msra.mxu0 0.0
  %6942 = vmatpush.xpose.msra.mxu0 0.0
  %6943 = vmatpush.xpose.msra.mxu0 0.0
  %6944 = vmatpush.xpose.msra.mxu0 0.0
  %6945 = vmatpush.xpose.msra.mxu0 0.0
  %6946 = vmatpush.xpose.msra.mxu0 0.0
  %6947 = vmatpush.xpose.msra.mxu0 0.0
  %6948 = vmatpush.xpose.msra.mxu0 0.0
  %6949 = vmatpush.xpose.msra.mxu0 0.0
  %6950 = vmatpush.xpose.msra.mxu0 0.0
  %6951 = vmatpush.xpose.msra.mxu0 0.0
  %6952 = vmatpush.xpose.msra.mxu0 0.0
  %6953 = vmatpush.xpose.msra.mxu0 0.0
  %6954 = vmatpush.xpose.msra.mxu0 0.0
  %6955 = vmatpush.xpose.msra.mxu0 %v5649
  %6956 = vmatpush.xpose.msra.mxu0 %v5642
  %6957 = vmatmul.f32.gmra.mxu0 %v5488
  %v6958 = vpop.f32.mrf.mxu0
  %v6959 = vadd.f32 %v6939, %v6958
  %6960 = vdwg.mxu0
  %6961 = vmatpush.xpose.msra.mxu0 0.0
  %6962 = vmatpush.xpose.msra.mxu0 0.0
  %6963 = vmatpush.xpose.msra.mxu0 0.0
  %6964 = vmatpush.xpose.msra.mxu0 0.0
  %6965 = vmatpush.xpose.msra.mxu0 0.0
  %6966 = vmatpush.xpose.msra.mxu0 0.0
  %6967 = vmatpush.xpose.msra.mxu0 0.0
  %6968 = vmatpush.xpose.msra.mxu0 0.0
  %6969 = vmatpush.xpose.msra.mxu0 0.0
  %6970 = vmatpush.xpose.msra.mxu0 0.0
  %6971 = vmatpush.xpose.msra.mxu0 0.0
  %6972 = vmatpush.xpose.msra.mxu0 0.0
  %6973 = vmatpush.xpose.msra.mxu0 0.0
  %6974 = vmatpush.xpose.msra.mxu0 0.0
  %6975 = vmatpush.xpose.msra.mxu0 %v5650
  %6976 = vmatpush.xpose.msra.mxu0 %v5643
  %6977 = vmatmul.f32.gmra.mxu0 %v5489
  %v6978 = vpop.f32.mrf.mxu0
  %v6979 = vadd.f32 %v6959, %v6978
  %6980 = vdwg.mxu0
  %6981 = vmatpush.xpose.msra.mxu0 0.0
  %6982 = vmatpush.xpose.msra.mxu0 0.0
  %6983 = vmatpush.xpose.msra.mxu0 0.0
  %6984 = vmatpush.xpose.msra.mxu0 0.0
  %6985 = vmatpush.xpose.msra.mxu0 0.0
  %6986 = vmatpush.xpose.msra.mxu0 0.0
  %6987 = vmatpush.xpose.msra.mxu0 0.0
  %6988 = vmatpush.xpose.msra.mxu0 0.0
  %6989 = vmatpush.xpose.msra.mxu0 0.0
  %6990 = vmatpush.xpose.msra.mxu0 0.0
  %6991 = vmatpush.xpose.msra.mxu0 0.0
  %6992 = vmatpush.xpose.msra.mxu0 0.0
  %6993 = vmatpush.xpose.msra.mxu0 0.0
  %6994 = vmatpush.xpose.msra.mxu0 0.0
  %6995 = vmatpush.xpose.msra.mxu0 %v5658
  %6996 = vmatpush.xpose.msra.mxu0 %v5651
  %6997 = vmatmul.f32.gmra.mxu0 %v5490
  %v6998 = vpop.f32.mrf.mxu0
  %v6999 = vadd.f32 0.0, %v6998
  %7000 = vdwg.mxu0
  %7001 = vmatpush.xpose.msra.mxu0 0.0
  %7002 = vmatpush.xpose.msra.mxu0 0.0
  %7003 = vmatpush.xpose.msra.mxu0 0.0
  %7004 = vmatpush.xpose.msra.mxu0 0.0
  %7005 = vmatpush.xpose.msra.mxu0 0.0
  %7006 = vmatpush.xpose.msra.mxu0 0.0
  %7007 = vmatpush.xpose.msra.mxu0 0.0
  %7008 = vmatpush.xpose.msra.mxu0 0.0
  %7009 = vmatpush.xpose.msra.mxu0 0.0
  %7010 = vmatpush.xpose.msra.mxu0 0.0
  %7011 = vmatpush.xpose.msra.mxu0 0.0
  %7012 = vmatpush.xpose.msra.mxu0 0.0
  %7013 = vmatpush.xpose.msra.mxu0 0.0
  %7014 = vmatpush.xpose.msra.mxu0 0.0
  %7015 = vmatpush.xpose.msra.mxu0 %v5659
  %7016 = vmatpush.xpose.msra.mxu0 %v5652
  %7017 = vmatmul.f32.gmra.mxu0 %v5491
  %v7018 = vpop.f32.mrf.mxu0
  %v7019 = vadd.f32 %v6999, %v7018
  %7020 = vdwg.mxu0
  %7021 = vmatpush.xpose.msra.mxu0 0.0
  %7022 = vmatpush.xpose.msra.mxu0 0.0
  %7023 = vmatpush.xpose.msra.mxu0 0.0
  %7024 = vmatpush.xpose.msra.mxu0 0.0
  %7025 = vmatpush.xpose.msra.mxu0 0.0
  %7026 = vmatpush.xpose.msra.mxu0 0.0
  %7027 = vmatpush.xpose.msra.mxu0 0.0
  %7028 = vmatpush.xpose.msra.mxu0 0.0
  %7029 = vmatpush.xpose.msra.mxu0 0.0
  %7030 = vmatpush.xpose.msra.mxu0 0.0
  %7031 = vmatpush.xpose.msra.mxu0 0.0
  %7032 = vmatpush.xpose.msra.mxu0 0.0
  %7033 = vmatpush.xpose.msra.mxu0 0.0
  %7034 = vmatpush.xpose.msra.mxu0 0.0
  %7035 = vmatpush.xpose.msra.mxu0 %v5660
  %7036 = vmatpush.xpose.msra.mxu0 %v5653
  %7037 = vmatmul.f32.gmra.mxu0 %v5492
  %v7038 = vpop.f32.mrf.mxu0
  %v7039 = vadd.f32 %v7019, %v7038
  %7040 = vdwg.mxu0
  %7041 = vmatpush.xpose.msra.mxu0 0.0
  %7042 = vmatpush.xpose.msra.mxu0 0.0
  %7043 = vmatpush.xpose.msra.mxu0 0.0
  %7044 = vmatpush.xpose.msra.mxu0 0.0
  %7045 = vmatpush.xpose.msra.mxu0 0.0
  %7046 = vmatpush.xpose.msra.mxu0 0.0
  %7047 = vmatpush.xpose.msra.mxu0 0.0
  %7048 = vmatpush.xpose.msra.mxu0 0.0
  %7049 = vmatpush.xpose.msra.mxu0 0.0
  %7050 = vmatpush.xpose.msra.mxu0 0.0
  %7051 = vmatpush.xpose.msra.mxu0 0.0
  %7052 = vmatpush.xpose.msra.mxu0 0.0
  %7053 = vmatpush.xpose.msra.mxu0 0.0
  %7054 = vmatpush.xpose.msra.mxu0 0.0
  %7055 = vmatpush.xpose.msra.mxu0 %v5661
  %7056 = vmatpush.xpose.msra.mxu0 %v5654
  %7057 = vmatmul.f32.gmra.mxu0 %v5493
  %v7058 = vpop.f32.mrf.mxu0
  %v7059 = vadd.f32 %v7039, %v7058
  %7060 = vdwg.mxu0
  %7061 = vmatpush.xpose.msra.mxu0 0.0
  %7062 = vmatpush.xpose.msra.mxu0 0.0
  %7063 = vmatpush.xpose.msra.mxu0 0.0
  %7064 = vmatpush.xpose.msra.mxu0 0.0
  %7065 = vmatpush.xpose.msra.mxu0 0.0
  %7066 = vmatpush.xpose.msra.mxu0 0.0
  %7067 = vmatpush.xpose.msra.mxu0 0.0
  %7068 = vmatpush.xpose.msra.mxu0 0.0
  %7069 = vmatpush.xpose.msra.mxu0 0.0
  %7070 = vmatpush.xpose.msra.mxu0 0.0
  %7071 = vmatpush.xpose.msra.mxu0 0.0
  %7072 = vmatpush.xpose.msra.mxu0 0.0
  %7073 = vmatpush.xpose.msra.mxu0 0.0
  %7074 = vmatpush.xpose.msra.mxu0 0.0
  %7075 = vmatpush.xpose.msra.mxu0 %v5662
  %7076 = vmatpush.xpose.msra.mxu0 %v5655
  %7077 = vmatmul.f32.gmra.mxu0 %v5494
  %v7078 = vpop.f32.mrf.mxu0
  %v7079 = vadd.f32 %v7059, %v7078
  %7080 = vdwg.mxu0
  %7081 = vmatpush.xpose.msra.mxu0 0.0
  %7082 = vmatpush.xpose.msra.mxu0 0.0
  %7083 = vmatpush.xpose.msra.mxu0 0.0
  %7084 = vmatpush.xpose.msra.mxu0 0.0
  %7085 = vmatpush.xpose.msra.mxu0 0.0
  %7086 = vmatpush.xpose.msra.mxu0 0.0
  %7087 = vmatpush.xpose.msra.mxu0 0.0
  %7088 = vmatpush.xpose.msra.mxu0 0.0
  %7089 = vmatpush.xpose.msra.mxu0 0.0
  %7090 = vmatpush.xpose.msra.mxu0 0.0
  %7091 = vmatpush.xpose.msra.mxu0 0.0
  %7092 = vmatpush.xpose.msra.mxu0 0.0
  %7093 = vmatpush.xpose.msra.mxu0 0.0
  %7094 = vmatpush.xpose.msra.mxu0 0.0
  %7095 = vmatpush.xpose.msra.mxu0 %v5663
  %7096 = vmatpush.xpose.msra.mxu0 %v5656
  %7097 = vmatmul.f32.gmra.mxu0 %v5495
  %v7098 = vpop.f32.mrf.mxu0
  %v7099 = vadd.f32 %v7079, %v7098
  %7100 = vdwg.mxu0
  %7101 = vmatpush.xpose.msra.mxu0 0.0
  %7102 = vmatpush.xpose.msra.mxu0 0.0
  %7103 = vmatpush.xpose.msra.mxu0 0.0
  %7104 = vmatpush.xpose.msra.mxu0 0.0
  %7105 = vmatpush.xpose.msra.mxu0 0.0
  %7106 = vmatpush.xpose.msra.mxu0 0.0
  %7107 = vmatpush.xpose.msra.mxu0 0.0
  %7108 = vmatpush.xpose.msra.mxu0 0.0
  %7109 = vmatpush.xpose.msra.mxu0 0.0
  %7110 = vmatpush.xpose.msra.mxu0 0.0
  %7111 = vmatpush.xpose.msra.mxu0 0.0
  %7112 = vmatpush.xpose.msra.mxu0 0.0
  %7113 = vmatpush.xpose.msra.mxu0 0.0
  %7114 = vmatpush.xpose.msra.mxu0 0.0
  %7115 = vmatpush.xpose.msra.mxu0 %v5664
  %7116 = vmatpush.xpose.msra.mxu0 %v5657
  %7117 = vmatmul.f32.gmra.mxu0 %v5496
  %v7118 = vpop.f32.mrf.mxu0
  %v7119 = vadd.f32 %v7099, %v7118
  %7120 = vdwg.mxu0
  %7121 = vmatpush.xpose.msra.mxu0 0.0
  %7122 = vmatpush.xpose.msra.mxu0 0.0
  %7123 = vmatpush.xpose.msra.mxu0 0.0
  %7124 = vmatpush.xpose.msra.mxu0 0.0
  %7125 = vmatpush.xpose.msra.mxu0 0.0
  %7126 = vmatpush.xpose.msra.mxu0 0.0
  %7127 = vmatpush.xpose.msra.mxu0 0.0
  %7128 = vmatpush.xpose.msra.mxu0 0.0
  %7129 = vmatpush.xpose.msra.mxu0 0.0
  %7130 = vmatpush.xpose.msra.mxu0 0.0
  %7131 = vmatpush.xpose.msra.mxu0 0.0
  %7132 = vmatpush.xpose.msra.mxu0 0.0
  %7133 = vmatpush.xpose.msra.mxu0 0.0
  %7134 = vmatpush.xpose.msra.mxu0 0.0
  %7135 = vmatpush.xpose.msra.mxu0 %v5672
  %7136 = vmatpush.xpose.msra.mxu0 %v5665
  %7137 = vmatmul.f32.gmra.mxu0 %v5497
  %v7138 = vpop.f32.mrf.mxu0
  %v7139 = vadd.f32 0.0, %v7138
  %7140 = vdwg.mxu0
  %7141 = vmatpush.xpose.msra.mxu0 0.0
  %7142 = vmatpush.xpose.msra.mxu0 0.0
  %7143 = vmatpush.xpose.msra.mxu0 0.0
  %7144 = vmatpush.xpose.msra.mxu0 0.0
  %7145 = vmatpush.xpose.msra.mxu0 0.0
  %7146 = vmatpush.xpose.msra.mxu0 0.0
  %7147 = vmatpush.xpose.msra.mxu0 0.0
  %7148 = vmatpush.xpose.msra.mxu0 0.0
  %7149 = vmatpush.xpose.msra.mxu0 0.0
  %7150 = vmatpush.xpose.msra.mxu0 0.0
  %7151 = vmatpush.xpose.msra.mxu0 0.0
  %7152 = vmatpush.xpose.msra.mxu0 0.0
  %7153 = vmatpush.xpose.msra.mxu0 0.0
  %7154 = vmatpush.xpose.msra.mxu0 0.0
  %7155 = vmatpush.xpose.msra.mxu0 %v5673
  %7156 = vmatpush.xpose.msra.mxu0 %v5666
  %7157 = vmatmul.f32.gmra.mxu0 %v5498
  %v7158 = vpop.f32.mrf.mxu0
  %v7159 = vadd.f32 %v7139, %v7158
  %7160 = vdwg.mxu0
  %7161 = vmatpush.xpose.msra.mxu0 0.0
  %7162 = vmatpush.xpose.msra.mxu0 0.0
  %7163 = vmatpush.xpose.msra.mxu0 0.0
  %7164 = vmatpush.xpose.msra.mxu0 0.0
  %7165 = vmatpush.xpose.msra.mxu0 0.0
  %7166 = vmatpush.xpose.msra.mxu0 0.0
  %7167 = vmatpush.xpose.msra.mxu0 0.0
  %7168 = vmatpush.xpose.msra.mxu0 0.0
  %7169 = vmatpush.xpose.msra.mxu0 0.0
  %7170 = vmatpush.xpose.msra.mxu0 0.0
  %7171 = vmatpush.xpose.msra.mxu0 0.0
  %7172 = vmatpush.xpose.msra.mxu0 0.0
  %7173 = vmatpush.xpose.msra.mxu0 0.0
  %7174 = vmatpush.xpose.msra.mxu0 0.0
  %7175 = vmatpush.xpose.msra.mxu0 %v5674
  %7176 = vmatpush.xpose.msra.mxu0 %v5667
  %7177 = vmatmul.f32.gmra.mxu0 %v5499
  %v7178 = vpop.f32.mrf.mxu0
  %v7179 = vadd.f32 %v7159, %v7178
  %7180 = vdwg.mxu0
  %7181 = vmatpush.xpose.msra.mxu0 0.0
  %7182 = vmatpush.xpose.msra.mxu0 0.0
  %7183 = vmatpush.xpose.msra.mxu0 0.0
  %7184 = vmatpush.xpose.msra.mxu0 0.0
  %7185 = vmatpush.xpose.msra.mxu0 0.0
  %7186 = vmatpush.xpose.msra.mxu0 0.0
  %7187 = vmatpush.xpose.msra.mxu0 0.0
  %7188 = vmatpush.xpose.msra.mxu0 0.0
  %7189 = vmatpush.xpose.msra.mxu0 0.0
  %7190 = vmatpush.xpose.msra.mxu0 0.0
  %7191 = vmatpush.xpose.msra.mxu0 0.0
  %7192 = vmatpush.xpose.msra.mxu0 0.0
  %7193 = vmatpush.xpose.msra.mxu0 0.0
  %7194 = vmatpush.xpose.msra.mxu0 0.0
  %7195 = vmatpush.xpose.msra.mxu0 %v5675
  %7196 = vmatpush.xpose.msra.mxu0 %v5668
  %7197 = vmatmul.f32.gmra.mxu0 %v5500
  %v7198 = vpop.f32.mrf.mxu0
  %v7199 = vadd.f32 %v7179, %v7198
  %7200 = vdwg.mxu0
  %7201 = vmatpush.xpose.msra.mxu0 0.0
  %7202 = vmatpush.xpose.msra.mxu0 0.0
  %7203 = vmatpush.xpose.msra.mxu0 0.0
  %7204 = vmatpush.xpose.msra.mxu0 0.0
  %7205 = vmatpush.xpose.msra.mxu0 0.0
  %7206 = vmatpush.xpose.msra.mxu0 0.0
  %7207 = vmatpush.xpose.msra.mxu0 0.0
  %7208 = vmatpush.xpose.msra.mxu0 0.0
  %7209 = vmatpush.xpose.msra.mxu0 0.0
  %7210 = vmatpush.xpose.msra.mxu0 0.0
  %7211 = vmatpush.xpose.msra.mxu0 0.0
  %7212 = vmatpush.xpose.msra.mxu0 0.0
  %7213 = vmatpush.xpose.msra.mxu0 0.0
  %7214 = vmatpush.xpose.msra.mxu0 0.0
  %7215 = vmatpush.xpose.msra.mxu0 %v5676
  %7216 = vmatpush.xpose.msra.mxu0 %v5669
  %7217 = vmatmul.f32.gmra.mxu0 %v5501
  %v7218 = vpop.f32.mrf.mxu0
  %v7219 = vadd.f32 %v7199, %v7218
  %7220 = vdwg.mxu0
  %7221 = vmatpush.xpose.msra.mxu0 0.0
  %7222 = vmatpush.xpose.msra.mxu0 0.0
  %7223 = vmatpush.xpose.msra.mxu0 0.0
  %7224 = vmatpush.xpose.msra.mxu0 0.0
  %7225 = vmatpush.xpose.msra.mxu0 0.0
  %7226 = vmatpush.xpose.msra.mxu0 0.0
  %7227 = vmatpush.xpose.msra.mxu0 0.0
  %7228 = vmatpush.xpose.msra.mxu0 0.0
  %7229 = vmatpush.xpose.msra.mxu0 0.0
  %7230 = vmatpush.xpose.msra.mxu0 0.0
  %7231 = vmatpush.xpose.msra.mxu0 0.0
  %7232 = vmatpush.xpose.msra.mxu0 0.0
  %7233 = vmatpush.xpose.msra.mxu0 0.0
  %7234 = vmatpush.xpose.msra.mxu0 0.0
  %7235 = vmatpush.xpose.msra.mxu0 %v5677
  %7236 = vmatpush.xpose.msra.mxu0 %v5670
  %7237 = vmatmul.f32.gmra.mxu0 %v5502
  %v7238 = vpop.f32.mrf.mxu0
  %v7239 = vadd.f32 %v7219, %v7238
  %7240 = vdwg.mxu0
  %7241 = vmatpush.xpose.msra.mxu0 0.0
  %7242 = vmatpush.xpose.msra.mxu0 0.0
  %7243 = vmatpush.xpose.msra.mxu0 0.0
  %7244 = vmatpush.xpose.msra.mxu0 0.0
  %7245 = vmatpush.xpose.msra.mxu0 0.0
  %7246 = vmatpush.xpose.msra.mxu0 0.0
  %7247 = vmatpush.xpose.msra.mxu0 0.0
  %7248 = vmatpush.xpose.msra.mxu0 0.0
  %7249 = vmatpush.xpose.msra.mxu0 0.0
  %7250 = vmatpush.xpose.msra.mxu0 0.0
  %7251 = vmatpush.xpose.msra.mxu0 0.0
  %7252 = vmatpush.xpose.msra.mxu0 0.0
  %7253 = vmatpush.xpose.msra.mxu0 0.0
  %7254 = vmatpush.xpose.msra.mxu0 0.0
  %7255 = vmatpush.xpose.msra.mxu0 %v5678
  %7256 = vmatpush.xpose.msra.mxu0 %v5671
  %7257 = vmatmul.f32.gmra.mxu0 %v5503
  %v7258 = vpop.f32.mrf.mxu0
  %v7259 = vadd.f32 %v7239, %v7258
  %7260 = vdwg.mxu0
  %7261 = vmatpush.xpose.msra.mxu0 0.0
  %7262 = vmatpush.xpose.msra.mxu0 0.0
  %7263 = vmatpush.xpose.msra.mxu0 0.0
  %7264 = vmatpush.xpose.msra.mxu0 0.0
  %7265 = vmatpush.xpose.msra.mxu0 0.0
  %7266 = vmatpush.xpose.msra.mxu0 0.0
  %7267 = vmatpush.xpose.msra.mxu0 0.0
  %7268 = vmatpush.xpose.msra.mxu0 0.0
  %7269 = vmatpush.xpose.msra.mxu0 0.0
  %7270 = vmatpush.xpose.msra.mxu0 0.0
  %7271 = vmatpush.xpose.msra.mxu0 0.0
  %7272 = vmatpush.xpose.msra.mxu0 0.0
  %7273 = vmatpush.xpose.msra.mxu0 0.0
  %7274 = vmatpush.xpose.msra.mxu0 0.0
  %7275 = vmatpush.xpose.msra.mxu0 %v5686
  %7276 = vmatpush.xpose.msra.mxu0 %v5679
  %7277 = vmatmul.f32.gmra.mxu0 %v5504
  %v7278 = vpop.f32.mrf.mxu0
  %v7279 = vadd.f32 0.0, %v7278
  %7280 = vdwg.mxu0
  %7281 = vmatpush.xpose.msra.mxu0 0.0
  %7282 = vmatpush.xpose.msra.mxu0 0.0
  %7283 = vmatpush.xpose.msra.mxu0 0.0
  %7284 = vmatpush.xpose.msra.mxu0 0.0
  %7285 = vmatpush.xpose.msra.mxu0 0.0
  %7286 = vmatpush.xpose.msra.mxu0 0.0
  %7287 = vmatpush.xpose.msra.mxu0 0.0
  %7288 = vmatpush.xpose.msra.mxu0 0.0
  %7289 = vmatpush.xpose.msra.mxu0 0.0
  %7290 = vmatpush.xpose.msra.mxu0 0.0
  %7291 = vmatpush.xpose.msra.mxu0 0.0
  %7292 = vmatpush.xpose.msra.mxu0 0.0
  %7293 = vmatpush.xpose.msra.mxu0 0.0
  %7294 = vmatpush.xpose.msra.mxu0 0.0
  %7295 = vmatpush.xpose.msra.mxu0 %v5687
  %7296 = vmatpush.xpose.msra.mxu0 %v5680
  %7297 = vmatmul.f32.gmra.mxu0 %v5505
  %v7298 = vpop.f32.mrf.mxu0
  %v7299 = vadd.f32 %v7279, %v7298
  %7300 = vdwg.mxu0
  %7301 = vmatpush.xpose.msra.mxu0 0.0
  %7302 = vmatpush.xpose.msra.mxu0 0.0
  %7303 = vmatpush.xpose.msra.mxu0 0.0
  %7304 = vmatpush.xpose.msra.mxu0 0.0
  %7305 = vmatpush.xpose.msra.mxu0 0.0
  %7306 = vmatpush.xpose.msra.mxu0 0.0
  %7307 = vmatpush.xpose.msra.mxu0 0.0
  %7308 = vmatpush.xpose.msra.mxu0 0.0
  %7309 = vmatpush.xpose.msra.mxu0 0.0
  %7310 = vmatpush.xpose.msra.mxu0 0.0
  %7311 = vmatpush.xpose.msra.mxu0 0.0
  %7312 = vmatpush.xpose.msra.mxu0 0.0
  %7313 = vmatpush.xpose.msra.mxu0 0.0
  %7314 = vmatpush.xpose.msra.mxu0 0.0
  %7315 = vmatpush.xpose.msra.mxu0 %v5688
  %7316 = vmatpush.xpose.msra.mxu0 %v5681
  %7317 = vmatmul.f32.gmra.mxu0 %v5506
  %v7318 = vpop.f32.mrf.mxu0
  %v7319 = vadd.f32 %v7299, %v7318
  %7320 = vdwg.mxu0
  %7321 = vmatpush.xpose.msra.mxu0 0.0
  %7322 = vmatpush.xpose.msra.mxu0 0.0
  %7323 = vmatpush.xpose.msra.mxu0 0.0
  %7324 = vmatpush.xpose.msra.mxu0 0.0
  %7325 = vmatpush.xpose.msra.mxu0 0.0
  %7326 = vmatpush.xpose.msra.mxu0 0.0
  %7327 = vmatpush.xpose.msra.mxu0 0.0
  %7328 = vmatpush.xpose.msra.mxu0 0.0
  %7329 = vmatpush.xpose.msra.mxu0 0.0
  %7330 = vmatpush.xpose.msra.mxu0 0.0
  %7331 = vmatpush.xpose.msra.mxu0 0.0
  %7332 = vmatpush.xpose.msra.mxu0 0.0
  %7333 = vmatpush.xpose.msra.mxu0 0.0
  %7334 = vmatpush.xpose.msra.mxu0 0.0
  %7335 = vmatpush.xpose.msra.mxu0 %v5689
  %7336 = vmatpush.xpose.msra.mxu0 %v5682
  %7337 = vmatmul.f32.gmra.mxu0 %v5507
  %v7338 = vpop.f32.mrf.mxu0
  %v7339 = vadd.f32 %v7319, %v7338
  %7340 = vdwg.mxu0
  %7341 = vmatpush.xpose.msra.mxu0 0.0
  %7342 = vmatpush.xpose.msra.mxu0 0.0
  %7343 = vmatpush.xpose.msra.mxu0 0.0
  %7344 = vmatpush.xpose.msra.mxu0 0.0
  %7345 = vmatpush.xpose.msra.mxu0 0.0
  %7346 = vmatpush.xpose.msra.mxu0 0.0
  %7347 = vmatpush.xpose.msra.mxu0 0.0
  %7348 = vmatpush.xpose.msra.mxu0 0.0
  %7349 = vmatpush.xpose.msra.mxu0 0.0
  %7350 = vmatpush.xpose.msra.mxu0 0.0
  %7351 = vmatpush.xpose.msra.mxu0 0.0
  %7352 = vmatpush.xpose.msra.mxu0 0.0
  %7353 = vmatpush.xpose.msra.mxu0 0.0
  %7354 = vmatpush.xpose.msra.mxu0 0.0
  %7355 = vmatpush.xpose.msra.mxu0 %v5690
  %7356 = vmatpush.xpose.msra.mxu0 %v5683
  %7357 = vmatmul.f32.gmra.mxu0 %v5508
  %v7358 = vpop.f32.mrf.mxu0
  %v7359 = vadd.f32 %v7339, %v7358
  %7360 = vdwg.mxu0
  %7361 = vmatpush.xpose.msra.mxu0 0.0
  %7362 = vmatpush.xpose.msra.mxu0 0.0
  %7363 = vmatpush.xpose.msra.mxu0 0.0
  %7364 = vmatpush.xpose.msra.mxu0 0.0
  %7365 = vmatpush.xpose.msra.mxu0 0.0
  %7366 = vmatpush.xpose.msra.mxu0 0.0
  %7367 = vmatpush.xpose.msra.mxu0 0.0
  %7368 = vmatpush.xpose.msra.mxu0 0.0
  %7369 = vmatpush.xpose.msra.mxu0 0.0
  %7370 = vmatpush.xpose.msra.mxu0 0.0
  %7371 = vmatpush.xpose.msra.mxu0 0.0
  %7372 = vmatpush.xpose.msra.mxu0 0.0
  %7373 = vmatpush.xpose.msra.mxu0 0.0
  %7374 = vmatpush.xpose.msra.mxu0 0.0
  %7375 = vmatpush.xpose.msra.mxu0 %v5691
  %7376 = vmatpush.xpose.msra.mxu0 %v5684
  %7377 = vmatmul.f32.gmra.mxu0 %v5509
  %v7378 = vpop.f32.mrf.mxu0
  %v7379 = vadd.f32 %v7359, %v7378
  %7380 = vdwg.mxu0
  %7381 = vmatpush.xpose.msra.mxu0 0.0
  %7382 = vmatpush.xpose.msra.mxu0 0.0
  %7383 = vmatpush.xpose.msra.mxu0 0.0
  %7384 = vmatpush.xpose.msra.mxu0 0.0
  %7385 = vmatpush.xpose.msra.mxu0 0.0
  %7386 = vmatpush.xpose.msra.mxu0 0.0
  %7387 = vmatpush.xpose.msra.mxu0 0.0
  %7388 = vmatpush.xpose.msra.mxu0 0.0
  %7389 = vmatpush.xpose.msra.mxu0 0.0
  %7390 = vmatpush.xpose.msra.mxu0 0.0
  %7391 = vmatpush.xpose.msra.mxu0 0.0
  %7392 = vmatpush.xpose.msra.mxu0 0.0
  %7393 = vmatpush.xpose.msra.mxu0 0.0
  %7394 = vmatpush.xpose.msra.mxu0 0.0
  %7395 = vmatpush.xpose.msra.mxu0 %v5692
  %7396 = vmatpush.xpose.msra.mxu0 %v5685
  %7397 = vmatmul.f32.gmra.mxu0 %v5510
  %v7398 = vpop.f32.mrf.mxu0
  %v7399 = vadd.f32 %v7379, %v7398
  %7400 = vdwg.mxu0
  %7401 = vmatpush.xpose.msra.mxu0 0.0
  %7402 = vmatpush.xpose.msra.mxu0 0.0
  %7403 = vmatpush.xpose.msra.mxu0 0.0
  %7404 = vmatpush.xpose.msra.mxu0 0.0
  %7405 = vmatpush.xpose.msra.mxu0 0.0
  %7406 = vmatpush.xpose.msra.mxu0 0.0
  %7407 = vmatpush.xpose.msra.mxu0 0.0
  %7408 = vmatpush.xpose.msra.mxu0 0.0
  %7409 = vmatpush.xpose.msra.mxu0 0.0
  %7410 = vmatpush.xpose.msra.mxu0 0.0
  %7411 = vmatpush.xpose.msra.mxu0 0.0
  %7412 = vmatpush.xpose.msra.mxu0 0.0
  %7413 = vmatpush.xpose.msra.mxu0 0.0
  %7414 = vmatpush.xpose.msra.mxu0 0.0
  %7415 = vmatpush.xpose.msra.mxu0 %v5700
  %7416 = vmatpush.xpose.msra.mxu0 %v5693
  %7417 = vmatmul.f32.gmra.mxu0 %v5511
  %v7418 = vpop.f32.mrf.mxu0
  %v7419 = vadd.f32 0.0, %v7418
  %7420 = vdwg.mxu0
  %7421 = vmatpush.xpose.msra.mxu0 0.0
  %7422 = vmatpush.xpose.msra.mxu0 0.0
  %7423 = vmatpush.xpose.msra.mxu0 0.0
  %7424 = vmatpush.xpose.msra.mxu0 0.0
  %7425 = vmatpush.xpose.msra.mxu0 0.0
  %7426 = vmatpush.xpose.msra.mxu0 0.0
  %7427 = vmatpush.xpose.msra.mxu0 0.0
  %7428 = vmatpush.xpose.msra.mxu0 0.0
  %7429 = vmatpush.xpose.msra.mxu0 0.0
  %7430 = vmatpush.xpose.msra.mxu0 0.0
  %7431 = vmatpush.xpose.msra.mxu0 0.0
  %7432 = vmatpush.xpose.msra.mxu0 0.0
  %7433 = vmatpush.xpose.msra.mxu0 0.0
  %7434 = vmatpush.xpose.msra.mxu0 0.0
  %7435 = vmatpush.xpose.msra.mxu0 %v5701
  %7436 = vmatpush.xpose.msra.mxu0 %v5694
  %7437 = vmatmul.f32.gmra.mxu0 %v5512
  %v7438 = vpop.f32.mrf.mxu0
  %v7439 = vadd.f32 %v7419, %v7438
  %7440 = vdwg.mxu0
  %7441 = vmatpush.xpose.msra.mxu0 0.0
  %7442 = vmatpush.xpose.msra.mxu0 0.0
  %7443 = vmatpush.xpose.msra.mxu0 0.0
  %7444 = vmatpush.xpose.msra.mxu0 0.0
  %7445 = vmatpush.xpose.msra.mxu0 0.0
  %7446 = vmatpush.xpose.msra.mxu0 0.0
  %7447 = vmatpush.xpose.msra.mxu0 0.0
  %7448 = vmatpush.xpose.msra.mxu0 0.0
  %7449 = vmatpush.xpose.msra.mxu0 0.0
  %7450 = vmatpush.xpose.msra.mxu0 0.0
  %7451 = vmatpush.xpose.msra.mxu0 0.0
  %7452 = vmatpush.xpose.msra.mxu0 0.0
  %7453 = vmatpush.xpose.msra.mxu0 0.0
  %7454 = vmatpush.xpose.msra.mxu0 0.0
  %7455 = vmatpush.xpose.msra.mxu0 %v5702
  %7456 = vmatpush.xpose.msra.mxu0 %v5695
  %7457 = vmatmul.f32.gmra.mxu0 %v5513
  %v7458 = vpop.f32.mrf.mxu0
  %v7459 = vadd.f32 %v7439, %v7458
  %7460 = vdwg.mxu0
  %7461 = vmatpush.xpose.msra.mxu0 0.0
  %7462 = vmatpush.xpose.msra.mxu0 0.0
  %7463 = vmatpush.xpose.msra.mxu0 0.0
  %7464 = vmatpush.xpose.msra.mxu0 0.0
  %7465 = vmatpush.xpose.msra.mxu0 0.0
  %7466 = vmatpush.xpose.msra.mxu0 0.0
  %7467 = vmatpush.xpose.msra.mxu0 0.0
  %7468 = vmatpush.xpose.msra.mxu0 0.0
  %7469 = vmatpush.xpose.msra.mxu0 0.0
  %7470 = vmatpush.xpose.msra.mxu0 0.0
  %7471 = vmatpush.xpose.msra.mxu0 0.0
  %7472 = vmatpush.xpose.msra.mxu0 0.0
  %7473 = vmatpush.xpose.msra.mxu0 0.0
  %7474 = vmatpush.xpose.msra.mxu0 0.0
  %7475 = vmatpush.xpose.msra.mxu0 %v5703
  %7476 = vmatpush.xpose.msra.mxu0 %v5696
  %7477 = vmatmul.f32.gmra.mxu0 %v5514
  %v7478 = vpop.f32.mrf.mxu0
  %v7479 = vadd.f32 %v7459, %v7478
  %7480 = vdwg.mxu0
  %7481 = vmatpush.xpose.msra.mxu0 0.0
  %7482 = vmatpush.xpose.msra.mxu0 0.0
  %7483 = vmatpush.xpose.msra.mxu0 0.0
  %7484 = vmatpush.xpose.msra.mxu0 0.0
  %7485 = vmatpush.xpose.msra.mxu0 0.0
  %7486 = vmatpush.xpose.msra.mxu0 0.0
  %7487 = vmatpush.xpose.msra.mxu0 0.0
  %7488 = vmatpush.xpose.msra.mxu0 0.0
  %7489 = vmatpush.xpose.msra.mxu0 0.0
  %7490 = vmatpush.xpose.msra.mxu0 0.0
  %7491 = vmatpush.xpose.msra.mxu0 0.0
  %7492 = vmatpush.xpose.msra.mxu0 0.0
  %7493 = vmatpush.xpose.msra.mxu0 0.0
  %7494 = vmatpush.xpose.msra.mxu0 0.0
  %7495 = vmatpush.xpose.msra.mxu0 %v5704
  %7496 = vmatpush.xpose.msra.mxu0 %v5697
  %7497 = vmatmul.f32.gmra.mxu0 %v5515
  %v7498 = vpop.f32.mrf.mxu0
  %v7499 = vadd.f32 %v7479, %v7498
  %7500 = vdwg.mxu0
  %7501 = vmatpush.xpose.msra.mxu0 0.0
  %7502 = vmatpush.xpose.msra.mxu0 0.0
  %7503 = vmatpush.xpose.msra.mxu0 0.0
  %7504 = vmatpush.xpose.msra.mxu0 0.0
  %7505 = vmatpush.xpose.msra.mxu0 0.0
  %7506 = vmatpush.xpose.msra.mxu0 0.0
  %7507 = vmatpush.xpose.msra.mxu0 0.0
  %7508 = vmatpush.xpose.msra.mxu0 0.0
  %7509 = vmatpush.xpose.msra.mxu0 0.0
  %7510 = vmatpush.xpose.msra.mxu0 0.0
  %7511 = vmatpush.xpose.msra.mxu0 0.0
  %7512 = vmatpush.xpose.msra.mxu0 0.0
  %7513 = vmatpush.xpose.msra.mxu0 0.0
  %7514 = vmatpush.xpose.msra.mxu0 0.0
  %7515 = vmatpush.xpose.msra.mxu0 %v5705
  %7516 = vmatpush.xpose.msra.mxu0 %v5698
  %7517 = vmatmul.f32.gmra.mxu0 %v5516
  %v7518 = vpop.f32.mrf.mxu0
  %v7519 = vadd.f32 %v7499, %v7518
  %7520 = vdwg.mxu0
  %7521 = vmatpush.xpose.msra.mxu0 0.0
  %7522 = vmatpush.xpose.msra.mxu0 0.0
  %7523 = vmatpush.xpose.msra.mxu0 0.0
  %7524 = vmatpush.xpose.msra.mxu0 0.0
  %7525 = vmatpush.xpose.msra.mxu0 0.0
  %7526 = vmatpush.xpose.msra.mxu0 0.0
  %7527 = vmatpush.xpose.msra.mxu0 0.0
  %7528 = vmatpush.xpose.msra.mxu0 0.0
  %7529 = vmatpush.xpose.msra.mxu0 0.0
  %7530 = vmatpush.xpose.msra.mxu0 0.0
  %7531 = vmatpush.xpose.msra.mxu0 0.0
  %7532 = vmatpush.xpose.msra.mxu0 0.0
  %7533 = vmatpush.xpose.msra.mxu0 0.0
  %7534 = vmatpush.xpose.msra.mxu0 0.0
  %7535 = vmatpush.xpose.msra.mxu0 %v5706
  %7536 = vmatpush.xpose.msra.mxu0 %v5699
  %7537 = vmatmul.f32.gmra.mxu0 %v5517
  %v7538 = vpop.f32.mrf.mxu0
  %v7539 = vadd.f32 %v7519, %v7538
  %7540 = vdwg.mxu0
  %7541 = vmatpush.xpose.msra.mxu0 0.0
  %7542 = vmatpush.xpose.msra.mxu0 0.0
  %7543 = vmatpush.xpose.msra.mxu0 0.0
  %7544 = vmatpush.xpose.msra.mxu0 0.0
  %7545 = vmatpush.xpose.msra.mxu0 0.0
  %7546 = vmatpush.xpose.msra.mxu0 0.0
  %7547 = vmatpush.xpose.msra.mxu0 0.0
  %7548 = vmatpush.xpose.msra.mxu0 0.0
  %7549 = vmatpush.xpose.msra.mxu0 0.0
  %7550 = vmatpush.xpose.msra.mxu0 0.0
  %7551 = vmatpush.xpose.msra.mxu0 0.0
  %7552 = vmatpush.xpose.msra.mxu0 0.0
  %7553 = vmatpush.xpose.msra.mxu0 0.0
  %7554 = vmatpush.xpose.msra.mxu0 0.0
  %7555 = vmatpush.xpose.msra.mxu0 %v5714
  %7556 = vmatpush.xpose.msra.mxu0 %v5707
  %7557 = vmatmul.f32.gmra.mxu0 %v5518
  %v7558 = vpop.f32.mrf.mxu0
  %v7559 = vadd.f32 0.0, %v7558
  %7560 = vdwg.mxu0
  %7561 = vmatpush.xpose.msra.mxu0 0.0
  %7562 = vmatpush.xpose.msra.mxu0 0.0
  %7563 = vmatpush.xpose.msra.mxu0 0.0
  %7564 = vmatpush.xpose.msra.mxu0 0.0
  %7565 = vmatpush.xpose.msra.mxu0 0.0
  %7566 = vmatpush.xpose.msra.mxu0 0.0
  %7567 = vmatpush.xpose.msra.mxu0 0.0
  %7568 = vmatpush.xpose.msra.mxu0 0.0
  %7569 = vmatpush.xpose.msra.mxu0 0.0
  %7570 = vmatpush.xpose.msra.mxu0 0.0
  %7571 = vmatpush.xpose.msra.mxu0 0.0
  %7572 = vmatpush.xpose.msra.mxu0 0.0
  %7573 = vmatpush.xpose.msra.mxu0 0.0
  %7574 = vmatpush.xpose.msra.mxu0 0.0
  %7575 = vmatpush.xpose.msra.mxu0 %v5715
  %7576 = vmatpush.xpose.msra.mxu0 %v5708
  %7577 = vmatmul.f32.gmra.mxu0 %v5519
  %v7578 = vpop.f32.mrf.mxu0
  %v7579 = vadd.f32 %v7559, %v7578
  %7580 = vdwg.mxu0
  %7581 = vmatpush.xpose.msra.mxu0 0.0
  %7582 = vmatpush.xpose.msra.mxu0 0.0
  %7583 = vmatpush.xpose.msra.mxu0 0.0
  %7584 = vmatpush.xpose.msra.mxu0 0.0
  %7585 = vmatpush.xpose.msra.mxu0 0.0
  %7586 = vmatpush.xpose.msra.mxu0 0.0
  %7587 = vmatpush.xpose.msra.mxu0 0.0
  %7588 = vmatpush.xpose.msra.mxu0 0.0
  %7589 = vmatpush.xpose.msra.mxu0 0.0
  %7590 = vmatpush.xpose.msra.mxu0 0.0
  %7591 = vmatpush.xpose.msra.mxu0 0.0
  %7592 = vmatpush.xpose.msra.mxu0 0.0
  %7593 = vmatpush.xpose.msra.mxu0 0.0
  %7594 = vmatpush.xpose.msra.mxu0 0.0
  %7595 = vmatpush.xpose.msra.mxu0 %v5716
  %7596 = vmatpush.xpose.msra.mxu0 %v5709
  %7597 = vmatmul.f32.gmra.mxu0 %v5520
  %v7598 = vpop.f32.mrf.mxu0
  %v7599 = vadd.f32 %v7579, %v7598
  %7600 = vdwg.mxu0
  %7601 = vmatpush.xpose.msra.mxu0 0.0
  %7602 = vmatpush.xpose.msra.mxu0 0.0
  %7603 = vmatpush.xpose.msra.mxu0 0.0
  %7604 = vmatpush.xpose.msra.mxu0 0.0
  %7605 = vmatpush.xpose.msra.mxu0 0.0
  %7606 = vmatpush.xpose.msra.mxu0 0.0
  %7607 = vmatpush.xpose.msra.mxu0 0.0
  %7608 = vmatpush.xpose.msra.mxu0 0.0
  %7609 = vmatpush.xpose.msra.mxu0 0.0
  %7610 = vmatpush.xpose.msra.mxu0 0.0
  %7611 = vmatpush.xpose.msra.mxu0 0.0
  %7612 = vmatpush.xpose.msra.mxu0 0.0
  %7613 = vmatpush.xpose.msra.mxu0 0.0
  %7614 = vmatpush.xpose.msra.mxu0 0.0
  %7615 = vmatpush.xpose.msra.mxu0 %v5717
  %7616 = vmatpush.xpose.msra.mxu0 %v5710
  %7617 = vmatmul.f32.gmra.mxu0 %v5521
  %v7618 = vpop.f32.mrf.mxu0
  %v7619 = vadd.f32 %v7599, %v7618
  %7620 = vdwg.mxu0
  %7621 = vmatpush.xpose.msra.mxu0 0.0
  %7622 = vmatpush.xpose.msra.mxu0 0.0
  %7623 = vmatpush.xpose.msra.mxu0 0.0
  %7624 = vmatpush.xpose.msra.mxu0 0.0
  %7625 = vmatpush.xpose.msra.mxu0 0.0
  %7626 = vmatpush.xpose.msra.mxu0 0.0
  %7627 = vmatpush.xpose.msra.mxu0 0.0
  %7628 = vmatpush.xpose.msra.mxu0 0.0
  %7629 = vmatpush.xpose.msra.mxu0 0.0
  %7630 = vmatpush.xpose.msra.mxu0 0.0
  %7631 = vmatpush.xpose.msra.mxu0 0.0
  %7632 = vmatpush.xpose.msra.mxu0 0.0
  %7633 = vmatpush.xpose.msra.mxu0 0.0
  %7634 = vmatpush.xpose.msra.mxu0 0.0
  %7635 = vmatpush.xpose.msra.mxu0 %v5718
  %7636 = vmatpush.xpose.msra.mxu0 %v5711
  %7637 = vmatmul.f32.gmra.mxu0 %v5522
  %v7638 = vpop.f32.mrf.mxu0
  %v7639 = vadd.f32 %v7619, %v7638
  %7640 = vdwg.mxu0
  %7641 = vmatpush.xpose.msra.mxu0 0.0
  %7642 = vmatpush.xpose.msra.mxu0 0.0
  %7643 = vmatpush.xpose.msra.mxu0 0.0
  %7644 = vmatpush.xpose.msra.mxu0 0.0
  %7645 = vmatpush.xpose.msra.mxu0 0.0
  %7646 = vmatpush.xpose.msra.mxu0 0.0
  %7647 = vmatpush.xpose.msra.mxu0 0.0
  %7648 = vmatpush.xpose.msra.mxu0 0.0
  %7649 = vmatpush.xpose.msra.mxu0 0.0
  %7650 = vmatpush.xpose.msra.mxu0 0.0
  %7651 = vmatpush.xpose.msra.mxu0 0.0
  %7652 = vmatpush.xpose.msra.mxu0 0.0
  %7653 = vmatpush.xpose.msra.mxu0 0.0
  %7654 = vmatpush.xpose.msra.mxu0 0.0
  %7655 = vmatpush.xpose.msra.mxu0 %v5719
  %7656 = vmatpush.xpose.msra.mxu0 %v5712
  %7657 = vmatmul.f32.gmra.mxu0 %v5523
  %v7658 = vpop.f32.mrf.mxu0
  %v7659 = vadd.f32 %v7639, %v7658
  %7660 = vdwg.mxu0
  %7661 = vmatpush.xpose.msra.mxu0 0.0
  %7662 = vmatpush.xpose.msra.mxu0 0.0
  %7663 = vmatpush.xpose.msra.mxu0 0.0
  %7664 = vmatpush.xpose.msra.mxu0 0.0
  %7665 = vmatpush.xpose.msra.mxu0 0.0
  %7666 = vmatpush.xpose.msra.mxu0 0.0
  %7667 = vmatpush.xpose.msra.mxu0 0.0
  %7668 = vmatpush.xpose.msra.mxu0 0.0
  %7669 = vmatpush.xpose.msra.mxu0 0.0
  %7670 = vmatpush.xpose.msra.mxu0 0.0
  %7671 = vmatpush.xpose.msra.mxu0 0.0
  %7672 = vmatpush.xpose.msra.mxu0 0.0
  %7673 = vmatpush.xpose.msra.mxu0 0.0
  %7674 = vmatpush.xpose.msra.mxu0 0.0
  %7675 = vmatpush.xpose.msra.mxu0 %v5720
  %7676 = vmatpush.xpose.msra.mxu0 %v5713
  %7677 = vmatmul.f32.gmra.mxu0 %v5524
  %v7678 = vpop.f32.mrf.mxu0
  %v7679 = vadd.f32 %v7659, %v7678
  %7680 = vdwg.mxu0
  %vm7681 = vcmask 80896
  %v7682 = vsel %vm7681, %v5859, 0.0
  %v7683 = vsel %vm7681, %v5999, 0.0
  %v7684 = vadd.f32 %v7682, %v7683
  %v7685 = vsel %vm7681, %v6139, 0.0
  %v7686 = vadd.f32 %v7684, %v7685
  %v7687 = vsel %vm7681, %v6279, 0.0
  %v7688 = vadd.f32 %v7686, %v7687
  %v7689 = vsel %vm7681, %v6419, 0.0
  %v7690 = vadd.f32 %v7688, %v7689
  %v7691 = vsel %vm7681, %v6559, 0.0
  %v7692 = vadd.f32 %v7690, %v7691
  %v7693 = vsel %vm7681, %v6699, 0.0
  %v7694 = vadd.f32 %v7692, %v7693
  %v7695 = vsel %vm7681, %v6839, 0.0
  %v7696 = vadd.f32 %v7694, %v7695
  %v7697 = vsel %vm7681, %v6979, 0.0
  %v7698 = vadd.f32 %v7696, %v7697
  %v7699 = vsel %vm7681, %v7119, 0.0
  %v7700 = vadd.f32 %v7698, %v7699
  %v7701 = vsel %vm7681, %v7259, 0.0
  %v7702 = vadd.f32 %v7700, %v7701
  %v7703 = vsel %vm7681, %v7399, 0.0
  %v7704 = vadd.f32 %v7702, %v7703
  %v7705 = vsel %vm7681, %v7539, 0.0
  %v7706 = vadd.f32 %v7704, %v7705
  %v7707 = vsel %vm7681, %v7679, 0.0
  %v7708 = vadd.f32 %v7706, %v7707
  %v7709 = vld [vmem:[%s4] sm:$0x1]
  %v7711 = vperm.slane %v7709, 0
  %v7713 = vadd.f32 %v7708, %v7711
  %7714 = vst.msk [vmem:[%s5] sm:$0xff] %vm7681, %v7713
  // Predicated region
  $region22: #{simple_convolutional_net.1} parent=0 // pred_check
    _
  $region23: #{simple_convolutional_net.1} parent=0 // pred_check_branch
    %7716 = sbr.rel (0) target = $region25
  $region24: #{simple_convolutional_net.1} parent=0 // pred_region
    _
  $region25: #{simple_convolutional_net.1} parent=0 // pred_fallthru
    _
  // Predicated region
  $region26: #{simple_convolutional_net.1} parent=0 // pred_check
    _
  $region27: #{simple_convolutional_net.1} parent=0 // pred_check_branch
    %7718 = sbr.rel (0) target = $region29
  $region28: #{simple_convolutional_net.1} parent=0 // pred_region
    _
  $region29: #{simple_convolutional_net.1} parent=0 // pred_fallthru
    _

</llo_original>
